<compile_context>
chip_gen: v5e
topology: v5e:2x2
jax: 0.10.0
libtpu: 0.0.40
codegen_flags: <defaults>
</compile_context>

<pallas_src>
import functools

import jax
import jax.numpy as jnp
import numpy as np
from jax.experimental import pallas as pl
from jax.experimental.pallas import tpu as pltpu


def _round_up(x, m):
  return (x + m - 1) // m * m


# Row-slab size for the in-kernel chunk loop (bounds live vregs as L grows).
_ROW_CHUNK = 8
# Target packed lane width per grid step (amortizes fixed per-step overhead).
_LANE_TARGET = 512


def _features_kernel(mask_ref, x_ref, w1_ref, b1_ref, w2_ref, b2_ref,
                     w3_ref, b3_ref, o_ref, h1_ref, h2_ref,
                     *, H, C_in, L):
  """One block of Bblk images per grid step, packed along the lane axis.

  mask_ref: (8, L) VMEM f32 -- 1.0 on real-pixel lanes, 0.0 on per-image halo
            columns / lane padding.  Grid-invariant (index_map -> (0, 0)).
  x_ref   : (1, C_in, H+2, L) VMEM -- per-image zero halo, images packed on
            the lane axis.
  w*_ref  : flat (Cout*Cin*9,) SMEM;  b*_ref: (Cout,) SMEM.
  o_ref   : (1, 3, H, L) VMEM -- lane-dense packed output (no row halo).
  h*_ref  : (3, H+9, L) VMEM scratch; rows [0,8) top pad (row 7 = conv halo),
            rows [8, 8+H) interior (sublane-aligned stores), row 8+H bottom
            halo.
  """
  TOP = 8  # first interior row of the scratch buffers

  # Re-zero only the halo rows the convs actually read.  Interiors are fully
  # rewritten and halo/pad lanes re-masked every step, so each grid step is
  # self-contained (safe for "parallel"/megacore sharding of the batch axis).
  zrow = jnp.zeros((1, L), jnp.float32)
  for ref in (h1_ref, h2_ref):
    for co in range(3):
      ref[co, TOP - 1:TOP, :] = zrow
      ref[co, TOP + H:TOP + H + 1, :] = zrow

  def conv3x3_relu(read_row, w_ref, b_ref, cin, write_out, apply_mask):
    """3x3 same-padding conv + bias + ReLU, chunked over <=8-row slabs."""
    r0 = 0
    while r0 < H:                       # static Python loop (unrolled)
      hc = min(_ROW_CHUNK, H - r0)
      accs = [jnp.full((hc, L), b_ref[co], jnp.float32) for co in range(3)]
      for ci in range(cin):
        for ky in range(3):
          row = read_row(ci, r0 + ky, hc)            # (hc, L)
          for kx in range(3):
            # Lane shifts on the XLU; wrap-around lanes only ever land on
            # halo/pad columns, which stay masked to zero.
            if kx == 0:
              tap = pltpu.roll(row, shift=1, axis=1)        # x - 1
            elif kx == 1:
              tap = row                                     # x
            else:
              tap = pltpu.roll(row, shift=L - 1, axis=1)    # x + 1
            for co in range(3):
              wk = w_ref[((co * cin + ci) * 3 + ky) * 3 + kx]  # SMEM scalar
              accs[co] = accs[co] + tap * wk
      m = mask_ref[0:hc, :] if apply_mask else None
      for co in range(3):
        val = jnp.maximum(accs[co], 0.0)
        if apply_mask:
          # Load-bearing: keeps halo/pad lanes zero so the next layer's lane
          # rolls cannot bleed between adjacent packed images.
          val = val * m
        write_out(co, r0, hc, val)
      r0 += _ROW_CHUNK

  def read_input(ci, r, hc):            # padded-input rows [r, r+hc)
    return x_ref[0, ci, r:r + hc, :]

  def read_scratch(href):
    def _read(ci, r, hc):               # padded row p lives at scratch TOP-1+p
      return href[ci, TOP - 1 + r:TOP - 1 + r + hc, :]
    return _read

  def write_scratch(href):
    def _write(co, r0, hc, val):        # sublane-aligned interior store
      href[co, TOP + r0:TOP + r0 + hc, :] = val
    return _write

  def write_output(co, r0, hc, val):
    o_ref[0, co, r0:r0 + hc, :] = val.astype(o_ref.dtype)

  conv3x3_relu(read_input, w1_ref, b1_ref, C_in, write_scratch(h1_ref), True)
  conv3x3_relu(read_scratch(h1_ref), w2_ref, b2_ref, 3,
               write_scratch(h2_ref), True)
  conv3x3_relu(read_scratch(h2_ref), w3_ref, b3_ref, 3, write_output, False)


def features_forward(x, params):
  """x: (N, C_in, H, W) float32; params: [(w, b)] * 3 with w in OIHW."""
  N, C_in, H, W = x.shape
  (w1, b1), (w2, b2), (w3, b3) = params

  WP = W + 2
  # Pack as many images as fit in ~_LANE_TARGET lanes per grid step (amortizes
  # the fixed per-step overhead), but keep >= 2 grid steps when blocks are
  # already reasonably wide so both v7x TensorCores get work.
  bblk = max(1, min(N, _LANE_TARGET // WP)) if WP <= _LANE_TARGET else 1
  nb = -(-N // bblk)
  if nb == 1 and N > 1 and bblk * WP > 256:
    bblk = -(-N // 2)
    nb = -(-N // bblk)
  L = _round_up(bblk * WP, 128)

  # Pack bblk images along the lane axis, each with its own zero halo, so the
  # kernel sees wide, lane-dense planes.
  xb = jnp.pad(x, ((0, nb * bblk - N), (0, 0), (1, 1), (1, 1)))
  xb = xb.reshape(nb, bblk, C_in, H + 2, WP)
  xb = xb.transpose(0, 2, 3, 1, 4).reshape(nb, C_in, H + 2, bblk * WP)
  xb = jnp.pad(xb, ((0, 0), (0, 0), (0, 0), (0, L - bblk * WP)))

  # Grid-invariant column mask (1.0 on real-pixel lanes), built once on host.
  lane = np.arange(L)
  keep = (lane < bblk * WP) & ((lane % WP) >= 1) & ((lane % WP) <= W)
  mask = jnp.asarray(np.broadcast_to(keep.astype(np.float32), (8, L)))

  kernel = functools.partial(_features_kernel, H=H, C_in=C_in, L=L)
  smem = pl.BlockSpec(memory_space=pltpu.MemorySpace.SMEM)

  # VMEM footprint at these caps (L <= 512): ~1 MiB total (double-buffered
  # input/output blocks + 2 scratch buffers), far below the v5e 16 MiB /
  # v7x 32 MiB scoped defaults, so no vmem_limit_bytes override is needed.
  out = pl.pallas_call(
      kernel,
      out_shape=jax.ShapeDtypeStruct((nb, 3, H, L), jnp.float32),
      grid_spec=pltpu.PrefetchScalarGridSpec(
          num_scalar_prefetch=0,
          grid=(nb,),
          in_specs=[
              pl.BlockSpec((8, L), lambda b: (0, 0)),                 # mask
              pl.BlockSpec((1, C_in, H + 2, L), lambda b: (b, 0, 0, 0)),
              smem, smem,   # w1, b1
              smem, smem,   # w2, b2
              smem, smem,   # w3, b3
          ],
          out_specs=pl.BlockSpec((1, 3, H, L), lambda b: (b, 0, 0, 0)),
          scratch_shapes=[
              pltpu.VMEM((3, H + 9, L), jnp.float32),
              pltpu.VMEM((3, H + 9, L), jnp.float32),
          ],
      ),
      compiler_params=pltpu.CompilerParams(
          dimension_semantics=("parallel",)),
  )(mask, xb, w1.reshape(-1), b1, w2.reshape(-1), b2, w3.reshape(-1), b3)

  # Unpack lanes back to NCHW, dropping per-image halo columns and batch pad.
  y = out[..., :bblk * WP].reshape(nb, 3, H, bblk, WP)
  y = y.transpose(0, 3, 1, 2, 4)[..., 1:W + 1]
  return y.reshape(nb * bblk, 3, H, W)[:N]


def ref_forward(x, params):
  """Pure-JAX reference (matches PyTorch NCHW Conv2d + ReLU semantics)."""
  for w, b in params:
    x = jax.lax.conv_general_dilated(
        x, w, window_strides=(1, 1), padding="SAME",
        dimension_numbers=("NCHW", "OIHW", "NCHW"))
    x = jnp.maximum(x + b[None, :, None, None], 0.0)
  return x


def init_params(key, c_in):
  """Deterministic synthetic weights, OIHW layout like nn.Conv2d."""
  sizes = [(3, c_in, 3, 3), (3, 3, 3, 3), (3, 3, 3, 3)]
  params = []
  for s in sizes:
    key, kw, kb = jax.random.split(key, 3)
    fan_in = s[1] * s[2] * s[3]
    bound = 1.0 / np.sqrt(fan_in)
    w = jax.random.uniform(kw, s, jnp.float32, -bound, bound)
    b = jax.random.uniform(kb, (s[0],), jnp.float32, -bound, bound)
    params.append((w, b))
  return params


if __name__ == "__main__":
  key = jax.random.PRNGKey(0)
  k_in, k_par = jax.random.split(key)

  N, C_in, H, W = 2, 4, 16, 16
  x = jax.random.normal(k_in, (N, C_in, H, W), jnp.float32)
  params = init_params(k_par, C_in)

  out = features_forward(x, params)
  out = jax.block_until_ready(out)

  expected = ref_forward(x, params)
  np.testing.assert_allclose(np.asarray(out), np.asarray(expected),
                             rtol=1e-5, atol=1e-5)
  print("KERNEL_OK")
</pallas_src>

<mosaic_0001>
module attributes {stable_mosaic.version = 11 : i64} {
  func.func @_features_kernel(%arg0: i32, %arg1: memref<8x128xf32, #tpu.memory_space<vmem>>, %arg2: memref<1x4x18x128xf32, #tpu.memory_space<vmem>>, %arg3: memref<108xf32, #tpu.memory_space<smem>>, %arg4: memref<3xf32, #tpu.memory_space<smem>>, %arg5: memref<81xf32, #tpu.memory_space<smem>>, %arg6: memref<3xf32, #tpu.memory_space<smem>>, %arg7: memref<81xf32, #tpu.memory_space<smem>>, %arg8: memref<3xf32, #tpu.memory_space<smem>>, %arg9: memref<1x3x16x128xf32, #tpu.memory_space<vmem>>, %arg10: memref<3x25x128xf32, #tpu.memory_space<vmem>>, %arg11: memref<3x25x128xf32, #tpu.memory_space<vmem>>) attributes {dimension_semantics = [#tpu.dimension_semantics<parallel>], iteration_bounds = array<i64: 1>, scalar_prefetch = 0 : i64, scratch_operands = 2 : i64, tpu.core_type = #tpu.core_type<tc>, window_params = [{pipeline_mode = #tpu.pipeline_mode<synchronous>, transform_indices = @transform_0, window_bounds = array<i64: 8, 128>}, {transform_indices = @transform_1, window_bounds = array<i64: 1, 4, 18, 128>}, {transform_indices = @transform_2, window_bounds = array<i64: 108>}, {transform_indices = @transform_3, window_bounds = array<i64: 3>}, {transform_indices = @transform_4, window_bounds = array<i64: 81>}, {transform_indices = @transform_5, window_bounds = array<i64: 3>}, {transform_indices = @transform_6, window_bounds = array<i64: 81>}, {transform_indices = @transform_7, window_bounds = array<i64: 3>}, {transform_indices = @transform_8, window_bounds = array<i64: 1, 3, 16, 128>}]} {
    %cst = arith.constant 0.000000e+00 : f32
    %0 = vector.broadcast %cst : f32 to vector<1x128xf32>
    %c0 = arith.constant 0 : index
    %c7 = arith.constant 7 : index
    %c0_0 = arith.constant 0 : index
    %1 = vector.load %arg10[%c0, %c7, %c0_0] : memref<3x25x128xf32, #tpu.memory_space<vmem>>, vector<1x1x128xf32>
    %2 = vector.shape_cast %1 : vector<1x1x128xf32> to vector<1x128xf32>
    %3 = vector.shape_cast %0 : vector<1x128xf32> to vector<1x1x128xf32>
    tpu.vector_store %arg10[%c0, %c7, %c0_0], %3 {strides = array<i32>} : memref<3x25x128xf32, #tpu.memory_space<vmem>>, vector<1x1x128xf32>,
    %c0_1 = arith.constant 0 : index
    %c24 = arith.constant 24 : index
    %c0_2 = arith.constant 0 : index
    %4 = vector.load %arg10[%c0_1, %c24, %c0_2] : memref<3x25x128xf32, #tpu.memory_space<vmem>>, vector<1x1x128xf32>
    %5 = vector.shape_cast %4 : vector<1x1x128xf32> to vector<1x128xf32>
    %6 = vector.shape_cast %0 : vector<1x128xf32> to vector<1x1x128xf32>
    tpu.vector_store %arg10[%c0_1, %c24, %c0_2], %6 {strides = array<i32>} : memref<3x25x128xf32, #tpu.memory_space<vmem>>, vector<1x1x128xf32>,
    %c1 = arith.constant 1 : index
    %c7_3 = arith.constant 7 : index
    %c0_4 = arith.constant 0 : index
    %7 = vector.load %arg10[%c1, %c7_3, %c0_4] : memref<3x25x128xf32, #tpu.memory_space<vmem>>, vector<1x1x128xf32>
    %8 = vector.shape_cast %7 : vector<1x1x128xf32> to vector<1x128xf32>
    %9 = vector.shape_cast %0 : vector<1x128xf32> to vector<1x1x128xf32>
    tpu.vector_store %arg10[%c1, %c7_3, %c0_4], %9 {strides = array<i32>} : memref<3x25x128xf32, #tpu.memory_space<vmem>>, vector<1x1x128xf32>,
    %c1_5 = arith.constant 1 : index
    %c24_6 = arith.constant 24 : index
    %c0_7 = arith.constant 0 : index
    %10 = vector.load %arg10[%c1_5, %c24_6, %c0_7] : memref<3x25x128xf32, #tpu.memory_space<vmem>>, vector<1x1x128xf32>
    %11 = vector.shape_cast %10 : vector<1x1x128xf32> to vector<1x128xf32>
    %12 = vector.shape_cast %0 : vector<1x128xf32> to vector<1x1x128xf32>
    tpu.vector_store %arg10[%c1_5, %c24_6, %c0_7], %12 {strides = array<i32>} : memref<3x25x128xf32, #tpu.memory_space<vmem>>, vector<1x1x128xf32>,
    %c2 = arith.constant 2 : index
    %c7_8 = arith.constant 7 : index
    %c0_9 = arith.constant 0 : index
    %13 = vector.load %arg10[%c2, %c7_8, %c0_9] : memref<3x25x128xf32, #tpu.memory_space<vmem>>, vector<1x1x128xf32>
    %14 = vector.shape_cast %13 : vector<1x1x128xf32> to vector<1x128xf32>
    %15 = vector.shape_cast %0 : vector<1x128xf32> to vector<1x1x128xf32>
    tpu.vector_store %arg10[%c2, %c7_8, %c0_9], %15 {strides = array<i32>} : memref<3x25x128xf32, #tpu.memory_space<vmem>>, vector<1x1x128xf32>,
    %c2_10 = arith.constant 2 : index
    %c24_11 = arith.constant 24 : index
    %c0_12 = arith.constant 0 : index
    %16 = vector.load %arg10[%c2_10, %c24_11, %c0_12] : memref<3x25x128xf32, #tpu.memory_space<vmem>>, vector<1x1x128xf32>
    %17 = vector.shape_cast %16 : vector<1x1x128xf32> to vector<1x128xf32>
    %18 = vector.shape_cast %0 : vector<1x128xf32> to vector<1x1x128xf32>
    tpu.vector_store %arg10[%c2_10, %c24_11, %c0_12], %18 {strides = array<i32>} : memref<3x25x128xf32, #tpu.memory_space<vmem>>, vector<1x1x128xf32>,
    %c0_13 = arith.constant 0 : index
    %c7_14 = arith.constant 7 : index
    %c0_15 = arith.constant 0 : index
    %19 = vector.load %arg11[%c0_13, %c7_14, %c0_15] : memref<3x25x128xf32, #tpu.memory_space<vmem>>, vector<1x1x128xf32>
    %20 = vector.shape_cast %19 : vector<1x1x128xf32> to vector<1x128xf32>
    %21 = vector.shape_cast %0 : vector<1x128xf32> to vector<1x1x128xf32>
    tpu.vector_store %arg11[%c0_13, %c7_14, %c0_15], %21 {strides = array<i32>} : memref<3x25x128xf32, #tpu.memory_space<vmem>>, vector<1x1x128xf32>,
    %c0_16 = arith.constant 0 : index
    %c24_17 = arith.constant 24 : index
    %c0_18 = arith.constant 0 : index
    %22 = vector.load %arg11[%c0_16, %c24_17, %c0_18] : memref<3x25x128xf32, #tpu.memory_space<vmem>>, vector<1x1x128xf32>
    %23 = vector.shape_cast %22 : vector<1x1x128xf32> to vector<1x128xf32>
    %24 = vector.shape_cast %0 : vector<1x128xf32> to vector<1x1x128xf32>
    tpu.vector_store %arg11[%c0_16, %c24_17, %c0_18], %24 {strides = array<i32>} : memref<3x25x128xf32, #tpu.memory_space<vmem>>, vector<1x1x128xf32>,
    %c1_19 = arith.constant 1 : index
    %c7_20 = arith.constant 7 : index
    %c0_21 = arith.constant 0 : index
    %25 = vector.load %arg11[%c1_19, %c7_20, %c0_21] : memref<3x25x128xf32, #tpu.memory_space<vmem>>, vector<1x1x128xf32>
    %26 = vector.shape_cast %25 : vector<1x1x128xf32> to vector<1x128xf32>
    %27 = vector.shape_cast %0 : vector<1x128xf32> to vector<1x1x128xf32>
    tpu.vector_store %arg11[%c1_19, %c7_20, %c0_21], %27 {strides = array<i32>} : memref<3x25x128xf32, #tpu.memory_space<vmem>>, vector<1x1x128xf32>,
    %c1_22 = arith.constant 1 : index
    %c24_23 = arith.constant 24 : index
    %c0_24 = arith.constant 0 : index
    %28 = vector.load %arg11[%c1_22, %c24_23, %c0_24] : memref<3x25x128xf32, #tpu.memory_space<vmem>>, vector<1x1x128xf32>
    %29 = vector.shape_cast %28 : vector<1x1x128xf32> to vector<1x128xf32>
    %30 = vector.shape_cast %0 : vector<1x128xf32> to vector<1x1x128xf32>
    tpu.vector_store %arg11[%c1_22, %c24_23, %c0_24], %30 {strides = array<i32>} : memref<3x25x128xf32, #tpu.memory_space<vmem>>, vector<1x1x128xf32>,
    %c2_25 = arith.constant 2 : index
    %c7_26 = arith.constant 7 : index
    %c0_27 = arith.constant 0 : index
    %31 = vector.load %arg11[%c2_25, %c7_26, %c0_27] : memref<3x25x128xf32, #tpu.memory_space<vmem>>, vector<1x1x128xf32>
    %32 = vector.shape_cast %31 : vector<1x1x128xf32> to vector<1x128xf32>
    %33 = vector.shape_cast %0 : vector<1x128xf32> to vector<1x1x128xf32>
    tpu.vector_store %arg11[%c2_25, %c7_26, %c0_27], %33 {strides = array<i32>} : memref<3x25x128xf32, #tpu.memory_space<vmem>>, vector<1x1x128xf32>,
    %c2_28 = arith.constant 2 : index
    %c24_29 = arith.constant 24 : index
    %c0_30 = arith.constant 0 : index
    %34 = vector.load %arg11[%c2_28, %c24_29, %c0_30] : memref<3x25x128xf32, #tpu.memory_space<vmem>>, vector<1x1x128xf32>
    %35 = vector.shape_cast %34 : vector<1x1x128xf32> to vector<1x128xf32>
    %36 = vector.shape_cast %0 : vector<1x128xf32> to vector<1x1x128xf32>
    tpu.vector_store %arg11[%c2_28, %c24_29, %c0_30], %36 {strides = array<i32>} : memref<3x25x128xf32, #tpu.memory_space<vmem>>, vector<1x1x128xf32>,
    %c0_31 = arith.constant 0 : index
    %37 = memref.load %arg4[%c0_31] : memref<3xf32, #tpu.memory_space<smem>>
    %38 = vector.broadcast %37 : f32 to vector<8x128xf32>
    %c1_32 = arith.constant 1 : index
    %39 = memref.load %arg4[%c1_32] : memref<3xf32, #tpu.memory_space<smem>>
    %40 = vector.broadcast %39 : f32 to vector<8x128xf32>
    %c2_33 = arith.constant 2 : index
    %41 = memref.load %arg4[%c2_33] : memref<3xf32, #tpu.memory_space<smem>>
    %42 = vector.broadcast %41 : f32 to vector<8x128xf32>
    %c0_34 = arith.constant 0 : index
    %c0_35 = arith.constant 0 : index
    %c0_36 = arith.constant 0 : index
    %c0_37 = arith.constant 0 : index
    %43 = vector.load %arg2[%c0_34, %c0_35, %c0_36, %c0_37] : memref<1x4x18x128xf32, #tpu.memory_space<vmem>>, vector<1x1x8x128xf32>
    %44 = vector.shape_cast %43 : vector<1x1x8x128xf32> to vector<8x128xf32>
    %c1_i32 = arith.constant 1 : i32
    %45 = tpu.dynamic_rotate %44 by %c1_i32 dim 1 : vector<8x128xf32>, i32 -> vector<8x128xf32>
    %c0_38 = arith.constant 0 : index
    %46 = memref.load %arg3[%c0_38] : memref<108xf32, #tpu.memory_space<smem>>
    %47 = vector.broadcast %46 : f32 to vector<8x128xf32>
    %48 = arith.mulf %45, %47 : vector<8x128xf32>
    %49 = arith.addf %38, %48 : vector<8x128xf32>
    %c36 = arith.constant 36 : index
    %50 = memref.load %arg3[%c36] : memref<108xf32, #tpu.memory_space<smem>>
    %51 = vector.broadcast %50 : f32 to vector<8x128xf32>
    %52 = arith.mulf %45, %51 : vector<8x128xf32>
    %53 = arith.addf %40, %52 : vector<8x128xf32>
    %c72 = arith.constant 72 : index
    %54 = memref.load %arg3[%c72] : memref<108xf32, #tpu.memory_space<smem>>
    %55 = vector.broadcast %54 : f32 to vector<8x128xf32>
    %56 = arith.mulf %45, %55 : vector<8x128xf32>
    %57 = arith.addf %42, %56 : vector<8x128xf32>
    %c1_39 = arith.constant 1 : index
    %58 = memref.load %arg3[%c1_39] : memref<108xf32, #tpu.memory_space<smem>>
    %59 = vector.broadcast %58 : f32 to vector<8x128xf32>
    %60 = arith.mulf %44, %59 : vector<8x128xf32>
    %61 = arith.addf %49, %60 : vector<8x128xf32>
    %c37 = arith.constant 37 : index
    %62 = memref.load %arg3[%c37] : memref<108xf32, #tpu.memory_space<smem>>
    %63 = vector.broadcast %62 : f32 to vector<8x128xf32>
    %64 = arith.mulf %44, %63 : vector<8x128xf32>
    %65 = arith.addf %53, %64 : vector<8x128xf32>
    %c73 = arith.constant 73 : index
    %66 = memref.load %arg3[%c73] : memref<108xf32, #tpu.memory_space<smem>>
    %67 = vector.broadcast %66 : f32 to vector<8x128xf32>
    %68 = arith.mulf %44, %67 : vector<8x128xf32>
    %69 = arith.addf %57, %68 : vector<8x128xf32>
    %c127_i32 = arith.constant 127 : i32
    %70 = tpu.dynamic_rotate %44 by %c127_i32 dim 1 : vector<8x128xf32>, i32 -> vector<8x128xf32>
    %c2_40 = arith.constant 2 : index
    %71 = memref.load %arg3[%c2_40] : memref<108xf32, #tpu.memory_space<smem>>
    %72 = vector.broadcast %71 : f32 to vector<8x128xf32>
    %73 = arith.mulf %70, %72 : vector<8x128xf32>
    %74 = arith.addf %61, %73 : vector<8x128xf32>
    %c38 = arith.constant 38 : index
    %75 = memref.load %arg3[%c38] : memref<108xf32, #tpu.memory_space<smem>>
    %76 = vector.broadcast %75 : f32 to vector<8x128xf32>
    %77 = arith.mulf %70, %76 : vector<8x128xf32>
    %78 = arith.addf %65, %77 : vector<8x128xf32>
    %c74 = arith.constant 74 : index
    %79 = memref.load %arg3[%c74] : memref<108xf32, #tpu.memory_space<smem>>
    %80 = vector.broadcast %79 : f32 to vector<8x128xf32>
    %81 = arith.mulf %70, %80 : vector<8x128xf32>
    %82 = arith.addf %69, %81 : vector<8x128xf32>
    %c0_41 = arith.constant 0 : index
    %c0_42 = arith.constant 0 : index
    %c1_43 = arith.constant 1 : index
    %c0_44 = arith.constant 0 : index
    %83 = vector.load %arg2[%c0_41, %c0_42, %c1_43, %c0_44] : memref<1x4x18x128xf32, #tpu.memory_space<vmem>>, vector<1x1x8x128xf32>
    %84 = vector.shape_cast %83 : vector<1x1x8x128xf32> to vector<8x128xf32>
    %c1_i32_45 = arith.constant 1 : i32
    %85 = tpu.dynamic_rotate %84 by %c1_i32_45 dim 1 : vector<8x128xf32>, i32 -> vector<8x128xf32>
    %c3 = arith.constant 3 : index
    %86 = memref.load %arg3[%c3] : memref<108xf32, #tpu.memory_space<smem>>
    %87 = vector.broadcast %86 : f32 to vector<8x128xf32>
    %88 = arith.mulf %85, %87 : vector<8x128xf32>
    %89 = arith.addf %74, %88 : vector<8x128xf32>
    %c39 = arith.constant 39 : index
    %90 = memref.load %arg3[%c39] : memref<108xf32, #tpu.memory_space<smem>>
    %91 = vector.broadcast %90 : f32 to vector<8x128xf32>
    %92 = arith.mulf %85, %91 : vector<8x128xf32>
    %93 = arith.addf %78, %92 : vector<8x128xf32>
    %c75 = arith.constant 75 : index
    %94 = memref.load %arg3[%c75] : memref<108xf32, #tpu.memory_space<smem>>
    %95 = vector.broadcast %94 : f32 to vector<8x128xf32>
    %96 = arith.mulf %85, %95 : vector<8x128xf32>
    %97 = arith.addf %82, %96 : vector<8x128xf32>
    %c4 = arith.constant 4 : index
    %98 = memref.load %arg3[%c4] : memref<108xf32, #tpu.memory_space<smem>>
    %99 = vector.broadcast %98 : f32 to vector<8x128xf32>
    %100 = arith.mulf %84, %99 : vector<8x128xf32>
    %101 = arith.addf %89, %100 : vector<8x128xf32>
    %c40 = arith.constant 40 : index
    %102 = memref.load %arg3[%c40] : memref<108xf32, #tpu.memory_space<smem>>
    %103 = vector.broadcast %102 : f32 to vector<8x128xf32>
    %104 = arith.mulf %84, %103 : vector<8x128xf32>
    %105 = arith.addf %93, %104 : vector<8x128xf32>
    %c76 = arith.constant 76 : index
    %106 = memref.load %arg3[%c76] : memref<108xf32, #tpu.memory_space<smem>>
    %107 = vector.broadcast %106 : f32 to vector<8x128xf32>
    %108 = arith.mulf %84, %107 : vector<8x128xf32>
    %109 = arith.addf %97, %108 : vector<8x128xf32>
    %c127_i32_46 = arith.constant 127 : i32
    %110 = tpu.dynamic_rotate %84 by %c127_i32_46 dim 1 : vector<8x128xf32>, i32 -> vector<8x128xf32>
    %c5 = arith.constant 5 : index
    %111 = memref.load %arg3[%c5] : memref<108xf32, #tpu.memory_space<smem>>
    %112 = vector.broadcast %111 : f32 to vector<8x128xf32>
    %113 = arith.mulf %110, %112 : vector<8x128xf32>
    %114 = arith.addf %101, %113 : vector<8x128xf32>
    %c41 = arith.constant 41 : index
    %115 = memref.load %arg3[%c41] : memref<108xf32, #tpu.memory_space<smem>>
    %116 = vector.broadcast %115 : f32 to vector<8x128xf32>
    %117 = arith.mulf %110, %116 : vector<8x128xf32>
    %118 = arith.addf %105, %117 : vector<8x128xf32>
    %c77 = arith.constant 77 : index
    %119 = memref.load %arg3[%c77] : memref<108xf32, #tpu.memory_space<smem>>
    %120 = vector.broadcast %119 : f32 to vector<8x128xf32>
    %121 = arith.mulf %110, %120 : vector<8x128xf32>
    %122 = arith.addf %109, %121 : vector<8x128xf32>
    %c0_47 = arith.constant 0 : index
    %c0_48 = arith.constant 0 : index
    %c2_49 = arith.constant 2 : index
    %c0_50 = arith.constant 0 : index
    %123 = vector.load %arg2[%c0_47, %c0_48, %c2_49, %c0_50] : memref<1x4x18x128xf32, #tpu.memory_space<vmem>>, vector<1x1x8x128xf32>
    %124 = vector.shape_cast %123 : vector<1x1x8x128xf32> to vector<8x128xf32>
    %c1_i32_51 = arith.constant 1 : i32
    %125 = tpu.dynamic_rotate %124 by %c1_i32_51 dim 1 : vector<8x128xf32>, i32 -> vector<8x128xf32>
    %c6 = arith.constant 6 : index
    %126 = memref.load %arg3[%c6] : memref<108xf32, #tpu.memory_space<smem>>
    %127 = vector.broadcast %126 : f32 to vector<8x128xf32>
    %128 = arith.mulf %125, %127 : vector<8x128xf32>
    %129 = arith.addf %114, %128 : vector<8x128xf32>
    %c42 = arith.constant 42 : index
    %130 = memref.load %arg3[%c42] : memref<108xf32, #tpu.memory_space<smem>>
    %131 = vector.broadcast %130 : f32 to vector<8x128xf32>
    %132 = arith.mulf %125, %131 : vector<8x128xf32>
    %133 = arith.addf %118, %132 : vector<8x128xf32>
    %c78 = arith.constant 78 : index
    %134 = memref.load %arg3[%c78] : memref<108xf32, #tpu.memory_space<smem>>
    %135 = vector.broadcast %134 : f32 to vector<8x128xf32>
    %136 = arith.mulf %125, %135 : vector<8x128xf32>
    %137 = arith.addf %122, %136 : vector<8x128xf32>
    %c7_52 = arith.constant 7 : index
    %138 = memref.load %arg3[%c7_52] : memref<108xf32, #tpu.memory_space<smem>>
    %139 = vector.broadcast %138 : f32 to vector<8x128xf32>
    %140 = arith.mulf %124, %139 : vector<8x128xf32>
    %141 = arith.addf %129, %140 : vector<8x128xf32>
    %c43 = arith.constant 43 : index
    %142 = memref.load %arg3[%c43] : memref<108xf32, #tpu.memory_space<smem>>
    %143 = vector.broadcast %142 : f32 to vector<8x128xf32>
    %144 = arith.mulf %124, %143 : vector<8x128xf32>
    %145 = arith.addf %133, %144 : vector<8x128xf32>
    %c79 = arith.constant 79 : index
    %146 = memref.load %arg3[%c79] : memref<108xf32, #tpu.memory_space<smem>>
    %147 = vector.broadcast %146 : f32 to vector<8x128xf32>
    %148 = arith.mulf %124, %147 : vector<8x128xf32>
    %149 = arith.addf %137, %148 : vector<8x128xf32>
    %c127_i32_53 = arith.constant 127 : i32
    %150 = tpu.dynamic_rotate %124 by %c127_i32_53 dim 1 : vector<8x128xf32>, i32 -> vector<8x128xf32>
    %c8 = arith.constant 8 : index
    %151 = memref.load %arg3[%c8] : memref<108xf32, #tpu.memory_space<smem>>
    %152 = vector.broadcast %151 : f32 to vector<8x128xf32>
    %153 = arith.mulf %150, %152 : vector<8x128xf32>
    %154 = arith.addf %141, %153 : vector<8x128xf32>
    %c44 = arith.constant 44 : index
    %155 = memref.load %arg3[%c44] : memref<108xf32, #tpu.memory_space<smem>>
    %156 = vector.broadcast %155 : f32 to vector<8x128xf32>
    %157 = arith.mulf %150, %156 : vector<8x128xf32>
    %158 = arith.addf %145, %157 : vector<8x128xf32>
    %c80 = arith.constant 80 : index
    %159 = memref.load %arg3[%c80] : memref<108xf32, #tpu.memory_space<smem>>
    %160 = vector.broadcast %159 : f32 to vector<8x128xf32>
    %161 = arith.mulf %150, %160 : vector<8x128xf32>
    %162 = arith.addf %149, %161 : vector<8x128xf32>
    %c0_54 = arith.constant 0 : index
    %c1_55 = arith.constant 1 : index
    %c0_56 = arith.constant 0 : index
    %c0_57 = arith.constant 0 : index
    %163 = vector.load %arg2[%c0_54, %c1_55, %c0_56, %c0_57] : memref<1x4x18x128xf32, #tpu.memory_space<vmem>>, vector<1x1x8x128xf32>
    %164 = vector.shape_cast %163 : vector<1x1x8x128xf32> to vector<8x128xf32>
    %c1_i32_58 = arith.constant 1 : i32
    %165 = tpu.dynamic_rotate %164 by %c1_i32_58 dim 1 : vector<8x128xf32>, i32 -> vector<8x128xf32>
    %c9 = arith.constant 9 : index
    %166 = memref.load %arg3[%c9] : memref<108xf32, #tpu.memory_space<smem>>
    %167 = vector.broadcast %166 : f32 to vector<8x128xf32>
    %168 = arith.mulf %165, %167 : vector<8x128xf32>
    %169 = arith.addf %154, %168 : vector<8x128xf32>
    %c45 = arith.constant 45 : index
    %170 = memref.load %arg3[%c45] : memref<108xf32, #tpu.memory_space<smem>>
    %171 = vector.broadcast %170 : f32 to vector<8x128xf32>
    %172 = arith.mulf %165, %171 : vector<8x128xf32>
    %173 = arith.addf %158, %172 : vector<8x128xf32>
    %c81 = arith.constant 81 : index
    %174 = memref.load %arg3[%c81] : memref<108xf32, #tpu.memory_space<smem>>
    %175 = vector.broadcast %174 : f32 to vector<8x128xf32>
    %176 = arith.mulf %165, %175 : vector<8x128xf32>
    %177 = arith.addf %162, %176 : vector<8x128xf32>
    %c10 = arith.constant 10 : index
    %178 = memref.load %arg3[%c10] : memref<108xf32, #tpu.memory_space<smem>>
    %179 = vector.broadcast %178 : f32 to vector<8x128xf32>
    %180 = arith.mulf %164, %179 : vector<8x128xf32>
    %181 = arith.addf %169, %180 : vector<8x128xf32>
    %c46 = arith.constant 46 : index
    %182 = memref.load %arg3[%c46] : memref<108xf32, #tpu.memory_space<smem>>
    %183 = vector.broadcast %182 : f32 to vector<8x128xf32>
    %184 = arith.mulf %164, %183 : vector<8x128xf32>
    %185 = arith.addf %173, %184 : vector<8x128xf32>
    %c82 = arith.constant 82 : index
    %186 = memref.load %arg3[%c82] : memref<108xf32, #tpu.memory_space<smem>>
    %187 = vector.broadcast %186 : f32 to vector<8x128xf32>
    %188 = arith.mulf %164, %187 : vector<8x128xf32>
    %189 = arith.addf %177, %188 : vector<8x128xf32>
    %c127_i32_59 = arith.constant 127 : i32
    %190 = tpu.dynamic_rotate %164 by %c127_i32_59 dim 1 : vector<8x128xf32>, i32 -> vector<8x128xf32>
    %c11 = arith.constant 11 : index
    %191 = memref.load %arg3[%c11] : memref<108xf32, #tpu.memory_space<smem>>
    %192 = vector.broadcast %191 : f32 to vector<8x128xf32>
    %193 = arith.mulf %190, %192 : vector<8x128xf32>
    %194 = arith.addf %181, %193 : vector<8x128xf32>
    %c47 = arith.constant 47 : index
    %195 = memref.load %arg3[%c47] : memref<108xf32, #tpu.memory_space<smem>>
    %196 = vector.broadcast %195 : f32 to vector<8x128xf32>
    %197 = arith.mulf %190, %196 : vector<8x128xf32>
    %198 = arith.addf %185, %197 : vector<8x128xf32>
    %c83 = arith.constant 83 : index
    %199 = memref.load %arg3[%c83] : memref<108xf32, #tpu.memory_space<smem>>
    %200 = vector.broadcast %199 : f32 to vector<8x128xf32>
    %201 = arith.mulf %190, %200 : vector<8x128xf32>
    %202 = arith.addf %189, %201 : vector<8x128xf32>
    %c0_60 = arith.constant 0 : index
    %c1_61 = arith.constant 1 : index
    %c1_62 = arith.constant 1 : index
    %c0_63 = arith.constant 0 : index
    %203 = vector.load %arg2[%c0_60, %c1_61, %c1_62, %c0_63] : memref<1x4x18x128xf32, #tpu.memory_space<vmem>>, vector<1x1x8x128xf32>
    %204 = vector.shape_cast %203 : vector<1x1x8x128xf32> to vector<8x128xf32>
    %c1_i32_64 = arith.constant 1 : i32
    %205 = tpu.dynamic_rotate %204 by %c1_i32_64 dim 1 : vector<8x128xf32>, i32 -> vector<8x128xf32>
    %c12 = arith.constant 12 : index
    %206 = memref.load %arg3[%c12] : memref<108xf32, #tpu.memory_space<smem>>
    %207 = vector.broadcast %206 : f32 to vector<8x128xf32>
    %208 = arith.mulf %205, %207 : vector<8x128xf32>
    %209 = arith.addf %194, %208 : vector<8x128xf32>
    %c48 = arith.constant 48 : index
    %210 = memref.load %arg3[%c48] : memref<108xf32, #tpu.memory_space<smem>>
    %211 = vector.broadcast %210 : f32 to vector<8x128xf32>
    %212 = arith.mulf %205, %211 : vector<8x128xf32>
    %213 = arith.addf %198, %212 : vector<8x128xf32>
    %c84 = arith.constant 84 : index
    %214 = memref.load %arg3[%c84] : memref<108xf32, #tpu.memory_space<smem>>
    %215 = vector.broadcast %214 : f32 to vector<8x128xf32>
    %216 = arith.mulf %205, %215 : vector<8x128xf32>
    %217 = arith.addf %202, %216 : vector<8x128xf32>
    %c13 = arith.constant 13 : index
    %218 = memref.load %arg3[%c13] : memref<108xf32, #tpu.memory_space<smem>>
    %219 = vector.broadcast %218 : f32 to vector<8x128xf32>
    %220 = arith.mulf %204, %219 : vector<8x128xf32>
    %221 = arith.addf %209, %220 : vector<8x128xf32>
    %c49 = arith.constant 49 : index
    %222 = memref.load %arg3[%c49] : memref<108xf32, #tpu.memory_space<smem>>
    %223 = vector.broadcast %222 : f32 to vector<8x128xf32>
    %224 = arith.mulf %204, %223 : vector<8x128xf32>
    %225 = arith.addf %213, %224 : vector<8x128xf32>
    %c85 = arith.constant 85 : index
    %226 = memref.load %arg3[%c85] : memref<108xf32, #tpu.memory_space<smem>>
    %227 = vector.broadcast %226 : f32 to vector<8x128xf32>
    %228 = arith.mulf %204, %227 : vector<8x128xf32>
    %229 = arith.addf %217, %228 : vector<8x128xf32>
    %c127_i32_65 = arith.constant 127 : i32
    %230 = tpu.dynamic_rotate %204 by %c127_i32_65 dim 1 : vector<8x128xf32>, i32 -> vector<8x128xf32>
    %c14 = arith.constant 14 : index
    %231 = memref.load %arg3[%c14] : memref<108xf32, #tpu.memory_space<smem>>
    %232 = vector.broadcast %231 : f32 to vector<8x128xf32>
    %233 = arith.mulf %230, %232 : vector<8x128xf32>
    %234 = arith.addf %221, %233 : vector<8x128xf32>
    %c50 = arith.constant 50 : index
    %235 = memref.load %arg3[%c50] : memref<108xf32, #tpu.memory_space<smem>>
    %236 = vector.broadcast %235 : f32 to vector<8x128xf32>
    %237 = arith.mulf %230, %236 : vector<8x128xf32>
    %238 = arith.addf %225, %237 : vector<8x128xf32>
    %c86 = arith.constant 86 : index
    %239 = memref.load %arg3[%c86] : memref<108xf32, #tpu.memory_space<smem>>
    %240 = vector.broadcast %239 : f32 to vector<8x128xf32>
    %241 = arith.mulf %230, %240 : vector<8x128xf32>
    %242 = arith.addf %229, %241 : vector<8x128xf32>
    %c0_66 = arith.constant 0 : index
    %c1_67 = arith.constant 1 : index
    %c2_68 = arith.constant 2 : index
    %c0_69 = arith.constant 0 : index
    %243 = vector.load %arg2[%c0_66, %c1_67, %c2_68, %c0_69] : memref<1x4x18x128xf32, #tpu.memory_space<vmem>>, vector<1x1x8x128xf32>
    %244 = vector.shape_cast %243 : vector<1x1x8x128xf32> to vector<8x128xf32>
    %c1_i32_70 = arith.constant 1 : i32
    %245 = tpu.dynamic_rotate %244 by %c1_i32_70 dim 1 : vector<8x128xf32>, i32 -> vector<8x128xf32>
    %c15 = arith.constant 15 : index
    %246 = memref.load %arg3[%c15] : memref<108xf32, #tpu.memory_space<smem>>
    %247 = vector.broadcast %246 : f32 to vector<8x128xf32>
    %248 = arith.mulf %245, %247 : vector<8x128xf32>
    %249 = arith.addf %234, %248 : vector<8x128xf32>
    %c51 = arith.constant 51 : index
    %250 = memref.load %arg3[%c51] : memref<108xf32, #tpu.memory_space<smem>>
    %251 = vector.broadcast %250 : f32 to vector<8x128xf32>
    %252 = arith.mulf %245, %251 : vector<8x128xf32>
    %253 = arith.addf %238, %252 : vector<8x128xf32>
    %c87 = arith.constant 87 : index
    %254 = memref.load %arg3[%c87] : memref<108xf32, #tpu.memory_space<smem>>
    %255 = vector.broadcast %254 : f32 to vector<8x128xf32>
    %256 = arith.mulf %245, %255 : vector<8x128xf32>
    %257 = arith.addf %242, %256 : vector<8x128xf32>
    %c16 = arith.constant 16 : index
    %258 = memref.load %arg3[%c16] : memref<108xf32, #tpu.memory_space<smem>>
    %259 = vector.broadcast %258 : f32 to vector<8x128xf32>
    %260 = arith.mulf %244, %259 : vector<8x128xf32>
    %261 = arith.addf %249, %260 : vector<8x128xf32>
    %c52 = arith.constant 52 : index
    %262 = memref.load %arg3[%c52] : memref<108xf32, #tpu.memory_space<smem>>
    %263 = vector.broadcast %262 : f32 to vector<8x128xf32>
    %264 = arith.mulf %244, %263 : vector<8x128xf32>
    %265 = arith.addf %253, %264 : vector<8x128xf32>
    %c88 = arith.constant 88 : index
    %266 = memref.load %arg3[%c88] : memref<108xf32, #tpu.memory_space<smem>>
    %267 = vector.broadcast %266 : f32 to vector<8x128xf32>
    %268 = arith.mulf %244, %267 : vector<8x128xf32>
    %269 = arith.addf %257, %268 : vector<8x128xf32>
    %c127_i32_71 = arith.constant 127 : i32
    %270 = tpu.dynamic_rotate %244 by %c127_i32_71 dim 1 : vector<8x128xf32>, i32 -> vector<8x128xf32>
    %c17 = arith.constant 17 : index
    %271 = memref.load %arg3[%c17] : memref<108xf32, #tpu.memory_space<smem>>
    %272 = vector.broadcast %271 : f32 to vector<8x128xf32>
    %273 = arith.mulf %270, %272 : vector<8x128xf32>
    %274 = arith.addf %261, %273 : vector<8x128xf32>
    %c53 = arith.constant 53 : index
    %275 = memref.load %arg3[%c53] : memref<108xf32, #tpu.memory_space<smem>>
    %276 = vector.broadcast %275 : f32 to vector<8x128xf32>
    %277 = arith.mulf %270, %276 : vector<8x128xf32>
    %278 = arith.addf %265, %277 : vector<8x128xf32>
    %c89 = arith.constant 89 : index
    %279 = memref.load %arg3[%c89] : memref<108xf32, #tpu.memory_space<smem>>
    %280 = vector.broadcast %279 : f32 to vector<8x128xf32>
    %281 = arith.mulf %270, %280 : vector<8x128xf32>
    %282 = arith.addf %269, %281 : vector<8x128xf32>
    %c0_72 = arith.constant 0 : index
    %c2_73 = arith.constant 2 : index
    %c0_74 = arith.constant 0 : index
    %c0_75 = arith.constant 0 : index
    %283 = vector.load %arg2[%c0_72, %c2_73, %c0_74, %c0_75] : memref<1x4x18x128xf32, #tpu.memory_space<vmem>>, vector<1x1x8x128xf32>
    %284 = vector.shape_cast %283 : vector<1x1x8x128xf32> to vector<8x128xf32>
    %c1_i32_76 = arith.constant 1 : i32
    %285 = tpu.dynamic_rotate %284 by %c1_i32_76 dim 1 : vector<8x128xf32>, i32 -> vector<8x128xf32>
    %c18 = arith.constant 18 : index
    %286 = memref.load %arg3[%c18] : memref<108xf32, #tpu.memory_space<smem>>
    %287 = vector.broadcast %286 : f32 to vector<8x128xf32>
    %288 = arith.mulf %285, %287 : vector<8x128xf32>
    %289 = arith.addf %274, %288 : vector<8x128xf32>
    %c54 = arith.constant 54 : index
    %290 = memref.load %arg3[%c54] : memref<108xf32, #tpu.memory_space<smem>>
    %291 = vector.broadcast %290 : f32 to vector<8x128xf32>
    %292 = arith.mulf %285, %291 : vector<8x128xf32>
    %293 = arith.addf %278, %292 : vector<8x128xf32>
    %c90 = arith.constant 90 : index
    %294 = memref.load %arg3[%c90] : memref<108xf32, #tpu.memory_space<smem>>
    %295 = vector.broadcast %294 : f32 to vector<8x128xf32>
    %296 = arith.mulf %285, %295 : vector<8x128xf32>
    %297 = arith.addf %282, %296 : vector<8x128xf32>
    %c19 = arith.constant 19 : index
    %298 = memref.load %arg3[%c19] : memref<108xf32, #tpu.memory_space<smem>>
    %299 = vector.broadcast %298 : f32 to vector<8x128xf32>
    %300 = arith.mulf %284, %299 : vector<8x128xf32>
    %301 = arith.addf %289, %300 : vector<8x128xf32>
    %c55 = arith.constant 55 : index
    %302 = memref.load %arg3[%c55] : memref<108xf32, #tpu.memory_space<smem>>
    %303 = vector.broadcast %302 : f32 to vector<8x128xf32>
    %304 = arith.mulf %284, %303 : vector<8x128xf32>
    %305 = arith.addf %293, %304 : vector<8x128xf32>
    %c91 = arith.constant 91 : index
    %306 = memref.load %arg3[%c91] : memref<108xf32, #tpu.memory_space<smem>>
    %307 = vector.broadcast %306 : f32 to vector<8x128xf32>
    %308 = arith.mulf %284, %307 : vector<8x128xf32>
    %309 = arith.addf %297, %308 : vector<8x128xf32>
    %c127_i32_77 = arith.constant 127 : i32
    %310 = tpu.dynamic_rotate %284 by %c127_i32_77 dim 1 : vector<8x128xf32>, i32 -> vector<8x128xf32>
    %c20 = arith.constant 20 : index
    %311 = memref.load %arg3[%c20] : memref<108xf32, #tpu.memory_space<smem>>
    %312 = vector.broadcast %311 : f32 to vector<8x128xf32>
    %313 = arith.mulf %310, %312 : vector<8x128xf32>
    %314 = arith.addf %301, %313 : vector<8x128xf32>
    %c56 = arith.constant 56 : index
    %315 = memref.load %arg3[%c56] : memref<108xf32, #tpu.memory_space<smem>>
    %316 = vector.broadcast %315 : f32 to vector<8x128xf32>
    %317 = arith.mulf %310, %316 : vector<8x128xf32>
    %318 = arith.addf %305, %317 : vector<8x128xf32>
    %c92 = arith.constant 92 : index
    %319 = memref.load %arg3[%c92] : memref<108xf32, #tpu.memory_space<smem>>
    %320 = vector.broadcast %319 : f32 to vector<8x128xf32>
    %321 = arith.mulf %310, %320 : vector<8x128xf32>
    %322 = arith.addf %309, %321 : vector<8x128xf32>
    %c0_78 = arith.constant 0 : index
    %c2_79 = arith.constant 2 : index
    %c1_80 = arith.constant 1 : index
    %c0_81 = arith.constant 0 : index
    %323 = vector.load %arg2[%c0_78, %c2_79, %c1_80, %c0_81] : memref<1x4x18x128xf32, #tpu.memory_space<vmem>>, vector<1x1x8x128xf32>
    %324 = vector.shape_cast %323 : vector<1x1x8x128xf32> to vector<8x128xf32>
    %c1_i32_82 = arith.constant 1 : i32
    %325 = tpu.dynamic_rotate %324 by %c1_i32_82 dim 1 : vector<8x128xf32>, i32 -> vector<8x128xf32>
    %c21 = arith.constant 21 : index
    %326 = memref.load %arg3[%c21] : memref<108xf32, #tpu.memory_space<smem>>
    %327 = vector.broadcast %326 : f32 to vector<8x128xf32>
    %328 = arith.mulf %325, %327 : vector<8x128xf32>
    %329 = arith.addf %314, %328 : vector<8x128xf32>
    %c57 = arith.constant 57 : index
    %330 = memref.load %arg3[%c57] : memref<108xf32, #tpu.memory_space<smem>>
    %331 = vector.broadcast %330 : f32 to vector<8x128xf32>
    %332 = arith.mulf %325, %331 : vector<8x128xf32>
    %333 = arith.addf %318, %332 : vector<8x128xf32>
    %c93 = arith.constant 93 : index
    %334 = memref.load %arg3[%c93] : memref<108xf32, #tpu.memory_space<smem>>
    %335 = vector.broadcast %334 : f32 to vector<8x128xf32>
    %336 = arith.mulf %325, %335 : vector<8x128xf32>
    %337 = arith.addf %322, %336 : vector<8x128xf32>
    %c22 = arith.constant 22 : index
    %338 = memref.load %arg3[%c22] : memref<108xf32, #tpu.memory_space<smem>>
    %339 = vector.broadcast %338 : f32 to vector<8x128xf32>
    %340 = arith.mulf %324, %339 : vector<8x128xf32>
    %341 = arith.addf %329, %340 : vector<8x128xf32>
    %c58 = arith.constant 58 : index
    %342 = memref.load %arg3[%c58] : memref<108xf32, #tpu.memory_space<smem>>
    %343 = vector.broadcast %342 : f32 to vector<8x128xf32>
    %344 = arith.mulf %324, %343 : vector<8x128xf32>
    %345 = arith.addf %333, %344 : vector<8x128xf32>
    %c94 = arith.constant 94 : index
    %346 = memref.load %arg3[%c94] : memref<108xf32, #tpu.memory_space<smem>>
    %347 = vector.broadcast %346 : f32 to vector<8x128xf32>
    %348 = arith.mulf %324, %347 : vector<8x128xf32>
    %349 = arith.addf %337, %348 : vector<8x128xf32>
    %c127_i32_83 = arith.constant 127 : i32
    %350 = tpu.dynamic_rotate %324 by %c127_i32_83 dim 1 : vector<8x128xf32>, i32 -> vector<8x128xf32>
    %c23 = arith.constant 23 : index
    %351 = memref.load %arg3[%c23] : memref<108xf32, #tpu.memory_space<smem>>
    %352 = vector.broadcast %351 : f32 to vector<8x128xf32>
    %353 = arith.mulf %350, %352 : vector<8x128xf32>
    %354 = arith.addf %341, %353 : vector<8x128xf32>
    %c59 = arith.constant 59 : index
    %355 = memref.load %arg3[%c59] : memref<108xf32, #tpu.memory_space<smem>>
    %356 = vector.broadcast %355 : f32 to vector<8x128xf32>
    %357 = arith.mulf %350, %356 : vector<8x128xf32>
    %358 = arith.addf %345, %357 : vector<8x128xf32>
    %c95 = arith.constant 95 : index
    %359 = memref.load %arg3[%c95] : memref<108xf32, #tpu.memory_space<smem>>
    %360 = vector.broadcast %359 : f32 to vector<8x128xf32>
    %361 = arith.mulf %350, %360 : vector<8x128xf32>
    %362 = arith.addf %349, %361 : vector<8x128xf32>
    %c0_84 = arith.constant 0 : index
    %c2_85 = arith.constant 2 : index
    %c2_86 = arith.constant 2 : index
    %c0_87 = arith.constant 0 : index
    %363 = vector.load %arg2[%c0_84, %c2_85, %c2_86, %c0_87] : memref<1x4x18x128xf32, #tpu.memory_space<vmem>>, vector<1x1x8x128xf32>
    %364 = vector.shape_cast %363 : vector<1x1x8x128xf32> to vector<8x128xf32>
    %c1_i32_88 = arith.constant 1 : i32
    %365 = tpu.dynamic_rotate %364 by %c1_i32_88 dim 1 : vector<8x128xf32>, i32 -> vector<8x128xf32>
    %c24_89 = arith.constant 24 : index
    %366 = memref.load %arg3[%c24_89] : memref<108xf32, #tpu.memory_space<smem>>
    %367 = vector.broadcast %366 : f32 to vector<8x128xf32>
    %368 = arith.mulf %365, %367 : vector<8x128xf32>
    %369 = arith.addf %354, %368 : vector<8x128xf32>
    %c60 = arith.constant 60 : index
    %370 = memref.load %arg3[%c60] : memref<108xf32, #tpu.memory_space<smem>>
    %371 = vector.broadcast %370 : f32 to vector<8x128xf32>
    %372 = arith.mulf %365, %371 : vector<8x128xf32>
    %373 = arith.addf %358, %372 : vector<8x128xf32>
    %c96 = arith.constant 96 : index
    %374 = memref.load %arg3[%c96] : memref<108xf32, #tpu.memory_space<smem>>
    %375 = vector.broadcast %374 : f32 to vector<8x128xf32>
    %376 = arith.mulf %365, %375 : vector<8x128xf32>
    %377 = arith.addf %362, %376 : vector<8x128xf32>
    %c25 = arith.constant 25 : index
    %378 = memref.load %arg3[%c25] : memref<108xf32, #tpu.memory_space<smem>>
    %379 = vector.broadcast %378 : f32 to vector<8x128xf32>
    %380 = arith.mulf %364, %379 : vector<8x128xf32>
    %381 = arith.addf %369, %380 : vector<8x128xf32>
    %c61 = arith.constant 61 : index
    %382 = memref.load %arg3[%c61] : memref<108xf32, #tpu.memory_space<smem>>
    %383 = vector.broadcast %382 : f32 to vector<8x128xf32>
    %384 = arith.mulf %364, %383 : vector<8x128xf32>
    %385 = arith.addf %373, %384 : vector<8x128xf32>
    %c97 = arith.constant 97 : index
    %386 = memref.load %arg3[%c97] : memref<108xf32, #tpu.memory_space<smem>>
    %387 = vector.broadcast %386 : f32 to vector<8x128xf32>
    %388 = arith.mulf %364, %387 : vector<8x128xf32>
    %389 = arith.addf %377, %388 : vector<8x128xf32>
    %c127_i32_90 = arith.constant 127 : i32
    %390 = tpu.dynamic_rotate %364 by %c127_i32_90 dim 1 : vector<8x128xf32>, i32 -> vector<8x128xf32>
    %c26 = arith.constant 26 : index
    %391 = memref.load %arg3[%c26] : memref<108xf32, #tpu.memory_space<smem>>
    %392 = vector.broadcast %391 : f32 to vector<8x128xf32>
    %393 = arith.mulf %390, %392 : vector<8x128xf32>
    %394 = arith.addf %381, %393 : vector<8x128xf32>
    %c62 = arith.constant 62 : index
    %395 = memref.load %arg3[%c62] : memref<108xf32, #tpu.memory_space<smem>>
    %396 = vector.broadcast %395 : f32 to vector<8x128xf32>
    %397 = arith.mulf %390, %396 : vector<8x128xf32>
    %398 = arith.addf %385, %397 : vector<8x128xf32>
    %c98 = arith.constant 98 : index
    %399 = memref.load %arg3[%c98] : memref<108xf32, #tpu.memory_space<smem>>
    %400 = vector.broadcast %399 : f32 to vector<8x128xf32>
    %401 = arith.mulf %390, %400 : vector<8x128xf32>
    %402 = arith.addf %389, %401 : vector<8x128xf32>
    %c0_91 = arith.constant 0 : index
    %c3_92 = arith.constant 3 : index
    %c0_93 = arith.constant 0 : index
    %c0_94 = arith.constant 0 : index
    %403 = vector.load %arg2[%c0_91, %c3_92, %c0_93, %c0_94] : memref<1x4x18x128xf32, #tpu.memory_space<vmem>>, vector<1x1x8x128xf32>
    %404 = vector.shape_cast %403 : vector<1x1x8x128xf32> to vector<8x128xf32>
    %c1_i32_95 = arith.constant 1 : i32
    %405 = tpu.dynamic_rotate %404 by %c1_i32_95 dim 1 : vector<8x128xf32>, i32 -> vector<8x128xf32>
    %c27 = arith.constant 27 : index
    %406 = memref.load %arg3[%c27] : memref<108xf32, #tpu.memory_space<smem>>
    %407 = vector.broadcast %406 : f32 to vector<8x128xf32>
    %408 = arith.mulf %405, %407 : vector<8x128xf32>
    %409 = arith.addf %394, %408 : vector<8x128xf32>
    %c63 = arith.constant 63 : index
    %410 = memref.load %arg3[%c63] : memref<108xf32, #tpu.memory_space<smem>>
    %411 = vector.broadcast %410 : f32 to vector<8x128xf32>
    %412 = arith.mulf %405, %411 : vector<8x128xf32>
    %413 = arith.addf %398, %412 : vector<8x128xf32>
    %c99 = arith.constant 99 : index
    %414 = memref.load %arg3[%c99] : memref<108xf32, #tpu.memory_space<smem>>
    %415 = vector.broadcast %414 : f32 to vector<8x128xf32>
    %416 = arith.mulf %405, %415 : vector<8x128xf32>
    %417 = arith.addf %402, %416 : vector<8x128xf32>
    %c28 = arith.constant 28 : index
    %418 = memref.load %arg3[%c28] : memref<108xf32, #tpu.memory_space<smem>>
    %419 = vector.broadcast %418 : f32 to vector<8x128xf32>
    %420 = arith.mulf %404, %419 : vector<8x128xf32>
    %421 = arith.addf %409, %420 : vector<8x128xf32>
    %c64 = arith.constant 64 : index
    %422 = memref.load %arg3[%c64] : memref<108xf32, #tpu.memory_space<smem>>
    %423 = vector.broadcast %422 : f32 to vector<8x128xf32>
    %424 = arith.mulf %404, %423 : vector<8x128xf32>
    %425 = arith.addf %413, %424 : vector<8x128xf32>
    %c100 = arith.constant 100 : index
    %426 = memref.load %arg3[%c100] : memref<108xf32, #tpu.memory_space<smem>>
    %427 = vector.broadcast %426 : f32 to vector<8x128xf32>
    %428 = arith.mulf %404, %427 : vector<8x128xf32>
    %429 = arith.addf %417, %428 : vector<8x128xf32>
    %c127_i32_96 = arith.constant 127 : i32
    %430 = tpu.dynamic_rotate %404 by %c127_i32_96 dim 1 : vector<8x128xf32>, i32 -> vector<8x128xf32>
    %c29 = arith.constant 29 : index
    %431 = memref.load %arg3[%c29] : memref<108xf32, #tpu.memory_space<smem>>
    %432 = vector.broadcast %431 : f32 to vector<8x128xf32>
    %433 = arith.mulf %430, %432 : vector<8x128xf32>
    %434 = arith.addf %421, %433 : vector<8x128xf32>
    %c65 = arith.constant 65 : index
    %435 = memref.load %arg3[%c65] : memref<108xf32, #tpu.memory_space<smem>>
    %436 = vector.broadcast %435 : f32 to vector<8x128xf32>
    %437 = arith.mulf %430, %436 : vector<8x128xf32>
    %438 = arith.addf %425, %437 : vector<8x128xf32>
    %c101 = arith.constant 101 : index
    %439 = memref.load %arg3[%c101] : memref<108xf32, #tpu.memory_space<smem>>
    %440 = vector.broadcast %439 : f32 to vector<8x128xf32>
    %441 = arith.mulf %430, %440 : vector<8x128xf32>
    %442 = arith.addf %429, %441 : vector<8x128xf32>
    %c0_97 = arith.constant 0 : index
    %c3_98 = arith.constant 3 : index
    %c1_99 = arith.constant 1 : index
    %c0_100 = arith.constant 0 : index
    %443 = vector.load %arg2[%c0_97, %c3_98, %c1_99, %c0_100] : memref<1x4x18x128xf32, #tpu.memory_space<vmem>>, vector<1x1x8x128xf32>
    %444 = vector.shape_cast %443 : vector<1x1x8x128xf32> to vector<8x128xf32>
    %c1_i32_101 = arith.constant 1 : i32
    %445 = tpu.dynamic_rotate %444 by %c1_i32_101 dim 1 : vector<8x128xf32>, i32 -> vector<8x128xf32>
    %c30 = arith.constant 30 : index
    %446 = memref.load %arg3[%c30] : memref<108xf32, #tpu.memory_space<smem>>
    %447 = vector.broadcast %446 : f32 to vector<8x128xf32>
    %448 = arith.mulf %445, %447 : vector<8x128xf32>
    %449 = arith.addf %434, %448 : vector<8x128xf32>
    %c66 = arith.constant 66 : index
    %450 = memref.load %arg3[%c66] : memref<108xf32, #tpu.memory_space<smem>>
    %451 = vector.broadcast %450 : f32 to vector<8x128xf32>
    %452 = arith.mulf %445, %451 : vector<8x128xf32>
    %453 = arith.addf %438, %452 : vector<8x128xf32>
    %c102 = arith.constant 102 : index
    %454 = memref.load %arg3[%c102] : memref<108xf32, #tpu.memory_space<smem>>
    %455 = vector.broadcast %454 : f32 to vector<8x128xf32>
    %456 = arith.mulf %445, %455 : vector<8x128xf32>
    %457 = arith.addf %442, %456 : vector<8x128xf32>
    %c31 = arith.constant 31 : index
    %458 = memref.load %arg3[%c31] : memref<108xf32, #tpu.memory_space<smem>>
    %459 = vector.broadcast %458 : f32 to vector<8x128xf32>
    %460 = arith.mulf %444, %459 : vector<8x128xf32>
    %461 = arith.addf %449, %460 : vector<8x128xf32>
    %c67 = arith.constant 67 : index
    %462 = memref.load %arg3[%c67] : memref<108xf32, #tpu.memory_space<smem>>
    %463 = vector.broadcast %462 : f32 to vector<8x128xf32>
    %464 = arith.mulf %444, %463 : vector<8x128xf32>
    %465 = arith.addf %453, %464 : vector<8x128xf32>
    %c103 = arith.constant 103 : index
    %466 = memref.load %arg3[%c103] : memref<108xf32, #tpu.memory_space<smem>>
    %467 = vector.broadcast %466 : f32 to vector<8x128xf32>
    %468 = arith.mulf %444, %467 : vector<8x128xf32>
    %469 = arith.addf %457, %468 : vector<8x128xf32>
    %c127_i32_102 = arith.constant 127 : i32
    %470 = tpu.dynamic_rotate %444 by %c127_i32_102 dim 1 : vector<8x128xf32>, i32 -> vector<8x128xf32>
    %c32 = arith.constant 32 : index
    %471 = memref.load %arg3[%c32] : memref<108xf32, #tpu.memory_space<smem>>
    %472 = vector.broadcast %471 : f32 to vector<8x128xf32>
    %473 = arith.mulf %470, %472 : vector<8x128xf32>
    %474 = arith.addf %461, %473 : vector<8x128xf32>
    %c68 = arith.constant 68 : index
    %475 = memref.load %arg3[%c68] : memref<108xf32, #tpu.memory_space<smem>>
    %476 = vector.broadcast %475 : f32 to vector<8x128xf32>
    %477 = arith.mulf %470, %476 : vector<8x128xf32>
    %478 = arith.addf %465, %477 : vector<8x128xf32>
    %c104 = arith.constant 104 : index
    %479 = memref.load %arg3[%c104] : memref<108xf32, #tpu.memory_space<smem>>
    %480 = vector.broadcast %479 : f32 to vector<8x128xf32>
    %481 = arith.mulf %470, %480 : vector<8x128xf32>
    %482 = arith.addf %469, %481 : vector<8x128xf32>
    %c0_103 = arith.constant 0 : index
    %c3_104 = arith.constant 3 : index
    %c2_105 = arith.constant 2 : index
    %c0_106 = arith.constant 0 : index
    %483 = vector.load %arg2[%c0_103, %c3_104, %c2_105, %c0_106] : memref<1x4x18x128xf32, #tpu.memory_space<vmem>>, vector<1x1x8x128xf32>
    %484 = vector.shape_cast %483 : vector<1x1x8x128xf32> to vector<8x128xf32>
    %c1_i32_107 = arith.constant 1 : i32
    %485 = tpu.dynamic_rotate %484 by %c1_i32_107 dim 1 : vector<8x128xf32>, i32 -> vector<8x128xf32>
    %c33 = arith.constant 33 : index
    %486 = memref.load %arg3[%c33] : memref<108xf32, #tpu.memory_space<smem>>
    %487 = vector.broadcast %486 : f32 to vector<8x128xf32>
    %488 = arith.mulf %485, %487 : vector<8x128xf32>
    %489 = arith.addf %474, %488 : vector<8x128xf32>
    %c69 = arith.constant 69 : index
    %490 = memref.load %arg3[%c69] : memref<108xf32, #tpu.memory_space<smem>>
    %491 = vector.broadcast %490 : f32 to vector<8x128xf32>
    %492 = arith.mulf %485, %491 : vector<8x128xf32>
    %493 = arith.addf %478, %492 : vector<8x128xf32>
    %c105 = arith.constant 105 : index
    %494 = memref.load %arg3[%c105] : memref<108xf32, #tpu.memory_space<smem>>
    %495 = vector.broadcast %494 : f32 to vector<8x128xf32>
    %496 = arith.mulf %485, %495 : vector<8x128xf32>
    %497 = arith.addf %482, %496 : vector<8x128xf32>
    %c34 = arith.constant 34 : index
    %498 = memref.load %arg3[%c34] : memref<108xf32, #tpu.memory_space<smem>>
    %499 = vector.broadcast %498 : f32 to vector<8x128xf32>
    %500 = arith.mulf %484, %499 : vector<8x128xf32>
    %501 = arith.addf %489, %500 : vector<8x128xf32>
    %c70 = arith.constant 70 : index
    %502 = memref.load %arg3[%c70] : memref<108xf32, #tpu.memory_space<smem>>
    %503 = vector.broadcast %502 : f32 to vector<8x128xf32>
    %504 = arith.mulf %484, %503 : vector<8x128xf32>
    %505 = arith.addf %493, %504 : vector<8x128xf32>
    %c106 = arith.constant 106 : index
    %506 = memref.load %arg3[%c106] : memref<108xf32, #tpu.memory_space<smem>>
    %507 = vector.broadcast %506 : f32 to vector<8x128xf32>
    %508 = arith.mulf %484, %507 : vector<8x128xf32>
    %509 = arith.addf %497, %508 : vector<8x128xf32>
    %c127_i32_108 = arith.constant 127 : i32
    %510 = tpu.dynamic_rotate %484 by %c127_i32_108 dim 1 : vector<8x128xf32>, i32 -> vector<8x128xf32>
    %c35 = arith.constant 35 : index
    %511 = memref.load %arg3[%c35] : memref<108xf32, #tpu.memory_space<smem>>
    %512 = vector.broadcast %511 : f32 to vector<8x128xf32>
    %513 = arith.mulf %510, %512 : vector<8x128xf32>
    %514 = arith.addf %501, %513 : vector<8x128xf32>
    %c71 = arith.constant 71 : index
    %515 = memref.load %arg3[%c71] : memref<108xf32, #tpu.memory_space<smem>>
    %516 = vector.broadcast %515 : f32 to vector<8x128xf32>
    %517 = arith.mulf %510, %516 : vector<8x128xf32>
    %518 = arith.addf %505, %517 : vector<8x128xf32>
    %c107 = arith.constant 107 : index
    %519 = memref.load %arg3[%c107] : memref<108xf32, #tpu.memory_space<smem>>
    %520 = vector.broadcast %519 : f32 to vector<8x128xf32>
    %521 = arith.mulf %510, %520 : vector<8x128xf32>
    %522 = arith.addf %509, %521 : vector<8x128xf32>
    %c0_109 = arith.constant 0 : index
    %c0_110 = arith.constant 0 : index
    %523 = vector.load %arg1[%c0_109, %c0_110] : memref<8x128xf32, #tpu.memory_space<vmem>>, vector<8x128xf32>
    %cst_111 = arith.constant 0.000000e+00 : f32
    %524 = vector.broadcast %cst_111 : f32 to vector<8x128xf32>
    %525 = arith.maximumf %514, %524 : vector<8x128xf32>
    %526 = arith.mulf %525, %523 : vector<8x128xf32>
    %c0_112 = arith.constant 0 : index
    %c8_113 = arith.constant 8 : index
    %c0_114 = arith.constant 0 : index
    %527 = vector.load %arg10[%c0_112, %c8_113, %c0_114] : memref<3x25x128xf32, #tpu.memory_space<vmem>>, vector<1x8x128xf32>
    %528 = vector.shape_cast %527 : vector<1x8x128xf32> to vector<8x128xf32>
    %529 = vector.shape_cast %526 : vector<8x128xf32> to vector<1x8x128xf32>
    tpu.vector_store %arg10[%c0_112, %c8_113, %c0_114], %529 {strides = array<i32>} : memref<3x25x128xf32, #tpu.memory_space<vmem>>, vector<1x8x128xf32>,
    %cst_115 = arith.constant 0.000000e+00 : f32
    %530 = vector.broadcast %cst_115 : f32 to vector<8x128xf32>
    %531 = arith.maximumf %518, %530 : vector<8x128xf32>
    %532 = arith.mulf %531, %523 : vector<8x128xf32>
    %c1_116 = arith.constant 1 : index
    %c8_117 = arith.constant 8 : index
    %c0_118 = arith.constant 0 : index
    %533 = vector.load %arg10[%c1_116, %c8_117, %c0_118] : memref<3x25x128xf32, #tpu.memory_space<vmem>>, vector<1x8x128xf32>
    %534 = vector.shape_cast %533 : vector<1x8x128xf32> to vector<8x128xf32>
    %535 = vector.shape_cast %532 : vector<8x128xf32> to vector<1x8x128xf32>
    tpu.vector_store %arg10[%c1_116, %c8_117, %c0_118], %535 {strides = array<i32>} : memref<3x25x128xf32, #tpu.memory_space<vmem>>, vector<1x8x128xf32>,
    %cst_119 = arith.constant 0.000000e+00 : f32
    %536 = vector.broadcast %cst_119 : f32 to vector<8x128xf32>
    %537 = arith.maximumf %522, %536 : vector<8x128xf32>
    %538 = arith.mulf %537, %523 : vector<8x128xf32>
    %c2_120 = arith.constant 2 : index
    %c8_121 = arith.constant 8 : index
    %c0_122 = arith.constant 0 : index
    %539 = vector.load %arg10[%c2_120, %c8_121, %c0_122] : memref<3x25x128xf32, #tpu.memory_space<vmem>>, vector<1x8x128xf32>
    %540 = vector.shape_cast %539 : vector<1x8x128xf32> to vector<8x128xf32>
    %541 = vector.shape_cast %538 : vector<8x128xf32> to vector<1x8x128xf32>
    tpu.vector_store %arg10[%c2_120, %c8_121, %c0_122], %541 {strides = array<i32>} : memref<3x25x128xf32, #tpu.memory_space<vmem>>, vector<1x8x128xf32>,
    %c0_123 = arith.constant 0 : index
    %542 = memref.load %arg4[%c0_123] : memref<3xf32, #tpu.memory_space<smem>>
    %543 = vector.broadcast %542 : f32 to vector<8x128xf32>
    %c1_124 = arith.constant 1 : index
    %544 = memref.load %arg4[%c1_124] : memref<3xf32, #tpu.memory_space<smem>>
    %545 = vector.broadcast %544 : f32 to vector<8x128xf32>
    %c2_125 = arith.constant 2 : index
    %546 = memref.load %arg4[%c2_125] : memref<3xf32, #tpu.memory_space<smem>>
    %547 = vector.broadcast %546 : f32 to vector<8x128xf32>
    %c0_126 = arith.constant 0 : index
    %c0_127 = arith.constant 0 : index
    %c8_128 = arith.constant 8 : index
    %c0_129 = arith.constant 0 : index
    %548 = vector.load %arg2[%c0_126, %c0_127, %c8_128, %c0_129] : memref<1x4x18x128xf32, #tpu.memory_space<vmem>>, vector<1x1x8x128xf32>
    %549 = vector.shape_cast %548 : vector<1x1x8x128xf32> to vector<8x128xf32>
    %c1_i32_130 = arith.constant 1 : i32
    %550 = tpu.dynamic_rotate %549 by %c1_i32_130 dim 1 : vector<8x128xf32>, i32 -> vector<8x128xf32>
    %c0_131 = arith.constant 0 : index
    %551 = memref.load %arg3[%c0_131] : memref<108xf32, #tpu.memory_space<smem>>
    %552 = vector.broadcast %551 : f32 to vector<8x128xf32>
    %553 = arith.mulf %550, %552 : vector<8x128xf32>
    %554 = arith.addf %543, %553 : vector<8x128xf32>
    %c36_132 = arith.constant 36 : index
    %555 = memref.load %arg3[%c36_132] : memref<108xf32, #tpu.memory_space<smem>>
    %556 = vector.broadcast %555 : f32 to vector<8x128xf32>
    %557 = arith.mulf %550, %556 : vector<8x128xf32>
    %558 = arith.addf %545, %557 : vector<8x128xf32>
    %c72_133 = arith.constant 72 : index
    %559 = memref.load %arg3[%c72_133] : memref<108xf32, #tpu.memory_space<smem>>
    %560 = vector.broadcast %559 : f32 to vector<8x128xf32>
    %561 = arith.mulf %550, %560 : vector<8x128xf32>
    %562 = arith.addf %547, %561 : vector<8x128xf32>
    %c1_134 = arith.constant 1 : index
    %563 = memref.load %arg3[%c1_134] : memref<108xf32, #tpu.memory_space<smem>>
    %564 = vector.broadcast %563 : f32 to vector<8x128xf32>
    %565 = arith.mulf %549, %564 : vector<8x128xf32>
    %566 = arith.addf %554, %565 : vector<8x128xf32>
    %c37_135 = arith.constant 37 : index
    %567 = memref.load %arg3[%c37_135] : memref<108xf32, #tpu.memory_space<smem>>
    %568 = vector.broadcast %567 : f32 to vector<8x128xf32>
    %569 = arith.mulf %549, %568 : vector<8x128xf32>
    %570 = arith.addf %558, %569 : vector<8x128xf32>
    %c73_136 = arith.constant 73 : index
    %571 = memref.load %arg3[%c73_136] : memref<108xf32, #tpu.memory_space<smem>>
    %572 = vector.broadcast %571 : f32 to vector<8x128xf32>
    %573 = arith.mulf %549, %572 : vector<8x128xf32>
    %574 = arith.addf %562, %573 : vector<8x128xf32>
    %c127_i32_137 = arith.constant 127 : i32
    %575 = tpu.dynamic_rotate %549 by %c127_i32_137 dim 1 : vector<8x128xf32>, i32 -> vector<8x128xf32>
    %c2_138 = arith.constant 2 : index
    %576 = memref.load %arg3[%c2_138] : memref<108xf32, #tpu.memory_space<smem>>
    %577 = vector.broadcast %576 : f32 to vector<8x128xf32>
    %578 = arith.mulf %575, %577 : vector<8x128xf32>
    %579 = arith.addf %566, %578 : vector<8x128xf32>
    %c38_139 = arith.constant 38 : index
    %580 = memref.load %arg3[%c38_139] : memref<108xf32, #tpu.memory_space<smem>>
    %581 = vector.broadcast %580 : f32 to vector<8x128xf32>
    %582 = arith.mulf %575, %581 : vector<8x128xf32>
    %583 = arith.addf %570, %582 : vector<8x128xf32>
    %c74_140 = arith.constant 74 : index
    %584 = memref.load %arg3[%c74_140] : memref<108xf32, #tpu.memory_space<smem>>
    %585 = vector.broadcast %584 : f32 to vector<8x128xf32>
    %586 = arith.mulf %575, %585 : vector<8x128xf32>
    %587 = arith.addf %574, %586 : vector<8x128xf32>
    %c0_141 = arith.constant 0 : index
    %c0_142 = arith.constant 0 : index
    %c9_143 = arith.constant 9 : index
    %c0_144 = arith.constant 0 : index
    %588 = vector.load %arg2[%c0_141, %c0_142, %c9_143, %c0_144] : memref<1x4x18x128xf32, #tpu.memory_space<vmem>>, vector<1x1x8x128xf32>
    %589 = vector.shape_cast %588 : vector<1x1x8x128xf32> to vector<8x128xf32>
    %c1_i32_145 = arith.constant 1 : i32
    %590 = tpu.dynamic_rotate %589 by %c1_i32_145 dim 1 : vector<8x128xf32>, i32 -> vector<8x128xf32>
    %c3_146 = arith.constant 3 : index
    %591 = memref.load %arg3[%c3_146] : memref<108xf32, #tpu.memory_space<smem>>
    %592 = vector.broadcast %591 : f32 to vector<8x128xf32>
    %593 = arith.mulf %590, %592 : vector<8x128xf32>
    %594 = arith.addf %579, %593 : vector<8x128xf32>
    %c39_147 = arith.constant 39 : index
    %595 = memref.load %arg3[%c39_147] : memref<108xf32, #tpu.memory_space<smem>>
    %596 = vector.broadcast %595 : f32 to vector<8x128xf32>
    %597 = arith.mulf %590, %596 : vector<8x128xf32>
    %598 = arith.addf %583, %597 : vector<8x128xf32>
    %c75_148 = arith.constant 75 : index
    %599 = memref.load %arg3[%c75_148] : memref<108xf32, #tpu.memory_space<smem>>
    %600 = vector.broadcast %599 : f32 to vector<8x128xf32>
    %601 = arith.mulf %590, %600 : vector<8x128xf32>
    %602 = arith.addf %587, %601 : vector<8x128xf32>
    %c4_149 = arith.constant 4 : index
    %603 = memref.load %arg3[%c4_149] : memref<108xf32, #tpu.memory_space<smem>>
    %604 = vector.broadcast %603 : f32 to vector<8x128xf32>
    %605 = arith.mulf %589, %604 : vector<8x128xf32>
    %606 = arith.addf %594, %605 : vector<8x128xf32>
    %c40_150 = arith.constant 40 : index
    %607 = memref.load %arg3[%c40_150] : memref<108xf32, #tpu.memory_space<smem>>
    %608 = vector.broadcast %607 : f32 to vector<8x128xf32>
    %609 = arith.mulf %589, %608 : vector<8x128xf32>
    %610 = arith.addf %598, %609 : vector<8x128xf32>
    %c76_151 = arith.constant 76 : index
    %611 = memref.load %arg3[%c76_151] : memref<108xf32, #tpu.memory_space<smem>>
    %612 = vector.broadcast %611 : f32 to vector<8x128xf32>
    %613 = arith.mulf %589, %612 : vector<8x128xf32>
    %614 = arith.addf %602, %613 : vector<8x128xf32>
    %c127_i32_152 = arith.constant 127 : i32
    %615 = tpu.dynamic_rotate %589 by %c127_i32_152 dim 1 : vector<8x128xf32>, i32 -> vector<8x128xf32>
    %c5_153 = arith.constant 5 : index
    %616 = memref.load %arg3[%c5_153] : memref<108xf32, #tpu.memory_space<smem>>
    %617 = vector.broadcast %616 : f32 to vector<8x128xf32>
    %618 = arith.mulf %615, %617 : vector<8x128xf32>
    %619 = arith.addf %606, %618 : vector<8x128xf32>
    %c41_154 = arith.constant 41 : index
    %620 = memref.load %arg3[%c41_154] : memref<108xf32, #tpu.memory_space<smem>>
    %621 = vector.broadcast %620 : f32 to vector<8x128xf32>
    %622 = arith.mulf %615, %621 : vector<8x128xf32>
    %623 = arith.addf %610, %622 : vector<8x128xf32>
    %c77_155 = arith.constant 77 : index
    %624 = memref.load %arg3[%c77_155] : memref<108xf32, #tpu.memory_space<smem>>
    %625 = vector.broadcast %624 : f32 to vector<8x128xf32>
    %626 = arith.mulf %615, %625 : vector<8x128xf32>
    %627 = arith.addf %614, %626 : vector<8x128xf32>
    %c0_156 = arith.constant 0 : index
    %c0_157 = arith.constant 0 : index
    %c10_158 = arith.constant 10 : index
    %c0_159 = arith.constant 0 : index
    %628 = vector.load %arg2[%c0_156, %c0_157, %c10_158, %c0_159] : memref<1x4x18x128xf32, #tpu.memory_space<vmem>>, vector<1x1x8x128xf32>
    %629 = vector.shape_cast %628 : vector<1x1x8x128xf32> to vector<8x128xf32>
    %c1_i32_160 = arith.constant 1 : i32
    %630 = tpu.dynamic_rotate %629 by %c1_i32_160 dim 1 : vector<8x128xf32>, i32 -> vector<8x128xf32>
    %c6_161 = arith.constant 6 : index
    %631 = memref.load %arg3[%c6_161] : memref<108xf32, #tpu.memory_space<smem>>
    %632 = vector.broadcast %631 : f32 to vector<8x128xf32>
    %633 = arith.mulf %630, %632 : vector<8x128xf32>
    %634 = arith.addf %619, %633 : vector<8x128xf32>
    %c42_162 = arith.constant 42 : index
    %635 = memref.load %arg3[%c42_162] : memref<108xf32, #tpu.memory_space<smem>>
    %636 = vector.broadcast %635 : f32 to vector<8x128xf32>
    %637 = arith.mulf %630, %636 : vector<8x128xf32>
    %638 = arith.addf %623, %637 : vector<8x128xf32>
    %c78_163 = arith.constant 78 : index
    %639 = memref.load %arg3[%c78_163] : memref<108xf32, #tpu.memory_space<smem>>
    %640 = vector.broadcast %639 : f32 to vector<8x128xf32>
    %641 = arith.mulf %630, %640 : vector<8x128xf32>
    %642 = arith.addf %627, %641 : vector<8x128xf32>
    %c7_164 = arith.constant 7 : index
    %643 = memref.load %arg3[%c7_164] : memref<108xf32, #tpu.memory_space<smem>>
    %644 = vector.broadcast %643 : f32 to vector<8x128xf32>
    %645 = arith.mulf %629, %644 : vector<8x128xf32>
    %646 = arith.addf %634, %645 : vector<8x128xf32>
    %c43_165 = arith.constant 43 : index
    %647 = memref.load %arg3[%c43_165] : memref<108xf32, #tpu.memory_space<smem>>
    %648 = vector.broadcast %647 : f32 to vector<8x128xf32>
    %649 = arith.mulf %629, %648 : vector<8x128xf32>
    %650 = arith.addf %638, %649 : vector<8x128xf32>
    %c79_166 = arith.constant 79 : index
    %651 = memref.load %arg3[%c79_166] : memref<108xf32, #tpu.memory_space<smem>>
    %652 = vector.broadcast %651 : f32 to vector<8x128xf32>
    %653 = arith.mulf %629, %652 : vector<8x128xf32>
    %654 = arith.addf %642, %653 : vector<8x128xf32>
    %c127_i32_167 = arith.constant 127 : i32
    %655 = tpu.dynamic_rotate %629 by %c127_i32_167 dim 1 : vector<8x128xf32>, i32 -> vector<8x128xf32>
    %c8_168 = arith.constant 8 : index
    %656 = memref.load %arg3[%c8_168] : memref<108xf32, #tpu.memory_space<smem>>
    %657 = vector.broadcast %656 : f32 to vector<8x128xf32>
    %658 = arith.mulf %655, %657 : vector<8x128xf32>
    %659 = arith.addf %646, %658 : vector<8x128xf32>
    %c44_169 = arith.constant 44 : index
    %660 = memref.load %arg3[%c44_169] : memref<108xf32, #tpu.memory_space<smem>>
    %661 = vector.broadcast %660 : f32 to vector<8x128xf32>
    %662 = arith.mulf %655, %661 : vector<8x128xf32>
    %663 = arith.addf %650, %662 : vector<8x128xf32>
    %c80_170 = arith.constant 80 : index
    %664 = memref.load %arg3[%c80_170] : memref<108xf32, #tpu.memory_space<smem>>
    %665 = vector.broadcast %664 : f32 to vector<8x128xf32>
    %666 = arith.mulf %655, %665 : vector<8x128xf32>
    %667 = arith.addf %654, %666 : vector<8x128xf32>
    %c0_171 = arith.constant 0 : index
    %c1_172 = arith.constant 1 : index
    %c8_173 = arith.constant 8 : index
    %c0_174 = arith.constant 0 : index
    %668 = vector.load %arg2[%c0_171, %c1_172, %c8_173, %c0_174] : memref<1x4x18x128xf32, #tpu.memory_space<vmem>>, vector<1x1x8x128xf32>
    %669 = vector.shape_cast %668 : vector<1x1x8x128xf32> to vector<8x128xf32>
    %c1_i32_175 = arith.constant 1 : i32
    %670 = tpu.dynamic_rotate %669 by %c1_i32_175 dim 1 : vector<8x128xf32>, i32 -> vector<8x128xf32>
    %c9_176 = arith.constant 9 : index
    %671 = memref.load %arg3[%c9_176] : memref<108xf32, #tpu.memory_space<smem>>
    %672 = vector.broadcast %671 : f32 to vector<8x128xf32>
    %673 = arith.mulf %670, %672 : vector<8x128xf32>
    %674 = arith.addf %659, %673 : vector<8x128xf32>
    %c45_177 = arith.constant 45 : index
    %675 = memref.load %arg3[%c45_177] : memref<108xf32, #tpu.memory_space<smem>>
    %676 = vector.broadcast %675 : f32 to vector<8x128xf32>
    %677 = arith.mulf %670, %676 : vector<8x128xf32>
    %678 = arith.addf %663, %677 : vector<8x128xf32>
    %c81_178 = arith.constant 81 : index
    %679 = memref.load %arg3[%c81_178] : memref<108xf32, #tpu.memory_space<smem>>
    %680 = vector.broadcast %679 : f32 to vector<8x128xf32>
    %681 = arith.mulf %670, %680 : vector<8x128xf32>
    %682 = arith.addf %667, %681 : vector<8x128xf32>
    %c10_179 = arith.constant 10 : index
    %683 = memref.load %arg3[%c10_179] : memref<108xf32, #tpu.memory_space<smem>>
    %684 = vector.broadcast %683 : f32 to vector<8x128xf32>
    %685 = arith.mulf %669, %684 : vector<8x128xf32>
    %686 = arith.addf %674, %685 : vector<8x128xf32>
    %c46_180 = arith.constant 46 : index
    %687 = memref.load %arg3[%c46_180] : memref<108xf32, #tpu.memory_space<smem>>
    %688 = vector.broadcast %687 : f32 to vector<8x128xf32>
    %689 = arith.mulf %669, %688 : vector<8x128xf32>
    %690 = arith.addf %678, %689 : vector<8x128xf32>
    %c82_181 = arith.constant 82 : index
    %691 = memref.load %arg3[%c82_181] : memref<108xf32, #tpu.memory_space<smem>>
    %692 = vector.broadcast %691 : f32 to vector<8x128xf32>
    %693 = arith.mulf %669, %692 : vector<8x128xf32>
    %694 = arith.addf %682, %693 : vector<8x128xf32>
    %c127_i32_182 = arith.constant 127 : i32
    %695 = tpu.dynamic_rotate %669 by %c127_i32_182 dim 1 : vector<8x128xf32>, i32 -> vector<8x128xf32>
    %c11_183 = arith.constant 11 : index
    %696 = memref.load %arg3[%c11_183] : memref<108xf32, #tpu.memory_space<smem>>
    %697 = vector.broadcast %696 : f32 to vector<8x128xf32>
    %698 = arith.mulf %695, %697 : vector<8x128xf32>
    %699 = arith.addf %686, %698 : vector<8x128xf32>
    %c47_184 = arith.constant 47 : index
    %700 = memref.load %arg3[%c47_184] : memref<108xf32, #tpu.memory_space<smem>>
    %701 = vector.broadcast %700 : f32 to vector<8x128xf32>
    %702 = arith.mulf %695, %701 : vector<8x128xf32>
    %703 = arith.addf %690, %702 : vector<8x128xf32>
    %c83_185 = arith.constant 83 : index
    %704 = memref.load %arg3[%c83_185] : memref<108xf32, #tpu.memory_space<smem>>
    %705 = vector.broadcast %704 : f32 to vector<8x128xf32>
    %706 = arith.mulf %695, %705 : vector<8x128xf32>
    %707 = arith.addf %694, %706 : vector<8x128xf32>
    %c0_186 = arith.constant 0 : index
    %c1_187 = arith.constant 1 : index
    %c9_188 = arith.constant 9 : index
    %c0_189 = arith.constant 0 : index
    %708 = vector.load %arg2[%c0_186, %c1_187, %c9_188, %c0_189] : memref<1x4x18x128xf32, #tpu.memory_space<vmem>>, vector<1x1x8x128xf32>
    %709 = vector.shape_cast %708 : vector<1x1x8x128xf32> to vector<8x128xf32>
    %c1_i32_190 = arith.constant 1 : i32
    %710 = tpu.dynamic_rotate %709 by %c1_i32_190 dim 1 : vector<8x128xf32>, i32 -> vector<8x128xf32>
    %c12_191 = arith.constant 12 : index
    %711 = memref.load %arg3[%c12_191] : memref<108xf32, #tpu.memory_space<smem>>
    %712 = vector.broadcast %711 : f32 to vector<8x128xf32>
    %713 = arith.mulf %710, %712 : vector<8x128xf32>
    %714 = arith.addf %699, %713 : vector<8x128xf32>
    %c48_192 = arith.constant 48 : index
    %715 = memref.load %arg3[%c48_192] : memref<108xf32, #tpu.memory_space<smem>>
    %716 = vector.broadcast %715 : f32 to vector<8x128xf32>
    %717 = arith.mulf %710, %716 : vector<8x128xf32>
    %718 = arith.addf %703, %717 : vector<8x128xf32>
    %c84_193 = arith.constant 84 : index
    %719 = memref.load %arg3[%c84_193] : memref<108xf32, #tpu.memory_space<smem>>
    %720 = vector.broadcast %719 : f32 to vector<8x128xf32>
    %721 = arith.mulf %710, %720 : vector<8x128xf32>
    %722 = arith.addf %707, %721 : vector<8x128xf32>
    %c13_194 = arith.constant 13 : index
    %723 = memref.load %arg3[%c13_194] : memref<108xf32, #tpu.memory_space<smem>>
    %724 = vector.broadcast %723 : f32 to vector<8x128xf32>
    %725 = arith.mulf %709, %724 : vector<8x128xf32>
    %726 = arith.addf %714, %725 : vector<8x128xf32>
    %c49_195 = arith.constant 49 : index
    %727 = memref.load %arg3[%c49_195] : memref<108xf32, #tpu.memory_space<smem>>
    %728 = vector.broadcast %727 : f32 to vector<8x128xf32>
    %729 = arith.mulf %709, %728 : vector<8x128xf32>
    %730 = arith.addf %718, %729 : vector<8x128xf32>
    %c85_196 = arith.constant 85 : index
    %731 = memref.load %arg3[%c85_196] : memref<108xf32, #tpu.memory_space<smem>>
    %732 = vector.broadcast %731 : f32 to vector<8x128xf32>
    %733 = arith.mulf %709, %732 : vector<8x128xf32>
    %734 = arith.addf %722, %733 : vector<8x128xf32>
    %c127_i32_197 = arith.constant 127 : i32
    %735 = tpu.dynamic_rotate %709 by %c127_i32_197 dim 1 : vector<8x128xf32>, i32 -> vector<8x128xf32>
    %c14_198 = arith.constant 14 : index
    %736 = memref.load %arg3[%c14_198] : memref<108xf32, #tpu.memory_space<smem>>
    %737 = vector.broadcast %736 : f32 to vector<8x128xf32>
    %738 = arith.mulf %735, %737 : vector<8x128xf32>
    %739 = arith.addf %726, %738 : vector<8x128xf32>
    %c50_199 = arith.constant 50 : index
    %740 = memref.load %arg3[%c50_199] : memref<108xf32, #tpu.memory_space<smem>>
    %741 = vector.broadcast %740 : f32 to vector<8x128xf32>
    %742 = arith.mulf %735, %741 : vector<8x128xf32>
    %743 = arith.addf %730, %742 : vector<8x128xf32>
    %c86_200 = arith.constant 86 : index
    %744 = memref.load %arg3[%c86_200] : memref<108xf32, #tpu.memory_space<smem>>
    %745 = vector.broadcast %744 : f32 to vector<8x128xf32>
    %746 = arith.mulf %735, %745 : vector<8x128xf32>
    %747 = arith.addf %734, %746 : vector<8x128xf32>
    %c0_201 = arith.constant 0 : index
    %c1_202 = arith.constant 1 : index
    %c10_203 = arith.constant 10 : index
    %c0_204 = arith.constant 0 : index
    %748 = vector.load %arg2[%c0_201, %c1_202, %c10_203, %c0_204] : memref<1x4x18x128xf32, #tpu.memory_space<vmem>>, vector<1x1x8x128xf32>
    %749 = vector.shape_cast %748 : vector<1x1x8x128xf32> to vector<8x128xf32>
    %c1_i32_205 = arith.constant 1 : i32
    %750 = tpu.dynamic_rotate %749 by %c1_i32_205 dim 1 : vector<8x128xf32>, i32 -> vector<8x128xf32>
    %c15_206 = arith.constant 15 : index
    %751 = memref.load %arg3[%c15_206] : memref<108xf32, #tpu.memory_space<smem>>
    %752 = vector.broadcast %751 : f32 to vector<8x128xf32>
    %753 = arith.mulf %750, %752 : vector<8x128xf32>
    %754 = arith.addf %739, %753 : vector<8x128xf32>
    %c51_207 = arith.constant 51 : index
    %755 = memref.load %arg3[%c51_207] : memref<108xf32, #tpu.memory_space<smem>>
    %756 = vector.broadcast %755 : f32 to vector<8x128xf32>
    %757 = arith.mulf %750, %756 : vector<8x128xf32>
    %758 = arith.addf %743, %757 : vector<8x128xf32>
    %c87_208 = arith.constant 87 : index
    %759 = memref.load %arg3[%c87_208] : memref<108xf32, #tpu.memory_space<smem>>
    %760 = vector.broadcast %759 : f32 to vector<8x128xf32>
    %761 = arith.mulf %750, %760 : vector<8x128xf32>
    %762 = arith.addf %747, %761 : vector<8x128xf32>
    %c16_209 = arith.constant 16 : index
    %763 = memref.load %arg3[%c16_209] : memref<108xf32, #tpu.memory_space<smem>>
    %764 = vector.broadcast %763 : f32 to vector<8x128xf32>
    %765 = arith.mulf %749, %764 : vector<8x128xf32>
    %766 = arith.addf %754, %765 : vector<8x128xf32>
    %c52_210 = arith.constant 52 : index
    %767 = memref.load %arg3[%c52_210] : memref<108xf32, #tpu.memory_space<smem>>
    %768 = vector.broadcast %767 : f32 to vector<8x128xf32>
    %769 = arith.mulf %749, %768 : vector<8x128xf32>
    %770 = arith.addf %758, %769 : vector<8x128xf32>
    %c88_211 = arith.constant 88 : index
    %771 = memref.load %arg3[%c88_211] : memref<108xf32, #tpu.memory_space<smem>>
    %772 = vector.broadcast %771 : f32 to vector<8x128xf32>
    %773 = arith.mulf %749, %772 : vector<8x128xf32>
    %774 = arith.addf %762, %773 : vector<8x128xf32>
    %c127_i32_212 = arith.constant 127 : i32
    %775 = tpu.dynamic_rotate %749 by %c127_i32_212 dim 1 : vector<8x128xf32>, i32 -> vector<8x128xf32>
    %c17_213 = arith.constant 17 : index
    %776 = memref.load %arg3[%c17_213] : memref<108xf32, #tpu.memory_space<smem>>
    %777 = vector.broadcast %776 : f32 to vector<8x128xf32>
    %778 = arith.mulf %775, %777 : vector<8x128xf32>
    %779 = arith.addf %766, %778 : vector<8x128xf32>
    %c53_214 = arith.constant 53 : index
    %780 = memref.load %arg3[%c53_214] : memref<108xf32, #tpu.memory_space<smem>>
    %781 = vector.broadcast %780 : f32 to vector<8x128xf32>
    %782 = arith.mulf %775, %781 : vector<8x128xf32>
    %783 = arith.addf %770, %782 : vector<8x128xf32>
    %c89_215 = arith.constant 89 : index
    %784 = memref.load %arg3[%c89_215] : memref<108xf32, #tpu.memory_space<smem>>
    %785 = vector.broadcast %784 : f32 to vector<8x128xf32>
    %786 = arith.mulf %775, %785 : vector<8x128xf32>
    %787 = arith.addf %774, %786 : vector<8x128xf32>
    %c0_216 = arith.constant 0 : index
    %c2_217 = arith.constant 2 : index
    %c8_218 = arith.constant 8 : index
    %c0_219 = arith.constant 0 : index
    %788 = vector.load %arg2[%c0_216, %c2_217, %c8_218, %c0_219] : memref<1x4x18x128xf32, #tpu.memory_space<vmem>>, vector<1x1x8x128xf32>
    %789 = vector.shape_cast %788 : vector<1x1x8x128xf32> to vector<8x128xf32>
    %c1_i32_220 = arith.constant 1 : i32
    %790 = tpu.dynamic_rotate %789 by %c1_i32_220 dim 1 : vector<8x128xf32>, i32 -> vector<8x128xf32>
    %c18_221 = arith.constant 18 : index
    %791 = memref.load %arg3[%c18_221] : memref<108xf32, #tpu.memory_space<smem>>
    %792 = vector.broadcast %791 : f32 to vector<8x128xf32>
    %793 = arith.mulf %790, %792 : vector<8x128xf32>
    %794 = arith.addf %779, %793 : vector<8x128xf32>
    %c54_222 = arith.constant 54 : index
    %795 = memref.load %arg3[%c54_222] : memref<108xf32, #tpu.memory_space<smem>>
    %796 = vector.broadcast %795 : f32 to vector<8x128xf32>
    %797 = arith.mulf %790, %796 : vector<8x128xf32>
    %798 = arith.addf %783, %797 : vector<8x128xf32>
    %c90_223 = arith.constant 90 : index
    %799 = memref.load %arg3[%c90_223] : memref<108xf32, #tpu.memory_space<smem>>
    %800 = vector.broadcast %799 : f32 to vector<8x128xf32>
    %801 = arith.mulf %790, %800 : vector<8x128xf32>
    %802 = arith.addf %787, %801 : vector<8x128xf32>
    %c19_224 = arith.constant 19 : index
    %803 = memref.load %arg3[%c19_224] : memref<108xf32, #tpu.memory_space<smem>>
    %804 = vector.broadcast %803 : f32 to vector<8x128xf32>
    %805 = arith.mulf %789, %804 : vector<8x128xf32>
    %806 = arith.addf %794, %805 : vector<8x128xf32>
    %c55_225 = arith.constant 55 : index
    %807 = memref.load %arg3[%c55_225] : memref<108xf32, #tpu.memory_space<smem>>
    %808 = vector.broadcast %807 : f32 to vector<8x128xf32>
    %809 = arith.mulf %789, %808 : vector<8x128xf32>
    %810 = arith.addf %798, %809 : vector<8x128xf32>
    %c91_226 = arith.constant 91 : index
    %811 = memref.load %arg3[%c91_226] : memref<108xf32, #tpu.memory_space<smem>>
    %812 = vector.broadcast %811 : f32 to vector<8x128xf32>
    %813 = arith.mulf %789, %812 : vector<8x128xf32>
    %814 = arith.addf %802, %813 : vector<8x128xf32>
    %c127_i32_227 = arith.constant 127 : i32
    %815 = tpu.dynamic_rotate %789 by %c127_i32_227 dim 1 : vector<8x128xf32>, i32 -> vector<8x128xf32>
    %c20_228 = arith.constant 20 : index
    %816 = memref.load %arg3[%c20_228] : memref<108xf32, #tpu.memory_space<smem>>
    %817 = vector.broadcast %816 : f32 to vector<8x128xf32>
    %818 = arith.mulf %815, %817 : vector<8x128xf32>
    %819 = arith.addf %806, %818 : vector<8x128xf32>
    %c56_229 = arith.constant 56 : index
    %820 = memref.load %arg3[%c56_229] : memref<108xf32, #tpu.memory_space<smem>>
    %821 = vector.broadcast %820 : f32 to vector<8x128xf32>
    %822 = arith.mulf %815, %821 : vector<8x128xf32>
    %823 = arith.addf %810, %822 : vector<8x128xf32>
    %c92_230 = arith.constant 92 : index
    %824 = memref.load %arg3[%c92_230] : memref<108xf32, #tpu.memory_space<smem>>
    %825 = vector.broadcast %824 : f32 to vector<8x128xf32>
    %826 = arith.mulf %815, %825 : vector<8x128xf32>
    %827 = arith.addf %814, %826 : vector<8x128xf32>
    %c0_231 = arith.constant 0 : index
    %c2_232 = arith.constant 2 : index
    %c9_233 = arith.constant 9 : index
    %c0_234 = arith.constant 0 : index
    %828 = vector.load %arg2[%c0_231, %c2_232, %c9_233, %c0_234] : memref<1x4x18x128xf32, #tpu.memory_space<vmem>>, vector<1x1x8x128xf32>
    %829 = vector.shape_cast %828 : vector<1x1x8x128xf32> to vector<8x128xf32>
    %c1_i32_235 = arith.constant 1 : i32
    %830 = tpu.dynamic_rotate %829 by %c1_i32_235 dim 1 : vector<8x128xf32>, i32 -> vector<8x128xf32>
    %c21_236 = arith.constant 21 : index
    %831 = memref.load %arg3[%c21_236] : memref<108xf32, #tpu.memory_space<smem>>
    %832 = vector.broadcast %831 : f32 to vector<8x128xf32>
    %833 = arith.mulf %830, %832 : vector<8x128xf32>
    %834 = arith.addf %819, %833 : vector<8x128xf32>
    %c57_237 = arith.constant 57 : index
    %835 = memref.load %arg3[%c57_237] : memref<108xf32, #tpu.memory_space<smem>>
    %836 = vector.broadcast %835 : f32 to vector<8x128xf32>
    %837 = arith.mulf %830, %836 : vector<8x128xf32>
    %838 = arith.addf %823, %837 : vector<8x128xf32>
    %c93_238 = arith.constant 93 : index
    %839 = memref.load %arg3[%c93_238] : memref<108xf32, #tpu.memory_space<smem>>
    %840 = vector.broadcast %839 : f32 to vector<8x128xf32>
    %841 = arith.mulf %830, %840 : vector<8x128xf32>
    %842 = arith.addf %827, %841 : vector<8x128xf32>
    %c22_239 = arith.constant 22 : index
    %843 = memref.load %arg3[%c22_239] : memref<108xf32, #tpu.memory_space<smem>>
    %844 = vector.broadcast %843 : f32 to vector<8x128xf32>
    %845 = arith.mulf %829, %844 : vector<8x128xf32>
    %846 = arith.addf %834, %845 : vector<8x128xf32>
    %c58_240 = arith.constant 58 : index
    %847 = memref.load %arg3[%c58_240] : memref<108xf32, #tpu.memory_space<smem>>
    %848 = vector.broadcast %847 : f32 to vector<8x128xf32>
    %849 = arith.mulf %829, %848 : vector<8x128xf32>
    %850 = arith.addf %838, %849 : vector<8x128xf32>
    %c94_241 = arith.constant 94 : index
    %851 = memref.load %arg3[%c94_241] : memref<108xf32, #tpu.memory_space<smem>>
    %852 = vector.broadcast %851 : f32 to vector<8x128xf32>
    %853 = arith.mulf %829, %852 : vector<8x128xf32>
    %854 = arith.addf %842, %853 : vector<8x128xf32>
    %c127_i32_242 = arith.constant 127 : i32
    %855 = tpu.dynamic_rotate %829 by %c127_i32_242 dim 1 : vector<8x128xf32>, i32 -> vector<8x128xf32>
    %c23_243 = arith.constant 23 : index
    %856 = memref.load %arg3[%c23_243] : memref<108xf32, #tpu.memory_space<smem>>
    %857 = vector.broadcast %856 : f32 to vector<8x128xf32>
    %858 = arith.mulf %855, %857 : vector<8x128xf32>
    %859 = arith.addf %846, %858 : vector<8x128xf32>
    %c59_244 = arith.constant 59 : index
    %860 = memref.load %arg3[%c59_244] : memref<108xf32, #tpu.memory_space<smem>>
    %861 = vector.broadcast %860 : f32 to vector<8x128xf32>
    %862 = arith.mulf %855, %861 : vector<8x128xf32>
    %863 = arith.addf %850, %862 : vector<8x128xf32>
    %c95_245 = arith.constant 95 : index
    %864 = memref.load %arg3[%c95_245] : memref<108xf32, #tpu.memory_space<smem>>
    %865 = vector.broadcast %864 : f32 to vector<8x128xf32>
    %866 = arith.mulf %855, %865 : vector<8x128xf32>
    %867 = arith.addf %854, %866 : vector<8x128xf32>
    %c0_246 = arith.constant 0 : index
    %c2_247 = arith.constant 2 : index
    %c10_248 = arith.constant 10 : index
    %c0_249 = arith.constant 0 : index
    %868 = vector.load %arg2[%c0_246, %c2_247, %c10_248, %c0_249] : memref<1x4x18x128xf32, #tpu.memory_space<vmem>>, vector<1x1x8x128xf32>
    %869 = vector.shape_cast %868 : vector<1x1x8x128xf32> to vector<8x128xf32>
    %c1_i32_250 = arith.constant 1 : i32
    %870 = tpu.dynamic_rotate %869 by %c1_i32_250 dim 1 : vector<8x128xf32>, i32 -> vector<8x128xf32>
    %c24_251 = arith.constant 24 : index
    %871 = memref.load %arg3[%c24_251] : memref<108xf32, #tpu.memory_space<smem>>
    %872 = vector.broadcast %871 : f32 to vector<8x128xf32>
    %873 = arith.mulf %870, %872 : vector<8x128xf32>
    %874 = arith.addf %859, %873 : vector<8x128xf32>
    %c60_252 = arith.constant 60 : index
    %875 = memref.load %arg3[%c60_252] : memref<108xf32, #tpu.memory_space<smem>>
    %876 = vector.broadcast %875 : f32 to vector<8x128xf32>
    %877 = arith.mulf %870, %876 : vector<8x128xf32>
    %878 = arith.addf %863, %877 : vector<8x128xf32>
    %c96_253 = arith.constant 96 : index
    %879 = memref.load %arg3[%c96_253] : memref<108xf32, #tpu.memory_space<smem>>
    %880 = vector.broadcast %879 : f32 to vector<8x128xf32>
    %881 = arith.mulf %870, %880 : vector<8x128xf32>
    %882 = arith.addf %867, %881 : vector<8x128xf32>
    %c25_254 = arith.constant 25 : index
    %883 = memref.load %arg3[%c25_254] : memref<108xf32, #tpu.memory_space<smem>>
    %884 = vector.broadcast %883 : f32 to vector<8x128xf32>
    %885 = arith.mulf %869, %884 : vector<8x128xf32>
    %886 = arith.addf %874, %885 : vector<8x128xf32>
    %c61_255 = arith.constant 61 : index
    %887 = memref.load %arg3[%c61_255] : memref<108xf32, #tpu.memory_space<smem>>
    %888 = vector.broadcast %887 : f32 to vector<8x128xf32>
    %889 = arith.mulf %869, %888 : vector<8x128xf32>
    %890 = arith.addf %878, %889 : vector<8x128xf32>
    %c97_256 = arith.constant 97 : index
    %891 = memref.load %arg3[%c97_256] : memref<108xf32, #tpu.memory_space<smem>>
    %892 = vector.broadcast %891 : f32 to vector<8x128xf32>
    %893 = arith.mulf %869, %892 : vector<8x128xf32>
    %894 = arith.addf %882, %893 : vector<8x128xf32>
    %c127_i32_257 = arith.constant 127 : i32
    %895 = tpu.dynamic_rotate %869 by %c127_i32_257 dim 1 : vector<8x128xf32>, i32 -> vector<8x128xf32>
    %c26_258 = arith.constant 26 : index
    %896 = memref.load %arg3[%c26_258] : memref<108xf32, #tpu.memory_space<smem>>
    %897 = vector.broadcast %896 : f32 to vector<8x128xf32>
    %898 = arith.mulf %895, %897 : vector<8x128xf32>
    %899 = arith.addf %886, %898 : vector<8x128xf32>
    %c62_259 = arith.constant 62 : index
    %900 = memref.load %arg3[%c62_259] : memref<108xf32, #tpu.memory_space<smem>>
    %901 = vector.broadcast %900 : f32 to vector<8x128xf32>
    %902 = arith.mulf %895, %901 : vector<8x128xf32>
    %903 = arith.addf %890, %902 : vector<8x128xf32>
    %c98_260 = arith.constant 98 : index
    %904 = memref.load %arg3[%c98_260] : memref<108xf32, #tpu.memory_space<smem>>
    %905 = vector.broadcast %904 : f32 to vector<8x128xf32>
    %906 = arith.mulf %895, %905 : vector<8x128xf32>
    %907 = arith.addf %894, %906 : vector<8x128xf32>
    %c0_261 = arith.constant 0 : index
    %c3_262 = arith.constant 3 : index
    %c8_263 = arith.constant 8 : index
    %c0_264 = arith.constant 0 : index
    %908 = vector.load %arg2[%c0_261, %c3_262, %c8_263, %c0_264] : memref<1x4x18x128xf32, #tpu.memory_space<vmem>>, vector<1x1x8x128xf32>
    %909 = vector.shape_cast %908 : vector<1x1x8x128xf32> to vector<8x128xf32>
    %c1_i32_265 = arith.constant 1 : i32
    %910 = tpu.dynamic_rotate %909 by %c1_i32_265 dim 1 : vector<8x128xf32>, i32 -> vector<8x128xf32>
    %c27_266 = arith.constant 27 : index
    %911 = memref.load %arg3[%c27_266] : memref<108xf32, #tpu.memory_space<smem>>
    %912 = vector.broadcast %911 : f32 to vector<8x128xf32>
    %913 = arith.mulf %910, %912 : vector<8x128xf32>
    %914 = arith.addf %899, %913 : vector<8x128xf32>
    %c63_267 = arith.constant 63 : index
    %915 = memref.load %arg3[%c63_267] : memref<108xf32, #tpu.memory_space<smem>>
    %916 = vector.broadcast %915 : f32 to vector<8x128xf32>
    %917 = arith.mulf %910, %916 : vector<8x128xf32>
    %918 = arith.addf %903, %917 : vector<8x128xf32>
    %c99_268 = arith.constant 99 : index
    %919 = memref.load %arg3[%c99_268] : memref<108xf32, #tpu.memory_space<smem>>
    %920 = vector.broadcast %919 : f32 to vector<8x128xf32>
    %921 = arith.mulf %910, %920 : vector<8x128xf32>
    %922 = arith.addf %907, %921 : vector<8x128xf32>
    %c28_269 = arith.constant 28 : index
    %923 = memref.load %arg3[%c28_269] : memref<108xf32, #tpu.memory_space<smem>>
    %924 = vector.broadcast %923 : f32 to vector<8x128xf32>
    %925 = arith.mulf %909, %924 : vector<8x128xf32>
    %926 = arith.addf %914, %925 : vector<8x128xf32>
    %c64_270 = arith.constant 64 : index
    %927 = memref.load %arg3[%c64_270] : memref<108xf32, #tpu.memory_space<smem>>
    %928 = vector.broadcast %927 : f32 to vector<8x128xf32>
    %929 = arith.mulf %909, %928 : vector<8x128xf32>
    %930 = arith.addf %918, %929 : vector<8x128xf32>
    %c100_271 = arith.constant 100 : index
    %931 = memref.load %arg3[%c100_271] : memref<108xf32, #tpu.memory_space<smem>>
    %932 = vector.broadcast %931 : f32 to vector<8x128xf32>
    %933 = arith.mulf %909, %932 : vector<8x128xf32>
    %934 = arith.addf %922, %933 : vector<8x128xf32>
    %c127_i32_272 = arith.constant 127 : i32
    %935 = tpu.dynamic_rotate %909 by %c127_i32_272 dim 1 : vector<8x128xf32>, i32 -> vector<8x128xf32>
    %c29_273 = arith.constant 29 : index
    %936 = memref.load %arg3[%c29_273] : memref<108xf32, #tpu.memory_space<smem>>
    %937 = vector.broadcast %936 : f32 to vector<8x128xf32>
    %938 = arith.mulf %935, %937 : vector<8x128xf32>
    %939 = arith.addf %926, %938 : vector<8x128xf32>
    %c65_274 = arith.constant 65 : index
    %940 = memref.load %arg3[%c65_274] : memref<108xf32, #tpu.memory_space<smem>>
    %941 = vector.broadcast %940 : f32 to vector<8x128xf32>
    %942 = arith.mulf %935, %941 : vector<8x128xf32>
    %943 = arith.addf %930, %942 : vector<8x128xf32>
    %c101_275 = arith.constant 101 : index
    %944 = memref.load %arg3[%c101_275] : memref<108xf32, #tpu.memory_space<smem>>
    %945 = vector.broadcast %944 : f32 to vector<8x128xf32>
    %946 = arith.mulf %935, %945 : vector<8x128xf32>
    %947 = arith.addf %934, %946 : vector<8x128xf32>
    %c0_276 = arith.constant 0 : index
    %c3_277 = arith.constant 3 : index
    %c9_278 = arith.constant 9 : index
    %c0_279 = arith.constant 0 : index
    %948 = vector.load %arg2[%c0_276, %c3_277, %c9_278, %c0_279] : memref<1x4x18x128xf32, #tpu.memory_space<vmem>>, vector<1x1x8x128xf32>
    %949 = vector.shape_cast %948 : vector<1x1x8x128xf32> to vector<8x128xf32>
    %c1_i32_280 = arith.constant 1 : i32
    %950 = tpu.dynamic_rotate %949 by %c1_i32_280 dim 1 : vector<8x128xf32>, i32 -> vector<8x128xf32>
    %c30_281 = arith.constant 30 : index
    %951 = memref.load %arg3[%c30_281] : memref<108xf32, #tpu.memory_space<smem>>
    %952 = vector.broadcast %951 : f32 to vector<8x128xf32>
    %953 = arith.mulf %950, %952 : vector<8x128xf32>
    %954 = arith.addf %939, %953 : vector<8x128xf32>
    %c66_282 = arith.constant 66 : index
    %955 = memref.load %arg3[%c66_282] : memref<108xf32, #tpu.memory_space<smem>>
    %956 = vector.broadcast %955 : f32 to vector<8x128xf32>
    %957 = arith.mulf %950, %956 : vector<8x128xf32>
    %958 = arith.addf %943, %957 : vector<8x128xf32>
    %c102_283 = arith.constant 102 : index
    %959 = memref.load %arg3[%c102_283] : memref<108xf32, #tpu.memory_space<smem>>
    %960 = vector.broadcast %959 : f32 to vector<8x128xf32>
    %961 = arith.mulf %950, %960 : vector<8x128xf32>
    %962 = arith.addf %947, %961 : vector<8x128xf32>
    %c31_284 = arith.constant 31 : index
    %963 = memref.load %arg3[%c31_284] : memref<108xf32, #tpu.memory_space<smem>>
    %964 = vector.broadcast %963 : f32 to vector<8x128xf32>
    %965 = arith.mulf %949, %964 : vector<8x128xf32>
    %966 = arith.addf %954, %965 : vector<8x128xf32>
    %c67_285 = arith.constant 67 : index
    %967 = memref.load %arg3[%c67_285] : memref<108xf32, #tpu.memory_space<smem>>
    %968 = vector.broadcast %967 : f32 to vector<8x128xf32>
    %969 = arith.mulf %949, %968 : vector<8x128xf32>
    %970 = arith.addf %958, %969 : vector<8x128xf32>
    %c103_286 = arith.constant 103 : index
    %971 = memref.load %arg3[%c103_286] : memref<108xf32, #tpu.memory_space<smem>>
    %972 = vector.broadcast %971 : f32 to vector<8x128xf32>
    %973 = arith.mulf %949, %972 : vector<8x128xf32>
    %974 = arith.addf %962, %973 : vector<8x128xf32>
    %c127_i32_287 = arith.constant 127 : i32
    %975 = tpu.dynamic_rotate %949 by %c127_i32_287 dim 1 : vector<8x128xf32>, i32 -> vector<8x128xf32>
    %c32_288 = arith.constant 32 : index
    %976 = memref.load %arg3[%c32_288] : memref<108xf32, #tpu.memory_space<smem>>
    %977 = vector.broadcast %976 : f32 to vector<8x128xf32>
    %978 = arith.mulf %975, %977 : vector<8x128xf32>
    %979 = arith.addf %966, %978 : vector<8x128xf32>
    %c68_289 = arith.constant 68 : index
    %980 = memref.load %arg3[%c68_289] : memref<108xf32, #tpu.memory_space<smem>>
    %981 = vector.broadcast %980 : f32 to vector<8x128xf32>
    %982 = arith.mulf %975, %981 : vector<8x128xf32>
    %983 = arith.addf %970, %982 : vector<8x128xf32>
    %c104_290 = arith.constant 104 : index
    %984 = memref.load %arg3[%c104_290] : memref<108xf32, #tpu.memory_space<smem>>
    %985 = vector.broadcast %984 : f32 to vector<8x128xf32>
    %986 = arith.mulf %975, %985 : vector<8x128xf32>
    %987 = arith.addf %974, %986 : vector<8x128xf32>
    %c0_291 = arith.constant 0 : index
    %c3_292 = arith.constant 3 : index
    %c10_293 = arith.constant 10 : index
    %c0_294 = arith.constant 0 : index
    %988 = vector.load %arg2[%c0_291, %c3_292, %c10_293, %c0_294] : memref<1x4x18x128xf32, #tpu.memory_space<vmem>>, vector<1x1x8x128xf32>
    %989 = vector.shape_cast %988 : vector<1x1x8x128xf32> to vector<8x128xf32>
    %c1_i32_295 = arith.constant 1 : i32
    %990 = tpu.dynamic_rotate %989 by %c1_i32_295 dim 1 : vector<8x128xf32>, i32 -> vector<8x128xf32>
    %c33_296 = arith.constant 33 : index
    %991 = memref.load %arg3[%c33_296] : memref<108xf32, #tpu.memory_space<smem>>
    %992 = vector.broadcast %991 : f32 to vector<8x128xf32>
    %993 = arith.mulf %990, %992 : vector<8x128xf32>
    %994 = arith.addf %979, %993 : vector<8x128xf32>
    %c69_297 = arith.constant 69 : index
    %995 = memref.load %arg3[%c69_297] : memref<108xf32, #tpu.memory_space<smem>>
    %996 = vector.broadcast %995 : f32 to vector<8x128xf32>
    %997 = arith.mulf %990, %996 : vector<8x128xf32>
    %998 = arith.addf %983, %997 : vector<8x128xf32>
    %c105_298 = arith.constant 105 : index
    %999 = memref.load %arg3[%c105_298] : memref<108xf32, #tpu.memory_space<smem>>
    %1000 = vector.broadcast %999 : f32 to vector<8x128xf32>
    %1001 = arith.mulf %990, %1000 : vector<8x128xf32>
    %1002 = arith.addf %987, %1001 : vector<8x128xf32>
    %c34_299 = arith.constant 34 : index
    %1003 = memref.load %arg3[%c34_299] : memref<108xf32, #tpu.memory_space<smem>>
    %1004 = vector.broadcast %1003 : f32 to vector<8x128xf32>
    %1005 = arith.mulf %989, %1004 : vector<8x128xf32>
    %1006 = arith.addf %994, %1005 : vector<8x128xf32>
    %c70_300 = arith.constant 70 : index
    %1007 = memref.load %arg3[%c70_300] : memref<108xf32, #tpu.memory_space<smem>>
    %1008 = vector.broadcast %1007 : f32 to vector<8x128xf32>
    %1009 = arith.mulf %989, %1008 : vector<8x128xf32>
    %1010 = arith.addf %998, %1009 : vector<8x128xf32>
    %c106_301 = arith.constant 106 : index
    %1011 = memref.load %arg3[%c106_301] : memref<108xf32, #tpu.memory_space<smem>>
    %1012 = vector.broadcast %1011 : f32 to vector<8x128xf32>
    %1013 = arith.mulf %989, %1012 : vector<8x128xf32>
    %1014 = arith.addf %1002, %1013 : vector<8x128xf32>
    %c127_i32_302 = arith.constant 127 : i32
    %1015 = tpu.dynamic_rotate %989 by %c127_i32_302 dim 1 : vector<8x128xf32>, i32 -> vector<8x128xf32>
    %c35_303 = arith.constant 35 : index
    %1016 = memref.load %arg3[%c35_303] : memref<108xf32, #tpu.memory_space<smem>>
    %1017 = vector.broadcast %1016 : f32 to vector<8x128xf32>
    %1018 = arith.mulf %1015, %1017 : vector<8x128xf32>
    %1019 = arith.addf %1006, %1018 : vector<8x128xf32>
    %c71_304 = arith.constant 71 : index
    %1020 = memref.load %arg3[%c71_304] : memref<108xf32, #tpu.memory_space<smem>>
    %1021 = vector.broadcast %1020 : f32 to vector<8x128xf32>
    %1022 = arith.mulf %1015, %1021 : vector<8x128xf32>
    %1023 = arith.addf %1010, %1022 : vector<8x128xf32>
    %c107_305 = arith.constant 107 : index
    %1024 = memref.load %arg3[%c107_305] : memref<108xf32, #tpu.memory_space<smem>>
    %1025 = vector.broadcast %1024 : f32 to vector<8x128xf32>
    %1026 = arith.mulf %1015, %1025 : vector<8x128xf32>
    %1027 = arith.addf %1014, %1026 : vector<8x128xf32>
    %c0_306 = arith.constant 0 : index
    %c0_307 = arith.constant 0 : index
    %1028 = vector.load %arg1[%c0_306, %c0_307] : memref<8x128xf32, #tpu.memory_space<vmem>>, vector<8x128xf32>
    %cst_308 = arith.constant 0.000000e+00 : f32
    %1029 = vector.broadcast %cst_308 : f32 to vector<8x128xf32>
    %1030 = arith.maximumf %1019, %1029 : vector<8x128xf32>
    %1031 = arith.mulf %1030, %1028 : vector<8x128xf32>
    %c0_309 = arith.constant 0 : index
    %c16_310 = arith.constant 16 : index
    %c0_311 = arith.constant 0 : index
    %1032 = vector.load %arg10[%c0_309, %c16_310, %c0_311] : memref<3x25x128xf32, #tpu.memory_space<vmem>>, vector<1x8x128xf32>
    %1033 = vector.shape_cast %1032 : vector<1x8x128xf32> to vector<8x128xf32>
    %1034 = vector.shape_cast %1031 : vector<8x128xf32> to vector<1x8x128xf32>
    tpu.vector_store %arg10[%c0_309, %c16_310, %c0_311], %1034 {strides = array<i32>} : memref<3x25x128xf32, #tpu.memory_space<vmem>>, vector<1x8x128xf32>,
    %cst_312 = arith.constant 0.000000e+00 : f32
    %1035 = vector.broadcast %cst_312 : f32 to vector<8x128xf32>
    %1036 = arith.maximumf %1023, %1035 : vector<8x128xf32>
    %1037 = arith.mulf %1036, %1028 : vector<8x128xf32>
    %c1_313 = arith.constant 1 : index
    %c16_314 = arith.constant 16 : index
    %c0_315 = arith.constant 0 : index
    %1038 = vector.load %arg10[%c1_313, %c16_314, %c0_315] : memref<3x25x128xf32, #tpu.memory_space<vmem>>, vector<1x8x128xf32>
    %1039 = vector.shape_cast %1038 : vector<1x8x128xf32> to vector<8x128xf32>
    %1040 = vector.shape_cast %1037 : vector<8x128xf32> to vector<1x8x128xf32>
    tpu.vector_store %arg10[%c1_313, %c16_314, %c0_315], %1040 {strides = array<i32>} : memref<3x25x128xf32, #tpu.memory_space<vmem>>, vector<1x8x128xf32>,
    %cst_316 = arith.constant 0.000000e+00 : f32
    %1041 = vector.broadcast %cst_316 : f32 to vector<8x128xf32>
    %1042 = arith.maximumf %1027, %1041 : vector<8x128xf32>
    %1043 = arith.mulf %1042, %1028 : vector<8x128xf32>
    %c2_317 = arith.constant 2 : index
    %c16_318 = arith.constant 16 : index
    %c0_319 = arith.constant 0 : index
    %1044 = vector.load %arg10[%c2_317, %c16_318, %c0_319] : memref<3x25x128xf32, #tpu.memory_space<vmem>>, vector<1x8x128xf32>
    %1045 = vector.shape_cast %1044 : vector<1x8x128xf32> to vector<8x128xf32>
    %1046 = vector.shape_cast %1043 : vector<8x128xf32> to vector<1x8x128xf32>
    tpu.vector_store %arg10[%c2_317, %c16_318, %c0_319], %1046 {strides = array<i32>} : memref<3x25x128xf32, #tpu.memory_space<vmem>>, vector<1x8x128xf32>,
    %c0_320 = arith.constant 0 : index
    %1047 = memref.load %arg6[%c0_320] : memref<3xf32, #tpu.memory_space<smem>>
    %1048 = vector.broadcast %1047 : f32 to vector<8x128xf32>
    %c1_321 = arith.constant 1 : index
    %1049 = memref.load %arg6[%c1_321] : memref<3xf32, #tpu.memory_space<smem>>
    %1050 = vector.broadcast %1049 : f32 to vector<8x128xf32>
    %c2_322 = arith.constant 2 : index
    %1051 = memref.load %arg6[%c2_322] : memref<3xf32, #tpu.memory_space<smem>>
    %1052 = vector.broadcast %1051 : f32 to vector<8x128xf32>
    %c0_323 = arith.constant 0 : index
    %c7_324 = arith.constant 7 : index
    %c0_325 = arith.constant 0 : index
    %1053 = vector.load %arg10[%c0_323, %c7_324, %c0_325] : memref<3x25x128xf32, #tpu.memory_space<vmem>>, vector<1x8x128xf32>
    %1054 = vector.shape_cast %1053 : vector<1x8x128xf32> to vector<8x128xf32>
    %c1_i32_326 = arith.constant 1 : i32
    %1055 = tpu.dynamic_rotate %1054 by %c1_i32_326 dim 1 : vector<8x128xf32>, i32 -> vector<8x128xf32>
    %c0_327 = arith.constant 0 : index
    %1056 = memref.load %arg5[%c0_327] : memref<81xf32, #tpu.memory_space<smem>>
    %1057 = vector.broadcast %1056 : f32 to vector<8x128xf32>
    %1058 = arith.mulf %1055, %1057 : vector<8x128xf32>
    %1059 = arith.addf %1048, %1058 : vector<8x128xf32>
    %c27_328 = arith.constant 27 : index
    %1060 = memref.load %arg5[%c27_328] : memref<81xf32, #tpu.memory_space<smem>>
    %1061 = vector.broadcast %1060 : f32 to vector<8x128xf32>
    %1062 = arith.mulf %1055, %1061 : vector<8x128xf32>
    %1063 = arith.addf %1050, %1062 : vector<8x128xf32>
    %c54_329 = arith.constant 54 : index
    %1064 = memref.load %arg5[%c54_329] : memref<81xf32, #tpu.memory_space<smem>>
    %1065 = vector.broadcast %1064 : f32 to vector<8x128xf32>
    %1066 = arith.mulf %1055, %1065 : vector<8x128xf32>
    %1067 = arith.addf %1052, %1066 : vector<8x128xf32>
    %c1_330 = arith.constant 1 : index
    %1068 = memref.load %arg5[%c1_330] : memref<81xf32, #tpu.memory_space<smem>>
    %1069 = vector.broadcast %1068 : f32 to vector<8x128xf32>
    %1070 = arith.mulf %1054, %1069 : vector<8x128xf32>
    %1071 = arith.addf %1059, %1070 : vector<8x128xf32>
    %c28_331 = arith.constant 28 : index
    %1072 = memref.load %arg5[%c28_331] : memref<81xf32, #tpu.memory_space<smem>>
    %1073 = vector.broadcast %1072 : f32 to vector<8x128xf32>
    %1074 = arith.mulf %1054, %1073 : vector<8x128xf32>
    %1075 = arith.addf %1063, %1074 : vector<8x128xf32>
    %c55_332 = arith.constant 55 : index
    %1076 = memref.load %arg5[%c55_332] : memref<81xf32, #tpu.memory_space<smem>>
    %1077 = vector.broadcast %1076 : f32 to vector<8x128xf32>
    %1078 = arith.mulf %1054, %1077 : vector<8x128xf32>
    %1079 = arith.addf %1067, %1078 : vector<8x128xf32>
    %c127_i32_333 = arith.constant 127 : i32
    %1080 = tpu.dynamic_rotate %1054 by %c127_i32_333 dim 1 : vector<8x128xf32>, i32 -> vector<8x128xf32>
    %c2_334 = arith.constant 2 : index
    %1081 = memref.load %arg5[%c2_334] : memref<81xf32, #tpu.memory_space<smem>>
    %1082 = vector.broadcast %1081 : f32 to vector<8x128xf32>
    %1083 = arith.mulf %1080, %1082 : vector<8x128xf32>
    %1084 = arith.addf %1071, %1083 : vector<8x128xf32>
    %c29_335 = arith.constant 29 : index
    %1085 = memref.load %arg5[%c29_335] : memref<81xf32, #tpu.memory_space<smem>>
    %1086 = vector.broadcast %1085 : f32 to vector<8x128xf32>
    %1087 = arith.mulf %1080, %1086 : vector<8x128xf32>
    %1088 = arith.addf %1075, %1087 : vector<8x128xf32>
    %c56_336 = arith.constant 56 : index
    %1089 = memref.load %arg5[%c56_336] : memref<81xf32, #tpu.memory_space<smem>>
    %1090 = vector.broadcast %1089 : f32 to vector<8x128xf32>
    %1091 = arith.mulf %1080, %1090 : vector<8x128xf32>
    %1092 = arith.addf %1079, %1091 : vector<8x128xf32>
    %c0_337 = arith.constant 0 : index
    %c8_338 = arith.constant 8 : index
    %c0_339 = arith.constant 0 : index
    %1093 = vector.load %arg10[%c0_337, %c8_338, %c0_339] : memref<3x25x128xf32, #tpu.memory_space<vmem>>, vector<1x8x128xf32>
    %1094 = vector.shape_cast %1093 : vector<1x8x128xf32> to vector<8x128xf32>
    %c1_i32_340 = arith.constant 1 : i32
    %1095 = tpu.dynamic_rotate %1094 by %c1_i32_340 dim 1 : vector<8x128xf32>, i32 -> vector<8x128xf32>
    %c3_341 = arith.constant 3 : index
    %1096 = memref.load %arg5[%c3_341] : memref<81xf32, #tpu.memory_space<smem>>
    %1097 = vector.broadcast %1096 : f32 to vector<8x128xf32>
    %1098 = arith.mulf %1095, %1097 : vector<8x128xf32>
    %1099 = arith.addf %1084, %1098 : vector<8x128xf32>
    %c30_342 = arith.constant 30 : index
    %1100 = memref.load %arg5[%c30_342] : memref<81xf32, #tpu.memory_space<smem>>
    %1101 = vector.broadcast %1100 : f32 to vector<8x128xf32>
    %1102 = arith.mulf %1095, %1101 : vector<8x128xf32>
    %1103 = arith.addf %1088, %1102 : vector<8x128xf32>
    %c57_343 = arith.constant 57 : index
    %1104 = memref.load %arg5[%c57_343] : memref<81xf32, #tpu.memory_space<smem>>
    %1105 = vector.broadcast %1104 : f32 to vector<8x128xf32>
    %1106 = arith.mulf %1095, %1105 : vector<8x128xf32>
    %1107 = arith.addf %1092, %1106 : vector<8x128xf32>
    %c4_344 = arith.constant 4 : index
    %1108 = memref.load %arg5[%c4_344] : memref<81xf32, #tpu.memory_space<smem>>
    %1109 = vector.broadcast %1108 : f32 to vector<8x128xf32>
    %1110 = arith.mulf %1094, %1109 : vector<8x128xf32>
    %1111 = arith.addf %1099, %1110 : vector<8x128xf32>
    %c31_345 = arith.constant 31 : index
    %1112 = memref.load %arg5[%c31_345] : memref<81xf32, #tpu.memory_space<smem>>
    %1113 = vector.broadcast %1112 : f32 to vector<8x128xf32>
    %1114 = arith.mulf %1094, %1113 : vector<8x128xf32>
    %1115 = arith.addf %1103, %1114 : vector<8x128xf32>
    %c58_346 = arith.constant 58 : index
    %1116 = memref.load %arg5[%c58_346] : memref<81xf32, #tpu.memory_space<smem>>
    %1117 = vector.broadcast %1116 : f32 to vector<8x128xf32>
    %1118 = arith.mulf %1094, %1117 : vector<8x128xf32>
    %1119 = arith.addf %1107, %1118 : vector<8x128xf32>
    %c127_i32_347 = arith.constant 127 : i32
    %1120 = tpu.dynamic_rotate %1094 by %c127_i32_347 dim 1 : vector<8x128xf32>, i32 -> vector<8x128xf32>
    %c5_348 = arith.constant 5 : index
    %1121 = memref.load %arg5[%c5_348] : memref<81xf32, #tpu.memory_space<smem>>
    %1122 = vector.broadcast %1121 : f32 to vector<8x128xf32>
    %1123 = arith.mulf %1120, %1122 : vector<8x128xf32>
    %1124 = arith.addf %1111, %1123 : vector<8x128xf32>
    %c32_349 = arith.constant 32 : index
    %1125 = memref.load %arg5[%c32_349] : memref<81xf32, #tpu.memory_space<smem>>
    %1126 = vector.broadcast %1125 : f32 to vector<8x128xf32>
    %1127 = arith.mulf %1120, %1126 : vector<8x128xf32>
    %1128 = arith.addf %1115, %1127 : vector<8x128xf32>
    %c59_350 = arith.constant 59 : index
    %1129 = memref.load %arg5[%c59_350] : memref<81xf32, #tpu.memory_space<smem>>
    %1130 = vector.broadcast %1129 : f32 to vector<8x128xf32>
    %1131 = arith.mulf %1120, %1130 : vector<8x128xf32>
    %1132 = arith.addf %1119, %1131 : vector<8x128xf32>
    %c0_351 = arith.constant 0 : index
    %c9_352 = arith.constant 9 : index
    %c0_353 = arith.constant 0 : index
    %1133 = vector.load %arg10[%c0_351, %c9_352, %c0_353] : memref<3x25x128xf32, #tpu.memory_space<vmem>>, vector<1x8x128xf32>
    %1134 = vector.shape_cast %1133 : vector<1x8x128xf32> to vector<8x128xf32>
    %c1_i32_354 = arith.constant 1 : i32
    %1135 = tpu.dynamic_rotate %1134 by %c1_i32_354 dim 1 : vector<8x128xf32>, i32 -> vector<8x128xf32>
    %c6_355 = arith.constant 6 : index
    %1136 = memref.load %arg5[%c6_355] : memref<81xf32, #tpu.memory_space<smem>>
    %1137 = vector.broadcast %1136 : f32 to vector<8x128xf32>
    %1138 = arith.mulf %1135, %1137 : vector<8x128xf32>
    %1139 = arith.addf %1124, %1138 : vector<8x128xf32>
    %c33_356 = arith.constant 33 : index
    %1140 = memref.load %arg5[%c33_356] : memref<81xf32, #tpu.memory_space<smem>>
    %1141 = vector.broadcast %1140 : f32 to vector<8x128xf32>
    %1142 = arith.mulf %1135, %1141 : vector<8x128xf32>
    %1143 = arith.addf %1128, %1142 : vector<8x128xf32>
    %c60_357 = arith.constant 60 : index
    %1144 = memref.load %arg5[%c60_357] : memref<81xf32, #tpu.memory_space<smem>>
    %1145 = vector.broadcast %1144 : f32 to vector<8x128xf32>
    %1146 = arith.mulf %1135, %1145 : vector<8x128xf32>
    %1147 = arith.addf %1132, %1146 : vector<8x128xf32>
    %c7_358 = arith.constant 7 : index
    %1148 = memref.load %arg5[%c7_358] : memref<81xf32, #tpu.memory_space<smem>>
    %1149 = vector.broadcast %1148 : f32 to vector<8x128xf32>
    %1150 = arith.mulf %1134, %1149 : vector<8x128xf32>
    %1151 = arith.addf %1139, %1150 : vector<8x128xf32>
    %c34_359 = arith.constant 34 : index
    %1152 = memref.load %arg5[%c34_359] : memref<81xf32, #tpu.memory_space<smem>>
    %1153 = vector.broadcast %1152 : f32 to vector<8x128xf32>
    %1154 = arith.mulf %1134, %1153 : vector<8x128xf32>
    %1155 = arith.addf %1143, %1154 : vector<8x128xf32>
    %c61_360 = arith.constant 61 : index
    %1156 = memref.load %arg5[%c61_360] : memref<81xf32, #tpu.memory_space<smem>>
    %1157 = vector.broadcast %1156 : f32 to vector<8x128xf32>
    %1158 = arith.mulf %1134, %1157 : vector<8x128xf32>
    %1159 = arith.addf %1147, %1158 : vector<8x128xf32>
    %c127_i32_361 = arith.constant 127 : i32
    %1160 = tpu.dynamic_rotate %1134 by %c127_i32_361 dim 1 : vector<8x128xf32>, i32 -> vector<8x128xf32>
    %c8_362 = arith.constant 8 : index
    %1161 = memref.load %arg5[%c8_362] : memref<81xf32, #tpu.memory_space<smem>>
    %1162 = vector.broadcast %1161 : f32 to vector<8x128xf32>
    %1163 = arith.mulf %1160, %1162 : vector<8x128xf32>
    %1164 = arith.addf %1151, %1163 : vector<8x128xf32>
    %c35_363 = arith.constant 35 : index
    %1165 = memref.load %arg5[%c35_363] : memref<81xf32, #tpu.memory_space<smem>>
    %1166 = vector.broadcast %1165 : f32 to vector<8x128xf32>
    %1167 = arith.mulf %1160, %1166 : vector<8x128xf32>
    %1168 = arith.addf %1155, %1167 : vector<8x128xf32>
    %c62_364 = arith.constant 62 : index
    %1169 = memref.load %arg5[%c62_364] : memref<81xf32, #tpu.memory_space<smem>>
    %1170 = vector.broadcast %1169 : f32 to vector<8x128xf32>
    %1171 = arith.mulf %1160, %1170 : vector<8x128xf32>
    %1172 = arith.addf %1159, %1171 : vector<8x128xf32>
    %c1_365 = arith.constant 1 : index
    %c7_366 = arith.constant 7 : index
    %c0_367 = arith.constant 0 : index
    %1173 = vector.load %arg10[%c1_365, %c7_366, %c0_367] : memref<3x25x128xf32, #tpu.memory_space<vmem>>, vector<1x8x128xf32>
    %1174 = vector.shape_cast %1173 : vector<1x8x128xf32> to vector<8x128xf32>
    %c1_i32_368 = arith.constant 1 : i32
    %1175 = tpu.dynamic_rotate %1174 by %c1_i32_368 dim 1 : vector<8x128xf32>, i32 -> vector<8x128xf32>
    %c9_369 = arith.constant 9 : index
    %1176 = memref.load %arg5[%c9_369] : memref<81xf32, #tpu.memory_space<smem>>
    %1177 = vector.broadcast %1176 : f32 to vector<8x128xf32>
    %1178 = arith.mulf %1175, %1177 : vector<8x128xf32>
    %1179 = arith.addf %1164, %1178 : vector<8x128xf32>
    %c36_370 = arith.constant 36 : index
    %1180 = memref.load %arg5[%c36_370] : memref<81xf32, #tpu.memory_space<smem>>
    %1181 = vector.broadcast %1180 : f32 to vector<8x128xf32>
    %1182 = arith.mulf %1175, %1181 : vector<8x128xf32>
    %1183 = arith.addf %1168, %1182 : vector<8x128xf32>
    %c63_371 = arith.constant 63 : index
    %1184 = memref.load %arg5[%c63_371] : memref<81xf32, #tpu.memory_space<smem>>
    %1185 = vector.broadcast %1184 : f32 to vector<8x128xf32>
    %1186 = arith.mulf %1175, %1185 : vector<8x128xf32>
    %1187 = arith.addf %1172, %1186 : vector<8x128xf32>
    %c10_372 = arith.constant 10 : index
    %1188 = memref.load %arg5[%c10_372] : memref<81xf32, #tpu.memory_space<smem>>
    %1189 = vector.broadcast %1188 : f32 to vector<8x128xf32>
    %1190 = arith.mulf %1174, %1189 : vector<8x128xf32>
    %1191 = arith.addf %1179, %1190 : vector<8x128xf32>
    %c37_373 = arith.constant 37 : index
    %1192 = memref.load %arg5[%c37_373] : memref<81xf32, #tpu.memory_space<smem>>
    %1193 = vector.broadcast %1192 : f32 to vector<8x128xf32>
    %1194 = arith.mulf %1174, %1193 : vector<8x128xf32>
    %1195 = arith.addf %1183, %1194 : vector<8x128xf32>
    %c64_374 = arith.constant 64 : index
    %1196 = memref.load %arg5[%c64_374] : memref<81xf32, #tpu.memory_space<smem>>
    %1197 = vector.broadcast %1196 : f32 to vector<8x128xf32>
    %1198 = arith.mulf %1174, %1197 : vector<8x128xf32>
    %1199 = arith.addf %1187, %1198 : vector<8x128xf32>
    %c127_i32_375 = arith.constant 127 : i32
    %1200 = tpu.dynamic_rotate %1174 by %c127_i32_375 dim 1 : vector<8x128xf32>, i32 -> vector<8x128xf32>
    %c11_376 = arith.constant 11 : index
    %1201 = memref.load %arg5[%c11_376] : memref<81xf32, #tpu.memory_space<smem>>
    %1202 = vector.broadcast %1201 : f32 to vector<8x128xf32>
    %1203 = arith.mulf %1200, %1202 : vector<8x128xf32>
    %1204 = arith.addf %1191, %1203 : vector<8x128xf32>
    %c38_377 = arith.constant 38 : index
    %1205 = memref.load %arg5[%c38_377] : memref<81xf32, #tpu.memory_space<smem>>
    %1206 = vector.broadcast %1205 : f32 to vector<8x128xf32>
    %1207 = arith.mulf %1200, %1206 : vector<8x128xf32>
    %1208 = arith.addf %1195, %1207 : vector<8x128xf32>
    %c65_378 = arith.constant 65 : index
    %1209 = memref.load %arg5[%c65_378] : memref<81xf32, #tpu.memory_space<smem>>
    %1210 = vector.broadcast %1209 : f32 to vector<8x128xf32>
    %1211 = arith.mulf %1200, %1210 : vector<8x128xf32>
    %1212 = arith.addf %1199, %1211 : vector<8x128xf32>
    %c1_379 = arith.constant 1 : index
    %c8_380 = arith.constant 8 : index
    %c0_381 = arith.constant 0 : index
    %1213 = vector.load %arg10[%c1_379, %c8_380, %c0_381] : memref<3x25x128xf32, #tpu.memory_space<vmem>>, vector<1x8x128xf32>
    %1214 = vector.shape_cast %1213 : vector<1x8x128xf32> to vector<8x128xf32>
    %c1_i32_382 = arith.constant 1 : i32
    %1215 = tpu.dynamic_rotate %1214 by %c1_i32_382 dim 1 : vector<8x128xf32>, i32 -> vector<8x128xf32>
    %c12_383 = arith.constant 12 : index
    %1216 = memref.load %arg5[%c12_383] : memref<81xf32, #tpu.memory_space<smem>>
    %1217 = vector.broadcast %1216 : f32 to vector<8x128xf32>
    %1218 = arith.mulf %1215, %1217 : vector<8x128xf32>
    %1219 = arith.addf %1204, %1218 : vector<8x128xf32>
    %c39_384 = arith.constant 39 : index
    %1220 = memref.load %arg5[%c39_384] : memref<81xf32, #tpu.memory_space<smem>>
    %1221 = vector.broadcast %1220 : f32 to vector<8x128xf32>
    %1222 = arith.mulf %1215, %1221 : vector<8x128xf32>
    %1223 = arith.addf %1208, %1222 : vector<8x128xf32>
    %c66_385 = arith.constant 66 : index
    %1224 = memref.load %arg5[%c66_385] : memref<81xf32, #tpu.memory_space<smem>>
    %1225 = vector.broadcast %1224 : f32 to vector<8x128xf32>
    %1226 = arith.mulf %1215, %1225 : vector<8x128xf32>
    %1227 = arith.addf %1212, %1226 : vector<8x128xf32>
    %c13_386 = arith.constant 13 : index
    %1228 = memref.load %arg5[%c13_386] : memref<81xf32, #tpu.memory_space<smem>>
    %1229 = vector.broadcast %1228 : f32 to vector<8x128xf32>
    %1230 = arith.mulf %1214, %1229 : vector<8x128xf32>
    %1231 = arith.addf %1219, %1230 : vector<8x128xf32>
    %c40_387 = arith.constant 40 : index
    %1232 = memref.load %arg5[%c40_387] : memref<81xf32, #tpu.memory_space<smem>>
    %1233 = vector.broadcast %1232 : f32 to vector<8x128xf32>
    %1234 = arith.mulf %1214, %1233 : vector<8x128xf32>
    %1235 = arith.addf %1223, %1234 : vector<8x128xf32>
    %c67_388 = arith.constant 67 : index
    %1236 = memref.load %arg5[%c67_388] : memref<81xf32, #tpu.memory_space<smem>>
    %1237 = vector.broadcast %1236 : f32 to vector<8x128xf32>
    %1238 = arith.mulf %1214, %1237 : vector<8x128xf32>
    %1239 = arith.addf %1227, %1238 : vector<8x128xf32>
    %c127_i32_389 = arith.constant 127 : i32
    %1240 = tpu.dynamic_rotate %1214 by %c127_i32_389 dim 1 : vector<8x128xf32>, i32 -> vector<8x128xf32>
    %c14_390 = arith.constant 14 : index
    %1241 = memref.load %arg5[%c14_390] : memref<81xf32, #tpu.memory_space<smem>>
    %1242 = vector.broadcast %1241 : f32 to vector<8x128xf32>
    %1243 = arith.mulf %1240, %1242 : vector<8x128xf32>
    %1244 = arith.addf %1231, %1243 : vector<8x128xf32>
    %c41_391 = arith.constant 41 : index
    %1245 = memref.load %arg5[%c41_391] : memref<81xf32, #tpu.memory_space<smem>>
    %1246 = vector.broadcast %1245 : f32 to vector<8x128xf32>
    %1247 = arith.mulf %1240, %1246 : vector<8x128xf32>
    %1248 = arith.addf %1235, %1247 : vector<8x128xf32>
    %c68_392 = arith.constant 68 : index
    %1249 = memref.load %arg5[%c68_392] : memref<81xf32, #tpu.memory_space<smem>>
    %1250 = vector.broadcast %1249 : f32 to vector<8x128xf32>
    %1251 = arith.mulf %1240, %1250 : vector<8x128xf32>
    %1252 = arith.addf %1239, %1251 : vector<8x128xf32>
    %c1_393 = arith.constant 1 : index
    %c9_394 = arith.constant 9 : index
    %c0_395 = arith.constant 0 : index
    %1253 = vector.load %arg10[%c1_393, %c9_394, %c0_395] : memref<3x25x128xf32, #tpu.memory_space<vmem>>, vector<1x8x128xf32>
    %1254 = vector.shape_cast %1253 : vector<1x8x128xf32> to vector<8x128xf32>
    %c1_i32_396 = arith.constant 1 : i32
    %1255 = tpu.dynamic_rotate %1254 by %c1_i32_396 dim 1 : vector<8x128xf32>, i32 -> vector<8x128xf32>
    %c15_397 = arith.constant 15 : index
    %1256 = memref.load %arg5[%c15_397] : memref<81xf32, #tpu.memory_space<smem>>
    %1257 = vector.broadcast %1256 : f32 to vector<8x128xf32>
    %1258 = arith.mulf %1255, %1257 : vector<8x128xf32>
    %1259 = arith.addf %1244, %1258 : vector<8x128xf32>
    %c42_398 = arith.constant 42 : index
    %1260 = memref.load %arg5[%c42_398] : memref<81xf32, #tpu.memory_space<smem>>
    %1261 = vector.broadcast %1260 : f32 to vector<8x128xf32>
    %1262 = arith.mulf %1255, %1261 : vector<8x128xf32>
    %1263 = arith.addf %1248, %1262 : vector<8x128xf32>
    %c69_399 = arith.constant 69 : index
    %1264 = memref.load %arg5[%c69_399] : memref<81xf32, #tpu.memory_space<smem>>
    %1265 = vector.broadcast %1264 : f32 to vector<8x128xf32>
    %1266 = arith.mulf %1255, %1265 : vector<8x128xf32>
    %1267 = arith.addf %1252, %1266 : vector<8x128xf32>
    %c16_400 = arith.constant 16 : index
    %1268 = memref.load %arg5[%c16_400] : memref<81xf32, #tpu.memory_space<smem>>
    %1269 = vector.broadcast %1268 : f32 to vector<8x128xf32>
    %1270 = arith.mulf %1254, %1269 : vector<8x128xf32>
    %1271 = arith.addf %1259, %1270 : vector<8x128xf32>
    %c43_401 = arith.constant 43 : index
    %1272 = memref.load %arg5[%c43_401] : memref<81xf32, #tpu.memory_space<smem>>
    %1273 = vector.broadcast %1272 : f32 to vector<8x128xf32>
    %1274 = arith.mulf %1254, %1273 : vector<8x128xf32>
    %1275 = arith.addf %1263, %1274 : vector<8x128xf32>
    %c70_402 = arith.constant 70 : index
    %1276 = memref.load %arg5[%c70_402] : memref<81xf32, #tpu.memory_space<smem>>
    %1277 = vector.broadcast %1276 : f32 to vector<8x128xf32>
    %1278 = arith.mulf %1254, %1277 : vector<8x128xf32>
    %1279 = arith.addf %1267, %1278 : vector<8x128xf32>
    %c127_i32_403 = arith.constant 127 : i32
    %1280 = tpu.dynamic_rotate %1254 by %c127_i32_403 dim 1 : vector<8x128xf32>, i32 -> vector<8x128xf32>
    %c17_404 = arith.constant 17 : index
    %1281 = memref.load %arg5[%c17_404] : memref<81xf32, #tpu.memory_space<smem>>
    %1282 = vector.broadcast %1281 : f32 to vector<8x128xf32>
    %1283 = arith.mulf %1280, %1282 : vector<8x128xf32>
    %1284 = arith.addf %1271, %1283 : vector<8x128xf32>
    %c44_405 = arith.constant 44 : index
    %1285 = memref.load %arg5[%c44_405] : memref<81xf32, #tpu.memory_space<smem>>
    %1286 = vector.broadcast %1285 : f32 to vector<8x128xf32>
    %1287 = arith.mulf %1280, %1286 : vector<8x128xf32>
    %1288 = arith.addf %1275, %1287 : vector<8x128xf32>
    %c71_406 = arith.constant 71 : index
    %1289 = memref.load %arg5[%c71_406] : memref<81xf32, #tpu.memory_space<smem>>
    %1290 = vector.broadcast %1289 : f32 to vector<8x128xf32>
    %1291 = arith.mulf %1280, %1290 : vector<8x128xf32>
    %1292 = arith.addf %1279, %1291 : vector<8x128xf32>
    %c2_407 = arith.constant 2 : index
    %c7_408 = arith.constant 7 : index
    %c0_409 = arith.constant 0 : index
    %1293 = vector.load %arg10[%c2_407, %c7_408, %c0_409] : memref<3x25x128xf32, #tpu.memory_space<vmem>>, vector<1x8x128xf32>
    %1294 = vector.shape_cast %1293 : vector<1x8x128xf32> to vector<8x128xf32>
    %c1_i32_410 = arith.constant 1 : i32
    %1295 = tpu.dynamic_rotate %1294 by %c1_i32_410 dim 1 : vector<8x128xf32>, i32 -> vector<8x128xf32>
    %c18_411 = arith.constant 18 : index
    %1296 = memref.load %arg5[%c18_411] : memref<81xf32, #tpu.memory_space<smem>>
    %1297 = vector.broadcast %1296 : f32 to vector<8x128xf32>
    %1298 = arith.mulf %1295, %1297 : vector<8x128xf32>
    %1299 = arith.addf %1284, %1298 : vector<8x128xf32>
    %c45_412 = arith.constant 45 : index
    %1300 = memref.load %arg5[%c45_412] : memref<81xf32, #tpu.memory_space<smem>>
    %1301 = vector.broadcast %1300 : f32 to vector<8x128xf32>
    %1302 = arith.mulf %1295, %1301 : vector<8x128xf32>
    %1303 = arith.addf %1288, %1302 : vector<8x128xf32>
    %c72_413 = arith.constant 72 : index
    %1304 = memref.load %arg5[%c72_413] : memref<81xf32, #tpu.memory_space<smem>>
    %1305 = vector.broadcast %1304 : f32 to vector<8x128xf32>
    %1306 = arith.mulf %1295, %1305 : vector<8x128xf32>
    %1307 = arith.addf %1292, %1306 : vector<8x128xf32>
    %c19_414 = arith.constant 19 : index
    %1308 = memref.load %arg5[%c19_414] : memref<81xf32, #tpu.memory_space<smem>>
    %1309 = vector.broadcast %1308 : f32 to vector<8x128xf32>
    %1310 = arith.mulf %1294, %1309 : vector<8x128xf32>
    %1311 = arith.addf %1299, %1310 : vector<8x128xf32>
    %c46_415 = arith.constant 46 : index
    %1312 = memref.load %arg5[%c46_415] : memref<81xf32, #tpu.memory_space<smem>>
    %1313 = vector.broadcast %1312 : f32 to vector<8x128xf32>
    %1314 = arith.mulf %1294, %1313 : vector<8x128xf32>
    %1315 = arith.addf %1303, %1314 : vector<8x128xf32>
    %c73_416 = arith.constant 73 : index
    %1316 = memref.load %arg5[%c73_416] : memref<81xf32, #tpu.memory_space<smem>>
    %1317 = vector.broadcast %1316 : f32 to vector<8x128xf32>
    %1318 = arith.mulf %1294, %1317 : vector<8x128xf32>
    %1319 = arith.addf %1307, %1318 : vector<8x128xf32>
    %c127_i32_417 = arith.constant 127 : i32
    %1320 = tpu.dynamic_rotate %1294 by %c127_i32_417 dim 1 : vector<8x128xf32>, i32 -> vector<8x128xf32>
    %c20_418 = arith.constant 20 : index
    %1321 = memref.load %arg5[%c20_418] : memref<81xf32, #tpu.memory_space<smem>>
    %1322 = vector.broadcast %1321 : f32 to vector<8x128xf32>
    %1323 = arith.mulf %1320, %1322 : vector<8x128xf32>
    %1324 = arith.addf %1311, %1323 : vector<8x128xf32>
    %c47_419 = arith.constant 47 : index
    %1325 = memref.load %arg5[%c47_419] : memref<81xf32, #tpu.memory_space<smem>>
    %1326 = vector.broadcast %1325 : f32 to vector<8x128xf32>
    %1327 = arith.mulf %1320, %1326 : vector<8x128xf32>
    %1328 = arith.addf %1315, %1327 : vector<8x128xf32>
    %c74_420 = arith.constant 74 : index
    %1329 = memref.load %arg5[%c74_420] : memref<81xf32, #tpu.memory_space<smem>>
    %1330 = vector.broadcast %1329 : f32 to vector<8x128xf32>
    %1331 = arith.mulf %1320, %1330 : vector<8x128xf32>
    %1332 = arith.addf %1319, %1331 : vector<8x128xf32>
    %c2_421 = arith.constant 2 : index
    %c8_422 = arith.constant 8 : index
    %c0_423 = arith.constant 0 : index
    %1333 = vector.load %arg10[%c2_421, %c8_422, %c0_423] : memref<3x25x128xf32, #tpu.memory_space<vmem>>, vector<1x8x128xf32>
    %1334 = vector.shape_cast %1333 : vector<1x8x128xf32> to vector<8x128xf32>
    %c1_i32_424 = arith.constant 1 : i32
    %1335 = tpu.dynamic_rotate %1334 by %c1_i32_424 dim 1 : vector<8x128xf32>, i32 -> vector<8x128xf32>
    %c21_425 = arith.constant 21 : index
    %1336 = memref.load %arg5[%c21_425] : memref<81xf32, #tpu.memory_space<smem>>
    %1337 = vector.broadcast %1336 : f32 to vector<8x128xf32>
    %1338 = arith.mulf %1335, %1337 : vector<8x128xf32>
    %1339 = arith.addf %1324, %1338 : vector<8x128xf32>
    %c48_426 = arith.constant 48 : index
    %1340 = memref.load %arg5[%c48_426] : memref<81xf32, #tpu.memory_space<smem>>
    %1341 = vector.broadcast %1340 : f32 to vector<8x128xf32>
    %1342 = arith.mulf %1335, %1341 : vector<8x128xf32>
    %1343 = arith.addf %1328, %1342 : vector<8x128xf32>
    %c75_427 = arith.constant 75 : index
    %1344 = memref.load %arg5[%c75_427] : memref<81xf32, #tpu.memory_space<smem>>
    %1345 = vector.broadcast %1344 : f32 to vector<8x128xf32>
    %1346 = arith.mulf %1335, %1345 : vector<8x128xf32>
    %1347 = arith.addf %1332, %1346 : vector<8x128xf32>
    %c22_428 = arith.constant 22 : index
    %1348 = memref.load %arg5[%c22_428] : memref<81xf32, #tpu.memory_space<smem>>
    %1349 = vector.broadcast %1348 : f32 to vector<8x128xf32>
    %1350 = arith.mulf %1334, %1349 : vector<8x128xf32>
    %1351 = arith.addf %1339, %1350 : vector<8x128xf32>
    %c49_429 = arith.constant 49 : index
    %1352 = memref.load %arg5[%c49_429] : memref<81xf32, #tpu.memory_space<smem>>
    %1353 = vector.broadcast %1352 : f32 to vector<8x128xf32>
    %1354 = arith.mulf %1334, %1353 : vector<8x128xf32>
    %1355 = arith.addf %1343, %1354 : vector<8x128xf32>
    %c76_430 = arith.constant 76 : index
    %1356 = memref.load %arg5[%c76_430] : memref<81xf32, #tpu.memory_space<smem>>
    %1357 = vector.broadcast %1356 : f32 to vector<8x128xf32>
    %1358 = arith.mulf %1334, %1357 : vector<8x128xf32>
    %1359 = arith.addf %1347, %1358 : vector<8x128xf32>
    %c127_i32_431 = arith.constant 127 : i32
    %1360 = tpu.dynamic_rotate %1334 by %c127_i32_431 dim 1 : vector<8x128xf32>, i32 -> vector<8x128xf32>
    %c23_432 = arith.constant 23 : index
    %1361 = memref.load %arg5[%c23_432] : memref<81xf32, #tpu.memory_space<smem>>
    %1362 = vector.broadcast %1361 : f32 to vector<8x128xf32>
    %1363 = arith.mulf %1360, %1362 : vector<8x128xf32>
    %1364 = arith.addf %1351, %1363 : vector<8x128xf32>
    %c50_433 = arith.constant 50 : index
    %1365 = memref.load %arg5[%c50_433] : memref<81xf32, #tpu.memory_space<smem>>
    %1366 = vector.broadcast %1365 : f32 to vector<8x128xf32>
    %1367 = arith.mulf %1360, %1366 : vector<8x128xf32>
    %1368 = arith.addf %1355, %1367 : vector<8x128xf32>
    %c77_434 = arith.constant 77 : index
    %1369 = memref.load %arg5[%c77_434] : memref<81xf32, #tpu.memory_space<smem>>
    %1370 = vector.broadcast %1369 : f32 to vector<8x128xf32>
    %1371 = arith.mulf %1360, %1370 : vector<8x128xf32>
    %1372 = arith.addf %1359, %1371 : vector<8x128xf32>
    %c2_435 = arith.constant 2 : index
    %c9_436 = arith.constant 9 : index
    %c0_437 = arith.constant 0 : index
    %1373 = vector.load %arg10[%c2_435, %c9_436, %c0_437] : memref<3x25x128xf32, #tpu.memory_space<vmem>>, vector<1x8x128xf32>
    %1374 = vector.shape_cast %1373 : vector<1x8x128xf32> to vector<8x128xf32>
    %c1_i32_438 = arith.constant 1 : i32
    %1375 = tpu.dynamic_rotate %1374 by %c1_i32_438 dim 1 : vector<8x128xf32>, i32 -> vector<8x128xf32>
    %c24_439 = arith.constant 24 : index
    %1376 = memref.load %arg5[%c24_439] : memref<81xf32, #tpu.memory_space<smem>>
    %1377 = vector.broadcast %1376 : f32 to vector<8x128xf32>
    %1378 = arith.mulf %1375, %1377 : vector<8x128xf32>
    %1379 = arith.addf %1364, %1378 : vector<8x128xf32>
    %c51_440 = arith.constant 51 : index
    %1380 = memref.load %arg5[%c51_440] : memref<81xf32, #tpu.memory_space<smem>>
    %1381 = vector.broadcast %1380 : f32 to vector<8x128xf32>
    %1382 = arith.mulf %1375, %1381 : vector<8x128xf32>
    %1383 = arith.addf %1368, %1382 : vector<8x128xf32>
    %c78_441 = arith.constant 78 : index
    %1384 = memref.load %arg5[%c78_441] : memref<81xf32, #tpu.memory_space<smem>>
    %1385 = vector.broadcast %1384 : f32 to vector<8x128xf32>
    %1386 = arith.mulf %1375, %1385 : vector<8x128xf32>
    %1387 = arith.addf %1372, %1386 : vector<8x128xf32>
    %c25_442 = arith.constant 25 : index
    %1388 = memref.load %arg5[%c25_442] : memref<81xf32, #tpu.memory_space<smem>>
    %1389 = vector.broadcast %1388 : f32 to vector<8x128xf32>
    %1390 = arith.mulf %1374, %1389 : vector<8x128xf32>
    %1391 = arith.addf %1379, %1390 : vector<8x128xf32>
    %c52_443 = arith.constant 52 : index
    %1392 = memref.load %arg5[%c52_443] : memref<81xf32, #tpu.memory_space<smem>>
    %1393 = vector.broadcast %1392 : f32 to vector<8x128xf32>
    %1394 = arith.mulf %1374, %1393 : vector<8x128xf32>
    %1395 = arith.addf %1383, %1394 : vector<8x128xf32>
    %c79_444 = arith.constant 79 : index
    %1396 = memref.load %arg5[%c79_444] : memref<81xf32, #tpu.memory_space<smem>>
    %1397 = vector.broadcast %1396 : f32 to vector<8x128xf32>
    %1398 = arith.mulf %1374, %1397 : vector<8x128xf32>
    %1399 = arith.addf %1387, %1398 : vector<8x128xf32>
    %c127_i32_445 = arith.constant 127 : i32
    %1400 = tpu.dynamic_rotate %1374 by %c127_i32_445 dim 1 : vector<8x128xf32>, i32 -> vector<8x128xf32>
    %c26_446 = arith.constant 26 : index
    %1401 = memref.load %arg5[%c26_446] : memref<81xf32, #tpu.memory_space<smem>>
    %1402 = vector.broadcast %1401 : f32 to vector<8x128xf32>
    %1403 = arith.mulf %1400, %1402 : vector<8x128xf32>
    %1404 = arith.addf %1391, %1403 : vector<8x128xf32>
    %c53_447 = arith.constant 53 : index
    %1405 = memref.load %arg5[%c53_447] : memref<81xf32, #tpu.memory_space<smem>>
    %1406 = vector.broadcast %1405 : f32 to vector<8x128xf32>
    %1407 = arith.mulf %1400, %1406 : vector<8x128xf32>
    %1408 = arith.addf %1395, %1407 : vector<8x128xf32>
    %c80_448 = arith.constant 80 : index
    %1409 = memref.load %arg5[%c80_448] : memref<81xf32, #tpu.memory_space<smem>>
    %1410 = vector.broadcast %1409 : f32 to vector<8x128xf32>
    %1411 = arith.mulf %1400, %1410 : vector<8x128xf32>
    %1412 = arith.addf %1399, %1411 : vector<8x128xf32>
    %c0_449 = arith.constant 0 : index
    %c0_450 = arith.constant 0 : index
    %1413 = vector.load %arg1[%c0_449, %c0_450] : memref<8x128xf32, #tpu.memory_space<vmem>>, vector<8x128xf32>
    %cst_451 = arith.constant 0.000000e+00 : f32
    %1414 = vector.broadcast %cst_451 : f32 to vector<8x128xf32>
    %1415 = arith.maximumf %1404, %1414 : vector<8x128xf32>
    %1416 = arith.mulf %1415, %1413 : vector<8x128xf32>
    %c0_452 = arith.constant 0 : index
    %c8_453 = arith.constant 8 : index
    %c0_454 = arith.constant 0 : index
    %1417 = vector.load %arg11[%c0_452, %c8_453, %c0_454] : memref<3x25x128xf32, #tpu.memory_space<vmem>>, vector<1x8x128xf32>
    %1418 = vector.shape_cast %1417 : vector<1x8x128xf32> to vector<8x128xf32>
    %1419 = vector.shape_cast %1416 : vector<8x128xf32> to vector<1x8x128xf32>
    tpu.vector_store %arg11[%c0_452, %c8_453, %c0_454], %1419 {strides = array<i32>} : memref<3x25x128xf32, #tpu.memory_space<vmem>>, vector<1x8x128xf32>,
    %cst_455 = arith.constant 0.000000e+00 : f32
    %1420 = vector.broadcast %cst_455 : f32 to vector<8x128xf32>
    %1421 = arith.maximumf %1408, %1420 : vector<8x128xf32>
    %1422 = arith.mulf %1421, %1413 : vector<8x128xf32>
    %c1_456 = arith.constant 1 : index
    %c8_457 = arith.constant 8 : index
    %c0_458 = arith.constant 0 : index
    %1423 = vector.load %arg11[%c1_456, %c8_457, %c0_458] : memref<3x25x128xf32, #tpu.memory_space<vmem>>, vector<1x8x128xf32>
    %1424 = vector.shape_cast %1423 : vector<1x8x128xf32> to vector<8x128xf32>
    %1425 = vector.shape_cast %1422 : vector<8x128xf32> to vector<1x8x128xf32>
    tpu.vector_store %arg11[%c1_456, %c8_457, %c0_458], %1425 {strides = array<i32>} : memref<3x25x128xf32, #tpu.memory_space<vmem>>, vector<1x8x128xf32>,
    %cst_459 = arith.constant 0.000000e+00 : f32
    %1426 = vector.broadcast %cst_459 : f32 to vector<8x128xf32>
    %1427 = arith.maximumf %1412, %1426 : vector<8x128xf32>
    %1428 = arith.mulf %1427, %1413 : vector<8x128xf32>
    %c2_460 = arith.constant 2 : index
    %c8_461 = arith.constant 8 : index
    %c0_462 = arith.constant 0 : index
    %1429 = vector.load %arg11[%c2_460, %c8_461, %c0_462] : memref<3x25x128xf32, #tpu.memory_space<vmem>>, vector<1x8x128xf32>
    %1430 = vector.shape_cast %1429 : vector<1x8x128xf32> to vector<8x128xf32>
    %1431 = vector.shape_cast %1428 : vector<8x128xf32> to vector<1x8x128xf32>
    tpu.vector_store %arg11[%c2_460, %c8_461, %c0_462], %1431 {strides = array<i32>} : memref<3x25x128xf32, #tpu.memory_space<vmem>>, vector<1x8x128xf32>,
    %c0_463 = arith.constant 0 : index
    %1432 = memref.load %arg6[%c0_463] : memref<3xf32, #tpu.memory_space<smem>>
    %1433 = vector.broadcast %1432 : f32 to vector<8x128xf32>
    %c1_464 = arith.constant 1 : index
    %1434 = memref.load %arg6[%c1_464] : memref<3xf32, #tpu.memory_space<smem>>
    %1435 = vector.broadcast %1434 : f32 to vector<8x128xf32>
    %c2_465 = arith.constant 2 : index
    %1436 = memref.load %arg6[%c2_465] : memref<3xf32, #tpu.memory_space<smem>>
    %1437 = vector.broadcast %1436 : f32 to vector<8x128xf32>
    %c0_466 = arith.constant 0 : index
    %c15_467 = arith.constant 15 : index
    %c0_468 = arith.constant 0 : index
    %1438 = vector.load %arg10[%c0_466, %c15_467, %c0_468] : memref<3x25x128xf32, #tpu.memory_space<vmem>>, vector<1x8x128xf32>
    %1439 = vector.shape_cast %1438 : vector<1x8x128xf32> to vector<8x128xf32>
    %c1_i32_469 = arith.constant 1 : i32
    %1440 = tpu.dynamic_rotate %1439 by %c1_i32_469 dim 1 : vector<8x128xf32>, i32 -> vector<8x128xf32>
    %c0_470 = arith.constant 0 : index
    %1441 = memref.load %arg5[%c0_470] : memref<81xf32, #tpu.memory_space<smem>>
    %1442 = vector.broadcast %1441 : f32 to vector<8x128xf32>
    %1443 = arith.mulf %1440, %1442 : vector<8x128xf32>
    %1444 = arith.addf %1433, %1443 : vector<8x128xf32>
    %c27_471 = arith.constant 27 : index
    %1445 = memref.load %arg5[%c27_471] : memref<81xf32, #tpu.memory_space<smem>>
    %1446 = vector.broadcast %1445 : f32 to vector<8x128xf32>
    %1447 = arith.mulf %1440, %1446 : vector<8x128xf32>
    %1448 = arith.addf %1435, %1447 : vector<8x128xf32>
    %c54_472 = arith.constant 54 : index
    %1449 = memref.load %arg5[%c54_472] : memref<81xf32, #tpu.memory_space<smem>>
    %1450 = vector.broadcast %1449 : f32 to vector<8x128xf32>
    %1451 = arith.mulf %1440, %1450 : vector<8x128xf32>
    %1452 = arith.addf %1437, %1451 : vector<8x128xf32>
    %c1_473 = arith.constant 1 : index
    %1453 = memref.load %arg5[%c1_473] : memref<81xf32, #tpu.memory_space<smem>>
    %1454 = vector.broadcast %1453 : f32 to vector<8x128xf32>
    %1455 = arith.mulf %1439, %1454 : vector<8x128xf32>
    %1456 = arith.addf %1444, %1455 : vector<8x128xf32>
    %c28_474 = arith.constant 28 : index
    %1457 = memref.load %arg5[%c28_474] : memref<81xf32, #tpu.memory_space<smem>>
    %1458 = vector.broadcast %1457 : f32 to vector<8x128xf32>
    %1459 = arith.mulf %1439, %1458 : vector<8x128xf32>
    %1460 = arith.addf %1448, %1459 : vector<8x128xf32>
    %c55_475 = arith.constant 55 : index
    %1461 = memref.load %arg5[%c55_475] : memref<81xf32, #tpu.memory_space<smem>>
    %1462 = vector.broadcast %1461 : f32 to vector<8x128xf32>
    %1463 = arith.mulf %1439, %1462 : vector<8x128xf32>
    %1464 = arith.addf %1452, %1463 : vector<8x128xf32>
    %c127_i32_476 = arith.constant 127 : i32
    %1465 = tpu.dynamic_rotate %1439 by %c127_i32_476 dim 1 : vector<8x128xf32>, i32 -> vector<8x128xf32>
    %c2_477 = arith.constant 2 : index
    %1466 = memref.load %arg5[%c2_477] : memref<81xf32, #tpu.memory_space<smem>>
    %1467 = vector.broadcast %1466 : f32 to vector<8x128xf32>
    %1468 = arith.mulf %1465, %1467 : vector<8x128xf32>
    %1469 = arith.addf %1456, %1468 : vector<8x128xf32>
    %c29_478 = arith.constant 29 : index
    %1470 = memref.load %arg5[%c29_478] : memref<81xf32, #tpu.memory_space<smem>>
    %1471 = vector.broadcast %1470 : f32 to vector<8x128xf32>
    %1472 = arith.mulf %1465, %1471 : vector<8x128xf32>
    %1473 = arith.addf %1460, %1472 : vector<8x128xf32>
    %c56_479 = arith.constant 56 : index
    %1474 = memref.load %arg5[%c56_479] : memref<81xf32, #tpu.memory_space<smem>>
    %1475 = vector.broadcast %1474 : f32 to vector<8x128xf32>
    %1476 = arith.mulf %1465, %1475 : vector<8x128xf32>
    %1477 = arith.addf %1464, %1476 : vector<8x128xf32>
    %c0_480 = arith.constant 0 : index
    %c16_481 = arith.constant 16 : index
    %c0_482 = arith.constant 0 : index
    %1478 = vector.load %arg10[%c0_480, %c16_481, %c0_482] : memref<3x25x128xf32, #tpu.memory_space<vmem>>, vector<1x8x128xf32>
    %1479 = vector.shape_cast %1478 : vector<1x8x128xf32> to vector<8x128xf32>
    %c1_i32_483 = arith.constant 1 : i32
    %1480 = tpu.dynamic_rotate %1479 by %c1_i32_483 dim 1 : vector<8x128xf32>, i32 -> vector<8x128xf32>
    %c3_484 = arith.constant 3 : index
    %1481 = memref.load %arg5[%c3_484] : memref<81xf32, #tpu.memory_space<smem>>
    %1482 = vector.broadcast %1481 : f32 to vector<8x128xf32>
    %1483 = arith.mulf %1480, %1482 : vector<8x128xf32>
    %1484 = arith.addf %1469, %1483 : vector<8x128xf32>
    %c30_485 = arith.constant 30 : index
    %1485 = memref.load %arg5[%c30_485] : memref<81xf32, #tpu.memory_space<smem>>
    %1486 = vector.broadcast %1485 : f32 to vector<8x128xf32>
    %1487 = arith.mulf %1480, %1486 : vector<8x128xf32>
    %1488 = arith.addf %1473, %1487 : vector<8x128xf32>
    %c57_486 = arith.constant 57 : index
    %1489 = memref.load %arg5[%c57_486] : memref<81xf32, #tpu.memory_space<smem>>
    %1490 = vector.broadcast %1489 : f32 to vector<8x128xf32>
    %1491 = arith.mulf %1480, %1490 : vector<8x128xf32>
    %1492 = arith.addf %1477, %1491 : vector<8x128xf32>
    %c4_487 = arith.constant 4 : index
    %1493 = memref.load %arg5[%c4_487] : memref<81xf32, #tpu.memory_space<smem>>
    %1494 = vector.broadcast %1493 : f32 to vector<8x128xf32>
    %1495 = arith.mulf %1479, %1494 : vector<8x128xf32>
    %1496 = arith.addf %1484, %1495 : vector<8x128xf32>
    %c31_488 = arith.constant 31 : index
    %1497 = memref.load %arg5[%c31_488] : memref<81xf32, #tpu.memory_space<smem>>
    %1498 = vector.broadcast %1497 : f32 to vector<8x128xf32>
    %1499 = arith.mulf %1479, %1498 : vector<8x128xf32>
    %1500 = arith.addf %1488, %1499 : vector<8x128xf32>
    %c58_489 = arith.constant 58 : index
    %1501 = memref.load %arg5[%c58_489] : memref<81xf32, #tpu.memory_space<smem>>
    %1502 = vector.broadcast %1501 : f32 to vector<8x128xf32>
    %1503 = arith.mulf %1479, %1502 : vector<8x128xf32>
    %1504 = arith.addf %1492, %1503 : vector<8x128xf32>
    %c127_i32_490 = arith.constant 127 : i32
    %1505 = tpu.dynamic_rotate %1479 by %c127_i32_490 dim 1 : vector<8x128xf32>, i32 -> vector<8x128xf32>
    %c5_491 = arith.constant 5 : index
    %1506 = memref.load %arg5[%c5_491] : memref<81xf32, #tpu.memory_space<smem>>
    %1507 = vector.broadcast %1506 : f32 to vector<8x128xf32>
    %1508 = arith.mulf %1505, %1507 : vector<8x128xf32>
    %1509 = arith.addf %1496, %1508 : vector<8x128xf32>
    %c32_492 = arith.constant 32 : index
    %1510 = memref.load %arg5[%c32_492] : memref<81xf32, #tpu.memory_space<smem>>
    %1511 = vector.broadcast %1510 : f32 to vector<8x128xf32>
    %1512 = arith.mulf %1505, %1511 : vector<8x128xf32>
    %1513 = arith.addf %1500, %1512 : vector<8x128xf32>
    %c59_493 = arith.constant 59 : index
    %1514 = memref.load %arg5[%c59_493] : memref<81xf32, #tpu.memory_space<smem>>
    %1515 = vector.broadcast %1514 : f32 to vector<8x128xf32>
    %1516 = arith.mulf %1505, %1515 : vector<8x128xf32>
    %1517 = arith.addf %1504, %1516 : vector<8x128xf32>
    %c0_494 = arith.constant 0 : index
    %c17_495 = arith.constant 17 : index
    %c0_496 = arith.constant 0 : index
    %1518 = vector.load %arg10[%c0_494, %c17_495, %c0_496] : memref<3x25x128xf32, #tpu.memory_space<vmem>>, vector<1x8x128xf32>
    %1519 = vector.shape_cast %1518 : vector<1x8x128xf32> to vector<8x128xf32>
    %c1_i32_497 = arith.constant 1 : i32
    %1520 = tpu.dynamic_rotate %1519 by %c1_i32_497 dim 1 : vector<8x128xf32>, i32 -> vector<8x128xf32>
    %c6_498 = arith.constant 6 : index
    %1521 = memref.load %arg5[%c6_498] : memref<81xf32, #tpu.memory_space<smem>>
    %1522 = vector.broadcast %1521 : f32 to vector<8x128xf32>
    %1523 = arith.mulf %1520, %1522 : vector<8x128xf32>
    %1524 = arith.addf %1509, %1523 : vector<8x128xf32>
    %c33_499 = arith.constant 33 : index
    %1525 = memref.load %arg5[%c33_499] : memref<81xf32, #tpu.memory_space<smem>>
    %1526 = vector.broadcast %1525 : f32 to vector<8x128xf32>
    %1527 = arith.mulf %1520, %1526 : vector<8x128xf32>
    %1528 = arith.addf %1513, %1527 : vector<8x128xf32>
    %c60_500 = arith.constant 60 : index
    %1529 = memref.load %arg5[%c60_500] : memref<81xf32, #tpu.memory_space<smem>>
    %1530 = vector.broadcast %1529 : f32 to vector<8x128xf32>
    %1531 = arith.mulf %1520, %1530 : vector<8x128xf32>
    %1532 = arith.addf %1517, %1531 : vector<8x128xf32>
    %c7_501 = arith.constant 7 : index
    %1533 = memref.load %arg5[%c7_501] : memref<81xf32, #tpu.memory_space<smem>>
    %1534 = vector.broadcast %1533 : f32 to vector<8x128xf32>
    %1535 = arith.mulf %1519, %1534 : vector<8x128xf32>
    %1536 = arith.addf %1524, %1535 : vector<8x128xf32>
    %c34_502 = arith.constant 34 : index
    %1537 = memref.load %arg5[%c34_502] : memref<81xf32, #tpu.memory_space<smem>>
    %1538 = vector.broadcast %1537 : f32 to vector<8x128xf32>
    %1539 = arith.mulf %1519, %1538 : vector<8x128xf32>
    %1540 = arith.addf %1528, %1539 : vector<8x128xf32>
    %c61_503 = arith.constant 61 : index
    %1541 = memref.load %arg5[%c61_503] : memref<81xf32, #tpu.memory_space<smem>>
    %1542 = vector.broadcast %1541 : f32 to vector<8x128xf32>
    %1543 = arith.mulf %1519, %1542 : vector<8x128xf32>
    %1544 = arith.addf %1532, %1543 : vector<8x128xf32>
    %c127_i32_504 = arith.constant 127 : i32
    %1545 = tpu.dynamic_rotate %1519 by %c127_i32_504 dim 1 : vector<8x128xf32>, i32 -> vector<8x128xf32>
    %c8_505 = arith.constant 8 : index
    %1546 = memref.load %arg5[%c8_505] : memref<81xf32, #tpu.memory_space<smem>>
    %1547 = vector.broadcast %1546 : f32 to vector<8x128xf32>
    %1548 = arith.mulf %1545, %1547 : vector<8x128xf32>
    %1549 = arith.addf %1536, %1548 : vector<8x128xf32>
    %c35_506 = arith.constant 35 : index
    %1550 = memref.load %arg5[%c35_506] : memref<81xf32, #tpu.memory_space<smem>>
    %1551 = vector.broadcast %1550 : f32 to vector<8x128xf32>
    %1552 = arith.mulf %1545, %1551 : vector<8x128xf32>
    %1553 = arith.addf %1540, %1552 : vector<8x128xf32>
    %c62_507 = arith.constant 62 : index
    %1554 = memref.load %arg5[%c62_507] : memref<81xf32, #tpu.memory_space<smem>>
    %1555 = vector.broadcast %1554 : f32 to vector<8x128xf32>
    %1556 = arith.mulf %1545, %1555 : vector<8x128xf32>
    %1557 = arith.addf %1544, %1556 : vector<8x128xf32>
    %c1_508 = arith.constant 1 : index
    %c15_509 = arith.constant 15 : index
    %c0_510 = arith.constant 0 : index
    %1558 = vector.load %arg10[%c1_508, %c15_509, %c0_510] : memref<3x25x128xf32, #tpu.memory_space<vmem>>, vector<1x8x128xf32>
    %1559 = vector.shape_cast %1558 : vector<1x8x128xf32> to vector<8x128xf32>
    %c1_i32_511 = arith.constant 1 : i32
    %1560 = tpu.dynamic_rotate %1559 by %c1_i32_511 dim 1 : vector<8x128xf32>, i32 -> vector<8x128xf32>
    %c9_512 = arith.constant 9 : index
    %1561 = memref.load %arg5[%c9_512] : memref<81xf32, #tpu.memory_space<smem>>
    %1562 = vector.broadcast %1561 : f32 to vector<8x128xf32>
    %1563 = arith.mulf %1560, %1562 : vector<8x128xf32>
    %1564 = arith.addf %1549, %1563 : vector<8x128xf32>
    %c36_513 = arith.constant 36 : index
    %1565 = memref.load %arg5[%c36_513] : memref<81xf32, #tpu.memory_space<smem>>
    %1566 = vector.broadcast %1565 : f32 to vector<8x128xf32>
    %1567 = arith.mulf %1560, %1566 : vector<8x128xf32>
    %1568 = arith.addf %1553, %1567 : vector<8x128xf32>
    %c63_514 = arith.constant 63 : index
    %1569 = memref.load %arg5[%c63_514] : memref<81xf32, #tpu.memory_space<smem>>
    %1570 = vector.broadcast %1569 : f32 to vector<8x128xf32>
    %1571 = arith.mulf %1560, %1570 : vector<8x128xf32>
    %1572 = arith.addf %1557, %1571 : vector<8x128xf32>
    %c10_515 = arith.constant 10 : index
    %1573 = memref.load %arg5[%c10_515] : memref<81xf32, #tpu.memory_space<smem>>
    %1574 = vector.broadcast %1573 : f32 to vector<8x128xf32>
    %1575 = arith.mulf %1559, %1574 : vector<8x128xf32>
    %1576 = arith.addf %1564, %1575 : vector<8x128xf32>
    %c37_516 = arith.constant 37 : index
    %1577 = memref.load %arg5[%c37_516] : memref<81xf32, #tpu.memory_space<smem>>
    %1578 = vector.broadcast %1577 : f32 to vector<8x128xf32>
    %1579 = arith.mulf %1559, %1578 : vector<8x128xf32>
    %1580 = arith.addf %1568, %1579 : vector<8x128xf32>
    %c64_517 = arith.constant 64 : index
    %1581 = memref.load %arg5[%c64_517] : memref<81xf32, #tpu.memory_space<smem>>
    %1582 = vector.broadcast %1581 : f32 to vector<8x128xf32>
    %1583 = arith.mulf %1559, %1582 : vector<8x128xf32>
    %1584 = arith.addf %1572, %1583 : vector<8x128xf32>
    %c127_i32_518 = arith.constant 127 : i32
    %1585 = tpu.dynamic_rotate %1559 by %c127_i32_518 dim 1 : vector<8x128xf32>, i32 -> vector<8x128xf32>
    %c11_519 = arith.constant 11 : index
    %1586 = memref.load %arg5[%c11_519] : memref<81xf32, #tpu.memory_space<smem>>
    %1587 = vector.broadcast %1586 : f32 to vector<8x128xf32>
    %1588 = arith.mulf %1585, %1587 : vector<8x128xf32>
    %1589 = arith.addf %1576, %1588 : vector<8x128xf32>
    %c38_520 = arith.constant 38 : index
    %1590 = memref.load %arg5[%c38_520] : memref<81xf32, #tpu.memory_space<smem>>
    %1591 = vector.broadcast %1590 : f32 to vector<8x128xf32>
    %1592 = arith.mulf %1585, %1591 : vector<8x128xf32>
    %1593 = arith.addf %1580, %1592 : vector<8x128xf32>
    %c65_521 = arith.constant 65 : index
    %1594 = memref.load %arg5[%c65_521] : memref<81xf32, #tpu.memory_space<smem>>
    %1595 = vector.broadcast %1594 : f32 to vector<8x128xf32>
    %1596 = arith.mulf %1585, %1595 : vector<8x128xf32>
    %1597 = arith.addf %1584, %1596 : vector<8x128xf32>
    %c1_522 = arith.constant 1 : index
    %c16_523 = arith.constant 16 : index
    %c0_524 = arith.constant 0 : index
    %1598 = vector.load %arg10[%c1_522, %c16_523, %c0_524] : memref<3x25x128xf32, #tpu.memory_space<vmem>>, vector<1x8x128xf32>
    %1599 = vector.shape_cast %1598 : vector<1x8x128xf32> to vector<8x128xf32>
    %c1_i32_525 = arith.constant 1 : i32
    %1600 = tpu.dynamic_rotate %1599 by %c1_i32_525 dim 1 : vector<8x128xf32>, i32 -> vector<8x128xf32>
    %c12_526 = arith.constant 12 : index
    %1601 = memref.load %arg5[%c12_526] : memref<81xf32, #tpu.memory_space<smem>>
    %1602 = vector.broadcast %1601 : f32 to vector<8x128xf32>
    %1603 = arith.mulf %1600, %1602 : vector<8x128xf32>
    %1604 = arith.addf %1589, %1603 : vector<8x128xf32>
    %c39_527 = arith.constant 39 : index
    %1605 = memref.load %arg5[%c39_527] : memref<81xf32, #tpu.memory_space<smem>>
    %1606 = vector.broadcast %1605 : f32 to vector<8x128xf32>
    %1607 = arith.mulf %1600, %1606 : vector<8x128xf32>
    %1608 = arith.addf %1593, %1607 : vector<8x128xf32>
    %c66_528 = arith.constant 66 : index
    %1609 = memref.load %arg5[%c66_528] : memref<81xf32, #tpu.memory_space<smem>>
    %1610 = vector.broadcast %1609 : f32 to vector<8x128xf32>
    %1611 = arith.mulf %1600, %1610 : vector<8x128xf32>
    %1612 = arith.addf %1597, %1611 : vector<8x128xf32>
    %c13_529 = arith.constant 13 : index
    %1613 = memref.load %arg5[%c13_529] : memref<81xf32, #tpu.memory_space<smem>>
    %1614 = vector.broadcast %1613 : f32 to vector<8x128xf32>
    %1615 = arith.mulf %1599, %1614 : vector<8x128xf32>
    %1616 = arith.addf %1604, %1615 : vector<8x128xf32>
    %c40_530 = arith.constant 40 : index
    %1617 = memref.load %arg5[%c40_530] : memref<81xf32, #tpu.memory_space<smem>>
    %1618 = vector.broadcast %1617 : f32 to vector<8x128xf32>
    %1619 = arith.mulf %1599, %1618 : vector<8x128xf32>
    %1620 = arith.addf %1608, %1619 : vector<8x128xf32>
    %c67_531 = arith.constant 67 : index
    %1621 = memref.load %arg5[%c67_531] : memref<81xf32, #tpu.memory_space<smem>>
    %1622 = vector.broadcast %1621 : f32 to vector<8x128xf32>
    %1623 = arith.mulf %1599, %1622 : vector<8x128xf32>
    %1624 = arith.addf %1612, %1623 : vector<8x128xf32>
    %c127_i32_532 = arith.constant 127 : i32
    %1625 = tpu.dynamic_rotate %1599 by %c127_i32_532 dim 1 : vector<8x128xf32>, i32 -> vector<8x128xf32>
    %c14_533 = arith.constant 14 : index
    %1626 = memref.load %arg5[%c14_533] : memref<81xf32, #tpu.memory_space<smem>>
    %1627 = vector.broadcast %1626 : f32 to vector<8x128xf32>
    %1628 = arith.mulf %1625, %1627 : vector<8x128xf32>
    %1629 = arith.addf %1616, %1628 : vector<8x128xf32>
    %c41_534 = arith.constant 41 : index
    %1630 = memref.load %arg5[%c41_534] : memref<81xf32, #tpu.memory_space<smem>>
    %1631 = vector.broadcast %1630 : f32 to vector<8x128xf32>
    %1632 = arith.mulf %1625, %1631 : vector<8x128xf32>
    %1633 = arith.addf %1620, %1632 : vector<8x128xf32>
    %c68_535 = arith.constant 68 : index
    %1634 = memref.load %arg5[%c68_535] : memref<81xf32, #tpu.memory_space<smem>>
    %1635 = vector.broadcast %1634 : f32 to vector<8x128xf32>
    %1636 = arith.mulf %1625, %1635 : vector<8x128xf32>
    %1637 = arith.addf %1624, %1636 : vector<8x128xf32>
    %c1_536 = arith.constant 1 : index
    %c17_537 = arith.constant 17 : index
    %c0_538 = arith.constant 0 : index
    %1638 = vector.load %arg10[%c1_536, %c17_537, %c0_538] : memref<3x25x128xf32, #tpu.memory_space<vmem>>, vector<1x8x128xf32>
    %1639 = vector.shape_cast %1638 : vector<1x8x128xf32> to vector<8x128xf32>
    %c1_i32_539 = arith.constant 1 : i32
    %1640 = tpu.dynamic_rotate %1639 by %c1_i32_539 dim 1 : vector<8x128xf32>, i32 -> vector<8x128xf32>
    %c15_540 = arith.constant 15 : index
    %1641 = memref.load %arg5[%c15_540] : memref<81xf32, #tpu.memory_space<smem>>
    %1642 = vector.broadcast %1641 : f32 to vector<8x128xf32>
    %1643 = arith.mulf %1640, %1642 : vector<8x128xf32>
    %1644 = arith.addf %1629, %1643 : vector<8x128xf32>
    %c42_541 = arith.constant 42 : index
    %1645 = memref.load %arg5[%c42_541] : memref<81xf32, #tpu.memory_space<smem>>
    %1646 = vector.broadcast %1645 : f32 to vector<8x128xf32>
    %1647 = arith.mulf %1640, %1646 : vector<8x128xf32>
    %1648 = arith.addf %1633, %1647 : vector<8x128xf32>
    %c69_542 = arith.constant 69 : index
    %1649 = memref.load %arg5[%c69_542] : memref<81xf32, #tpu.memory_space<smem>>
    %1650 = vector.broadcast %1649 : f32 to vector<8x128xf32>
    %1651 = arith.mulf %1640, %1650 : vector<8x128xf32>
    %1652 = arith.addf %1637, %1651 : vector<8x128xf32>
    %c16_543 = arith.constant 16 : index
    %1653 = memref.load %arg5[%c16_543] : memref<81xf32, #tpu.memory_space<smem>>
    %1654 = vector.broadcast %1653 : f32 to vector<8x128xf32>
    %1655 = arith.mulf %1639, %1654 : vector<8x128xf32>
    %1656 = arith.addf %1644, %1655 : vector<8x128xf32>
    %c43_544 = arith.constant 43 : index
    %1657 = memref.load %arg5[%c43_544] : memref<81xf32, #tpu.memory_space<smem>>
    %1658 = vector.broadcast %1657 : f32 to vector<8x128xf32>
    %1659 = arith.mulf %1639, %1658 : vector<8x128xf32>
    %1660 = arith.addf %1648, %1659 : vector<8x128xf32>
    %c70_545 = arith.constant 70 : index
    %1661 = memref.load %arg5[%c70_545] : memref<81xf32, #tpu.memory_space<smem>>
    %1662 = vector.broadcast %1661 : f32 to vector<8x128xf32>
    %1663 = arith.mulf %1639, %1662 : vector<8x128xf32>
    %1664 = arith.addf %1652, %1663 : vector<8x128xf32>
    %c127_i32_546 = arith.constant 127 : i32
    %1665 = tpu.dynamic_rotate %1639 by %c127_i32_546 dim 1 : vector<8x128xf32>, i32 -> vector<8x128xf32>
    %c17_547 = arith.constant 17 : index
    %1666 = memref.load %arg5[%c17_547] : memref<81xf32, #tpu.memory_space<smem>>
    %1667 = vector.broadcast %1666 : f32 to vector<8x128xf32>
    %1668 = arith.mulf %1665, %1667 : vector<8x128xf32>
    %1669 = arith.addf %1656, %1668 : vector<8x128xf32>
    %c44_548 = arith.constant 44 : index
    %1670 = memref.load %arg5[%c44_548] : memref<81xf32, #tpu.memory_space<smem>>
    %1671 = vector.broadcast %1670 : f32 to vector<8x128xf32>
    %1672 = arith.mulf %1665, %1671 : vector<8x128xf32>
    %1673 = arith.addf %1660, %1672 : vector<8x128xf32>
    %c71_549 = arith.constant 71 : index
    %1674 = memref.load %arg5[%c71_549] : memref<81xf32, #tpu.memory_space<smem>>
    %1675 = vector.broadcast %1674 : f32 to vector<8x128xf32>
    %1676 = arith.mulf %1665, %1675 : vector<8x128xf32>
    %1677 = arith.addf %1664, %1676 : vector<8x128xf32>
    %c2_550 = arith.constant 2 : index
    %c15_551 = arith.constant 15 : index
    %c0_552 = arith.constant 0 : index
    %1678 = vector.load %arg10[%c2_550, %c15_551, %c0_552] : memref<3x25x128xf32, #tpu.memory_space<vmem>>, vector<1x8x128xf32>
    %1679 = vector.shape_cast %1678 : vector<1x8x128xf32> to vector<8x128xf32>
    %c1_i32_553 = arith.constant 1 : i32
    %1680 = tpu.dynamic_rotate %1679 by %c1_i32_553 dim 1 : vector<8x128xf32>, i32 -> vector<8x128xf32>
    %c18_554 = arith.constant 18 : index
    %1681 = memref.load %arg5[%c18_554] : memref<81xf32, #tpu.memory_space<smem>>
    %1682 = vector.broadcast %1681 : f32 to vector<8x128xf32>
    %1683 = arith.mulf %1680, %1682 : vector<8x128xf32>
    %1684 = arith.addf %1669, %1683 : vector<8x128xf32>
    %c45_555 = arith.constant 45 : index
    %1685 = memref.load %arg5[%c45_555] : memref<81xf32, #tpu.memory_space<smem>>
    %1686 = vector.broadcast %1685 : f32 to vector<8x128xf32>
    %1687 = arith.mulf %1680, %1686 : vector<8x128xf32>
    %1688 = arith.addf %1673, %1687 : vector<8x128xf32>
    %c72_556 = arith.constant 72 : index
    %1689 = memref.load %arg5[%c72_556] : memref<81xf32, #tpu.memory_space<smem>>
    %1690 = vector.broadcast %1689 : f32 to vector<8x128xf32>
    %1691 = arith.mulf %1680, %1690 : vector<8x128xf32>
    %1692 = arith.addf %1677, %1691 : vector<8x128xf32>
    %c19_557 = arith.constant 19 : index
    %1693 = memref.load %arg5[%c19_557] : memref<81xf32, #tpu.memory_space<smem>>
    %1694 = vector.broadcast %1693 : f32 to vector<8x128xf32>
    %1695 = arith.mulf %1679, %1694 : vector<8x128xf32>
    %1696 = arith.addf %1684, %1695 : vector<8x128xf32>
    %c46_558 = arith.constant 46 : index
    %1697 = memref.load %arg5[%c46_558] : memref<81xf32, #tpu.memory_space<smem>>
    %1698 = vector.broadcast %1697 : f32 to vector<8x128xf32>
    %1699 = arith.mulf %1679, %1698 : vector<8x128xf32>
    %1700 = arith.addf %1688, %1699 : vector<8x128xf32>
    %c73_559 = arith.constant 73 : index
    %1701 = memref.load %arg5[%c73_559] : memref<81xf32, #tpu.memory_space<smem>>
    %1702 = vector.broadcast %1701 : f32 to vector<8x128xf32>
    %1703 = arith.mulf %1679, %1702 : vector<8x128xf32>
    %1704 = arith.addf %1692, %1703 : vector<8x128xf32>
    %c127_i32_560 = arith.constant 127 : i32
    %1705 = tpu.dynamic_rotate %1679 by %c127_i32_560 dim 1 : vector<8x128xf32>, i32 -> vector<8x128xf32>
    %c20_561 = arith.constant 20 : index
    %1706 = memref.load %arg5[%c20_561] : memref<81xf32, #tpu.memory_space<smem>>
    %1707 = vector.broadcast %1706 : f32 to vector<8x128xf32>
    %1708 = arith.mulf %1705, %1707 : vector<8x128xf32>
    %1709 = arith.addf %1696, %1708 : vector<8x128xf32>
    %c47_562 = arith.constant 47 : index
    %1710 = memref.load %arg5[%c47_562] : memref<81xf32, #tpu.memory_space<smem>>
    %1711 = vector.broadcast %1710 : f32 to vector<8x128xf32>
    %1712 = arith.mulf %1705, %1711 : vector<8x128xf32>
    %1713 = arith.addf %1700, %1712 : vector<8x128xf32>
    %c74_563 = arith.constant 74 : index
    %1714 = memref.load %arg5[%c74_563] : memref<81xf32, #tpu.memory_space<smem>>
    %1715 = vector.broadcast %1714 : f32 to vector<8x128xf32>
    %1716 = arith.mulf %1705, %1715 : vector<8x128xf32>
    %1717 = arith.addf %1704, %1716 : vector<8x128xf32>
    %c2_564 = arith.constant 2 : index
    %c16_565 = arith.constant 16 : index
    %c0_566 = arith.constant 0 : index
    %1718 = vector.load %arg10[%c2_564, %c16_565, %c0_566] : memref<3x25x128xf32, #tpu.memory_space<vmem>>, vector<1x8x128xf32>
    %1719 = vector.shape_cast %1718 : vector<1x8x128xf32> to vector<8x128xf32>
    %c1_i32_567 = arith.constant 1 : i32
    %1720 = tpu.dynamic_rotate %1719 by %c1_i32_567 dim 1 : vector<8x128xf32>, i32 -> vector<8x128xf32>
    %c21_568 = arith.constant 21 : index
    %1721 = memref.load %arg5[%c21_568] : memref<81xf32, #tpu.memory_space<smem>>
    %1722 = vector.broadcast %1721 : f32 to vector<8x128xf32>
    %1723 = arith.mulf %1720, %1722 : vector<8x128xf32>
    %1724 = arith.addf %1709, %1723 : vector<8x128xf32>
    %c48_569 = arith.constant 48 : index
    %1725 = memref.load %arg5[%c48_569] : memref<81xf32, #tpu.memory_space<smem>>
    %1726 = vector.broadcast %1725 : f32 to vector<8x128xf32>
    %1727 = arith.mulf %1720, %1726 : vector<8x128xf32>
    %1728 = arith.addf %1713, %1727 : vector<8x128xf32>
    %c75_570 = arith.constant 75 : index
    %1729 = memref.load %arg5[%c75_570] : memref<81xf32, #tpu.memory_space<smem>>
    %1730 = vector.broadcast %1729 : f32 to vector<8x128xf32>
    %1731 = arith.mulf %1720, %1730 : vector<8x128xf32>
    %1732 = arith.addf %1717, %1731 : vector<8x128xf32>
    %c22_571 = arith.constant 22 : index
    %1733 = memref.load %arg5[%c22_571] : memref<81xf32, #tpu.memory_space<smem>>
    %1734 = vector.broadcast %1733 : f32 to vector<8x128xf32>
    %1735 = arith.mulf %1719, %1734 : vector<8x128xf32>
    %1736 = arith.addf %1724, %1735 : vector<8x128xf32>
    %c49_572 = arith.constant 49 : index
    %1737 = memref.load %arg5[%c49_572] : memref<81xf32, #tpu.memory_space<smem>>
    %1738 = vector.broadcast %1737 : f32 to vector<8x128xf32>
    %1739 = arith.mulf %1719, %1738 : vector<8x128xf32>
    %1740 = arith.addf %1728, %1739 : vector<8x128xf32>
    %c76_573 = arith.constant 76 : index
    %1741 = memref.load %arg5[%c76_573] : memref<81xf32, #tpu.memory_space<smem>>
    %1742 = vector.broadcast %1741 : f32 to vector<8x128xf32>
    %1743 = arith.mulf %1719, %1742 : vector<8x128xf32>
    %1744 = arith.addf %1732, %1743 : vector<8x128xf32>
    %c127_i32_574 = arith.constant 127 : i32
    %1745 = tpu.dynamic_rotate %1719 by %c127_i32_574 dim 1 : vector<8x128xf32>, i32 -> vector<8x128xf32>
    %c23_575 = arith.constant 23 : index
    %1746 = memref.load %arg5[%c23_575] : memref<81xf32, #tpu.memory_space<smem>>
    %1747 = vector.broadcast %1746 : f32 to vector<8x128xf32>
    %1748 = arith.mulf %1745, %1747 : vector<8x128xf32>
    %1749 = arith.addf %1736, %1748 : vector<8x128xf32>
    %c50_576 = arith.constant 50 : index
    %1750 = memref.load %arg5[%c50_576] : memref<81xf32, #tpu.memory_space<smem>>
    %1751 = vector.broadcast %1750 : f32 to vector<8x128xf32>
    %1752 = arith.mulf %1745, %1751 : vector<8x128xf32>
    %1753 = arith.addf %1740, %1752 : vector<8x128xf32>
    %c77_577 = arith.constant 77 : index
    %1754 = memref.load %arg5[%c77_577] : memref<81xf32, #tpu.memory_space<smem>>
    %1755 = vector.broadcast %1754 : f32 to vector<8x128xf32>
    %1756 = arith.mulf %1745, %1755 : vector<8x128xf32>
    %1757 = arith.addf %1744, %1756 : vector<8x128xf32>
    %c2_578 = arith.constant 2 : index
    %c17_579 = arith.constant 17 : index
    %c0_580 = arith.constant 0 : index
    %1758 = vector.load %arg10[%c2_578, %c17_579, %c0_580] : memref<3x25x128xf32, #tpu.memory_space<vmem>>, vector<1x8x128xf32>
    %1759 = vector.shape_cast %1758 : vector<1x8x128xf32> to vector<8x128xf32>
    %c1_i32_581 = arith.constant 1 : i32
    %1760 = tpu.dynamic_rotate %1759 by %c1_i32_581 dim 1 : vector<8x128xf32>, i32 -> vector<8x128xf32>
    %c24_582 = arith.constant 24 : index
    %1761 = memref.load %arg5[%c24_582] : memref<81xf32, #tpu.memory_space<smem>>
    %1762 = vector.broadcast %1761 : f32 to vector<8x128xf32>
    %1763 = arith.mulf %1760, %1762 : vector<8x128xf32>
    %1764 = arith.addf %1749, %1763 : vector<8x128xf32>
    %c51_583 = arith.constant 51 : index
    %1765 = memref.load %arg5[%c51_583] : memref<81xf32, #tpu.memory_space<smem>>
    %1766 = vector.broadcast %1765 : f32 to vector<8x128xf32>
    %1767 = arith.mulf %1760, %1766 : vector<8x128xf32>
    %1768 = arith.addf %1753, %1767 : vector<8x128xf32>
    %c78_584 = arith.constant 78 : index
    %1769 = memref.load %arg5[%c78_584] : memref<81xf32, #tpu.memory_space<smem>>
    %1770 = vector.broadcast %1769 : f32 to vector<8x128xf32>
    %1771 = arith.mulf %1760, %1770 : vector<8x128xf32>
    %1772 = arith.addf %1757, %1771 : vector<8x128xf32>
    %c25_585 = arith.constant 25 : index
    %1773 = memref.load %arg5[%c25_585] : memref<81xf32, #tpu.memory_space<smem>>
    %1774 = vector.broadcast %1773 : f32 to vector<8x128xf32>
    %1775 = arith.mulf %1759, %1774 : vector<8x128xf32>
    %1776 = arith.addf %1764, %1775 : vector<8x128xf32>
    %c52_586 = arith.constant 52 : index
    %1777 = memref.load %arg5[%c52_586] : memref<81xf32, #tpu.memory_space<smem>>
    %1778 = vector.broadcast %1777 : f32 to vector<8x128xf32>
    %1779 = arith.mulf %1759, %1778 : vector<8x128xf32>
    %1780 = arith.addf %1768, %1779 : vector<8x128xf32>
    %c79_587 = arith.constant 79 : index
    %1781 = memref.load %arg5[%c79_587] : memref<81xf32, #tpu.memory_space<smem>>
    %1782 = vector.broadcast %1781 : f32 to vector<8x128xf32>
    %1783 = arith.mulf %1759, %1782 : vector<8x128xf32>
    %1784 = arith.addf %1772, %1783 : vector<8x128xf32>
    %c127_i32_588 = arith.constant 127 : i32
    %1785 = tpu.dynamic_rotate %1759 by %c127_i32_588 dim 1 : vector<8x128xf32>, i32 -> vector<8x128xf32>
    %c26_589 = arith.constant 26 : index
    %1786 = memref.load %arg5[%c26_589] : memref<81xf32, #tpu.memory_space<smem>>
    %1787 = vector.broadcast %1786 : f32 to vector<8x128xf32>
    %1788 = arith.mulf %1785, %1787 : vector<8x128xf32>
    %1789 = arith.addf %1776, %1788 : vector<8x128xf32>
    %c53_590 = arith.constant 53 : index
    %1790 = memref.load %arg5[%c53_590] : memref<81xf32, #tpu.memory_space<smem>>
    %1791 = vector.broadcast %1790 : f32 to vector<8x128xf32>
    %1792 = arith.mulf %1785, %1791 : vector<8x128xf32>
    %1793 = arith.addf %1780, %1792 : vector<8x128xf32>
    %c80_591 = arith.constant 80 : index
    %1794 = memref.load %arg5[%c80_591] : memref<81xf32, #tpu.memory_space<smem>>
    %1795 = vector.broadcast %1794 : f32 to vector<8x128xf32>
    %1796 = arith.mulf %1785, %1795 : vector<8x128xf32>
    %1797 = arith.addf %1784, %1796 : vector<8x128xf32>
    %c0_592 = arith.constant 0 : index
    %c0_593 = arith.constant 0 : index
    %1798 = vector.load %arg1[%c0_592, %c0_593] : memref<8x128xf32, #tpu.memory_space<vmem>>, vector<8x128xf32>
    %cst_594 = arith.constant 0.000000e+00 : f32
    %1799 = vector.broadcast %cst_594 : f32 to vector<8x128xf32>
    %1800 = arith.maximumf %1789, %1799 : vector<8x128xf32>
    %1801 = arith.mulf %1800, %1798 : vector<8x128xf32>
    %c0_595 = arith.constant 0 : index
    %c16_596 = arith.constant 16 : index
    %c0_597 = arith.constant 0 : index
    %1802 = vector.load %arg11[%c0_595, %c16_596, %c0_597] : memref<3x25x128xf32, #tpu.memory_space<vmem>>, vector<1x8x128xf32>
    %1803 = vector.shape_cast %1802 : vector<1x8x128xf32> to vector<8x128xf32>
    %1804 = vector.shape_cast %1801 : vector<8x128xf32> to vector<1x8x128xf32>
    tpu.vector_store %arg11[%c0_595, %c16_596, %c0_597], %1804 {strides = array<i32>} : memref<3x25x128xf32, #tpu.memory_space<vmem>>, vector<1x8x128xf32>,
    %cst_598 = arith.constant 0.000000e+00 : f32
    %1805 = vector.broadcast %cst_598 : f32 to vector<8x128xf32>
    %1806 = arith.maximumf %1793, %1805 : vector<8x128xf32>
    %1807 = arith.mulf %1806, %1798 : vector<8x128xf32>
    %c1_599 = arith.constant 1 : index
    %c16_600 = arith.constant 16 : index
    %c0_601 = arith.constant 0 : index
    %1808 = vector.load %arg11[%c1_599, %c16_600, %c0_601] : memref<3x25x128xf32, #tpu.memory_space<vmem>>, vector<1x8x128xf32>
    %1809 = vector.shape_cast %1808 : vector<1x8x128xf32> to vector<8x128xf32>
    %1810 = vector.shape_cast %1807 : vector<8x128xf32> to vector<1x8x128xf32>
    tpu.vector_store %arg11[%c1_599, %c16_600, %c0_601], %1810 {strides = array<i32>} : memref<3x25x128xf32, #tpu.memory_space<vmem>>, vector<1x8x128xf32>,
    %cst_602 = arith.constant 0.000000e+00 : f32
    %1811 = vector.broadcast %cst_602 : f32 to vector<8x128xf32>
    %1812 = arith.maximumf %1797, %1811 : vector<8x128xf32>
    %1813 = arith.mulf %1812, %1798 : vector<8x128xf32>
    %c2_603 = arith.constant 2 : index
    %c16_604 = arith.constant 16 : index
    %c0_605 = arith.constant 0 : index
    %1814 = vector.load %arg11[%c2_603, %c16_604, %c0_605] : memref<3x25x128xf32, #tpu.memory_space<vmem>>, vector<1x8x128xf32>
    %1815 = vector.shape_cast %1814 : vector<1x8x128xf32> to vector<8x128xf32>
    %1816 = vector.shape_cast %1813 : vector<8x128xf32> to vector<1x8x128xf32>
    tpu.vector_store %arg11[%c2_603, %c16_604, %c0_605], %1816 {strides = array<i32>} : memref<3x25x128xf32, #tpu.memory_space<vmem>>, vector<1x8x128xf32>,
    %c0_606 = arith.constant 0 : index
    %1817 = memref.load %arg8[%c0_606] : memref<3xf32, #tpu.memory_space<smem>>
    %1818 = vector.broadcast %1817 : f32 to vector<8x128xf32>
    %c1_607 = arith.constant 1 : index
    %1819 = memref.load %arg8[%c1_607] : memref<3xf32, #tpu.memory_space<smem>>
    %1820 = vector.broadcast %1819 : f32 to vector<8x128xf32>
    %c2_608 = arith.constant 2 : index
    %1821 = memref.load %arg8[%c2_608] : memref<3xf32, #tpu.memory_space<smem>>
    %1822 = vector.broadcast %1821 : f32 to vector<8x128xf32>
    %c0_609 = arith.constant 0 : index
    %c7_610 = arith.constant 7 : index
    %c0_611 = arith.constant 0 : index
    %1823 = vector.load %arg11[%c0_609, %c7_610, %c0_611] : memref<3x25x128xf32, #tpu.memory_space<vmem>>, vector<1x8x128xf32>
    %1824 = vector.shape_cast %1823 : vector<1x8x128xf32> to vector<8x128xf32>
    %c1_i32_612 = arith.constant 1 : i32
    %1825 = tpu.dynamic_rotate %1824 by %c1_i32_612 dim 1 : vector<8x128xf32>, i32 -> vector<8x128xf32>
    %c0_613 = arith.constant 0 : index
    %1826 = memref.load %arg7[%c0_613] : memref<81xf32, #tpu.memory_space<smem>>
    %1827 = vector.broadcast %1826 : f32 to vector<8x128xf32>
    %1828 = arith.mulf %1825, %1827 : vector<8x128xf32>
    %1829 = arith.addf %1818, %1828 : vector<8x128xf32>
    %c27_614 = arith.constant 27 : index
    %1830 = memref.load %arg7[%c27_614] : memref<81xf32, #tpu.memory_space<smem>>
    %1831 = vector.broadcast %1830 : f32 to vector<8x128xf32>
    %1832 = arith.mulf %1825, %1831 : vector<8x128xf32>
    %1833 = arith.addf %1820, %1832 : vector<8x128xf32>
    %c54_615 = arith.constant 54 : index
    %1834 = memref.load %arg7[%c54_615] : memref<81xf32, #tpu.memory_space<smem>>
    %1835 = vector.broadcast %1834 : f32 to vector<8x128xf32>
    %1836 = arith.mulf %1825, %1835 : vector<8x128xf32>
    %1837 = arith.addf %1822, %1836 : vector<8x128xf32>
    %c1_616 = arith.constant 1 : index
    %1838 = memref.load %arg7[%c1_616] : memref<81xf32, #tpu.memory_space<smem>>
    %1839 = vector.broadcast %1838 : f32 to vector<8x128xf32>
    %1840 = arith.mulf %1824, %1839 : vector<8x128xf32>
    %1841 = arith.addf %1829, %1840 : vector<8x128xf32>
    %c28_617 = arith.constant 28 : index
    %1842 = memref.load %arg7[%c28_617] : memref<81xf32, #tpu.memory_space<smem>>
    %1843 = vector.broadcast %1842 : f32 to vector<8x128xf32>
    %1844 = arith.mulf %1824, %1843 : vector<8x128xf32>
    %1845 = arith.addf %1833, %1844 : vector<8x128xf32>
    %c55_618 = arith.constant 55 : index
    %1846 = memref.load %arg7[%c55_618] : memref<81xf32, #tpu.memory_space<smem>>
    %1847 = vector.broadcast %1846 : f32 to vector<8x128xf32>
    %1848 = arith.mulf %1824, %1847 : vector<8x128xf32>
    %1849 = arith.addf %1837, %1848 : vector<8x128xf32>
    %c127_i32_619 = arith.constant 127 : i32
    %1850 = tpu.dynamic_rotate %1824 by %c127_i32_619 dim 1 : vector<8x128xf32>, i32 -> vector<8x128xf32>
    %c2_620 = arith.constant 2 : index
    %1851 = memref.load %arg7[%c2_620] : memref<81xf32, #tpu.memory_space<smem>>
    %1852 = vector.broadcast %1851 : f32 to vector<8x128xf32>
    %1853 = arith.mulf %1850, %1852 : vector<8x128xf32>
    %1854 = arith.addf %1841, %1853 : vector<8x128xf32>
    %c29_621 = arith.constant 29 : index
    %1855 = memref.load %arg7[%c29_621] : memref<81xf32, #tpu.memory_space<smem>>
    %1856 = vector.broadcast %1855 : f32 to vector<8x128xf32>
    %1857 = arith.mulf %1850, %1856 : vector<8x128xf32>
    %1858 = arith.addf %1845, %1857 : vector<8x128xf32>
    %c56_622 = arith.constant 56 : index
    %1859 = memref.load %arg7[%c56_622] : memref<81xf32, #tpu.memory_space<smem>>
    %1860 = vector.broadcast %1859 : f32 to vector<8x128xf32>
    %1861 = arith.mulf %1850, %1860 : vector<8x128xf32>
    %1862 = arith.addf %1849, %1861 : vector<8x128xf32>
    %c0_623 = arith.constant 0 : index
    %c8_624 = arith.constant 8 : index
    %c0_625 = arith.constant 0 : index
    %1863 = vector.load %arg11[%c0_623, %c8_624, %c0_625] : memref<3x25x128xf32, #tpu.memory_space<vmem>>, vector<1x8x128xf32>
    %1864 = vector.shape_cast %1863 : vector<1x8x128xf32> to vector<8x128xf32>
    %c1_i32_626 = arith.constant 1 : i32
    %1865 = tpu.dynamic_rotate %1864 by %c1_i32_626 dim 1 : vector<8x128xf32>, i32 -> vector<8x128xf32>
    %c3_627 = arith.constant 3 : index
    %1866 = memref.load %arg7[%c3_627] : memref<81xf32, #tpu.memory_space<smem>>
    %1867 = vector.broadcast %1866 : f32 to vector<8x128xf32>
    %1868 = arith.mulf %1865, %1867 : vector<8x128xf32>
    %1869 = arith.addf %1854, %1868 : vector<8x128xf32>
    %c30_628 = arith.constant 30 : index
    %1870 = memref.load %arg7[%c30_628] : memref<81xf32, #tpu.memory_space<smem>>
    %1871 = vector.broadcast %1870 : f32 to vector<8x128xf32>
    %1872 = arith.mulf %1865, %1871 : vector<8x128xf32>
    %1873 = arith.addf %1858, %1872 : vector<8x128xf32>
    %c57_629 = arith.constant 57 : index
    %1874 = memref.load %arg7[%c57_629] : memref<81xf32, #tpu.memory_space<smem>>
    %1875 = vector.broadcast %1874 : f32 to vector<8x128xf32>
    %1876 = arith.mulf %1865, %1875 : vector<8x128xf32>
    %1877 = arith.addf %1862, %1876 : vector<8x128xf32>
    %c4_630 = arith.constant 4 : index
    %1878 = memref.load %arg7[%c4_630] : memref<81xf32, #tpu.memory_space<smem>>
    %1879 = vector.broadcast %1878 : f32 to vector<8x128xf32>
    %1880 = arith.mulf %1864, %1879 : vector<8x128xf32>
    %1881 = arith.addf %1869, %1880 : vector<8x128xf32>
    %c31_631 = arith.constant 31 : index
    %1882 = memref.load %arg7[%c31_631] : memref<81xf32, #tpu.memory_space<smem>>
    %1883 = vector.broadcast %1882 : f32 to vector<8x128xf32>
    %1884 = arith.mulf %1864, %1883 : vector<8x128xf32>
    %1885 = arith.addf %1873, %1884 : vector<8x128xf32>
    %c58_632 = arith.constant 58 : index
    %1886 = memref.load %arg7[%c58_632] : memref<81xf32, #tpu.memory_space<smem>>
    %1887 = vector.broadcast %1886 : f32 to vector<8x128xf32>
    %1888 = arith.mulf %1864, %1887 : vector<8x128xf32>
    %1889 = arith.addf %1877, %1888 : vector<8x128xf32>
    %c127_i32_633 = arith.constant 127 : i32
    %1890 = tpu.dynamic_rotate %1864 by %c127_i32_633 dim 1 : vector<8x128xf32>, i32 -> vector<8x128xf32>
    %c5_634 = arith.constant 5 : index
    %1891 = memref.load %arg7[%c5_634] : memref<81xf32, #tpu.memory_space<smem>>
    %1892 = vector.broadcast %1891 : f32 to vector<8x128xf32>
    %1893 = arith.mulf %1890, %1892 : vector<8x128xf32>
    %1894 = arith.addf %1881, %1893 : vector<8x128xf32>
    %c32_635 = arith.constant 32 : index
    %1895 = memref.load %arg7[%c32_635] : memref<81xf32, #tpu.memory_space<smem>>
    %1896 = vector.broadcast %1895 : f32 to vector<8x128xf32>
    %1897 = arith.mulf %1890, %1896 : vector<8x128xf32>
    %1898 = arith.addf %1885, %1897 : vector<8x128xf32>
    %c59_636 = arith.constant 59 : index
    %1899 = memref.load %arg7[%c59_636] : memref<81xf32, #tpu.memory_space<smem>>
    %1900 = vector.broadcast %1899 : f32 to vector<8x128xf32>
    %1901 = arith.mulf %1890, %1900 : vector<8x128xf32>
    %1902 = arith.addf %1889, %1901 : vector<8x128xf32>
    %c0_637 = arith.constant 0 : index
    %c9_638 = arith.constant 9 : index
    %c0_639 = arith.constant 0 : index
    %1903 = vector.load %arg11[%c0_637, %c9_638, %c0_639] : memref<3x25x128xf32, #tpu.memory_space<vmem>>, vector<1x8x128xf32>
    %1904 = vector.shape_cast %1903 : vector<1x8x128xf32> to vector<8x128xf32>
    %c1_i32_640 = arith.constant 1 : i32
    %1905 = tpu.dynamic_rotate %1904 by %c1_i32_640 dim 1 : vector<8x128xf32>, i32 -> vector<8x128xf32>
    %c6_641 = arith.constant 6 : index
    %1906 = memref.load %arg7[%c6_641] : memref<81xf32, #tpu.memory_space<smem>>
    %1907 = vector.broadcast %1906 : f32 to vector<8x128xf32>
    %1908 = arith.mulf %1905, %1907 : vector<8x128xf32>
    %1909 = arith.addf %1894, %1908 : vector<8x128xf32>
    %c33_642 = arith.constant 33 : index
    %1910 = memref.load %arg7[%c33_642] : memref<81xf32, #tpu.memory_space<smem>>
    %1911 = vector.broadcast %1910 : f32 to vector<8x128xf32>
    %1912 = arith.mulf %1905, %1911 : vector<8x128xf32>
    %1913 = arith.addf %1898, %1912 : vector<8x128xf32>
    %c60_643 = arith.constant 60 : index
    %1914 = memref.load %arg7[%c60_643] : memref<81xf32, #tpu.memory_space<smem>>
    %1915 = vector.broadcast %1914 : f32 to vector<8x128xf32>
    %1916 = arith.mulf %1905, %1915 : vector<8x128xf32>
    %1917 = arith.addf %1902, %1916 : vector<8x128xf32>
    %c7_644 = arith.constant 7 : index
    %1918 = memref.load %arg7[%c7_644] : memref<81xf32, #tpu.memory_space<smem>>
    %1919 = vector.broadcast %1918 : f32 to vector<8x128xf32>
    %1920 = arith.mulf %1904, %1919 : vector<8x128xf32>
    %1921 = arith.addf %1909, %1920 : vector<8x128xf32>
    %c34_645 = arith.constant 34 : index
    %1922 = memref.load %arg7[%c34_645] : memref<81xf32, #tpu.memory_space<smem>>
    %1923 = vector.broadcast %1922 : f32 to vector<8x128xf32>
    %1924 = arith.mulf %1904, %1923 : vector<8x128xf32>
    %1925 = arith.addf %1913, %1924 : vector<8x128xf32>
    %c61_646 = arith.constant 61 : index
    %1926 = memref.load %arg7[%c61_646] : memref<81xf32, #tpu.memory_space<smem>>
    %1927 = vector.broadcast %1926 : f32 to vector<8x128xf32>
    %1928 = arith.mulf %1904, %1927 : vector<8x128xf32>
    %1929 = arith.addf %1917, %1928 : vector<8x128xf32>
    %c127_i32_647 = arith.constant 127 : i32
    %1930 = tpu.dynamic_rotate %1904 by %c127_i32_647 dim 1 : vector<8x128xf32>, i32 -> vector<8x128xf32>
    %c8_648 = arith.constant 8 : index
    %1931 = memref.load %arg7[%c8_648] : memref<81xf32, #tpu.memory_space<smem>>
    %1932 = vector.broadcast %1931 : f32 to vector<8x128xf32>
    %1933 = arith.mulf %1930, %1932 : vector<8x128xf32>
    %1934 = arith.addf %1921, %1933 : vector<8x128xf32>
    %c35_649 = arith.constant 35 : index
    %1935 = memref.load %arg7[%c35_649] : memref<81xf32, #tpu.memory_space<smem>>
    %1936 = vector.broadcast %1935 : f32 to vector<8x128xf32>
    %1937 = arith.mulf %1930, %1936 : vector<8x128xf32>
    %1938 = arith.addf %1925, %1937 : vector<8x128xf32>
    %c62_650 = arith.constant 62 : index
    %1939 = memref.load %arg7[%c62_650] : memref<81xf32, #tpu.memory_space<smem>>
    %1940 = vector.broadcast %1939 : f32 to vector<8x128xf32>
    %1941 = arith.mulf %1930, %1940 : vector<8x128xf32>
    %1942 = arith.addf %1929, %1941 : vector<8x128xf32>
    %c1_651 = arith.constant 1 : index
    %c7_652 = arith.constant 7 : index
    %c0_653 = arith.constant 0 : index
    %1943 = vector.load %arg11[%c1_651, %c7_652, %c0_653] : memref<3x25x128xf32, #tpu.memory_space<vmem>>, vector<1x8x128xf32>
    %1944 = vector.shape_cast %1943 : vector<1x8x128xf32> to vector<8x128xf32>
    %c1_i32_654 = arith.constant 1 : i32
    %1945 = tpu.dynamic_rotate %1944 by %c1_i32_654 dim 1 : vector<8x128xf32>, i32 -> vector<8x128xf32>
    %c9_655 = arith.constant 9 : index
    %1946 = memref.load %arg7[%c9_655] : memref<81xf32, #tpu.memory_space<smem>>
    %1947 = vector.broadcast %1946 : f32 to vector<8x128xf32>
    %1948 = arith.mulf %1945, %1947 : vector<8x128xf32>
    %1949 = arith.addf %1934, %1948 : vector<8x128xf32>
    %c36_656 = arith.constant 36 : index
    %1950 = memref.load %arg7[%c36_656] : memref<81xf32, #tpu.memory_space<smem>>
    %1951 = vector.broadcast %1950 : f32 to vector<8x128xf32>
    %1952 = arith.mulf %1945, %1951 : vector<8x128xf32>
    %1953 = arith.addf %1938, %1952 : vector<8x128xf32>
    %c63_657 = arith.constant 63 : index
    %1954 = memref.load %arg7[%c63_657] : memref<81xf32, #tpu.memory_space<smem>>
    %1955 = vector.broadcast %1954 : f32 to vector<8x128xf32>
    %1956 = arith.mulf %1945, %1955 : vector<8x128xf32>
    %1957 = arith.addf %1942, %1956 : vector<8x128xf32>
    %c10_658 = arith.constant 10 : index
    %1958 = memref.load %arg7[%c10_658] : memref<81xf32, #tpu.memory_space<smem>>
    %1959 = vector.broadcast %1958 : f32 to vector<8x128xf32>
    %1960 = arith.mulf %1944, %1959 : vector<8x128xf32>
    %1961 = arith.addf %1949, %1960 : vector<8x128xf32>
    %c37_659 = arith.constant 37 : index
    %1962 = memref.load %arg7[%c37_659] : memref<81xf32, #tpu.memory_space<smem>>
    %1963 = vector.broadcast %1962 : f32 to vector<8x128xf32>
    %1964 = arith.mulf %1944, %1963 : vector<8x128xf32>
    %1965 = arith.addf %1953, %1964 : vector<8x128xf32>
    %c64_660 = arith.constant 64 : index
    %1966 = memref.load %arg7[%c64_660] : memref<81xf32, #tpu.memory_space<smem>>
    %1967 = vector.broadcast %1966 : f32 to vector<8x128xf32>
    %1968 = arith.mulf %1944, %1967 : vector<8x128xf32>
    %1969 = arith.addf %1957, %1968 : vector<8x128xf32>
    %c127_i32_661 = arith.constant 127 : i32
    %1970 = tpu.dynamic_rotate %1944 by %c127_i32_661 dim 1 : vector<8x128xf32>, i32 -> vector<8x128xf32>
    %c11_662 = arith.constant 11 : index
    %1971 = memref.load %arg7[%c11_662] : memref<81xf32, #tpu.memory_space<smem>>
    %1972 = vector.broadcast %1971 : f32 to vector<8x128xf32>
    %1973 = arith.mulf %1970, %1972 : vector<8x128xf32>
    %1974 = arith.addf %1961, %1973 : vector<8x128xf32>
    %c38_663 = arith.constant 38 : index
    %1975 = memref.load %arg7[%c38_663] : memref<81xf32, #tpu.memory_space<smem>>
    %1976 = vector.broadcast %1975 : f32 to vector<8x128xf32>
    %1977 = arith.mulf %1970, %1976 : vector<8x128xf32>
    %1978 = arith.addf %1965, %1977 : vector<8x128xf32>
    %c65_664 = arith.constant 65 : index
    %1979 = memref.load %arg7[%c65_664] : memref<81xf32, #tpu.memory_space<smem>>
    %1980 = vector.broadcast %1979 : f32 to vector<8x128xf32>
    %1981 = arith.mulf %1970, %1980 : vector<8x128xf32>
    %1982 = arith.addf %1969, %1981 : vector<8x128xf32>
    %c1_665 = arith.constant 1 : index
    %c8_666 = arith.constant 8 : index
    %c0_667 = arith.constant 0 : index
    %1983 = vector.load %arg11[%c1_665, %c8_666, %c0_667] : memref<3x25x128xf32, #tpu.memory_space<vmem>>, vector<1x8x128xf32>
    %1984 = vector.shape_cast %1983 : vector<1x8x128xf32> to vector<8x128xf32>
    %c1_i32_668 = arith.constant 1 : i32
    %1985 = tpu.dynamic_rotate %1984 by %c1_i32_668 dim 1 : vector<8x128xf32>, i32 -> vector<8x128xf32>
    %c12_669 = arith.constant 12 : index
    %1986 = memref.load %arg7[%c12_669] : memref<81xf32, #tpu.memory_space<smem>>
    %1987 = vector.broadcast %1986 : f32 to vector<8x128xf32>
    %1988 = arith.mulf %1985, %1987 : vector<8x128xf32>
    %1989 = arith.addf %1974, %1988 : vector<8x128xf32>
    %c39_670 = arith.constant 39 : index
    %1990 = memref.load %arg7[%c39_670] : memref<81xf32, #tpu.memory_space<smem>>
    %1991 = vector.broadcast %1990 : f32 to vector<8x128xf32>
    %1992 = arith.mulf %1985, %1991 : vector<8x128xf32>
    %1993 = arith.addf %1978, %1992 : vector<8x128xf32>
    %c66_671 = arith.constant 66 : index
    %1994 = memref.load %arg7[%c66_671] : memref<81xf32, #tpu.memory_space<smem>>
    %1995 = vector.broadcast %1994 : f32 to vector<8x128xf32>
    %1996 = arith.mulf %1985, %1995 : vector<8x128xf32>
    %1997 = arith.addf %1982, %1996 : vector<8x128xf32>
    %c13_672 = arith.constant 13 : index
    %1998 = memref.load %arg7[%c13_672] : memref<81xf32, #tpu.memory_space<smem>>
    %1999 = vector.broadcast %1998 : f32 to vector<8x128xf32>
    %2000 = arith.mulf %1984, %1999 : vector<8x128xf32>
    %2001 = arith.addf %1989, %2000 : vector<8x128xf32>
    %c40_673 = arith.constant 40 : index
    %2002 = memref.load %arg7[%c40_673] : memref<81xf32, #tpu.memory_space<smem>>
    %2003 = vector.broadcast %2002 : f32 to vector<8x128xf32>
    %2004 = arith.mulf %1984, %2003 : vector<8x128xf32>
    %2005 = arith.addf %1993, %2004 : vector<8x128xf32>
    %c67_674 = arith.constant 67 : index
    %2006 = memref.load %arg7[%c67_674] : memref<81xf32, #tpu.memory_space<smem>>
    %2007 = vector.broadcast %2006 : f32 to vector<8x128xf32>
    %2008 = arith.mulf %1984, %2007 : vector<8x128xf32>
    %2009 = arith.addf %1997, %2008 : vector<8x128xf32>
    %c127_i32_675 = arith.constant 127 : i32
    %2010 = tpu.dynamic_rotate %1984 by %c127_i32_675 dim 1 : vector<8x128xf32>, i32 -> vector<8x128xf32>
    %c14_676 = arith.constant 14 : index
    %2011 = memref.load %arg7[%c14_676] : memref<81xf32, #tpu.memory_space<smem>>
    %2012 = vector.broadcast %2011 : f32 to vector<8x128xf32>
    %2013 = arith.mulf %2010, %2012 : vector<8x128xf32>
    %2014 = arith.addf %2001, %2013 : vector<8x128xf32>
    %c41_677 = arith.constant 41 : index
    %2015 = memref.load %arg7[%c41_677] : memref<81xf32, #tpu.memory_space<smem>>
    %2016 = vector.broadcast %2015 : f32 to vector<8x128xf32>
    %2017 = arith.mulf %2010, %2016 : vector<8x128xf32>
    %2018 = arith.addf %2005, %2017 : vector<8x128xf32>
    %c68_678 = arith.constant 68 : index
    %2019 = memref.load %arg7[%c68_678] : memref<81xf32, #tpu.memory_space<smem>>
    %2020 = vector.broadcast %2019 : f32 to vector<8x128xf32>
    %2021 = arith.mulf %2010, %2020 : vector<8x128xf32>
    %2022 = arith.addf %2009, %2021 : vector<8x128xf32>
    %c1_679 = arith.constant 1 : index
    %c9_680 = arith.constant 9 : index
    %c0_681 = arith.constant 0 : index
    %2023 = vector.load %arg11[%c1_679, %c9_680, %c0_681] : memref<3x25x128xf32, #tpu.memory_space<vmem>>, vector<1x8x128xf32>
    %2024 = vector.shape_cast %2023 : vector<1x8x128xf32> to vector<8x128xf32>
    %c1_i32_682 = arith.constant 1 : i32
    %2025 = tpu.dynamic_rotate %2024 by %c1_i32_682 dim 1 : vector<8x128xf32>, i32 -> vector<8x128xf32>
    %c15_683 = arith.constant 15 : index
    %2026 = memref.load %arg7[%c15_683] : memref<81xf32, #tpu.memory_space<smem>>
    %2027 = vector.broadcast %2026 : f32 to vector<8x128xf32>
    %2028 = arith.mulf %2025, %2027 : vector<8x128xf32>
    %2029 = arith.addf %2014, %2028 : vector<8x128xf32>
    %c42_684 = arith.constant 42 : index
    %2030 = memref.load %arg7[%c42_684] : memref<81xf32, #tpu.memory_space<smem>>
    %2031 = vector.broadcast %2030 : f32 to vector<8x128xf32>
    %2032 = arith.mulf %2025, %2031 : vector<8x128xf32>
    %2033 = arith.addf %2018, %2032 : vector<8x128xf32>
    %c69_685 = arith.constant 69 : index
    %2034 = memref.load %arg7[%c69_685] : memref<81xf32, #tpu.memory_space<smem>>
    %2035 = vector.broadcast %2034 : f32 to vector<8x128xf32>
    %2036 = arith.mulf %2025, %2035 : vector<8x128xf32>
    %2037 = arith.addf %2022, %2036 : vector<8x128xf32>
    %c16_686 = arith.constant 16 : index
    %2038 = memref.load %arg7[%c16_686] : memref<81xf32, #tpu.memory_space<smem>>
    %2039 = vector.broadcast %2038 : f32 to vector<8x128xf32>
    %2040 = arith.mulf %2024, %2039 : vector<8x128xf32>
    %2041 = arith.addf %2029, %2040 : vector<8x128xf32>
    %c43_687 = arith.constant 43 : index
    %2042 = memref.load %arg7[%c43_687] : memref<81xf32, #tpu.memory_space<smem>>
    %2043 = vector.broadcast %2042 : f32 to vector<8x128xf32>
    %2044 = arith.mulf %2024, %2043 : vector<8x128xf32>
    %2045 = arith.addf %2033, %2044 : vector<8x128xf32>
    %c70_688 = arith.constant 70 : index
    %2046 = memref.load %arg7[%c70_688] : memref<81xf32, #tpu.memory_space<smem>>
    %2047 = vector.broadcast %2046 : f32 to vector<8x128xf32>
    %2048 = arith.mulf %2024, %2047 : vector<8x128xf32>
    %2049 = arith.addf %2037, %2048 : vector<8x128xf32>
    %c127_i32_689 = arith.constant 127 : i32
    %2050 = tpu.dynamic_rotate %2024 by %c127_i32_689 dim 1 : vector<8x128xf32>, i32 -> vector<8x128xf32>
    %c17_690 = arith.constant 17 : index
    %2051 = memref.load %arg7[%c17_690] : memref<81xf32, #tpu.memory_space<smem>>
    %2052 = vector.broadcast %2051 : f32 to vector<8x128xf32>
    %2053 = arith.mulf %2050, %2052 : vector<8x128xf32>
    %2054 = arith.addf %2041, %2053 : vector<8x128xf32>
    %c44_691 = arith.constant 44 : index
    %2055 = memref.load %arg7[%c44_691] : memref<81xf32, #tpu.memory_space<smem>>
    %2056 = vector.broadcast %2055 : f32 to vector<8x128xf32>
    %2057 = arith.mulf %2050, %2056 : vector<8x128xf32>
    %2058 = arith.addf %2045, %2057 : vector<8x128xf32>
    %c71_692 = arith.constant 71 : index
    %2059 = memref.load %arg7[%c71_692] : memref<81xf32, #tpu.memory_space<smem>>
    %2060 = vector.broadcast %2059 : f32 to vector<8x128xf32>
    %2061 = arith.mulf %2050, %2060 : vector<8x128xf32>
    %2062 = arith.addf %2049, %2061 : vector<8x128xf32>
    %c2_693 = arith.constant 2 : index
    %c7_694 = arith.constant 7 : index
    %c0_695 = arith.constant 0 : index
    %2063 = vector.load %arg11[%c2_693, %c7_694, %c0_695] : memref<3x25x128xf32, #tpu.memory_space<vmem>>, vector<1x8x128xf32>
    %2064 = vector.shape_cast %2063 : vector<1x8x128xf32> to vector<8x128xf32>
    %c1_i32_696 = arith.constant 1 : i32
    %2065 = tpu.dynamic_rotate %2064 by %c1_i32_696 dim 1 : vector<8x128xf32>, i32 -> vector<8x128xf32>
    %c18_697 = arith.constant 18 : index
    %2066 = memref.load %arg7[%c18_697] : memref<81xf32, #tpu.memory_space<smem>>
    %2067 = vector.broadcast %2066 : f32 to vector<8x128xf32>
    %2068 = arith.mulf %2065, %2067 : vector<8x128xf32>
    %2069 = arith.addf %2054, %2068 : vector<8x128xf32>
    %c45_698 = arith.constant 45 : index
    %2070 = memref.load %arg7[%c45_698] : memref<81xf32, #tpu.memory_space<smem>>
    %2071 = vector.broadcast %2070 : f32 to vector<8x128xf32>
    %2072 = arith.mulf %2065, %2071 : vector<8x128xf32>
    %2073 = arith.addf %2058, %2072 : vector<8x128xf32>
    %c72_699 = arith.constant 72 : index
    %2074 = memref.load %arg7[%c72_699] : memref<81xf32, #tpu.memory_space<smem>>
    %2075 = vector.broadcast %2074 : f32 to vector<8x128xf32>
    %2076 = arith.mulf %2065, %2075 : vector<8x128xf32>
    %2077 = arith.addf %2062, %2076 : vector<8x128xf32>
    %c19_700 = arith.constant 19 : index
    %2078 = memref.load %arg7[%c19_700] : memref<81xf32, #tpu.memory_space<smem>>
    %2079 = vector.broadcast %2078 : f32 to vector<8x128xf32>
    %2080 = arith.mulf %2064, %2079 : vector<8x128xf32>
    %2081 = arith.addf %2069, %2080 : vector<8x128xf32>
    %c46_701 = arith.constant 46 : index
    %2082 = memref.load %arg7[%c46_701] : memref<81xf32, #tpu.memory_space<smem>>
    %2083 = vector.broadcast %2082 : f32 to vector<8x128xf32>
    %2084 = arith.mulf %2064, %2083 : vector<8x128xf32>
    %2085 = arith.addf %2073, %2084 : vector<8x128xf32>
    %c73_702 = arith.constant 73 : index
    %2086 = memref.load %arg7[%c73_702] : memref<81xf32, #tpu.memory_space<smem>>
    %2087 = vector.broadcast %2086 : f32 to vector<8x128xf32>
    %2088 = arith.mulf %2064, %2087 : vector<8x128xf32>
    %2089 = arith.addf %2077, %2088 : vector<8x128xf32>
    %c127_i32_703 = arith.constant 127 : i32
    %2090 = tpu.dynamic_rotate %2064 by %c127_i32_703 dim 1 : vector<8x128xf32>, i32 -> vector<8x128xf32>
    %c20_704 = arith.constant 20 : index
    %2091 = memref.load %arg7[%c20_704] : memref<81xf32, #tpu.memory_space<smem>>
    %2092 = vector.broadcast %2091 : f32 to vector<8x128xf32>
    %2093 = arith.mulf %2090, %2092 : vector<8x128xf32>
    %2094 = arith.addf %2081, %2093 : vector<8x128xf32>
    %c47_705 = arith.constant 47 : index
    %2095 = memref.load %arg7[%c47_705] : memref<81xf32, #tpu.memory_space<smem>>
    %2096 = vector.broadcast %2095 : f32 to vector<8x128xf32>
    %2097 = arith.mulf %2090, %2096 : vector<8x128xf32>
    %2098 = arith.addf %2085, %2097 : vector<8x128xf32>
    %c74_706 = arith.constant 74 : index
    %2099 = memref.load %arg7[%c74_706] : memref<81xf32, #tpu.memory_space<smem>>
    %2100 = vector.broadcast %2099 : f32 to vector<8x128xf32>
    %2101 = arith.mulf %2090, %2100 : vector<8x128xf32>
    %2102 = arith.addf %2089, %2101 : vector<8x128xf32>
    %c2_707 = arith.constant 2 : index
    %c8_708 = arith.constant 8 : index
    %c0_709 = arith.constant 0 : index
    %2103 = vector.load %arg11[%c2_707, %c8_708, %c0_709] : memref<3x25x128xf32, #tpu.memory_space<vmem>>, vector<1x8x128xf32>
    %2104 = vector.shape_cast %2103 : vector<1x8x128xf32> to vector<8x128xf32>
    %c1_i32_710 = arith.constant 1 : i32
    %2105 = tpu.dynamic_rotate %2104 by %c1_i32_710 dim 1 : vector<8x128xf32>, i32 -> vector<8x128xf32>
    %c21_711 = arith.constant 21 : index
    %2106 = memref.load %arg7[%c21_711] : memref<81xf32, #tpu.memory_space<smem>>
    %2107 = vector.broadcast %2106 : f32 to vector<8x128xf32>
    %2108 = arith.mulf %2105, %2107 : vector<8x128xf32>
    %2109 = arith.addf %2094, %2108 : vector<8x128xf32>
    %c48_712 = arith.constant 48 : index
    %2110 = memref.load %arg7[%c48_712] : memref<81xf32, #tpu.memory_space<smem>>
    %2111 = vector.broadcast %2110 : f32 to vector<8x128xf32>
    %2112 = arith.mulf %2105, %2111 : vector<8x128xf32>
    %2113 = arith.addf %2098, %2112 : vector<8x128xf32>
    %c75_713 = arith.constant 75 : index
    %2114 = memref.load %arg7[%c75_713] : memref<81xf32, #tpu.memory_space<smem>>
    %2115 = vector.broadcast %2114 : f32 to vector<8x128xf32>
    %2116 = arith.mulf %2105, %2115 : vector<8x128xf32>
    %2117 = arith.addf %2102, %2116 : vector<8x128xf32>
    %c22_714 = arith.constant 22 : index
    %2118 = memref.load %arg7[%c22_714] : memref<81xf32, #tpu.memory_space<smem>>
    %2119 = vector.broadcast %2118 : f32 to vector<8x128xf32>
    %2120 = arith.mulf %2104, %2119 : vector<8x128xf32>
    %2121 = arith.addf %2109, %2120 : vector<8x128xf32>
    %c49_715 = arith.constant 49 : index
    %2122 = memref.load %arg7[%c49_715] : memref<81xf32, #tpu.memory_space<smem>>
    %2123 = vector.broadcast %2122 : f32 to vector<8x128xf32>
    %2124 = arith.mulf %2104, %2123 : vector<8x128xf32>
    %2125 = arith.addf %2113, %2124 : vector<8x128xf32>
    %c76_716 = arith.constant 76 : index
    %2126 = memref.load %arg7[%c76_716] : memref<81xf32, #tpu.memory_space<smem>>
    %2127 = vector.broadcast %2126 : f32 to vector<8x128xf32>
    %2128 = arith.mulf %2104, %2127 : vector<8x128xf32>
    %2129 = arith.addf %2117, %2128 : vector<8x128xf32>
    %c127_i32_717 = arith.constant 127 : i32
    %2130 = tpu.dynamic_rotate %2104 by %c127_i32_717 dim 1 : vector<8x128xf32>, i32 -> vector<8x128xf32>
    %c23_718 = arith.constant 23 : index
    %2131 = memref.load %arg7[%c23_718] : memref<81xf32, #tpu.memory_space<smem>>
    %2132 = vector.broadcast %2131 : f32 to vector<8x128xf32>
    %2133 = arith.mulf %2130, %2132 : vector<8x128xf32>
    %2134 = arith.addf %2121, %2133 : vector<8x128xf32>
    %c50_719 = arith.constant 50 : index
    %2135 = memref.load %arg7[%c50_719] : memref<81xf32, #tpu.memory_space<smem>>
    %2136 = vector.broadcast %2135 : f32 to vector<8x128xf32>
    %2137 = arith.mulf %2130, %2136 : vector<8x128xf32>
    %2138 = arith.addf %2125, %2137 : vector<8x128xf32>
    %c77_720 = arith.constant 77 : index
    %2139 = memref.load %arg7[%c77_720] : memref<81xf32, #tpu.memory_space<smem>>
    %2140 = vector.broadcast %2139 : f32 to vector<8x128xf32>
    %2141 = arith.mulf %2130, %2140 : vector<8x128xf32>
    %2142 = arith.addf %2129, %2141 : vector<8x128xf32>
    %c2_721 = arith.constant 2 : index
    %c9_722 = arith.constant 9 : index
    %c0_723 = arith.constant 0 : index
    %2143 = vector.load %arg11[%c2_721, %c9_722, %c0_723] : memref<3x25x128xf32, #tpu.memory_space<vmem>>, vector<1x8x128xf32>
    %2144 = vector.shape_cast %2143 : vector<1x8x128xf32> to vector<8x128xf32>
    %c1_i32_724 = arith.constant 1 : i32
    %2145 = tpu.dynamic_rotate %2144 by %c1_i32_724 dim 1 : vector<8x128xf32>, i32 -> vector<8x128xf32>
    %c24_725 = arith.constant 24 : index
    %2146 = memref.load %arg7[%c24_725] : memref<81xf32, #tpu.memory_space<smem>>
    %2147 = vector.broadcast %2146 : f32 to vector<8x128xf32>
    %2148 = arith.mulf %2145, %2147 : vector<8x128xf32>
    %2149 = arith.addf %2134, %2148 : vector<8x128xf32>
    %c51_726 = arith.constant 51 : index
    %2150 = memref.load %arg7[%c51_726] : memref<81xf32, #tpu.memory_space<smem>>
    %2151 = vector.broadcast %2150 : f32 to vector<8x128xf32>
    %2152 = arith.mulf %2145, %2151 : vector<8x128xf32>
    %2153 = arith.addf %2138, %2152 : vector<8x128xf32>
    %c78_727 = arith.constant 78 : index
    %2154 = memref.load %arg7[%c78_727] : memref<81xf32, #tpu.memory_space<smem>>
    %2155 = vector.broadcast %2154 : f32 to vector<8x128xf32>
    %2156 = arith.mulf %2145, %2155 : vector<8x128xf32>
    %2157 = arith.addf %2142, %2156 : vector<8x128xf32>
    %c25_728 = arith.constant 25 : index
    %2158 = memref.load %arg7[%c25_728] : memref<81xf32, #tpu.memory_space<smem>>
    %2159 = vector.broadcast %2158 : f32 to vector<8x128xf32>
    %2160 = arith.mulf %2144, %2159 : vector<8x128xf32>
    %2161 = arith.addf %2149, %2160 : vector<8x128xf32>
    %c52_729 = arith.constant 52 : index
    %2162 = memref.load %arg7[%c52_729] : memref<81xf32, #tpu.memory_space<smem>>
    %2163 = vector.broadcast %2162 : f32 to vector<8x128xf32>
    %2164 = arith.mulf %2144, %2163 : vector<8x128xf32>
    %2165 = arith.addf %2153, %2164 : vector<8x128xf32>
    %c79_730 = arith.constant 79 : index
    %2166 = memref.load %arg7[%c79_730] : memref<81xf32, #tpu.memory_space<smem>>
    %2167 = vector.broadcast %2166 : f32 to vector<8x128xf32>
    %2168 = arith.mulf %2144, %2167 : vector<8x128xf32>
    %2169 = arith.addf %2157, %2168 : vector<8x128xf32>
    %c127_i32_731 = arith.constant 127 : i32
    %2170 = tpu.dynamic_rotate %2144 by %c127_i32_731 dim 1 : vector<8x128xf32>, i32 -> vector<8x128xf32>
    %c26_732 = arith.constant 26 : index
    %2171 = memref.load %arg7[%c26_732] : memref<81xf32, #tpu.memory_space<smem>>
    %2172 = vector.broadcast %2171 : f32 to vector<8x128xf32>
    %2173 = arith.mulf %2170, %2172 : vector<8x128xf32>
    %2174 = arith.addf %2161, %2173 : vector<8x128xf32>
    %c53_733 = arith.constant 53 : index
    %2175 = memref.load %arg7[%c53_733] : memref<81xf32, #tpu.memory_space<smem>>
    %2176 = vector.broadcast %2175 : f32 to vector<8x128xf32>
    %2177 = arith.mulf %2170, %2176 : vector<8x128xf32>
    %2178 = arith.addf %2165, %2177 : vector<8x128xf32>
    %c80_734 = arith.constant 80 : index
    %2179 = memref.load %arg7[%c80_734] : memref<81xf32, #tpu.memory_space<smem>>
    %2180 = vector.broadcast %2179 : f32 to vector<8x128xf32>
    %2181 = arith.mulf %2170, %2180 : vector<8x128xf32>
    %2182 = arith.addf %2169, %2181 : vector<8x128xf32>
    %cst_735 = arith.constant 0.000000e+00 : f32
    %2183 = vector.broadcast %cst_735 : f32 to vector<8x128xf32>
    %2184 = arith.maximumf %2174, %2183 : vector<8x128xf32>
    %c0_736 = arith.constant 0 : index
    %c0_737 = arith.constant 0 : index
    %c0_738 = arith.constant 0 : index
    %c0_739 = arith.constant 0 : index
    %2185 = vector.load %arg9[%c0_736, %c0_737, %c0_738, %c0_739] : memref<1x3x16x128xf32, #tpu.memory_space<vmem>>, vector<1x1x8x128xf32>
    %2186 = vector.shape_cast %2185 : vector<1x1x8x128xf32> to vector<8x128xf32>
    %2187 = vector.shape_cast %2184 : vector<8x128xf32> to vector<1x1x8x128xf32>
    tpu.vector_store %arg9[%c0_736, %c0_737, %c0_738, %c0_739], %2187 {strides = array<i32>} : memref<1x3x16x128xf32, #tpu.memory_space<vmem>>, vector<1x1x8x128xf32>,
    %cst_740 = arith.constant 0.000000e+00 : f32
    %2188 = vector.broadcast %cst_740 : f32 to vector<8x128xf32>
    %2189 = arith.maximumf %2178, %2188 : vector<8x128xf32>
    %c0_741 = arith.constant 0 : index
    %c1_742 = arith.constant 1 : index
    %c0_743 = arith.constant 0 : index
    %c0_744 = arith.constant 0 : index
    %2190 = vector.load %arg9[%c0_741, %c1_742, %c0_743, %c0_744] : memref<1x3x16x128xf32, #tpu.memory_space<vmem>>, vector<1x1x8x128xf32>
    %2191 = vector.shape_cast %2190 : vector<1x1x8x128xf32> to vector<8x128xf32>
    %2192 = vector.shape_cast %2189 : vector<8x128xf32> to vector<1x1x8x128xf32>
    tpu.vector_store %arg9[%c0_741, %c1_742, %c0_743, %c0_744], %2192 {strides = array<i32>} : memref<1x3x16x128xf32, #tpu.memory_space<vmem>>, vector<1x1x8x128xf32>,
    %cst_745 = arith.constant 0.000000e+00 : f32
    %2193 = vector.broadcast %cst_745 : f32 to vector<8x128xf32>
    %2194 = arith.maximumf %2182, %2193 : vector<8x128xf32>
    %c0_746 = arith.constant 0 : index
    %c2_747 = arith.constant 2 : index
    %c0_748 = arith.constant 0 : index
    %c0_749 = arith.constant 0 : index
    %2195 = vector.load %arg9[%c0_746, %c2_747, %c0_748, %c0_749] : memref<1x3x16x128xf32, #tpu.memory_space<vmem>>, vector<1x1x8x128xf32>
    %2196 = vector.shape_cast %2195 : vector<1x1x8x128xf32> to vector<8x128xf32>
    %2197 = vector.shape_cast %2194 : vector<8x128xf32> to vector<1x1x8x128xf32>
    tpu.vector_store %arg9[%c0_746, %c2_747, %c0_748, %c0_749], %2197 {strides = array<i32>} : memref<1x3x16x128xf32, #tpu.memory_space<vmem>>, vector<1x1x8x128xf32>,
    %c0_750 = arith.constant 0 : index
    %2198 = memref.load %arg8[%c0_750] : memref<3xf32, #tpu.memory_space<smem>>
    %2199 = vector.broadcast %2198 : f32 to vector<8x128xf32>
    %c1_751 = arith.constant 1 : index
    %2200 = memref.load %arg8[%c1_751] : memref<3xf32, #tpu.memory_space<smem>>
    %2201 = vector.broadcast %2200 : f32 to vector<8x128xf32>
    %c2_752 = arith.constant 2 : index
    %2202 = memref.load %arg8[%c2_752] : memref<3xf32, #tpu.memory_space<smem>>
    %2203 = vector.broadcast %2202 : f32 to vector<8x128xf32>
    %c0_753 = arith.constant 0 : index
    %c15_754 = arith.constant 15 : index
    %c0_755 = arith.constant 0 : index
    %2204 = vector.load %arg11[%c0_753, %c15_754, %c0_755] : memref<3x25x128xf32, #tpu.memory_space<vmem>>, vector<1x8x128xf32>
    %2205 = vector.shape_cast %2204 : vector<1x8x128xf32> to vector<8x128xf32>
    %c1_i32_756 = arith.constant 1 : i32
    %2206 = tpu.dynamic_rotate %2205 by %c1_i32_756 dim 1 : vector<8x128xf32>, i32 -> vector<8x128xf32>
    %c0_757 = arith.constant 0 : index
    %2207 = memref.load %arg7[%c0_757] : memref<81xf32, #tpu.memory_space<smem>>
    %2208 = vector.broadcast %2207 : f32 to vector<8x128xf32>
    %2209 = arith.mulf %2206, %2208 : vector<8x128xf32>
    %2210 = arith.addf %2199, %2209 : vector<8x128xf32>
    %c27_758 = arith.constant 27 : index
    %2211 = memref.load %arg7[%c27_758] : memref<81xf32, #tpu.memory_space<smem>>
    %2212 = vector.broadcast %2211 : f32 to vector<8x128xf32>
    %2213 = arith.mulf %2206, %2212 : vector<8x128xf32>
    %2214 = arith.addf %2201, %2213 : vector<8x128xf32>
    %c54_759 = arith.constant 54 : index
    %2215 = memref.load %arg7[%c54_759] : memref<81xf32, #tpu.memory_space<smem>>
    %2216 = vector.broadcast %2215 : f32 to vector<8x128xf32>
    %2217 = arith.mulf %2206, %2216 : vector<8x128xf32>
    %2218 = arith.addf %2203, %2217 : vector<8x128xf32>
    %c1_760 = arith.constant 1 : index
    %2219 = memref.load %arg7[%c1_760] : memref<81xf32, #tpu.memory_space<smem>>
    %2220 = vector.broadcast %2219 : f32 to vector<8x128xf32>
    %2221 = arith.mulf %2205, %2220 : vector<8x128xf32>
    %2222 = arith.addf %2210, %2221 : vector<8x128xf32>
    %c28_761 = arith.constant 28 : index
    %2223 = memref.load %arg7[%c28_761] : memref<81xf32, #tpu.memory_space<smem>>
    %2224 = vector.broadcast %2223 : f32 to vector<8x128xf32>
    %2225 = arith.mulf %2205, %2224 : vector<8x128xf32>
    %2226 = arith.addf %2214, %2225 : vector<8x128xf32>
    %c55_762 = arith.constant 55 : index
    %2227 = memref.load %arg7[%c55_762] : memref<81xf32, #tpu.memory_space<smem>>
    %2228 = vector.broadcast %2227 : f32 to vector<8x128xf32>
    %2229 = arith.mulf %2205, %2228 : vector<8x128xf32>
    %2230 = arith.addf %2218, %2229 : vector<8x128xf32>
    %c127_i32_763 = arith.constant 127 : i32
    %2231 = tpu.dynamic_rotate %2205 by %c127_i32_763 dim 1 : vector<8x128xf32>, i32 -> vector<8x128xf32>
    %c2_764 = arith.constant 2 : index
    %2232 = memref.load %arg7[%c2_764] : memref<81xf32, #tpu.memory_space<smem>>
    %2233 = vector.broadcast %2232 : f32 to vector<8x128xf32>
    %2234 = arith.mulf %2231, %2233 : vector<8x128xf32>
    %2235 = arith.addf %2222, %2234 : vector<8x128xf32>
    %c29_765 = arith.constant 29 : index
    %2236 = memref.load %arg7[%c29_765] : memref<81xf32, #tpu.memory_space<smem>>
    %2237 = vector.broadcast %2236 : f32 to vector<8x128xf32>
    %2238 = arith.mulf %2231, %2237 : vector<8x128xf32>
    %2239 = arith.addf %2226, %2238 : vector<8x128xf32>
    %c56_766 = arith.constant 56 : index
    %2240 = memref.load %arg7[%c56_766] : memref<81xf32, #tpu.memory_space<smem>>
    %2241 = vector.broadcast %2240 : f32 to vector<8x128xf32>
    %2242 = arith.mulf %2231, %2241 : vector<8x128xf32>
    %2243 = arith.addf %2230, %2242 : vector<8x128xf32>
    %c0_767 = arith.constant 0 : index
    %c16_768 = arith.constant 16 : index
    %c0_769 = arith.constant 0 : index
    %2244 = vector.load %arg11[%c0_767, %c16_768, %c0_769] : memref<3x25x128xf32, #tpu.memory_space<vmem>>, vector<1x8x128xf32>
    %2245 = vector.shape_cast %2244 : vector<1x8x128xf32> to vector<8x128xf32>
    %c1_i32_770 = arith.constant 1 : i32
    %2246 = tpu.dynamic_rotate %2245 by %c1_i32_770 dim 1 : vector<8x128xf32>, i32 -> vector<8x128xf32>
    %c3_771 = arith.constant 3 : index
    %2247 = memref.load %arg7[%c3_771] : memref<81xf32, #tpu.memory_space<smem>>
    %2248 = vector.broadcast %2247 : f32 to vector<8x128xf32>
    %2249 = arith.mulf %2246, %2248 : vector<8x128xf32>
    %2250 = arith.addf %2235, %2249 : vector<8x128xf32>
    %c30_772 = arith.constant 30 : index
    %2251 = memref.load %arg7[%c30_772] : memref<81xf32, #tpu.memory_space<smem>>
    %2252 = vector.broadcast %2251 : f32 to vector<8x128xf32>
    %2253 = arith.mulf %2246, %2252 : vector<8x128xf32>
    %2254 = arith.addf %2239, %2253 : vector<8x128xf32>
    %c57_773 = arith.constant 57 : index
    %2255 = memref.load %arg7[%c57_773] : memref<81xf32, #tpu.memory_space<smem>>
    %2256 = vector.broadcast %2255 : f32 to vector<8x128xf32>
    %2257 = arith.mulf %2246, %2256 : vector<8x128xf32>
    %2258 = arith.addf %2243, %2257 : vector<8x128xf32>
    %c4_774 = arith.constant 4 : index
    %2259 = memref.load %arg7[%c4_774] : memref<81xf32, #tpu.memory_space<smem>>
    %2260 = vector.broadcast %2259 : f32 to vector<8x128xf32>
    %2261 = arith.mulf %2245, %2260 : vector<8x128xf32>
    %2262 = arith.addf %2250, %2261 : vector<8x128xf32>
    %c31_775 = arith.constant 31 : index
    %2263 = memref.load %arg7[%c31_775] : memref<81xf32, #tpu.memory_space<smem>>
    %2264 = vector.broadcast %2263 : f32 to vector<8x128xf32>
    %2265 = arith.mulf %2245, %2264 : vector<8x128xf32>
    %2266 = arith.addf %2254, %2265 : vector<8x128xf32>
    %c58_776 = arith.constant 58 : index
    %2267 = memref.load %arg7[%c58_776] : memref<81xf32, #tpu.memory_space<smem>>
    %2268 = vector.broadcast %2267 : f32 to vector<8x128xf32>
    %2269 = arith.mulf %2245, %2268 : vector<8x128xf32>
    %2270 = arith.addf %2258, %2269 : vector<8x128xf32>
    %c127_i32_777 = arith.constant 127 : i32
    %2271 = tpu.dynamic_rotate %2245 by %c127_i32_777 dim 1 : vector<8x128xf32>, i32 -> vector<8x128xf32>
    %c5_778 = arith.constant 5 : index
    %2272 = memref.load %arg7[%c5_778] : memref<81xf32, #tpu.memory_space<smem>>
    %2273 = vector.broadcast %2272 : f32 to vector<8x128xf32>
    %2274 = arith.mulf %2271, %2273 : vector<8x128xf32>
    %2275 = arith.addf %2262, %2274 : vector<8x128xf32>
    %c32_779 = arith.constant 32 : index
    %2276 = memref.load %arg7[%c32_779] : memref<81xf32, #tpu.memory_space<smem>>
    %2277 = vector.broadcast %2276 : f32 to vector<8x128xf32>
    %2278 = arith.mulf %2271, %2277 : vector<8x128xf32>
    %2279 = arith.addf %2266, %2278 : vector<8x128xf32>
    %c59_780 = arith.constant 59 : index
    %2280 = memref.load %arg7[%c59_780] : memref<81xf32, #tpu.memory_space<smem>>
    %2281 = vector.broadcast %2280 : f32 to vector<8x128xf32>
    %2282 = arith.mulf %2271, %2281 : vector<8x128xf32>
    %2283 = arith.addf %2270, %2282 : vector<8x128xf32>
    %c0_781 = arith.constant 0 : index
    %c17_782 = arith.constant 17 : index
    %c0_783 = arith.constant 0 : index
    %2284 = vector.load %arg11[%c0_781, %c17_782, %c0_783] : memref<3x25x128xf32, #tpu.memory_space<vmem>>, vector<1x8x128xf32>
    %2285 = vector.shape_cast %2284 : vector<1x8x128xf32> to vector<8x128xf32>
    %c1_i32_784 = arith.constant 1 : i32
    %2286 = tpu.dynamic_rotate %2285 by %c1_i32_784 dim 1 : vector<8x128xf32>, i32 -> vector<8x128xf32>
    %c6_785 = arith.constant 6 : index
    %2287 = memref.load %arg7[%c6_785] : memref<81xf32, #tpu.memory_space<smem>>
    %2288 = vector.broadcast %2287 : f32 to vector<8x128xf32>
    %2289 = arith.mulf %2286, %2288 : vector<8x128xf32>
    %2290 = arith.addf %2275, %2289 : vector<8x128xf32>
    %c33_786 = arith.constant 33 : index
    %2291 = memref.load %arg7[%c33_786] : memref<81xf32, #tpu.memory_space<smem>>
    %2292 = vector.broadcast %2291 : f32 to vector<8x128xf32>
    %2293 = arith.mulf %2286, %2292 : vector<8x128xf32>
    %2294 = arith.addf %2279, %2293 : vector<8x128xf32>
    %c60_787 = arith.constant 60 : index
    %2295 = memref.load %arg7[%c60_787] : memref<81xf32, #tpu.memory_space<smem>>
    %2296 = vector.broadcast %2295 : f32 to vector<8x128xf32>
    %2297 = arith.mulf %2286, %2296 : vector<8x128xf32>
    %2298 = arith.addf %2283, %2297 : vector<8x128xf32>
    %c7_788 = arith.constant 7 : index
    %2299 = memref.load %arg7[%c7_788] : memref<81xf32, #tpu.memory_space<smem>>
    %2300 = vector.broadcast %2299 : f32 to vector<8x128xf32>
    %2301 = arith.mulf %2285, %2300 : vector<8x128xf32>
    %2302 = arith.addf %2290, %2301 : vector<8x128xf32>
    %c34_789 = arith.constant 34 : index
    %2303 = memref.load %arg7[%c34_789] : memref<81xf32, #tpu.memory_space<smem>>
    %2304 = vector.broadcast %2303 : f32 to vector<8x128xf32>
    %2305 = arith.mulf %2285, %2304 : vector<8x128xf32>
    %2306 = arith.addf %2294, %2305 : vector<8x128xf32>
    %c61_790 = arith.constant 61 : index
    %2307 = memref.load %arg7[%c61_790] : memref<81xf32, #tpu.memory_space<smem>>
    %2308 = vector.broadcast %2307 : f32 to vector<8x128xf32>
    %2309 = arith.mulf %2285, %2308 : vector<8x128xf32>
    %2310 = arith.addf %2298, %2309 : vector<8x128xf32>
    %c127_i32_791 = arith.constant 127 : i32
    %2311 = tpu.dynamic_rotate %2285 by %c127_i32_791 dim 1 : vector<8x128xf32>, i32 -> vector<8x128xf32>
    %c8_792 = arith.constant 8 : index
    %2312 = memref.load %arg7[%c8_792] : memref<81xf32, #tpu.memory_space<smem>>
    %2313 = vector.broadcast %2312 : f32 to vector<8x128xf32>
    %2314 = arith.mulf %2311, %2313 : vector<8x128xf32>
    %2315 = arith.addf %2302, %2314 : vector<8x128xf32>
    %c35_793 = arith.constant 35 : index
    %2316 = memref.load %arg7[%c35_793] : memref<81xf32, #tpu.memory_space<smem>>
    %2317 = vector.broadcast %2316 : f32 to vector<8x128xf32>
    %2318 = arith.mulf %2311, %2317 : vector<8x128xf32>
    %2319 = arith.addf %2306, %2318 : vector<8x128xf32>
    %c62_794 = arith.constant 62 : index
    %2320 = memref.load %arg7[%c62_794] : memref<81xf32, #tpu.memory_space<smem>>
    %2321 = vector.broadcast %2320 : f32 to vector<8x128xf32>
    %2322 = arith.mulf %2311, %2321 : vector<8x128xf32>
    %2323 = arith.addf %2310, %2322 : vector<8x128xf32>
    %c1_795 = arith.constant 1 : index
    %c15_796 = arith.constant 15 : index
    %c0_797 = arith.constant 0 : index
    %2324 = vector.load %arg11[%c1_795, %c15_796, %c0_797] : memref<3x25x128xf32, #tpu.memory_space<vmem>>, vector<1x8x128xf32>
    %2325 = vector.shape_cast %2324 : vector<1x8x128xf32> to vector<8x128xf32>
    %c1_i32_798 = arith.constant 1 : i32
    %2326 = tpu.dynamic_rotate %2325 by %c1_i32_798 dim 1 : vector<8x128xf32>, i32 -> vector<8x128xf32>
    %c9_799 = arith.constant 9 : index
    %2327 = memref.load %arg7[%c9_799] : memref<81xf32, #tpu.memory_space<smem>>
    %2328 = vector.broadcast %2327 : f32 to vector<8x128xf32>
    %2329 = arith.mulf %2326, %2328 : vector<8x128xf32>
    %2330 = arith.addf %2315, %2329 : vector<8x128xf32>
    %c36_800 = arith.constant 36 : index
    %2331 = memref.load %arg7[%c36_800] : memref<81xf32, #tpu.memory_space<smem>>
    %2332 = vector.broadcast %2331 : f32 to vector<8x128xf32>
    %2333 = arith.mulf %2326, %2332 : vector<8x128xf32>
    %2334 = arith.addf %2319, %2333 : vector<8x128xf32>
    %c63_801 = arith.constant 63 : index
    %2335 = memref.load %arg7[%c63_801] : memref<81xf32, #tpu.memory_space<smem>>
    %2336 = vector.broadcast %2335 : f32 to vector<8x128xf32>
    %2337 = arith.mulf %2326, %2336 : vector<8x128xf32>
    %2338 = arith.addf %2323, %2337 : vector<8x128xf32>
    %c10_802 = arith.constant 10 : index
    %2339 = memref.load %arg7[%c10_802] : memref<81xf32, #tpu.memory_space<smem>>
    %2340 = vector.broadcast %2339 : f32 to vector<8x128xf32>
    %2341 = arith.mulf %2325, %2340 : vector<8x128xf32>
    %2342 = arith.addf %2330, %2341 : vector<8x128xf32>
    %c37_803 = arith.constant 37 : index
    %2343 = memref.load %arg7[%c37_803] : memref<81xf32, #tpu.memory_space<smem>>
    %2344 = vector.broadcast %2343 : f32 to vector<8x128xf32>
    %2345 = arith.mulf %2325, %2344 : vector<8x128xf32>
    %2346 = arith.addf %2334, %2345 : vector<8x128xf32>
    %c64_804 = arith.constant 64 : index
    %2347 = memref.load %arg7[%c64_804] : memref<81xf32, #tpu.memory_space<smem>>
    %2348 = vector.broadcast %2347 : f32 to vector<8x128xf32>
    %2349 = arith.mulf %2325, %2348 : vector<8x128xf32>
    %2350 = arith.addf %2338, %2349 : vector<8x128xf32>
    %c127_i32_805 = arith.constant 127 : i32
    %2351 = tpu.dynamic_rotate %2325 by %c127_i32_805 dim 1 : vector<8x128xf32>, i32 -> vector<8x128xf32>
    %c11_806 = arith.constant 11 : index
    %2352 = memref.load %arg7[%c11_806] : memref<81xf32, #tpu.memory_space<smem>>
    %2353 = vector.broadcast %2352 : f32 to vector<8x128xf32>
    %2354 = arith.mulf %2351, %2353 : vector<8x128xf32>
    %2355 = arith.addf %2342, %2354 : vector<8x128xf32>
    %c38_807 = arith.constant 38 : index
    %2356 = memref.load %arg7[%c38_807] : memref<81xf32, #tpu.memory_space<smem>>
    %2357 = vector.broadcast %2356 : f32 to vector<8x128xf32>
    %2358 = arith.mulf %2351, %2357 : vector<8x128xf32>
    %2359 = arith.addf %2346, %2358 : vector<8x128xf32>
    %c65_808 = arith.constant 65 : index
    %2360 = memref.load %arg7[%c65_808] : memref<81xf32, #tpu.memory_space<smem>>
    %2361 = vector.broadcast %2360 : f32 to vector<8x128xf32>
    %2362 = arith.mulf %2351, %2361 : vector<8x128xf32>
    %2363 = arith.addf %2350, %2362 : vector<8x128xf32>
    %c1_809 = arith.constant 1 : index
    %c16_810 = arith.constant 16 : index
    %c0_811 = arith.constant 0 : index
    %2364 = vector.load %arg11[%c1_809, %c16_810, %c0_811] : memref<3x25x128xf32, #tpu.memory_space<vmem>>, vector<1x8x128xf32>
    %2365 = vector.shape_cast %2364 : vector<1x8x128xf32> to vector<8x128xf32>
    %c1_i32_812 = arith.constant 1 : i32
    %2366 = tpu.dynamic_rotate %2365 by %c1_i32_812 dim 1 : vector<8x128xf32>, i32 -> vector<8x128xf32>
    %c12_813 = arith.constant 12 : index
    %2367 = memref.load %arg7[%c12_813] : memref<81xf32, #tpu.memory_space<smem>>
    %2368 = vector.broadcast %2367 : f32 to vector<8x128xf32>
    %2369 = arith.mulf %2366, %2368 : vector<8x128xf32>
    %2370 = arith.addf %2355, %2369 : vector<8x128xf32>
    %c39_814 = arith.constant 39 : index
    %2371 = memref.load %arg7[%c39_814] : memref<81xf32, #tpu.memory_space<smem>>
    %2372 = vector.broadcast %2371 : f32 to vector<8x128xf32>
    %2373 = arith.mulf %2366, %2372 : vector<8x128xf32>
    %2374 = arith.addf %2359, %2373 : vector<8x128xf32>
    %c66_815 = arith.constant 66 : index
    %2375 = memref.load %arg7[%c66_815] : memref<81xf32, #tpu.memory_space<smem>>
    %2376 = vector.broadcast %2375 : f32 to vector<8x128xf32>
    %2377 = arith.mulf %2366, %2376 : vector<8x128xf32>
    %2378 = arith.addf %2363, %2377 : vector<8x128xf32>
    %c13_816 = arith.constant 13 : index
    %2379 = memref.load %arg7[%c13_816] : memref<81xf32, #tpu.memory_space<smem>>
    %2380 = vector.broadcast %2379 : f32 to vector<8x128xf32>
    %2381 = arith.mulf %2365, %2380 : vector<8x128xf32>
    %2382 = arith.addf %2370, %2381 : vector<8x128xf32>
    %c40_817 = arith.constant 40 : index
    %2383 = memref.load %arg7[%c40_817] : memref<81xf32, #tpu.memory_space<smem>>
    %2384 = vector.broadcast %2383 : f32 to vector<8x128xf32>
    %2385 = arith.mulf %2365, %2384 : vector<8x128xf32>
    %2386 = arith.addf %2374, %2385 : vector<8x128xf32>
    %c67_818 = arith.constant 67 : index
    %2387 = memref.load %arg7[%c67_818] : memref<81xf32, #tpu.memory_space<smem>>
    %2388 = vector.broadcast %2387 : f32 to vector<8x128xf32>
    %2389 = arith.mulf %2365, %2388 : vector<8x128xf32>
    %2390 = arith.addf %2378, %2389 : vector<8x128xf32>
    %c127_i32_819 = arith.constant 127 : i32
    %2391 = tpu.dynamic_rotate %2365 by %c127_i32_819 dim 1 : vector<8x128xf32>, i32 -> vector<8x128xf32>
    %c14_820 = arith.constant 14 : index
    %2392 = memref.load %arg7[%c14_820] : memref<81xf32, #tpu.memory_space<smem>>
    %2393 = vector.broadcast %2392 : f32 to vector<8x128xf32>
    %2394 = arith.mulf %2391, %2393 : vector<8x128xf32>
    %2395 = arith.addf %2382, %2394 : vector<8x128xf32>
    %c41_821 = arith.constant 41 : index
    %2396 = memref.load %arg7[%c41_821] : memref<81xf32, #tpu.memory_space<smem>>
    %2397 = vector.broadcast %2396 : f32 to vector<8x128xf32>
    %2398 = arith.mulf %2391, %2397 : vector<8x128xf32>
    %2399 = arith.addf %2386, %2398 : vector<8x128xf32>
    %c68_822 = arith.constant 68 : index
    %2400 = memref.load %arg7[%c68_822] : memref<81xf32, #tpu.memory_space<smem>>
    %2401 = vector.broadcast %2400 : f32 to vector<8x128xf32>
    %2402 = arith.mulf %2391, %2401 : vector<8x128xf32>
    %2403 = arith.addf %2390, %2402 : vector<8x128xf32>
    %c1_823 = arith.constant 1 : index
    %c17_824 = arith.constant 17 : index
    %c0_825 = arith.constant 0 : index
    %2404 = vector.load %arg11[%c1_823, %c17_824, %c0_825] : memref<3x25x128xf32, #tpu.memory_space<vmem>>, vector<1x8x128xf32>
    %2405 = vector.shape_cast %2404 : vector<1x8x128xf32> to vector<8x128xf32>
    %c1_i32_826 = arith.constant 1 : i32
    %2406 = tpu.dynamic_rotate %2405 by %c1_i32_826 dim 1 : vector<8x128xf32>, i32 -> vector<8x128xf32>
    %c15_827 = arith.constant 15 : index
    %2407 = memref.load %arg7[%c15_827] : memref<81xf32, #tpu.memory_space<smem>>
    %2408 = vector.broadcast %2407 : f32 to vector<8x128xf32>
    %2409 = arith.mulf %2406, %2408 : vector<8x128xf32>
    %2410 = arith.addf %2395, %2409 : vector<8x128xf32>
    %c42_828 = arith.constant 42 : index
    %2411 = memref.load %arg7[%c42_828] : memref<81xf32, #tpu.memory_space<smem>>
    %2412 = vector.broadcast %2411 : f32 to vector<8x128xf32>
    %2413 = arith.mulf %2406, %2412 : vector<8x128xf32>
    %2414 = arith.addf %2399, %2413 : vector<8x128xf32>
    %c69_829 = arith.constant 69 : index
    %2415 = memref.load %arg7[%c69_829] : memref<81xf32, #tpu.memory_space<smem>>
    %2416 = vector.broadcast %2415 : f32 to vector<8x128xf32>
    %2417 = arith.mulf %2406, %2416 : vector<8x128xf32>
    %2418 = arith.addf %2403, %2417 : vector<8x128xf32>
    %c16_830 = arith.constant 16 : index
    %2419 = memref.load %arg7[%c16_830] : memref<81xf32, #tpu.memory_space<smem>>
    %2420 = vector.broadcast %2419 : f32 to vector<8x128xf32>
    %2421 = arith.mulf %2405, %2420 : vector<8x128xf32>
    %2422 = arith.addf %2410, %2421 : vector<8x128xf32>
    %c43_831 = arith.constant 43 : index
    %2423 = memref.load %arg7[%c43_831] : memref<81xf32, #tpu.memory_space<smem>>
    %2424 = vector.broadcast %2423 : f32 to vector<8x128xf32>
    %2425 = arith.mulf %2405, %2424 : vector<8x128xf32>
    %2426 = arith.addf %2414, %2425 : vector<8x128xf32>
    %c70_832 = arith.constant 70 : index
    %2427 = memref.load %arg7[%c70_832] : memref<81xf32, #tpu.memory_space<smem>>
    %2428 = vector.broadcast %2427 : f32 to vector<8x128xf32>
    %2429 = arith.mulf %2405, %2428 : vector<8x128xf32>
    %2430 = arith.addf %2418, %2429 : vector<8x128xf32>
    %c127_i32_833 = arith.constant 127 : i32
    %2431 = tpu.dynamic_rotate %2405 by %c127_i32_833 dim 1 : vector<8x128xf32>, i32 -> vector<8x128xf32>
    %c17_834 = arith.constant 17 : index
    %2432 = memref.load %arg7[%c17_834] : memref<81xf32, #tpu.memory_space<smem>>
    %2433 = vector.broadcast %2432 : f32 to vector<8x128xf32>
    %2434 = arith.mulf %2431, %2433 : vector<8x128xf32>
    %2435 = arith.addf %2422, %2434 : vector<8x128xf32>
    %c44_835 = arith.constant 44 : index
    %2436 = memref.load %arg7[%c44_835] : memref<81xf32, #tpu.memory_space<smem>>
    %2437 = vector.broadcast %2436 : f32 to vector<8x128xf32>
    %2438 = arith.mulf %2431, %2437 : vector<8x128xf32>
    %2439 = arith.addf %2426, %2438 : vector<8x128xf32>
    %c71_836 = arith.constant 71 : index
    %2440 = memref.load %arg7[%c71_836] : memref<81xf32, #tpu.memory_space<smem>>
    %2441 = vector.broadcast %2440 : f32 to vector<8x128xf32>
    %2442 = arith.mulf %2431, %2441 : vector<8x128xf32>
    %2443 = arith.addf %2430, %2442 : vector<8x128xf32>
    %c2_837 = arith.constant 2 : index
    %c15_838 = arith.constant 15 : index
    %c0_839 = arith.constant 0 : index
    %2444 = vector.load %arg11[%c2_837, %c15_838, %c0_839] : memref<3x25x128xf32, #tpu.memory_space<vmem>>, vector<1x8x128xf32>
    %2445 = vector.shape_cast %2444 : vector<1x8x128xf32> to vector<8x128xf32>
    %c1_i32_840 = arith.constant 1 : i32
    %2446 = tpu.dynamic_rotate %2445 by %c1_i32_840 dim 1 : vector<8x128xf32>, i32 -> vector<8x128xf32>
    %c18_841 = arith.constant 18 : index
    %2447 = memref.load %arg7[%c18_841] : memref<81xf32, #tpu.memory_space<smem>>
    %2448 = vector.broadcast %2447 : f32 to vector<8x128xf32>
    %2449 = arith.mulf %2446, %2448 : vector<8x128xf32>
    %2450 = arith.addf %2435, %2449 : vector<8x128xf32>
    %c45_842 = arith.constant 45 : index
    %2451 = memref.load %arg7[%c45_842] : memref<81xf32, #tpu.memory_space<smem>>
    %2452 = vector.broadcast %2451 : f32 to vector<8x128xf32>
    %2453 = arith.mulf %2446, %2452 : vector<8x128xf32>
    %2454 = arith.addf %2439, %2453 : vector<8x128xf32>
    %c72_843 = arith.constant 72 : index
    %2455 = memref.load %arg7[%c72_843] : memref<81xf32, #tpu.memory_space<smem>>
    %2456 = vector.broadcast %2455 : f32 to vector<8x128xf32>
    %2457 = arith.mulf %2446, %2456 : vector<8x128xf32>
    %2458 = arith.addf %2443, %2457 : vector<8x128xf32>
    %c19_844 = arith.constant 19 : index
    %2459 = memref.load %arg7[%c19_844] : memref<81xf32, #tpu.memory_space<smem>>
    %2460 = vector.broadcast %2459 : f32 to vector<8x128xf32>
    %2461 = arith.mulf %2445, %2460 : vector<8x128xf32>
    %2462 = arith.addf %2450, %2461 : vector<8x128xf32>
    %c46_845 = arith.constant 46 : index
    %2463 = memref.load %arg7[%c46_845] : memref<81xf32, #tpu.memory_space<smem>>
    %2464 = vector.broadcast %2463 : f32 to vector<8x128xf32>
    %2465 = arith.mulf %2445, %2464 : vector<8x128xf32>
    %2466 = arith.addf %2454, %2465 : vector<8x128xf32>
    %c73_846 = arith.constant 73 : index
    %2467 = memref.load %arg7[%c73_846] : memref<81xf32, #tpu.memory_space<smem>>
    %2468 = vector.broadcast %2467 : f32 to vector<8x128xf32>
    %2469 = arith.mulf %2445, %2468 : vector<8x128xf32>
    %2470 = arith.addf %2458, %2469 : vector<8x128xf32>
    %c127_i32_847 = arith.constant 127 : i32
    %2471 = tpu.dynamic_rotate %2445 by %c127_i32_847 dim 1 : vector<8x128xf32>, i32 -> vector<8x128xf32>
    %c20_848 = arith.constant 20 : index
    %2472 = memref.load %arg7[%c20_848] : memref<81xf32, #tpu.memory_space<smem>>
    %2473 = vector.broadcast %2472 : f32 to vector<8x128xf32>
    %2474 = arith.mulf %2471, %2473 : vector<8x128xf32>
    %2475 = arith.addf %2462, %2474 : vector<8x128xf32>
    %c47_849 = arith.constant 47 : index
    %2476 = memref.load %arg7[%c47_849] : memref<81xf32, #tpu.memory_space<smem>>
    %2477 = vector.broadcast %2476 : f32 to vector<8x128xf32>
    %2478 = arith.mulf %2471, %2477 : vector<8x128xf32>
    %2479 = arith.addf %2466, %2478 : vector<8x128xf32>
    %c74_850 = arith.constant 74 : index
    %2480 = memref.load %arg7[%c74_850] : memref<81xf32, #tpu.memory_space<smem>>
    %2481 = vector.broadcast %2480 : f32 to vector<8x128xf32>
    %2482 = arith.mulf %2471, %2481 : vector<8x128xf32>
    %2483 = arith.addf %2470, %2482 : vector<8x128xf32>
    %c2_851 = arith.constant 2 : index
    %c16_852 = arith.constant 16 : index
    %c0_853 = arith.constant 0 : index
    %2484 = vector.load %arg11[%c2_851, %c16_852, %c0_853] : memref<3x25x128xf32, #tpu.memory_space<vmem>>, vector<1x8x128xf32>
    %2485 = vector.shape_cast %2484 : vector<1x8x128xf32> to vector<8x128xf32>
    %c1_i32_854 = arith.constant 1 : i32
    %2486 = tpu.dynamic_rotate %2485 by %c1_i32_854 dim 1 : vector<8x128xf32>, i32 -> vector<8x128xf32>
    %c21_855 = arith.constant 21 : index
    %2487 = memref.load %arg7[%c21_855] : memref<81xf32, #tpu.memory_space<smem>>
    %2488 = vector.broadcast %2487 : f32 to vector<8x128xf32>
    %2489 = arith.mulf %2486, %2488 : vector<8x128xf32>
    %2490 = arith.addf %2475, %2489 : vector<8x128xf32>
    %c48_856 = arith.constant 48 : index
    %2491 = memref.load %arg7[%c48_856] : memref<81xf32, #tpu.memory_space<smem>>
    %2492 = vector.broadcast %2491 : f32 to vector<8x128xf32>
    %2493 = arith.mulf %2486, %2492 : vector<8x128xf32>
    %2494 = arith.addf %2479, %2493 : vector<8x128xf32>
    %c75_857 = arith.constant 75 : index
    %2495 = memref.load %arg7[%c75_857] : memref<81xf32, #tpu.memory_space<smem>>
    %2496 = vector.broadcast %2495 : f32 to vector<8x128xf32>
    %2497 = arith.mulf %2486, %2496 : vector<8x128xf32>
    %2498 = arith.addf %2483, %2497 : vector<8x128xf32>
    %c22_858 = arith.constant 22 : index
    %2499 = memref.load %arg7[%c22_858] : memref<81xf32, #tpu.memory_space<smem>>
    %2500 = vector.broadcast %2499 : f32 to vector<8x128xf32>
    %2501 = arith.mulf %2485, %2500 : vector<8x128xf32>
    %2502 = arith.addf %2490, %2501 : vector<8x128xf32>
    %c49_859 = arith.constant 49 : index
    %2503 = memref.load %arg7[%c49_859] : memref<81xf32, #tpu.memory_space<smem>>
    %2504 = vector.broadcast %2503 : f32 to vector<8x128xf32>
    %2505 = arith.mulf %2485, %2504 : vector<8x128xf32>
    %2506 = arith.addf %2494, %2505 : vector<8x128xf32>
    %c76_860 = arith.constant 76 : index
    %2507 = memref.load %arg7[%c76_860] : memref<81xf32, #tpu.memory_space<smem>>
    %2508 = vector.broadcast %2507 : f32 to vector<8x128xf32>
    %2509 = arith.mulf %2485, %2508 : vector<8x128xf32>
    %2510 = arith.addf %2498, %2509 : vector<8x128xf32>
    %c127_i32_861 = arith.constant 127 : i32
    %2511 = tpu.dynamic_rotate %2485 by %c127_i32_861 dim 1 : vector<8x128xf32>, i32 -> vector<8x128xf32>
    %c23_862 = arith.constant 23 : index
    %2512 = memref.load %arg7[%c23_862] : memref<81xf32, #tpu.memory_space<smem>>
    %2513 = vector.broadcast %2512 : f32 to vector<8x128xf32>
    %2514 = arith.mulf %2511, %2513 : vector<8x128xf32>
    %2515 = arith.addf %2502, %2514 : vector<8x128xf32>
    %c50_863 = arith.constant 50 : index
    %2516 = memref.load %arg7[%c50_863] : memref<81xf32, #tpu.memory_space<smem>>
    %2517 = vector.broadcast %2516 : f32 to vector<8x128xf32>
    %2518 = arith.mulf %2511, %2517 : vector<8x128xf32>
    %2519 = arith.addf %2506, %2518 : vector<8x128xf32>
    %c77_864 = arith.constant 77 : index
    %2520 = memref.load %arg7[%c77_864] : memref<81xf32, #tpu.memory_space<smem>>
    %2521 = vector.broadcast %2520 : f32 to vector<8x128xf32>
    %2522 = arith.mulf %2511, %2521 : vector<8x128xf32>
    %2523 = arith.addf %2510, %2522 : vector<8x128xf32>
    %c2_865 = arith.constant 2 : index
    %c17_866 = arith.constant 17 : index
    %c0_867 = arith.constant 0 : index
    %2524 = vector.load %arg11[%c2_865, %c17_866, %c0_867] : memref<3x25x128xf32, #tpu.memory_space<vmem>>, vector<1x8x128xf32>
    %2525 = vector.shape_cast %2524 : vector<1x8x128xf32> to vector<8x128xf32>
    %c1_i32_868 = arith.constant 1 : i32
    %2526 = tpu.dynamic_rotate %2525 by %c1_i32_868 dim 1 : vector<8x128xf32>, i32 -> vector<8x128xf32>
    %c24_869 = arith.constant 24 : index
    %2527 = memref.load %arg7[%c24_869] : memref<81xf32, #tpu.memory_space<smem>>
    %2528 = vector.broadcast %2527 : f32 to vector<8x128xf32>
    %2529 = arith.mulf %2526, %2528 : vector<8x128xf32>
    %2530 = arith.addf %2515, %2529 : vector<8x128xf32>
    %c51_870 = arith.constant 51 : index
    %2531 = memref.load %arg7[%c51_870] : memref<81xf32, #tpu.memory_space<smem>>
    %2532 = vector.broadcast %2531 : f32 to vector<8x128xf32>
    %2533 = arith.mulf %2526, %2532 : vector<8x128xf32>
    %2534 = arith.addf %2519, %2533 : vector<8x128xf32>
    %c78_871 = arith.constant 78 : index
    %2535 = memref.load %arg7[%c78_871] : memref<81xf32, #tpu.memory_space<smem>>
    %2536 = vector.broadcast %2535 : f32 to vector<8x128xf32>
    %2537 = arith.mulf %2526, %2536 : vector<8x128xf32>
    %2538 = arith.addf %2523, %2537 : vector<8x128xf32>
    %c25_872 = arith.constant 25 : index
    %2539 = memref.load %arg7[%c25_872] : memref<81xf32, #tpu.memory_space<smem>>
    %2540 = vector.broadcast %2539 : f32 to vector<8x128xf32>
    %2541 = arith.mulf %2525, %2540 : vector<8x128xf32>
    %2542 = arith.addf %2530, %2541 : vector<8x128xf32>
    %c52_873 = arith.constant 52 : index
    %2543 = memref.load %arg7[%c52_873] : memref<81xf32, #tpu.memory_space<smem>>
    %2544 = vector.broadcast %2543 : f32 to vector<8x128xf32>
    %2545 = arith.mulf %2525, %2544 : vector<8x128xf32>
    %2546 = arith.addf %2534, %2545 : vector<8x128xf32>
    %c79_874 = arith.constant 79 : index
    %2547 = memref.load %arg7[%c79_874] : memref<81xf32, #tpu.memory_space<smem>>
    %2548 = vector.broadcast %2547 : f32 to vector<8x128xf32>
    %2549 = arith.mulf %2525, %2548 : vector<8x128xf32>
    %2550 = arith.addf %2538, %2549 : vector<8x128xf32>
    %c127_i32_875 = arith.constant 127 : i32
    %2551 = tpu.dynamic_rotate %2525 by %c127_i32_875 dim 1 : vector<8x128xf32>, i32 -> vector<8x128xf32>
    %c26_876 = arith.constant 26 : index
    %2552 = memref.load %arg7[%c26_876] : memref<81xf32, #tpu.memory_space<smem>>
    %2553 = vector.broadcast %2552 : f32 to vector<8x128xf32>
    %2554 = arith.mulf %2551, %2553 : vector<8x128xf32>
    %2555 = arith.addf %2542, %2554 : vector<8x128xf32>
    %c53_877 = arith.constant 53 : index
    %2556 = memref.load %arg7[%c53_877] : memref<81xf32, #tpu.memory_space<smem>>
    %2557 = vector.broadcast %2556 : f32 to vector<8x128xf32>
    %2558 = arith.mulf %2551, %2557 : vector<8x128xf32>
    %2559 = arith.addf %2546, %2558 : vector<8x128xf32>
    %c80_878 = arith.constant 80 : index
    %2560 = memref.load %arg7[%c80_878] : memref<81xf32, #tpu.memory_space<smem>>
    %2561 = vector.broadcast %2560 : f32 to vector<8x128xf32>
    %2562 = arith.mulf %2551, %2561 : vector<8x128xf32>
    %2563 = arith.addf %2550, %2562 : vector<8x128xf32>
    %cst_879 = arith.constant 0.000000e+00 : f32
    %2564 = vector.broadcast %cst_879 : f32 to vector<8x128xf32>
    %2565 = arith.maximumf %2555, %2564 : vector<8x128xf32>
    %c0_880 = arith.constant 0 : index
    %c0_881 = arith.constant 0 : index
    %c8_882 = arith.constant 8 : index
    %c0_883 = arith.constant 0 : index
    %2566 = vector.load %arg9[%c0_880, %c0_881, %c8_882, %c0_883] : memref<1x3x16x128xf32, #tpu.memory_space<vmem>>, vector<1x1x8x128xf32>
    %2567 = vector.shape_cast %2566 : vector<1x1x8x128xf32> to vector<8x128xf32>
    %2568 = vector.shape_cast %2565 : vector<8x128xf32> to vector<1x1x8x128xf32>
    tpu.vector_store %arg9[%c0_880, %c0_881, %c8_882, %c0_883], %2568 {strides = array<i32>} : memref<1x3x16x128xf32, #tpu.memory_space<vmem>>, vector<1x1x8x128xf32>,
    %cst_884 = arith.constant 0.000000e+00 : f32
    %2569 = vector.broadcast %cst_884 : f32 to vector<8x128xf32>
    %2570 = arith.maximumf %2559, %2569 : vector<8x128xf32>
    %c0_885 = arith.constant 0 : index
    %c1_886 = arith.constant 1 : index
    %c8_887 = arith.constant 8 : index
    %c0_888 = arith.constant 0 : index
    %2571 = vector.load %arg9[%c0_885, %c1_886, %c8_887, %c0_888] : memref<1x3x16x128xf32, #tpu.memory_space<vmem>>, vector<1x1x8x128xf32>
    %2572 = vector.shape_cast %2571 : vector<1x1x8x128xf32> to vector<8x128xf32>
    %2573 = vector.shape_cast %2570 : vector<8x128xf32> to vector<1x1x8x128xf32>
    tpu.vector_store %arg9[%c0_885, %c1_886, %c8_887, %c0_888], %2573 {strides = array<i32>} : memref<1x3x16x128xf32, #tpu.memory_space<vmem>>, vector<1x1x8x128xf32>,
    %cst_889 = arith.constant 0.000000e+00 : f32
    %2574 = vector.broadcast %cst_889 : f32 to vector<8x128xf32>
    %2575 = arith.maximumf %2563, %2574 : vector<8x128xf32>
    %c0_890 = arith.constant 0 : index
    %c2_891 = arith.constant 2 : index
    %c8_892 = arith.constant 8 : index
    %c0_893 = arith.constant 0 : index
    %2576 = vector.load %arg9[%c0_890, %c2_891, %c8_892, %c0_893] : memref<1x3x16x128xf32, #tpu.memory_space<vmem>>, vector<1x1x8x128xf32>
    %2577 = vector.shape_cast %2576 : vector<1x1x8x128xf32> to vector<8x128xf32>
    %2578 = vector.shape_cast %2575 : vector<8x128xf32> to vector<1x1x8x128xf32>
    tpu.vector_store %arg9[%c0_890, %c2_891, %c8_892, %c0_893], %2578 {strides = array<i32>} : memref<1x3x16x128xf32, #tpu.memory_space<vmem>>, vector<1x1x8x128xf32>,
    return
  }
  func.func @transform_0(%arg0: i32) -> (i32, i32) {
    %c0_i32 = arith.constant 0 : i32
    %c0_i32_0 = arith.constant 0 : i32
    %c0_i32_1 = arith.constant 0 : i32
    return %c0_i32, %c0_i32_0 : i32, i32
  }
  func.func @transform_1(%arg0: i32) -> (i32, i32, i32, i32) {
    %c0_i32 = arith.constant 0 : i32
    %c0_i32_0 = arith.constant 0 : i32
    %c0_i32_1 = arith.constant 0 : i32
    %c0_i32_2 = arith.constant 0 : i32
    return %arg0, %c0_i32, %c0_i32_0, %c0_i32_1 : i32, i32, i32, i32
  }
  func.func @transform_2(%arg0: i32) -> i32 {
    %c0_i32 = arith.constant 0 : i32
    %c0_i32_0 = arith.constant 0 : i32
    return %c0_i32 : i32
  }
  func.func @transform_3(%arg0: i32) -> i32 {
    %c0_i32 = arith.constant 0 : i32
    %c0_i32_0 = arith.constant 0 : i32
    return %c0_i32 : i32
  }
  func.func @transform_4(%arg0: i32) -> i32 {
    %c0_i32 = arith.constant 0 : i32
    %c0_i32_0 = arith.constant 0 : i32
    return %c0_i32 : i32
  }
  func.func @transform_5(%arg0: i32) -> i32 {
    %c0_i32 = arith.constant 0 : i32
    %c0_i32_0 = arith.constant 0 : i32
    return %c0_i32 : i32
  }
  func.func @transform_6(%arg0: i32) -> i32 {
    %c0_i32 = arith.constant 0 : i32
    %c0_i32_0 = arith.constant 0 : i32
    return %c0_i32 : i32
  }
  func.func @transform_7(%arg0: i32) -> i32 {
    %c0_i32 = arith.constant 0 : i32
    %c0_i32_0 = arith.constant 0 : i32
    return %c0_i32 : i32
  }
  func.func @transform_8(%arg0: i32) -> (i32, i32, i32, i32) {
    %c0_i32 = arith.constant 0 : i32
    %c0_i32_0 = arith.constant 0 : i32
    %c0_i32_1 = arith.constant 0 : i32
    %c0_i32_2 = arith.constant 0 : i32
    return %arg0, %c0_i32, %c0_i32_0, %c0_i32_1 : i32, i32, i32, i32
  }
}

</mosaic_0001>

<llo_original>
// kernel: tpu_custom_call.1
$region0: #{tpu_custom_call.1}
  #allocation0 [shape = 'u32[]', space=smem, size = 0x4, offset = 0x4, fixed_abs, tag = 'smem constant byte address 0x4 - core index']
  #allocation1 [shape = 'u32[72,128]{1,0:T(1,128)}', space=vmem, size = 0x9000, scoped, tag = 'internal scratch']
  #allocation2 [shape = 'f32[3,25,128]{2,1,0:T(8,128)}', space=vmem, size = 0xc000, scoped, tag = 'scratch operand']
  #allocation3 [shape = 'f32[3,25,128]{2,1,0:T(8,128)}', space=vmem, size = 0xc000, scoped, tag = 'scratch operand']
  %s0 = inlined_call_operand.vmem [shape: f32[8,128], index: 0, kind: input, shape index: {}]
  %s1 = inlined_call_operand.vmem [shape: f32[1,4,18,128], index: 1, kind: input, shape index: {}]
  %s2 = inlined_call_operand.vmem [shape: f32[108], index: 2, kind: input, shape index: {}]
  %s3 = inlined_call_operand.vmem [shape: f32[3], index: 3, kind: input, shape index: {}]
  %s4 = inlined_call_operand.vmem [shape: f32[81], index: 4, kind: input, shape index: {}]
  %s5 = inlined_call_operand.vmem [shape: f32[3], index: 5, kind: input, shape index: {}]
  %s6 = inlined_call_operand.vmem [shape: f32[81], index: 6, kind: input, shape index: {}]
  %s7 = inlined_call_operand.vmem [shape: f32[3], index: 7, kind: input, shape index: {}]
  %s8 = inlined_call_operand.hbm [shape: f32[1,3,16,128], index: 8, kind: output, shape index: {}]
  %s9 = sld [smem:[#allocation0]]
  $region66: #{tpu_custom_call.1} parent=0
    _
  %s11 = ssub.s32 1, %s9
  %s12 = scalar_select 0, %s11, %s9
  $region1: #{tpu_custom_call.1} parent=0
    #allocation4 [shape = 'u8[512]{0}', space=smem, size = 0x200, scoped, tag = 'input window, operand 2, single buffered']
    #allocation5 [shape = 's32[1]{0}', space=sflag, size = 0x4, scoped, tag = 'scoped memory for tpu_custom_call.1']
    #allocation6 [shape = 's32[1]{0}', space=sflag, size = 0x4, scoped, tag = 'scoped memory for tpu_custom_call.1']
    #allocation7 [shape = 'u8[512]{0}', space=smem, size = 0x200, scoped, tag = 'input window, operand 3, single buffered']
    #allocation8 [shape = 's32[1]{0}', space=sflag, size = 0x4, scoped, tag = 'scoped memory for tpu_custom_call.1']
    #allocation9 [shape = 'u8[512]{0}', space=smem, size = 0x200, scoped, tag = 'input window, operand 4, single buffered']
    #allocation10 [shape = 'u8[512]{0}', space=smem, size = 0x200, scoped, tag = 'input window, operand 5, single buffered']
    #allocation11 [shape = 's32[1]{0}', space=sflag, size = 0x4, scoped, tag = 'scoped memory for tpu_custom_call.1']
    #allocation12 [shape = 'u8[512]{0}', space=smem, size = 0x200, scoped, tag = 'input window, operand 6, single buffered']
    #allocation13 [shape = 'u8[512]{0}', space=smem, size = 0x200, scoped, tag = 'input window, operand 7, single buffered']
    #allocation14 [shape = 's32[1]{0}', space=sflag, size = 0x4, scoped, tag = 'scoped memory for tpu_custom_call.1']
    #allocation15 [shape = 'u8[24576]{0}', space=vmem, size = 0x6000, scoped, tag = 'output window, operand 0, single buffered']
    %13 = vsyncpa [#allocation6], 0
    %14 = vsyncpa [#allocation8], 0
    %15 = vsyncpa [#allocation11], 0
    %16 = vsyncpa [#allocation14], 0
    %17 = vsyncpa [#allocation5], 0
    // Predicated region
    $region2: #{tpu_custom_call.1} parent=1 // pred_check
      _
    $region3: #{tpu_custom_call.1} parent=1 // pred_check_branch
      %19 = sbr.rel (0) target = $region5
    $region4: #{tpu_custom_call.1} parent=1 // pred_region
      _
    $region5: #{tpu_custom_call.1} parent=1 // pred_fallthru
      _
    // Predicated region
    $region6: #{tpu_custom_call.1} parent=1 // pred_check
      _
    $region7: #{tpu_custom_call.1} parent=1 // pred_check_branch
      %21 = sbr.rel (0) target = $region9
    $region8: #{tpu_custom_call.1} parent=1 // pred_region
      _
    $region9: #{tpu_custom_call.1} parent=1 // pred_fallthru
      _
    // Predicated region
    $region10: #{tpu_custom_call.1} parent=1 // pred_check
      _
    $region11: #{tpu_custom_call.1} parent=1 // pred_check_branch
      %23 = sbr.rel (0) target = $region13
    $region12: #{tpu_custom_call.1} parent=1 // pred_region
      %25 = vsyncadd [#allocation6], 0
      %s27 = sshll.u32 %s2, 4
      %s28 = int_to_ptr.vmem [resolvable:$true] %s27
      %30 = dma.vmem_to_smem %s28, 16, [#allocation4], [#allocation6]
    $region13: #{tpu_custom_call.1} parent=1 // pred_fallthru
      _
    // Predicated region
    $region14: #{tpu_custom_call.1} parent=1 // pred_check
      _
    $region15: #{tpu_custom_call.1} parent=1 // pred_check_branch
      %32 = sbr.rel (0) target = $region17
    $region16: #{tpu_custom_call.1} parent=1 // pred_region
      %34 = vsyncadd [#allocation8], 0
      %s36 = sshll.u32 %s3, 4
      %s37 = int_to_ptr.vmem [resolvable:$true] %s36
      %39 = dma.vmem_to_smem %s37, 16, [#allocation7], [#allocation8]
    $region17: #{tpu_custom_call.1} parent=1 // pred_fallthru
      _
    // Predicated region
    $region18: #{tpu_custom_call.1} parent=1 // pred_check
      _
    $region19: #{tpu_custom_call.1} parent=1 // pred_check_branch
      %41 = sbr.rel (0) target = $region21
    $region20: #{tpu_custom_call.1} parent=1 // pred_region
      %43 = vsyncadd [#allocation8], 0
      %s45 = sshll.u32 %s4, 4
      %s46 = int_to_ptr.vmem [resolvable:$true] %s45
      %48 = dma.vmem_to_smem %s46, 16, [#allocation9], [#allocation8]
    $region21: #{tpu_custom_call.1} parent=1 // pred_fallthru
      _
    // Predicated region
    $region22: #{tpu_custom_call.1} parent=1 // pred_check
      _
    $region23: #{tpu_custom_call.1} parent=1 // pred_check_branch
      %50 = sbr.rel (0) target = $region25
    $region24: #{tpu_custom_call.1} parent=1 // pred_region
      %52 = vsyncadd [#allocation11], 0
      %s54 = sshll.u32 %s5, 4
      %s55 = int_to_ptr.vmem [resolvable:$true] %s54
      %57 = dma.vmem_to_smem %s55, 16, [#allocation10], [#allocation11]
    $region25: #{tpu_custom_call.1} parent=1 // pred_fallthru
      _
    // Predicated region
    $region26: #{tpu_custom_call.1} parent=1 // pred_check
      _
    $region27: #{tpu_custom_call.1} parent=1 // pred_check_branch
      %59 = sbr.rel (0) target = $region29
    $region28: #{tpu_custom_call.1} parent=1 // pred_region
      %61 = vsyncadd [#allocation11], 0
      %s63 = sshll.u32 %s6, 4
      %s64 = int_to_ptr.vmem [resolvable:$true] %s63
      %66 = dma.vmem_to_smem %s64, 16, [#allocation12], [#allocation11]
    $region29: #{tpu_custom_call.1} parent=1 // pred_fallthru
      _
    // Predicated region
    $region30: #{tpu_custom_call.1} parent=1 // pred_check
      _
    $region31: #{tpu_custom_call.1} parent=1 // pred_check_branch
      %68 = sbr.rel (0) target = $region33
    $region32: #{tpu_custom_call.1} parent=1 // pred_region
      %70 = vsyncadd [#allocation14], 0
      %s72 = sshll.u32 %s7, 4
      %s73 = int_to_ptr.vmem [resolvable:$true] %s72
      %75 = dma.vmem_to_smem %s73, 16, [#allocation13], [#allocation14]
    $region33: #{tpu_custom_call.1} parent=1 // pred_fallthru
      _
    // Predicated region
    $region34: #{tpu_custom_call.1} parent=1 // pred_check
      _
    $region35: #{tpu_custom_call.1} parent=1 // pred_check_branch
      %77 = sbr.rel (0) target = $region37
    $region36: #{tpu_custom_call.1} parent=1 // pred_region
      %79 = dma.done [#allocation6], 16
    $region37: #{tpu_custom_call.1} parent=1 // pred_fallthru
      _
    // Predicated region
    $region38: #{tpu_custom_call.1} parent=1 // pred_check
      _
    $region39: #{tpu_custom_call.1} parent=1 // pred_check_branch
      %81 = sbr.rel (0) target = $region41
    $region40: #{tpu_custom_call.1} parent=1 // pred_region
      %83 = dma.done [#allocation8], 16
    $region41: #{tpu_custom_call.1} parent=1 // pred_fallthru
      _
    // Predicated region
    $region42: #{tpu_custom_call.1} parent=1 // pred_check
      _
    $region43: #{tpu_custom_call.1} parent=1 // pred_check_branch
      %85 = sbr.rel (0) target = $region45
    $region44: #{tpu_custom_call.1} parent=1 // pred_region
      %87 = dma.done [#allocation8], 16
    $region45: #{tpu_custom_call.1} parent=1 // pred_fallthru
      _
    // Predicated region
    $region46: #{tpu_custom_call.1} parent=1 // pred_check
      _
    $region47: #{tpu_custom_call.1} parent=1 // pred_check_branch
      %89 = sbr.rel (0) target = $region49
    $region48: #{tpu_custom_call.1} parent=1 // pred_region
      %91 = dma.done [#allocation11], 16
    $region49: #{tpu_custom_call.1} parent=1 // pred_fallthru
      _
    // Predicated region
    $region50: #{tpu_custom_call.1} parent=1 // pred_check
      _
    $region51: #{tpu_custom_call.1} parent=1 // pred_check_branch
      %93 = sbr.rel (0) target = $region53
    $region52: #{tpu_custom_call.1} parent=1 // pred_region
      %95 = dma.done [#allocation11], 16
    $region53: #{tpu_custom_call.1} parent=1 // pred_fallthru
      _
    // Predicated region
    $region54: #{tpu_custom_call.1} parent=1 // pred_check
      _
    $region55: #{tpu_custom_call.1} parent=1 // pred_check_branch
      %97 = sbr.rel (0) target = $region57
    $region56: #{tpu_custom_call.1} parent=1 // pred_region
      %99 = dma.done [#allocation14], 16
    $region57: #{tpu_custom_call.1} parent=1 // pred_fallthru
      _
    %100 = sfence
    %101 = vst [vmem:[#allocation2 + $0x7] sm:$0x1] 0.0
    %102 = vst [vmem:[#allocation2 + $0x18] sm:$0x1] 0.0
    %s103 = scalar_lea.vmem [#allocation2], 32
    %104 = vst [vmem:[%s103 + $0x7] sm:$0x1] 0.0
    %105 = vst [vmem:[%s103 + $0x18] sm:$0x1] 0.0
    %s106 = scalar_lea.vmem [#allocation2], 64
    %107 = vst [vmem:[%s106 + $0x7] sm:$0x1] 0.0
    %108 = vst [vmem:[%s106 + $0x18] sm:$0x1] 0.0
    %109 = vst [vmem:[#allocation3 + $0x7] sm:$0x1] 0.0
    %110 = vst [vmem:[#allocation3 + $0x18] sm:$0x1] 0.0
    %s111 = scalar_lea.vmem [#allocation3], 32
    %112 = vst [vmem:[%s111 + $0x7] sm:$0x1] 0.0
    %113 = vst [vmem:[%s111 + $0x18] sm:$0x1] 0.0
    %s114 = scalar_lea.vmem [#allocation3], 64
    %115 = vst [vmem:[%s114 + $0x7] sm:$0x1] 0.0
    %116 = vst [vmem:[%s114 + $0x18] sm:$0x1] 0.0
    %s117 = sld [smem:[#allocation7]]
    %v118 = vstv %s117
    %s119 = sld [smem:[#allocation7 + $0x1]]
    %v120 = vstv %s119
    %s121 = sld [smem:[#allocation7 + $0x2]]
    %v122 = vstv %s121
    %v123 = vld [vmem:[%s1] sm:$0xff]
    %124 = vrot.lane.b32.xlu0 %v123, 1
    %v125 = vpop.permute.xlu0 %124
    %s126 = sld [smem:[#allocation4]]
    %v127 = vstv %s126
    %v128 = vmul.f32 %v125, %v127
    %v129 = vadd.f32 %v118, %v128
    %s130 = sld [smem:[#allocation4 + $0x24]]
    %v131 = vstv %s130
    %v132 = vmul.f32 %v125, %v131
    %v133 = vadd.f32 %v120, %v132
    %s134 = sld [smem:[#allocation4 + $0x48]]
    %v135 = vstv %s134
    %v136 = vmul.f32 %v125, %v135
    %v137 = vadd.f32 %v122, %v136
    %s138 = sld [smem:[#allocation4 + $0x1]]
    %v139 = vstv %s138
    %v140 = vmul.f32 %v123, %v139
    %v141 = vadd.f32 %v129, %v140
    %s142 = sld [smem:[#allocation4 + $0x25]]
    %v143 = vstv %s142
    %v144 = vmul.f32 %v123, %v143
    %v145 = vadd.f32 %v133, %v144
    %s146 = sld [smem:[#allocation4 + $0x49]]
    %v147 = vstv %s146
    %v148 = vmul.f32 %v123, %v147
    %v149 = vadd.f32 %v137, %v148
    %150 = vrot.lane.b32.xlu0 %v123, 127
    %v151 = vpop.permute.xlu0 %150
    %s152 = sld [smem:[#allocation4 + $0x2]]
    %v153 = vstv %s152
    %v154 = vmul.f32 %v151, %v153
    %v155 = vadd.f32 %v141, %v154
    %s156 = sld [smem:[#allocation4 + $0x26]]
    %v157 = vstv %s156
    %v158 = vmul.f32 %v151, %v157
    %v159 = vadd.f32 %v145, %v158
    %s160 = sld [smem:[#allocation4 + $0x4a]]
    %v161 = vstv %s160
    %v162 = vmul.f32 %v151, %v161
    %v163 = vadd.f32 %v149, %v162
    %v164 = vld [vmem:[%s1 + $0x1] sm:$0xff]
    %165 = vrot.lane.b32.xlu0 %v164, 1
    %v166 = vpop.permute.xlu0 %165
    %s167 = sld [smem:[#allocation4 + $0x3]]
    %v168 = vstv %s167
    %v169 = vmul.f32 %v166, %v168
    %v170 = vadd.f32 %v155, %v169
    %s171 = sld [smem:[#allocation4 + $0x27]]
    %v172 = vstv %s171
    %v173 = vmul.f32 %v166, %v172
    %v174 = vadd.f32 %v159, %v173
    %s175 = sld [smem:[#allocation4 + $0x4b]]
    %v176 = vstv %s175
    %v177 = vmul.f32 %v166, %v176
    %v178 = vadd.f32 %v163, %v177
    %s179 = sld [smem:[#allocation4 + $0x4]]
    %v180 = vstv %s179
    %v181 = vmul.f32 %v164, %v180
    %v182 = vadd.f32 %v170, %v181
    %s183 = sld [smem:[#allocation4 + $0x28]]
    %v184 = vstv %s183
    %v185 = vmul.f32 %v164, %v184
    %v186 = vadd.f32 %v174, %v185
    %s187 = sld [smem:[#allocation4 + $0x4c]]
    %v188 = vstv %s187
    %v189 = vmul.f32 %v164, %v188
    %v190 = vadd.f32 %v178, %v189
    %191 = vrot.lane.b32.xlu0 %v164, 127
    %v192 = vpop.permute.xlu0 %191
    %s193 = sld [smem:[#allocation4 + $0x5]]
    %v194 = vstv %s193
    %v195 = vmul.f32 %v192, %v194
    %v196 = vadd.f32 %v182, %v195
    %s197 = sld [smem:[#allocation4 + $0x29]]
    %v198 = vstv %s197
    %v199 = vmul.f32 %v192, %v198
    %v200 = vadd.f32 %v186, %v199
    %s201 = sld [smem:[#allocation4 + $0x4d]]
    %v202 = vstv %s201
    %v203 = vmul.f32 %v192, %v202
    %v204 = vadd.f32 %v190, %v203
    %v205 = vld [vmem:[%s1 + $0x2] sm:$0xff]
    %206 = vrot.lane.b32.xlu0 %v205, 1
    %v207 = vpop.permute.xlu0 %206
    %s208 = sld [smem:[#allocation4 + $0x6]]
    %v209 = vstv %s208
    %v210 = vmul.f32 %v207, %v209
    %v211 = vadd.f32 %v196, %v210
    %s212 = sld [smem:[#allocation4 + $0x2a]]
    %v213 = vstv %s212
    %v214 = vmul.f32 %v207, %v213
    %v215 = vadd.f32 %v200, %v214
    %s216 = sld [smem:[#allocation4 + $0x4e]]
    %v217 = vstv %s216
    %v218 = vmul.f32 %v207, %v217
    %v219 = vadd.f32 %v204, %v218
    %s220 = sld [smem:[#allocation4 + $0x7]]
    %v221 = vstv %s220
    %v222 = vmul.f32 %v205, %v221
    %v223 = vadd.f32 %v211, %v222
    %s224 = sld [smem:[#allocation4 + $0x2b]]
    %v225 = vstv %s224
    %v226 = vmul.f32 %v205, %v225
    %v227 = vadd.f32 %v215, %v226
    %s228 = sld [smem:[#allocation4 + $0x4f]]
    %v229 = vstv %s228
    %v230 = vmul.f32 %v205, %v229
    %v231 = vadd.f32 %v219, %v230
    %232 = vrot.lane.b32.xlu0 %v205, 127
    %v233 = vpop.permute.xlu0 %232
    %s234 = sld [smem:[#allocation4 + $0x8]]
    %v235 = vstv %s234
    %v236 = vmul.f32 %v233, %v235
    %v237 = vadd.f32 %v223, %v236
    %s238 = sld [smem:[#allocation4 + $0x2c]]
    %v239 = vstv %s238
    %v240 = vmul.f32 %v233, %v239
    %v241 = vadd.f32 %v227, %v240
    %s242 = sld [smem:[#allocation4 + $0x50]]
    %v243 = vstv %s242
    %v244 = vmul.f32 %v233, %v243
    %v245 = vadd.f32 %v231, %v244
    %s246 = scalar_lea.vmem %s1, 24
    %v247 = vld [vmem:[%s246] sm:$0xff]
    %248 = vrot.lane.b32.xlu0 %v247, 1
    %v249 = vpop.permute.xlu0 %248
    %s250 = sld [smem:[#allocation4 + $0x9]]
    %v251 = vstv %s250
    %v252 = vmul.f32 %v249, %v251
    %v253 = vadd.f32 %v237, %v252
    %s254 = sld [smem:[#allocation4 + $0x2d]]
    %v255 = vstv %s254
    %v256 = vmul.f32 %v249, %v255
    %v257 = vadd.f32 %v241, %v256
    %s258 = sld [smem:[#allocation4 + $0x51]]
    %v259 = vstv %s258
    %v260 = vmul.f32 %v249, %v259
    %v261 = vadd.f32 %v245, %v260
    %s262 = sld [smem:[#allocation4 + $0xa]]
    %v263 = vstv %s262
    %v264 = vmul.f32 %v247, %v263
    %v265 = vadd.f32 %v253, %v264
    %s266 = sld [smem:[#allocation4 + $0x2e]]
    %v267 = vstv %s266
    %v268 = vmul.f32 %v247, %v267
    %v269 = vadd.f32 %v257, %v268
    %s270 = sld [smem:[#allocation4 + $0x52]]
    %v271 = vstv %s270
    %v272 = vmul.f32 %v247, %v271
    %v273 = vadd.f32 %v261, %v272
    %274 = vrot.lane.b32.xlu0 %v247, 127
    %v275 = vpop.permute.xlu0 %274
    %s276 = sld [smem:[#allocation4 + $0xb]]
    %v277 = vstv %s276
    %v278 = vmul.f32 %v275, %v277
    %v279 = vadd.f32 %v265, %v278
    %s280 = sld [smem:[#allocation4 + $0x2f]]
    %v281 = vstv %s280
    %v282 = vmul.f32 %v275, %v281
    %v283 = vadd.f32 %v269, %v282
    %s284 = sld [smem:[#allocation4 + $0x53]]
    %v285 = vstv %s284
    %v286 = vmul.f32 %v275, %v285
    %v287 = vadd.f32 %v273, %v286
    %v288 = vld [vmem:[%s246 + $0x1] sm:$0xff]
    %289 = vrot.lane.b32.xlu0 %v288, 1
    %v290 = vpop.permute.xlu0 %289
    %s291 = sld [smem:[#allocation4 + $0xc]]
    %v292 = vstv %s291
    %v293 = vmul.f32 %v290, %v292
    %v294 = vadd.f32 %v279, %v293
    %s295 = sld [smem:[#allocation4 + $0x30]]
    %v296 = vstv %s295
    %v297 = vmul.f32 %v290, %v296
    %v298 = vadd.f32 %v283, %v297
    %s299 = sld [smem:[#allocation4 + $0x54]]
    %v300 = vstv %s299
    %v301 = vmul.f32 %v290, %v300
    %v302 = vadd.f32 %v287, %v301
    %s303 = sld [smem:[#allocation4 + $0xd]]
    %v304 = vstv %s303
    %v305 = vmul.f32 %v288, %v304
    %v306 = vadd.f32 %v294, %v305
    %s307 = sld [smem:[#allocation4 + $0x31]]
    %v308 = vstv %s307
    %v309 = vmul.f32 %v288, %v308
    %v310 = vadd.f32 %v298, %v309
    %s311 = sld [smem:[#allocation4 + $0x55]]
    %v312 = vstv %s311
    %v313 = vmul.f32 %v288, %v312
    %v314 = vadd.f32 %v302, %v313
    %315 = vrot.lane.b32.xlu0 %v288, 127
    %v316 = vpop.permute.xlu0 %315
    %s317 = sld [smem:[#allocation4 + $0xe]]
    %v318 = vstv %s317
    %v319 = vmul.f32 %v316, %v318
    %v320 = vadd.f32 %v306, %v319
    %s321 = sld [smem:[#allocation4 + $0x32]]
    %v322 = vstv %s321
    %v323 = vmul.f32 %v316, %v322
    %v324 = vadd.f32 %v310, %v323
    %s325 = sld [smem:[#allocation4 + $0x56]]
    %v326 = vstv %s325
    %v327 = vmul.f32 %v316, %v326
    %v328 = vadd.f32 %v314, %v327
    %v329 = vld [vmem:[%s246 + $0x2] sm:$0xff]
    %330 = vrot.lane.b32.xlu0 %v329, 1
    %v331 = vpop.permute.xlu0 %330
    %s332 = sld [smem:[#allocation4 + $0xf]]
    %v333 = vstv %s332
    %v334 = vmul.f32 %v331, %v333
    %v335 = vadd.f32 %v320, %v334
    %s336 = sld [smem:[#allocation4 + $0x33]]
    %v337 = vstv %s336
    %v338 = vmul.f32 %v331, %v337
    %v339 = vadd.f32 %v324, %v338
    %s340 = sld [smem:[#allocation4 + $0x57]]
    %v341 = vstv %s340
    %v342 = vmul.f32 %v331, %v341
    %v343 = vadd.f32 %v328, %v342
    %s344 = sld [smem:[#allocation4 + $0x10]]
    %v345 = vstv %s344
    %v346 = vmul.f32 %v329, %v345
    %v347 = vadd.f32 %v335, %v346
    %s348 = sld [smem:[#allocation4 + $0x34]]
    %v349 = vstv %s348
    %v350 = vmul.f32 %v329, %v349
    %v351 = vadd.f32 %v339, %v350
    %s352 = sld [smem:[#allocation4 + $0x58]]
    %v353 = vstv %s352
    %v354 = vmul.f32 %v329, %v353
    %v355 = vadd.f32 %v343, %v354
    %356 = vrot.lane.b32.xlu0 %v329, 127
    %v357 = vpop.permute.xlu0 %356
    %s358 = sld [smem:[#allocation4 + $0x11]]
    %v359 = vstv %s358
    %v360 = vmul.f32 %v357, %v359
    %v361 = vadd.f32 %v347, %v360
    %s362 = sld [smem:[#allocation4 + $0x35]]
    %v363 = vstv %s362
    %v364 = vmul.f32 %v357, %v363
    %v365 = vadd.f32 %v351, %v364
    %s366 = sld [smem:[#allocation4 + $0x59]]
    %v367 = vstv %s366
    %v368 = vmul.f32 %v357, %v367
    %v369 = vadd.f32 %v355, %v368
    %s370 = scalar_lea.vmem %s1, 48
    %v371 = vld [vmem:[%s370] sm:$0xff]
    %372 = vrot.lane.b32.xlu0 %v371, 1
    %v373 = vpop.permute.xlu0 %372
    %s374 = sld [smem:[#allocation4 + $0x12]]
    %v375 = vstv %s374
    %v376 = vmul.f32 %v373, %v375
    %v377 = vadd.f32 %v361, %v376
    %s378 = sld [smem:[#allocation4 + $0x36]]
    %v379 = vstv %s378
    %v380 = vmul.f32 %v373, %v379
    %v381 = vadd.f32 %v365, %v380
    %s382 = sld [smem:[#allocation4 + $0x5a]]
    %v383 = vstv %s382
    %v384 = vmul.f32 %v373, %v383
    %v385 = vadd.f32 %v369, %v384
    %s386 = sld [smem:[#allocation4 + $0x13]]
    %v387 = vstv %s386
    %v388 = vmul.f32 %v371, %v387
    %v389 = vadd.f32 %v377, %v388
    %s390 = sld [smem:[#allocation4 + $0x37]]
    %v391 = vstv %s390
    %v392 = vmul.f32 %v371, %v391
    %v393 = vadd.f32 %v381, %v392
    %s394 = sld [smem:[#allocation4 + $0x5b]]
    %v395 = vstv %s394
    %v396 = vmul.f32 %v371, %v395
    %v397 = vadd.f32 %v385, %v396
    %398 = vrot.lane.b32.xlu0 %v371, 127
    %v399 = vpop.permute.xlu0 %398
    %s400 = sld [smem:[#allocation4 + $0x14]]
    %v401 = vstv %s400
    %v402 = vmul.f32 %v399, %v401
    %v403 = vadd.f32 %v389, %v402
    %s404 = sld [smem:[#allocation4 + $0x38]]
    %v405 = vstv %s404
    %v406 = vmul.f32 %v399, %v405
    %v407 = vadd.f32 %v393, %v406
    %s408 = sld [smem:[#allocation4 + $0x5c]]
    %v409 = vstv %s408
    %v410 = vmul.f32 %v399, %v409
    %v411 = vadd.f32 %v397, %v410
    %v412 = vld [vmem:[%s370 + $0x1] sm:$0xff]
    %413 = vrot.lane.b32.xlu0 %v412, 1
    %v414 = vpop.permute.xlu0 %413
    %s415 = sld [smem:[#allocation4 + $0x15]]
    %v416 = vstv %s415
    %v417 = vmul.f32 %v414, %v416
    %v418 = vadd.f32 %v403, %v417
    %s419 = sld [smem:[#allocation4 + $0x39]]
    %v420 = vstv %s419
    %v421 = vmul.f32 %v414, %v420
    %v422 = vadd.f32 %v407, %v421
    %s423 = sld [smem:[#allocation4 + $0x5d]]
    %v424 = vstv %s423
    %v425 = vmul.f32 %v414, %v424
    %v426 = vadd.f32 %v411, %v425
    %s427 = sld [smem:[#allocation4 + $0x16]]
    %v428 = vstv %s427
    %v429 = vmul.f32 %v412, %v428
    %v430 = vadd.f32 %v418, %v429
    %s431 = sld [smem:[#allocation4 + $0x3a]]
    %v432 = vstv %s431
    %v433 = vmul.f32 %v412, %v432
    %v434 = vadd.f32 %v422, %v433
    %s435 = sld [smem:[#allocation4 + $0x5e]]
    %v436 = vstv %s435
    %v437 = vmul.f32 %v412, %v436
    %v438 = vadd.f32 %v426, %v437
    %439 = vrot.lane.b32.xlu0 %v412, 127
    %v440 = vpop.permute.xlu0 %439
    %s441 = sld [smem:[#allocation4 + $0x17]]
    %v442 = vstv %s441
    %v443 = vmul.f32 %v440, %v442
    %v444 = vadd.f32 %v430, %v443
    %s445 = sld [smem:[#allocation4 + $0x3b]]
    %v446 = vstv %s445
    %v447 = vmul.f32 %v440, %v446
    %v448 = vadd.f32 %v434, %v447
    %s449 = sld [smem:[#allocation4 + $0x5f]]
    %v450 = vstv %s449
    %v451 = vmul.f32 %v440, %v450
    %v452 = vadd.f32 %v438, %v451
    %v453 = vld [vmem:[%s370 + $0x2] sm:$0xff]
    %454 = vrot.lane.b32.xlu0 %v453, 1
    %v455 = vpop.permute.xlu0 %454
    %s456 = sld [smem:[#allocation4 + $0x18]]
    %v457 = vstv %s456
    %v458 = vmul.f32 %v455, %v457
    %v459 = vadd.f32 %v444, %v458
    %s460 = sld [smem:[#allocation4 + $0x3c]]
    %v461 = vstv %s460
    %v462 = vmul.f32 %v455, %v461
    %v463 = vadd.f32 %v448, %v462
    %s464 = sld [smem:[#allocation4 + $0x60]]
    %v465 = vstv %s464
    %v466 = vmul.f32 %v455, %v465
    %v467 = vadd.f32 %v452, %v466
    %s468 = sld [smem:[#allocation4 + $0x19]]
    %v469 = vstv %s468
    %v470 = vmul.f32 %v453, %v469
    %v471 = vadd.f32 %v459, %v470
    %s472 = sld [smem:[#allocation4 + $0x3d]]
    %v473 = vstv %s472
    %v474 = vmul.f32 %v453, %v473
    %v475 = vadd.f32 %v463, %v474
    %s476 = sld [smem:[#allocation4 + $0x61]]
    %v477 = vstv %s476
    %v478 = vmul.f32 %v453, %v477
    %v479 = vadd.f32 %v467, %v478
    %480 = vrot.lane.b32.xlu0 %v453, 127
    %v481 = vpop.permute.xlu0 %480
    %s482 = sld [smem:[#allocation4 + $0x1a]]
    %v483 = vstv %s482
    %v484 = vmul.f32 %v481, %v483
    %v485 = vadd.f32 %v471, %v484
    %s486 = sld [smem:[#allocation4 + $0x3e]]
    %v487 = vstv %s486
    %v488 = vmul.f32 %v481, %v487
    %v489 = vadd.f32 %v475, %v488
    %s490 = sld [smem:[#allocation4 + $0x62]]
    %v491 = vstv %s490
    %v492 = vmul.f32 %v481, %v491
    %v493 = vadd.f32 %v479, %v492
    %s494 = scalar_lea.vmem %s1, 72
    %v495 = vld [vmem:[%s494] sm:$0xff]
    %496 = vrot.lane.b32.xlu0 %v495, 1
    %v497 = vpop.permute.xlu0 %496
    %s498 = sld [smem:[#allocation4 + $0x1b]]
    %v499 = vstv %s498
    %v500 = vmul.f32 %v497, %v499
    %v501 = vadd.f32 %v485, %v500
    %s502 = sld [smem:[#allocation4 + $0x3f]]
    %v503 = vstv %s502
    %v504 = vmul.f32 %v497, %v503
    %v505 = vadd.f32 %v489, %v504
    %s506 = sld [smem:[#allocation4 + $0x63]]
    %v507 = vstv %s506
    %v508 = vmul.f32 %v497, %v507
    %v509 = vadd.f32 %v493, %v508
    %s510 = sld [smem:[#allocation4 + $0x1c]]
    %v511 = vstv %s510
    %v512 = vmul.f32 %v495, %v511
    %v513 = vadd.f32 %v501, %v512
    %s514 = sld [smem:[#allocation4 + $0x40]]
    %v515 = vstv %s514
    %v516 = vmul.f32 %v495, %v515
    %v517 = vadd.f32 %v505, %v516
    %s518 = sld [smem:[#allocation4 + $0x64]]
    %v519 = vstv %s518
    %v520 = vmul.f32 %v495, %v519
    %v521 = vadd.f32 %v509, %v520
    %522 = vrot.lane.b32.xlu0 %v495, 127
    %v523 = vpop.permute.xlu0 %522
    %s524 = sld [smem:[#allocation4 + $0x1d]]
    %v525 = vstv %s524
    %v526 = vmul.f32 %v523, %v525
    %v527 = vadd.f32 %v513, %v526
    %s528 = sld [smem:[#allocation4 + $0x41]]
    %v529 = vstv %s528
    %v530 = vmul.f32 %v523, %v529
    %v531 = vadd.f32 %v517, %v530
    %s532 = sld [smem:[#allocation4 + $0x65]]
    %v533 = vstv %s532
    %v534 = vmul.f32 %v523, %v533
    %v535 = vadd.f32 %v521, %v534
    %v536 = vld [vmem:[%s494 + $0x1] sm:$0xff]
    %537 = vrot.lane.b32.xlu0 %v536, 1
    %v538 = vpop.permute.xlu0 %537
    %s539 = sld [smem:[#allocation4 + $0x1e]]
    %v540 = vstv %s539
    %v541 = vmul.f32 %v538, %v540
    %v542 = vadd.f32 %v527, %v541
    %s543 = sld [smem:[#allocation4 + $0x42]]
    %v544 = vstv %s543
    %v545 = vmul.f32 %v538, %v544
    %v546 = vadd.f32 %v531, %v545
    %s547 = sld [smem:[#allocation4 + $0x66]]
    %v548 = vstv %s547
    %v549 = vmul.f32 %v538, %v548
    %v550 = vadd.f32 %v535, %v549
    %s551 = sld [smem:[#allocation4 + $0x1f]]
    %v552 = vstv %s551
    %v553 = vmul.f32 %v536, %v552
    %v554 = vadd.f32 %v542, %v553
    %s555 = sld [smem:[#allocation4 + $0x43]]
    %v556 = vstv %s555
    %v557 = vmul.f32 %v536, %v556
    %v558 = vadd.f32 %v546, %v557
    %s559 = sld [smem:[#allocation4 + $0x67]]
    %v560 = vstv %s559
    %v561 = vmul.f32 %v536, %v560
    %v562 = vadd.f32 %v550, %v561
    %563 = vrot.lane.b32.xlu0 %v536, 127
    %v564 = vpop.permute.xlu0 %563
    %s565 = sld [smem:[#allocation4 + $0x20]]
    %v566 = vstv %s565
    %v567 = vmul.f32 %v564, %v566
    %v568 = vadd.f32 %v554, %v567
    %s569 = sld [smem:[#allocation4 + $0x44]]
    %v570 = vstv %s569
    %v571 = vmul.f32 %v564, %v570
    %v572 = vadd.f32 %v558, %v571
    %s573 = sld [smem:[#allocation4 + $0x68]]
    %v574 = vstv %s573
    %v575 = vmul.f32 %v564, %v574
    %v576 = vadd.f32 %v562, %v575
    %v577 = vld [vmem:[%s494 + $0x2] sm:$0xff]
    %578 = vrot.lane.b32.xlu0 %v577, 1
    %v579 = vpop.permute.xlu0 %578
    %s580 = sld [smem:[#allocation4 + $0x21]]
    %v581 = vstv %s580
    %v582 = vmul.f32 %v579, %v581
    %v583 = vadd.f32 %v568, %v582
    %s584 = sld [smem:[#allocation4 + $0x45]]
    %v585 = vstv %s584
    %v586 = vmul.f32 %v579, %v585
    %v587 = vadd.f32 %v572, %v586
    %s588 = sld [smem:[#allocation4 + $0x69]]
    %v589 = vstv %s588
    %v590 = vmul.f32 %v579, %v589
    %v591 = vadd.f32 %v576, %v590
    %s592 = sld [smem:[#allocation4 + $0x22]]
    %v593 = vstv %s592
    %v594 = vmul.f32 %v577, %v593
    %v595 = vadd.f32 %v583, %v594
    %s596 = sld [smem:[#allocation4 + $0x46]]
    %v597 = vstv %s596
    %v598 = vmul.f32 %v577, %v597
    %v599 = vadd.f32 %v587, %v598
    %s600 = sld [smem:[#allocation4 + $0x6a]]
    %v601 = vstv %s600
    %v602 = vmul.f32 %v577, %v601
    %v603 = vadd.f32 %v591, %v602
    %604 = vrot.lane.b32.xlu0 %v577, 127
    %v605 = vpop.permute.xlu0 %604
    %s606 = sld [smem:[#allocation4 + $0x23]]
    %v607 = vstv %s606
    %v608 = vmul.f32 %v605, %v607
    %v609 = vadd.f32 %v595, %v608
    %s610 = sld [smem:[#allocation4 + $0x47]]
    %v611 = vstv %s610
    %v612 = vmul.f32 %v605, %v611
    %v613 = vadd.f32 %v599, %v612
    %s614 = sld [smem:[#allocation4 + $0x6b]]
    %v615 = vstv %s614
    %v616 = vmul.f32 %v605, %v615
    %v617 = vadd.f32 %v603, %v616
    %v618 = vld [vmem:[%s0] sm:$0xff]
    %v619 = vmax.f32 %v609, 0.0
    %v620 = vmul.f32 %v619, %v618
    %621 = vst [vmem:[#allocation2 + $0x8] sm:$0xff] %v620
    %v622 = vmax.f32 %v613, 0.0
    %v623 = vmul.f32 %v622, %v618
    %624 = vst [vmem:[%s103 + $0x8] sm:$0xff] %v623
    %v625 = vmax.f32 %v617, 0.0
    %v626 = vmul.f32 %v625, %v618
    %627 = vst [vmem:[%s106 + $0x8] sm:$0xff] %v626
    %s628 = sld [smem:[#allocation7]]
    %v629 = vstv %s628
    %s630 = sld [smem:[#allocation7 + $0x1]]
    %v631 = vstv %s630
    %s632 = sld [smem:[#allocation7 + $0x2]]
    %v633 = vstv %s632
    %v634 = vld [vmem:[%s1 + $0x8] sm:$0xff]
    %635 = vrot.lane.b32.xlu0 %v634, 1
    %v636 = vpop.permute.xlu0 %635
    %s637 = sld [smem:[#allocation4]]
    %v638 = vstv %s637
    %v639 = vmul.f32 %v636, %v638
    %v640 = vadd.f32 %v629, %v639
    %s641 = sld [smem:[#allocation4 + $0x24]]
    %v642 = vstv %s641
    %v643 = vmul.f32 %v636, %v642
    %v644 = vadd.f32 %v631, %v643
    %s645 = sld [smem:[#allocation4 + $0x48]]
    %v646 = vstv %s645
    %v647 = vmul.f32 %v636, %v646
    %v648 = vadd.f32 %v633, %v647
    %s649 = sld [smem:[#allocation4 + $0x1]]
    %v650 = vstv %s649
    %v651 = vmul.f32 %v634, %v650
    %v652 = vadd.f32 %v640, %v651
    %s653 = sld [smem:[#allocation4 + $0x25]]
    %v654 = vstv %s653
    %v655 = vmul.f32 %v634, %v654
    %v656 = vadd.f32 %v644, %v655
    %s657 = sld [smem:[#allocation4 + $0x49]]
    %v658 = vstv %s657
    %v659 = vmul.f32 %v634, %v658
    %v660 = vadd.f32 %v648, %v659
    %661 = vrot.lane.b32.xlu0 %v634, 127
    %v662 = vpop.permute.xlu0 %661
    %s663 = sld [smem:[#allocation4 + $0x2]]
    %v664 = vstv %s663
    %v665 = vmul.f32 %v662, %v664
    %v666 = vadd.f32 %v652, %v665
    %s667 = sld [smem:[#allocation4 + $0x26]]
    %v668 = vstv %s667
    %v669 = vmul.f32 %v662, %v668
    %v670 = vadd.f32 %v656, %v669
    %s671 = sld [smem:[#allocation4 + $0x4a]]
    %v672 = vstv %s671
    %v673 = vmul.f32 %v662, %v672
    %v674 = vadd.f32 %v660, %v673
    %v675 = vld [vmem:[%s1 + $0x9] sm:$0xff]
    %676 = vrot.lane.b32.xlu0 %v675, 1
    %v677 = vpop.permute.xlu0 %676
    %s678 = sld [smem:[#allocation4 + $0x3]]
    %v679 = vstv %s678
    %v680 = vmul.f32 %v677, %v679
    %v681 = vadd.f32 %v666, %v680
    %s682 = sld [smem:[#allocation4 + $0x27]]
    %v683 = vstv %s682
    %v684 = vmul.f32 %v677, %v683
    %v685 = vadd.f32 %v670, %v684
    %s686 = sld [smem:[#allocation4 + $0x4b]]
    %v687 = vstv %s686
    %v688 = vmul.f32 %v677, %v687
    %v689 = vadd.f32 %v674, %v688
    %s690 = sld [smem:[#allocation4 + $0x4]]
    %v691 = vstv %s690
    %v692 = vmul.f32 %v675, %v691
    %v693 = vadd.f32 %v681, %v692
    %s694 = sld [smem:[#allocation4 + $0x28]]
    %v695 = vstv %s694
    %v696 = vmul.f32 %v675, %v695
    %v697 = vadd.f32 %v685, %v696
    %s698 = sld [smem:[#allocation4 + $0x4c]]
    %v699 = vstv %s698
    %v700 = vmul.f32 %v675, %v699
    %v701 = vadd.f32 %v689, %v700
    %702 = vrot.lane.b32.xlu0 %v675, 127
    %v703 = vpop.permute.xlu0 %702
    %s704 = sld [smem:[#allocation4 + $0x5]]
    %v705 = vstv %s704
    %v706 = vmul.f32 %v703, %v705
    %v707 = vadd.f32 %v693, %v706
    %s708 = sld [smem:[#allocation4 + $0x29]]
    %v709 = vstv %s708
    %v710 = vmul.f32 %v703, %v709
    %v711 = vadd.f32 %v697, %v710
    %s712 = sld [smem:[#allocation4 + $0x4d]]
    %v713 = vstv %s712
    %v714 = vmul.f32 %v703, %v713
    %v715 = vadd.f32 %v701, %v714
    %v716 = vld [vmem:[%s1 + $0xa] sm:$0xff]
    %717 = vrot.lane.b32.xlu0 %v716, 1
    %v718 = vpop.permute.xlu0 %717
    %s719 = sld [smem:[#allocation4 + $0x6]]
    %v720 = vstv %s719
    %v721 = vmul.f32 %v718, %v720
    %v722 = vadd.f32 %v707, %v721
    %s723 = sld [smem:[#allocation4 + $0x2a]]
    %v724 = vstv %s723
    %v725 = vmul.f32 %v718, %v724
    %v726 = vadd.f32 %v711, %v725
    %s727 = sld [smem:[#allocation4 + $0x4e]]
    %v728 = vstv %s727
    %v729 = vmul.f32 %v718, %v728
    %v730 = vadd.f32 %v715, %v729
    %s731 = sld [smem:[#allocation4 + $0x7]]
    %v732 = vstv %s731
    %v733 = vmul.f32 %v716, %v732
    %v734 = vadd.f32 %v722, %v733
    %s735 = sld [smem:[#allocation4 + $0x2b]]
    %v736 = vstv %s735
    %v737 = vmul.f32 %v716, %v736
    %v738 = vadd.f32 %v726, %v737
    %s739 = sld [smem:[#allocation4 + $0x4f]]
    %v740 = vstv %s739
    %v741 = vmul.f32 %v716, %v740
    %v742 = vadd.f32 %v730, %v741
    %743 = vrot.lane.b32.xlu0 %v716, 127
    %v744 = vpop.permute.xlu0 %743
    %s745 = sld [smem:[#allocation4 + $0x8]]
    %v746 = vstv %s745
    %v747 = vmul.f32 %v744, %v746
    %v748 = vadd.f32 %v734, %v747
    %s749 = sld [smem:[#allocation4 + $0x2c]]
    %v750 = vstv %s749
    %v751 = vmul.f32 %v744, %v750
    %v752 = vadd.f32 %v738, %v751
    %s753 = sld [smem:[#allocation4 + $0x50]]
    %v754 = vstv %s753
    %v755 = vmul.f32 %v744, %v754
    %v756 = vadd.f32 %v742, %v755
    %v757 = vld [vmem:[%s246 + $0x8] sm:$0xff]
    %758 = vrot.lane.b32.xlu0 %v757, 1
    %v759 = vpop.permute.xlu0 %758
    %s760 = sld [smem:[#allocation4 + $0x9]]
    %v761 = vstv %s760
    %v762 = vmul.f32 %v759, %v761
    %v763 = vadd.f32 %v748, %v762
    %s764 = sld [smem:[#allocation4 + $0x2d]]
    %v765 = vstv %s764
    %v766 = vmul.f32 %v759, %v765
    %v767 = vadd.f32 %v752, %v766
    %s768 = sld [smem:[#allocation4 + $0x51]]
    %v769 = vstv %s768
    %v770 = vmul.f32 %v759, %v769
    %v771 = vadd.f32 %v756, %v770
    %s772 = sld [smem:[#allocation4 + $0xa]]
    %v773 = vstv %s772
    %v774 = vmul.f32 %v757, %v773
    %v775 = vadd.f32 %v763, %v774
    %s776 = sld [smem:[#allocation4 + $0x2e]]
    %v777 = vstv %s776
    %v778 = vmul.f32 %v757, %v777
    %v779 = vadd.f32 %v767, %v778
    %s780 = sld [smem:[#allocation4 + $0x52]]
    %v781 = vstv %s780
    %v782 = vmul.f32 %v757, %v781
    %v783 = vadd.f32 %v771, %v782
    %784 = vrot.lane.b32.xlu0 %v757, 127
    %v785 = vpop.permute.xlu0 %784
    %s786 = sld [smem:[#allocation4 + $0xb]]
    %v787 = vstv %s786
    %v788 = vmul.f32 %v785, %v787
    %v789 = vadd.f32 %v775, %v788
    %s790 = sld [smem:[#allocation4 + $0x2f]]
    %v791 = vstv %s790
    %v792 = vmul.f32 %v785, %v791
    %v793 = vadd.f32 %v779, %v792
    %s794 = sld [smem:[#allocation4 + $0x53]]
    %v795 = vstv %s794
    %v796 = vmul.f32 %v785, %v795
    %v797 = vadd.f32 %v783, %v796
    %v798 = vld [vmem:[%s246 + $0x9] sm:$0xff]
    %799 = vrot.lane.b32.xlu0 %v798, 1
    %v800 = vpop.permute.xlu0 %799
    %s801 = sld [smem:[#allocation4 + $0xc]]
    %v802 = vstv %s801
    %v803 = vmul.f32 %v800, %v802
    %v804 = vadd.f32 %v789, %v803
    %s805 = sld [smem:[#allocation4 + $0x30]]
    %v806 = vstv %s805
    %v807 = vmul.f32 %v800, %v806
    %v808 = vadd.f32 %v793, %v807
    %s809 = sld [smem:[#allocation4 + $0x54]]
    %v810 = vstv %s809
    %v811 = vmul.f32 %v800, %v810
    %v812 = vadd.f32 %v797, %v811
    %s813 = sld [smem:[#allocation4 + $0xd]]
    %v814 = vstv %s813
    %v815 = vmul.f32 %v798, %v814
    %v816 = vadd.f32 %v804, %v815
    %s817 = sld [smem:[#allocation4 + $0x31]]
    %v818 = vstv %s817
    %v819 = vmul.f32 %v798, %v818
    %v820 = vadd.f32 %v808, %v819
    %s821 = sld [smem:[#allocation4 + $0x55]]
    %v822 = vstv %s821
    %v823 = vmul.f32 %v798, %v822
    %v824 = vadd.f32 %v812, %v823
    %825 = vrot.lane.b32.xlu0 %v798, 127
    %v826 = vpop.permute.xlu0 %825
    %s827 = sld [smem:[#allocation4 + $0xe]]
    %v828 = vstv %s827
    %v829 = vmul.f32 %v826, %v828
    %v830 = vadd.f32 %v816, %v829
    %s831 = sld [smem:[#allocation4 + $0x32]]
    %v832 = vstv %s831
    %v833 = vmul.f32 %v826, %v832
    %v834 = vadd.f32 %v820, %v833
    %s835 = sld [smem:[#allocation4 + $0x56]]
    %v836 = vstv %s835
    %v837 = vmul.f32 %v826, %v836
    %v838 = vadd.f32 %v824, %v837
    %v839 = vld [vmem:[%s246 + $0xa] sm:$0xff]
    %840 = vrot.lane.b32.xlu0 %v839, 1
    %v841 = vpop.permute.xlu0 %840
    %s842 = sld [smem:[#allocation4 + $0xf]]
    %v843 = vstv %s842
    %v844 = vmul.f32 %v841, %v843
    %v845 = vadd.f32 %v830, %v844
    %s846 = sld [smem:[#allocation4 + $0x33]]
    %v847 = vstv %s846
    %v848 = vmul.f32 %v841, %v847
    %v849 = vadd.f32 %v834, %v848
    %s850 = sld [smem:[#allocation4 + $0x57]]
    %v851 = vstv %s850
    %v852 = vmul.f32 %v841, %v851
    %v853 = vadd.f32 %v838, %v852
    %s854 = sld [smem:[#allocation4 + $0x10]]
    %v855 = vstv %s854
    %v856 = vmul.f32 %v839, %v855
    %v857 = vadd.f32 %v845, %v856
    %s858 = sld [smem:[#allocation4 + $0x34]]
    %v859 = vstv %s858
    %v860 = vmul.f32 %v839, %v859
    %v861 = vadd.f32 %v849, %v860
    %s862 = sld [smem:[#allocation4 + $0x58]]
    %v863 = vstv %s862
    %v864 = vmul.f32 %v839, %v863
    %v865 = vadd.f32 %v853, %v864
    %866 = vrot.lane.b32.xlu0 %v839, 127
    %v867 = vpop.permute.xlu0 %866
    %s868 = sld [smem:[#allocation4 + $0x11]]
    %v869 = vstv %s868
    %v870 = vmul.f32 %v867, %v869
    %v871 = vadd.f32 %v857, %v870
    %s872 = sld [smem:[#allocation4 + $0x35]]
    %v873 = vstv %s872
    %v874 = vmul.f32 %v867, %v873
    %v875 = vadd.f32 %v861, %v874
    %s876 = sld [smem:[#allocation4 + $0x59]]
    %v877 = vstv %s876
    %v878 = vmul.f32 %v867, %v877
    %v879 = vadd.f32 %v865, %v878
    %v880 = vld [vmem:[%s370 + $0x8] sm:$0xff]
    %881 = vrot.lane.b32.xlu0 %v880, 1
    %v882 = vpop.permute.xlu0 %881
    %s883 = sld [smem:[#allocation4 + $0x12]]
    %v884 = vstv %s883
    %v885 = vmul.f32 %v882, %v884
    %v886 = vadd.f32 %v871, %v885
    %s887 = sld [smem:[#allocation4 + $0x36]]
    %v888 = vstv %s887
    %v889 = vmul.f32 %v882, %v888
    %v890 = vadd.f32 %v875, %v889
    %s891 = sld [smem:[#allocation4 + $0x5a]]
    %v892 = vstv %s891
    %v893 = vmul.f32 %v882, %v892
    %v894 = vadd.f32 %v879, %v893
    %s895 = sld [smem:[#allocation4 + $0x13]]
    %v896 = vstv %s895
    %v897 = vmul.f32 %v880, %v896
    %v898 = vadd.f32 %v886, %v897
    %s899 = sld [smem:[#allocation4 + $0x37]]
    %v900 = vstv %s899
    %v901 = vmul.f32 %v880, %v900
    %v902 = vadd.f32 %v890, %v901
    %s903 = sld [smem:[#allocation4 + $0x5b]]
    %v904 = vstv %s903
    %v905 = vmul.f32 %v880, %v904
    %v906 = vadd.f32 %v894, %v905
    %907 = vrot.lane.b32.xlu0 %v880, 127
    %v908 = vpop.permute.xlu0 %907
    %s909 = sld [smem:[#allocation4 + $0x14]]
    %v910 = vstv %s909
    %v911 = vmul.f32 %v908, %v910
    %v912 = vadd.f32 %v898, %v911
    %s913 = sld [smem:[#allocation4 + $0x38]]
    %v914 = vstv %s913
    %v915 = vmul.f32 %v908, %v914
    %v916 = vadd.f32 %v902, %v915
    %s917 = sld [smem:[#allocation4 + $0x5c]]
    %v918 = vstv %s917
    %v919 = vmul.f32 %v908, %v918
    %v920 = vadd.f32 %v906, %v919
    %v921 = vld [vmem:[%s370 + $0x9] sm:$0xff]
    %922 = vrot.lane.b32.xlu0 %v921, 1
    %v923 = vpop.permute.xlu0 %922
    %s924 = sld [smem:[#allocation4 + $0x15]]
    %v925 = vstv %s924
    %v926 = vmul.f32 %v923, %v925
    %v927 = vadd.f32 %v912, %v926
    %s928 = sld [smem:[#allocation4 + $0x39]]
    %v929 = vstv %s928
    %v930 = vmul.f32 %v923, %v929
    %v931 = vadd.f32 %v916, %v930
    %s932 = sld [smem:[#allocation4 + $0x5d]]
    %v933 = vstv %s932
    %v934 = vmul.f32 %v923, %v933
    %v935 = vadd.f32 %v920, %v934
    %s936 = sld [smem:[#allocation4 + $0x16]]
    %v937 = vstv %s936
    %v938 = vmul.f32 %v921, %v937
    %v939 = vadd.f32 %v927, %v938
    %s940 = sld [smem:[#allocation4 + $0x3a]]
    %v941 = vstv %s940
    %v942 = vmul.f32 %v921, %v941
    %v943 = vadd.f32 %v931, %v942
    %s944 = sld [smem:[#allocation4 + $0x5e]]
    %v945 = vstv %s944
    %v946 = vmul.f32 %v921, %v945
    %v947 = vadd.f32 %v935, %v946
    %948 = vrot.lane.b32.xlu0 %v921, 127
    %v949 = vpop.permute.xlu0 %948
    %s950 = sld [smem:[#allocation4 + $0x17]]
    %v951 = vstv %s950
    %v952 = vmul.f32 %v949, %v951
    %v953 = vadd.f32 %v939, %v952
    %s954 = sld [smem:[#allocation4 + $0x3b]]
    %v955 = vstv %s954
    %v956 = vmul.f32 %v949, %v955
    %v957 = vadd.f32 %v943, %v956
    %s958 = sld [smem:[#allocation4 + $0x5f]]
    %v959 = vstv %s958
    %v960 = vmul.f32 %v949, %v959
    %v961 = vadd.f32 %v947, %v960
    %v962 = vld [vmem:[%s370 + $0xa] sm:$0xff]
    %963 = vrot.lane.b32.xlu0 %v962, 1
    %v964 = vpop.permute.xlu0 %963
    %s965 = sld [smem:[#allocation4 + $0x18]]
    %v966 = vstv %s965
    %v967 = vmul.f32 %v964, %v966
    %v968 = vadd.f32 %v953, %v967
    %s969 = sld [smem:[#allocation4 + $0x3c]]
    %v970 = vstv %s969
    %v971 = vmul.f32 %v964, %v970
    %v972 = vadd.f32 %v957, %v971
    %s973 = sld [smem:[#allocation4 + $0x60]]
    %v974 = vstv %s973
    %v975 = vmul.f32 %v964, %v974
    %v976 = vadd.f32 %v961, %v975
    %s977 = sld [smem:[#allocation4 + $0x19]]
    %v978 = vstv %s977
    %v979 = vmul.f32 %v962, %v978
    %v980 = vadd.f32 %v968, %v979
    %s981 = sld [smem:[#allocation4 + $0x3d]]
    %v982 = vstv %s981
    %v983 = vmul.f32 %v962, %v982
    %v984 = vadd.f32 %v972, %v983
    %s985 = sld [smem:[#allocation4 + $0x61]]
    %v986 = vstv %s985
    %v987 = vmul.f32 %v962, %v986
    %v988 = vadd.f32 %v976, %v987
    %989 = vrot.lane.b32.xlu0 %v962, 127
    %v990 = vpop.permute.xlu0 %989
    %s991 = sld [smem:[#allocation4 + $0x1a]]
    %v992 = vstv %s991
    %v993 = vmul.f32 %v990, %v992
    %v994 = vadd.f32 %v980, %v993
    %s995 = sld [smem:[#allocation4 + $0x3e]]
    %v996 = vstv %s995
    %v997 = vmul.f32 %v990, %v996
    %v998 = vadd.f32 %v984, %v997
    %s999 = sld [smem:[#allocation4 + $0x62]]
    %v1000 = vstv %s999
    %v1001 = vmul.f32 %v990, %v1000
    %v1002 = vadd.f32 %v988, %v1001
    %v1003 = vld [vmem:[%s494 + $0x8] sm:$0xff]
    %1004 = vrot.lane.b32.xlu0 %v1003, 1
    %v1005 = vpop.permute.xlu0 %1004
    %s1006 = sld [smem:[#allocation4 + $0x1b]]
    %v1007 = vstv %s1006
    %v1008 = vmul.f32 %v1005, %v1007
    %v1009 = vadd.f32 %v994, %v1008
    %s1010 = sld [smem:[#allocation4 + $0x3f]]
    %v1011 = vstv %s1010
    %v1012 = vmul.f32 %v1005, %v1011
    %v1013 = vadd.f32 %v998, %v1012
    %s1014 = sld [smem:[#allocation4 + $0x63]]
    %v1015 = vstv %s1014
    %v1016 = vmul.f32 %v1005, %v1015
    %v1017 = vadd.f32 %v1002, %v1016
    %s1018 = sld [smem:[#allocation4 + $0x1c]]
    %v1019 = vstv %s1018
    %v1020 = vmul.f32 %v1003, %v1019
    %v1021 = vadd.f32 %v1009, %v1020
    %s1022 = sld [smem:[#allocation4 + $0x40]]
    %v1023 = vstv %s1022
    %v1024 = vmul.f32 %v1003, %v1023
    %v1025 = vadd.f32 %v1013, %v1024
    %s1026 = sld [smem:[#allocation4 + $0x64]]
    %v1027 = vstv %s1026
    %v1028 = vmul.f32 %v1003, %v1027
    %v1029 = vadd.f32 %v1017, %v1028
    %1030 = vrot.lane.b32.xlu0 %v1003, 127
    %v1031 = vpop.permute.xlu0 %1030
    %s1032 = sld [smem:[#allocation4 + $0x1d]]
    %v1033 = vstv %s1032
    %v1034 = vmul.f32 %v1031, %v1033
    %v1035 = vadd.f32 %v1021, %v1034
    %s1036 = sld [smem:[#allocation4 + $0x41]]
    %v1037 = vstv %s1036
    %v1038 = vmul.f32 %v1031, %v1037
    %v1039 = vadd.f32 %v1025, %v1038
    %s1040 = sld [smem:[#allocation4 + $0x65]]
    %v1041 = vstv %s1040
    %v1042 = vmul.f32 %v1031, %v1041
    %v1043 = vadd.f32 %v1029, %v1042
    %v1044 = vld [vmem:[%s494 + $0x9] sm:$0xff]
    %1045 = vrot.lane.b32.xlu0 %v1044, 1
    %v1046 = vpop.permute.xlu0 %1045
    %s1047 = sld [smem:[#allocation4 + $0x1e]]
    %v1048 = vstv %s1047
    %v1049 = vmul.f32 %v1046, %v1048
    %v1050 = vadd.f32 %v1035, %v1049
    %s1051 = sld [smem:[#allocation4 + $0x42]]
    %v1052 = vstv %s1051
    %v1053 = vmul.f32 %v1046, %v1052
    %v1054 = vadd.f32 %v1039, %v1053
    %s1055 = sld [smem:[#allocation4 + $0x66]]
    %v1056 = vstv %s1055
    %v1057 = vmul.f32 %v1046, %v1056
    %v1058 = vadd.f32 %v1043, %v1057
    %s1059 = sld [smem:[#allocation4 + $0x1f]]
    %v1060 = vstv %s1059
    %v1061 = vmul.f32 %v1044, %v1060
    %v1062 = vadd.f32 %v1050, %v1061
    %s1063 = sld [smem:[#allocation4 + $0x43]]
    %v1064 = vstv %s1063
    %v1065 = vmul.f32 %v1044, %v1064
    %v1066 = vadd.f32 %v1054, %v1065
    %s1067 = sld [smem:[#allocation4 + $0x67]]
    %v1068 = vstv %s1067
    %v1069 = vmul.f32 %v1044, %v1068
    %v1070 = vadd.f32 %v1058, %v1069
    %1071 = vrot.lane.b32.xlu0 %v1044, 127
    %v1072 = vpop.permute.xlu0 %1071
    %s1073 = sld [smem:[#allocation4 + $0x20]]
    %v1074 = vstv %s1073
    %v1075 = vmul.f32 %v1072, %v1074
    %v1076 = vadd.f32 %v1062, %v1075
    %s1077 = sld [smem:[#allocation4 + $0x44]]
    %v1078 = vstv %s1077
    %v1079 = vmul.f32 %v1072, %v1078
    %v1080 = vadd.f32 %v1066, %v1079
    %s1081 = sld [smem:[#allocation4 + $0x68]]
    %v1082 = vstv %s1081
    %v1083 = vmul.f32 %v1072, %v1082
    %v1084 = vadd.f32 %v1070, %v1083
    %v1085 = vld [vmem:[%s494 + $0xa] sm:$0xff]
    %1086 = vrot.lane.b32.xlu0 %v1085, 1
    %v1087 = vpop.permute.xlu0 %1086
    %s1088 = sld [smem:[#allocation4 + $0x21]]
    %v1089 = vstv %s1088
    %v1090 = vmul.f32 %v1087, %v1089
    %v1091 = vadd.f32 %v1076, %v1090
    %s1092 = sld [smem:[#allocation4 + $0x45]]
    %v1093 = vstv %s1092
    %v1094 = vmul.f32 %v1087, %v1093
    %v1095 = vadd.f32 %v1080, %v1094
    %s1096 = sld [smem:[#allocation4 + $0x69]]
    %v1097 = vstv %s1096
    %v1098 = vmul.f32 %v1087, %v1097
    %v1099 = vadd.f32 %v1084, %v1098
    %s1100 = sld [smem:[#allocation4 + $0x22]]
    %v1101 = vstv %s1100
    %v1102 = vmul.f32 %v1085, %v1101
    %v1103 = vadd.f32 %v1091, %v1102
    %s1104 = sld [smem:[#allocation4 + $0x46]]
    %v1105 = vstv %s1104
    %v1106 = vmul.f32 %v1085, %v1105
    %v1107 = vadd.f32 %v1095, %v1106
    %s1108 = sld [smem:[#allocation4 + $0x6a]]
    %v1109 = vstv %s1108
    %v1110 = vmul.f32 %v1085, %v1109
    %v1111 = vadd.f32 %v1099, %v1110
    %1112 = vrot.lane.b32.xlu0 %v1085, 127
    %v1113 = vpop.permute.xlu0 %1112
    %s1114 = sld [smem:[#allocation4 + $0x23]]
    %v1115 = vstv %s1114
    %v1116 = vmul.f32 %v1113, %v1115
    %v1117 = vadd.f32 %v1103, %v1116
    %s1118 = sld [smem:[#allocation4 + $0x47]]
    %v1119 = vstv %s1118
    %v1120 = vmul.f32 %v1113, %v1119
    %v1121 = vadd.f32 %v1107, %v1120
    %s1122 = sld [smem:[#allocation4 + $0x6b]]
    %v1123 = vstv %s1122
    %v1124 = vmul.f32 %v1113, %v1123
    %v1125 = vadd.f32 %v1111, %v1124
    %v1126 = vld [vmem:[%s0] sm:$0xff]
    %v1127 = vmax.f32 %v1117, 0.0
    %v1128 = vmul.f32 %v1127, %v1126
    %1129 = vst [vmem:[#allocation2 + $0x10] sm:$0xff] %v1128
    %v1130 = vmax.f32 %v1121, 0.0
    %v1131 = vmul.f32 %v1130, %v1126
    %1132 = vst [vmem:[%s103 + $0x10] sm:$0xff] %v1131
    %v1133 = vmax.f32 %v1125, 0.0
    %v1134 = vmul.f32 %v1133, %v1126
    %1135 = vst [vmem:[%s106 + $0x10] sm:$0xff] %v1134
    %s1136 = sld [smem:[#allocation10]]
    %v1137 = vstv %s1136
    %s1138 = sld [smem:[#allocation10 + $0x1]]
    %v1139 = vstv %s1138
    %s1140 = sld [smem:[#allocation10 + $0x2]]
    %v1141 = vstv %s1140
    %v1142 = vld [vmem:[#allocation2 + $0x7] sm:$0xff]
    %1143 = vrot.lane.b32.xlu0 %v1142, 1
    %v1144 = vpop.permute.xlu0 %1143
    %s1145 = sld [smem:[#allocation9]]
    %v1146 = vstv %s1145
    %v1147 = vmul.f32 %v1144, %v1146
    %v1148 = vadd.f32 %v1137, %v1147
    %s1149 = sld [smem:[#allocation9 + $0x1b]]
    %v1150 = vstv %s1149
    %v1151 = vmul.f32 %v1144, %v1150
    %v1152 = vadd.f32 %v1139, %v1151
    %s1153 = sld [smem:[#allocation9 + $0x36]]
    %v1154 = vstv %s1153
    %v1155 = vmul.f32 %v1144, %v1154
    %v1156 = vadd.f32 %v1141, %v1155
    %s1157 = sld [smem:[#allocation9 + $0x1]]
    %v1158 = vstv %s1157
    %v1159 = vmul.f32 %v1142, %v1158
    %v1160 = vadd.f32 %v1148, %v1159
    %s1161 = sld [smem:[#allocation9 + $0x1c]]
    %v1162 = vstv %s1161
    %v1163 = vmul.f32 %v1142, %v1162
    %v1164 = vadd.f32 %v1152, %v1163
    %s1165 = sld [smem:[#allocation9 + $0x37]]
    %v1166 = vstv %s1165
    %v1167 = vmul.f32 %v1142, %v1166
    %v1168 = vadd.f32 %v1156, %v1167
    %1169 = vrot.lane.b32.xlu0 %v1142, 127
    %v1170 = vpop.permute.xlu0 %1169
    %s1171 = sld [smem:[#allocation9 + $0x2]]
    %v1172 = vstv %s1171
    %v1173 = vmul.f32 %v1170, %v1172
    %v1174 = vadd.f32 %v1160, %v1173
    %s1175 = sld [smem:[#allocation9 + $0x1d]]
    %v1176 = vstv %s1175
    %v1177 = vmul.f32 %v1170, %v1176
    %v1178 = vadd.f32 %v1164, %v1177
    %s1179 = sld [smem:[#allocation9 + $0x38]]
    %v1180 = vstv %s1179
    %v1181 = vmul.f32 %v1170, %v1180
    %v1182 = vadd.f32 %v1168, %v1181
    %v1183 = vld [vmem:[#allocation2 + $0x8] sm:$0xff]
    %1184 = vrot.lane.b32.xlu0 %v1183, 1
    %v1185 = vpop.permute.xlu0 %1184
    %s1186 = sld [smem:[#allocation9 + $0x3]]
    %v1187 = vstv %s1186
    %v1188 = vmul.f32 %v1185, %v1187
    %v1189 = vadd.f32 %v1174, %v1188
    %s1190 = sld [smem:[#allocation9 + $0x1e]]
    %v1191 = vstv %s1190
    %v1192 = vmul.f32 %v1185, %v1191
    %v1193 = vadd.f32 %v1178, %v1192
    %s1194 = sld [smem:[#allocation9 + $0x39]]
    %v1195 = vstv %s1194
    %v1196 = vmul.f32 %v1185, %v1195
    %v1197 = vadd.f32 %v1182, %v1196
    %s1198 = sld [smem:[#allocation9 + $0x4]]
    %v1199 = vstv %s1198
    %v1200 = vmul.f32 %v1183, %v1199
    %v1201 = vadd.f32 %v1189, %v1200
    %s1202 = sld [smem:[#allocation9 + $0x1f]]
    %v1203 = vstv %s1202
    %v1204 = vmul.f32 %v1183, %v1203
    %v1205 = vadd.f32 %v1193, %v1204
    %s1206 = sld [smem:[#allocation9 + $0x3a]]
    %v1207 = vstv %s1206
    %v1208 = vmul.f32 %v1183, %v1207
    %v1209 = vadd.f32 %v1197, %v1208
    %1210 = vrot.lane.b32.xlu0 %v1183, 127
    %v1211 = vpop.permute.xlu0 %1210
    %s1212 = sld [smem:[#allocation9 + $0x5]]
    %v1213 = vstv %s1212
    %v1214 = vmul.f32 %v1211, %v1213
    %v1215 = vadd.f32 %v1201, %v1214
    %s1216 = sld [smem:[#allocation9 + $0x20]]
    %v1217 = vstv %s1216
    %v1218 = vmul.f32 %v1211, %v1217
    %v1219 = vadd.f32 %v1205, %v1218
    %s1220 = sld [smem:[#allocation9 + $0x3b]]
    %v1221 = vstv %s1220
    %v1222 = vmul.f32 %v1211, %v1221
    %v1223 = vadd.f32 %v1209, %v1222
    %v1224 = vld [vmem:[#allocation2 + $0x9] sm:$0xff]
    %1225 = vrot.lane.b32.xlu0 %v1224, 1
    %v1226 = vpop.permute.xlu0 %1225
    %s1227 = sld [smem:[#allocation9 + $0x6]]
    %v1228 = vstv %s1227
    %v1229 = vmul.f32 %v1226, %v1228
    %v1230 = vadd.f32 %v1215, %v1229
    %s1231 = sld [smem:[#allocation9 + $0x21]]
    %v1232 = vstv %s1231
    %v1233 = vmul.f32 %v1226, %v1232
    %v1234 = vadd.f32 %v1219, %v1233
    %s1235 = sld [smem:[#allocation9 + $0x3c]]
    %v1236 = vstv %s1235
    %v1237 = vmul.f32 %v1226, %v1236
    %v1238 = vadd.f32 %v1223, %v1237
    %s1239 = sld [smem:[#allocation9 + $0x7]]
    %v1240 = vstv %s1239
    %v1241 = vmul.f32 %v1224, %v1240
    %v1242 = vadd.f32 %v1230, %v1241
    %s1243 = sld [smem:[#allocation9 + $0x22]]
    %v1244 = vstv %s1243
    %v1245 = vmul.f32 %v1224, %v1244
    %v1246 = vadd.f32 %v1234, %v1245
    %s1247 = sld [smem:[#allocation9 + $0x3d]]
    %v1248 = vstv %s1247
    %v1249 = vmul.f32 %v1224, %v1248
    %v1250 = vadd.f32 %v1238, %v1249
    %1251 = vrot.lane.b32.xlu0 %v1224, 127
    %v1252 = vpop.permute.xlu0 %1251
    %s1253 = sld [smem:[#allocation9 + $0x8]]
    %v1254 = vstv %s1253
    %v1255 = vmul.f32 %v1252, %v1254
    %v1256 = vadd.f32 %v1242, %v1255
    %s1257 = sld [smem:[#allocation9 + $0x23]]
    %v1258 = vstv %s1257
    %v1259 = vmul.f32 %v1252, %v1258
    %v1260 = vadd.f32 %v1246, %v1259
    %s1261 = sld [smem:[#allocation9 + $0x3e]]
    %v1262 = vstv %s1261
    %v1263 = vmul.f32 %v1252, %v1262
    %v1264 = vadd.f32 %v1250, %v1263
    %v1265 = vld [vmem:[%s103 + $0x7] sm:$0xff]
    %1266 = vrot.lane.b32.xlu0 %v1265, 1
    %v1267 = vpop.permute.xlu0 %1266
    %s1268 = sld [smem:[#allocation9 + $0x9]]
    %v1269 = vstv %s1268
    %v1270 = vmul.f32 %v1267, %v1269
    %v1271 = vadd.f32 %v1256, %v1270
    %s1272 = sld [smem:[#allocation9 + $0x24]]
    %v1273 = vstv %s1272
    %v1274 = vmul.f32 %v1267, %v1273
    %v1275 = vadd.f32 %v1260, %v1274
    %s1276 = sld [smem:[#allocation9 + $0x3f]]
    %v1277 = vstv %s1276
    %v1278 = vmul.f32 %v1267, %v1277
    %v1279 = vadd.f32 %v1264, %v1278
    %s1280 = sld [smem:[#allocation9 + $0xa]]
    %v1281 = vstv %s1280
    %v1282 = vmul.f32 %v1265, %v1281
    %v1283 = vadd.f32 %v1271, %v1282
    %s1284 = sld [smem:[#allocation9 + $0x25]]
    %v1285 = vstv %s1284
    %v1286 = vmul.f32 %v1265, %v1285
    %v1287 = vadd.f32 %v1275, %v1286
    %s1288 = sld [smem:[#allocation9 + $0x40]]
    %v1289 = vstv %s1288
    %v1290 = vmul.f32 %v1265, %v1289
    %v1291 = vadd.f32 %v1279, %v1290
    %1292 = vrot.lane.b32.xlu0 %v1265, 127
    %v1293 = vpop.permute.xlu0 %1292
    %s1294 = sld [smem:[#allocation9 + $0xb]]
    %v1295 = vstv %s1294
    %v1296 = vmul.f32 %v1293, %v1295
    %v1297 = vadd.f32 %v1283, %v1296
    %s1298 = sld [smem:[#allocation9 + $0x26]]
    %v1299 = vstv %s1298
    %v1300 = vmul.f32 %v1293, %v1299
    %v1301 = vadd.f32 %v1287, %v1300
    %s1302 = sld [smem:[#allocation9 + $0x41]]
    %v1303 = vstv %s1302
    %v1304 = vmul.f32 %v1293, %v1303
    %v1305 = vadd.f32 %v1291, %v1304
    %v1306 = vld [vmem:[%s103 + $0x8] sm:$0xff]
    %1307 = vrot.lane.b32.xlu0 %v1306, 1
    %v1308 = vpop.permute.xlu0 %1307
    %s1309 = sld [smem:[#allocation9 + $0xc]]
    %v1310 = vstv %s1309
    %v1311 = vmul.f32 %v1308, %v1310
    %v1312 = vadd.f32 %v1297, %v1311
    %s1313 = sld [smem:[#allocation9 + $0x27]]
    %v1314 = vstv %s1313
    %v1315 = vmul.f32 %v1308, %v1314
    %v1316 = vadd.f32 %v1301, %v1315
    %s1317 = sld [smem:[#allocation9 + $0x42]]
    %v1318 = vstv %s1317
    %v1319 = vmul.f32 %v1308, %v1318
    %v1320 = vadd.f32 %v1305, %v1319
    %s1321 = sld [smem:[#allocation9 + $0xd]]
    %v1322 = vstv %s1321
    %v1323 = vmul.f32 %v1306, %v1322
    %v1324 = vadd.f32 %v1312, %v1323
    %s1325 = sld [smem:[#allocation9 + $0x28]]
    %v1326 = vstv %s1325
    %v1327 = vmul.f32 %v1306, %v1326
    %v1328 = vadd.f32 %v1316, %v1327
    %s1329 = sld [smem:[#allocation9 + $0x43]]
    %v1330 = vstv %s1329
    %v1331 = vmul.f32 %v1306, %v1330
    %v1332 = vadd.f32 %v1320, %v1331
    %1333 = vrot.lane.b32.xlu0 %v1306, 127
    %v1334 = vpop.permute.xlu0 %1333
    %s1335 = sld [smem:[#allocation9 + $0xe]]
    %v1336 = vstv %s1335
    %v1337 = vmul.f32 %v1334, %v1336
    %v1338 = vadd.f32 %v1324, %v1337
    %s1339 = sld [smem:[#allocation9 + $0x29]]
    %v1340 = vstv %s1339
    %v1341 = vmul.f32 %v1334, %v1340
    %v1342 = vadd.f32 %v1328, %v1341
    %s1343 = sld [smem:[#allocation9 + $0x44]]
    %v1344 = vstv %s1343
    %v1345 = vmul.f32 %v1334, %v1344
    %v1346 = vadd.f32 %v1332, %v1345
    %v1347 = vld [vmem:[%s103 + $0x9] sm:$0xff]
    %1348 = vrot.lane.b32.xlu0 %v1347, 1
    %v1349 = vpop.permute.xlu0 %1348
    %s1350 = sld [smem:[#allocation9 + $0xf]]
    %v1351 = vstv %s1350
    %v1352 = vmul.f32 %v1349, %v1351
    %v1353 = vadd.f32 %v1338, %v1352
    %s1354 = sld [smem:[#allocation9 + $0x2a]]
    %v1355 = vstv %s1354
    %v1356 = vmul.f32 %v1349, %v1355
    %v1357 = vadd.f32 %v1342, %v1356
    %s1358 = sld [smem:[#allocation9 + $0x45]]
    %v1359 = vstv %s1358
    %v1360 = vmul.f32 %v1349, %v1359
    %v1361 = vadd.f32 %v1346, %v1360
    %s1362 = sld [smem:[#allocation9 + $0x10]]
    %v1363 = vstv %s1362
    %v1364 = vmul.f32 %v1347, %v1363
    %v1365 = vadd.f32 %v1353, %v1364
    %s1366 = sld [smem:[#allocation9 + $0x2b]]
    %v1367 = vstv %s1366
    %v1368 = vmul.f32 %v1347, %v1367
    %v1369 = vadd.f32 %v1357, %v1368
    %s1370 = sld [smem:[#allocation9 + $0x46]]
    %v1371 = vstv %s1370
    %v1372 = vmul.f32 %v1347, %v1371
    %v1373 = vadd.f32 %v1361, %v1372
    %1374 = vrot.lane.b32.xlu0 %v1347, 127
    %v1375 = vpop.permute.xlu0 %1374
    %s1376 = sld [smem:[#allocation9 + $0x11]]
    %v1377 = vstv %s1376
    %v1378 = vmul.f32 %v1375, %v1377
    %v1379 = vadd.f32 %v1365, %v1378
    %s1380 = sld [smem:[#allocation9 + $0x2c]]
    %v1381 = vstv %s1380
    %v1382 = vmul.f32 %v1375, %v1381
    %v1383 = vadd.f32 %v1369, %v1382
    %s1384 = sld [smem:[#allocation9 + $0x47]]
    %v1385 = vstv %s1384
    %v1386 = vmul.f32 %v1375, %v1385
    %v1387 = vadd.f32 %v1373, %v1386
    %v1388 = vld [vmem:[%s106 + $0x7] sm:$0xff]
    %1389 = vrot.lane.b32.xlu0 %v1388, 1
    %v1390 = vpop.permute.xlu0 %1389
    %s1391 = sld [smem:[#allocation9 + $0x12]]
    %v1392 = vstv %s1391
    %v1393 = vmul.f32 %v1390, %v1392
    %v1394 = vadd.f32 %v1379, %v1393
    %s1395 = sld [smem:[#allocation9 + $0x2d]]
    %v1396 = vstv %s1395
    %v1397 = vmul.f32 %v1390, %v1396
    %v1398 = vadd.f32 %v1383, %v1397
    %s1399 = sld [smem:[#allocation9 + $0x48]]
    %v1400 = vstv %s1399
    %v1401 = vmul.f32 %v1390, %v1400
    %v1402 = vadd.f32 %v1387, %v1401
    %s1403 = sld [smem:[#allocation9 + $0x13]]
    %v1404 = vstv %s1403
    %v1405 = vmul.f32 %v1388, %v1404
    %v1406 = vadd.f32 %v1394, %v1405
    %s1407 = sld [smem:[#allocation9 + $0x2e]]
    %v1408 = vstv %s1407
    %v1409 = vmul.f32 %v1388, %v1408
    %v1410 = vadd.f32 %v1398, %v1409
    %s1411 = sld [smem:[#allocation9 + $0x49]]
    %v1412 = vstv %s1411
    %v1413 = vmul.f32 %v1388, %v1412
    %v1414 = vadd.f32 %v1402, %v1413
    %1415 = vrot.lane.b32.xlu0 %v1388, 127
    %v1416 = vpop.permute.xlu0 %1415
    %s1417 = sld [smem:[#allocation9 + $0x14]]
    %v1418 = vstv %s1417
    %v1419 = vmul.f32 %v1416, %v1418
    %v1420 = vadd.f32 %v1406, %v1419
    %s1421 = sld [smem:[#allocation9 + $0x2f]]
    %v1422 = vstv %s1421
    %v1423 = vmul.f32 %v1416, %v1422
    %v1424 = vadd.f32 %v1410, %v1423
    %s1425 = sld [smem:[#allocation9 + $0x4a]]
    %v1426 = vstv %s1425
    %v1427 = vmul.f32 %v1416, %v1426
    %v1428 = vadd.f32 %v1414, %v1427
    %v1429 = vld [vmem:[%s106 + $0x8] sm:$0xff]
    %1430 = vrot.lane.b32.xlu0 %v1429, 1
    %v1431 = vpop.permute.xlu0 %1430
    %s1432 = sld [smem:[#allocation9 + $0x15]]
    %v1433 = vstv %s1432
    %v1434 = vmul.f32 %v1431, %v1433
    %v1435 = vadd.f32 %v1420, %v1434
    %s1436 = sld [smem:[#allocation9 + $0x30]]
    %v1437 = vstv %s1436
    %v1438 = vmul.f32 %v1431, %v1437
    %v1439 = vadd.f32 %v1424, %v1438
    %s1440 = sld [smem:[#allocation9 + $0x4b]]
    %v1441 = vstv %s1440
    %v1442 = vmul.f32 %v1431, %v1441
    %v1443 = vadd.f32 %v1428, %v1442
    %s1444 = sld [smem:[#allocation9 + $0x16]]
    %v1445 = vstv %s1444
    %v1446 = vmul.f32 %v1429, %v1445
    %v1447 = vadd.f32 %v1435, %v1446
    %s1448 = sld [smem:[#allocation9 + $0x31]]
    %v1449 = vstv %s1448
    %v1450 = vmul.f32 %v1429, %v1449
    %v1451 = vadd.f32 %v1439, %v1450
    %s1452 = sld [smem:[#allocation9 + $0x4c]]
    %v1453 = vstv %s1452
    %v1454 = vmul.f32 %v1429, %v1453
    %v1455 = vadd.f32 %v1443, %v1454
    %1456 = vrot.lane.b32.xlu0 %v1429, 127
    %v1457 = vpop.permute.xlu0 %1456
    %s1458 = sld [smem:[#allocation9 + $0x17]]
    %v1459 = vstv %s1458
    %v1460 = vmul.f32 %v1457, %v1459
    %v1461 = vadd.f32 %v1447, %v1460
    %s1462 = sld [smem:[#allocation9 + $0x32]]
    %v1463 = vstv %s1462
    %v1464 = vmul.f32 %v1457, %v1463
    %v1465 = vadd.f32 %v1451, %v1464
    %s1466 = sld [smem:[#allocation9 + $0x4d]]
    %v1467 = vstv %s1466
    %v1468 = vmul.f32 %v1457, %v1467
    %v1469 = vadd.f32 %v1455, %v1468
    %v1470 = vld [vmem:[%s106 + $0x9] sm:$0xff]
    %1471 = vrot.lane.b32.xlu0 %v1470, 1
    %v1472 = vpop.permute.xlu0 %1471
    %s1473 = sld [smem:[#allocation9 + $0x18]]
    %v1474 = vstv %s1473
    %v1475 = vmul.f32 %v1472, %v1474
    %v1476 = vadd.f32 %v1461, %v1475
    %s1477 = sld [smem:[#allocation9 + $0x33]]
    %v1478 = vstv %s1477
    %v1479 = vmul.f32 %v1472, %v1478
    %v1480 = vadd.f32 %v1465, %v1479
    %s1481 = sld [smem:[#allocation9 + $0x4e]]
    %v1482 = vstv %s1481
    %v1483 = vmul.f32 %v1472, %v1482
    %v1484 = vadd.f32 %v1469, %v1483
    %s1485 = sld [smem:[#allocation9 + $0x19]]
    %v1486 = vstv %s1485
    %v1487 = vmul.f32 %v1470, %v1486
    %v1488 = vadd.f32 %v1476, %v1487
    %s1489 = sld [smem:[#allocation9 + $0x34]]
    %v1490 = vstv %s1489
    %v1491 = vmul.f32 %v1470, %v1490
    %v1492 = vadd.f32 %v1480, %v1491
    %s1493 = sld [smem:[#allocation9 + $0x4f]]
    %v1494 = vstv %s1493
    %v1495 = vmul.f32 %v1470, %v1494
    %v1496 = vadd.f32 %v1484, %v1495
    %1497 = vrot.lane.b32.xlu0 %v1470, 127
    %v1498 = vpop.permute.xlu0 %1497
    %s1499 = sld [smem:[#allocation9 + $0x1a]]
    %v1500 = vstv %s1499
    %v1501 = vmul.f32 %v1498, %v1500
    %v1502 = vadd.f32 %v1488, %v1501
    %s1503 = sld [smem:[#allocation9 + $0x35]]
    %v1504 = vstv %s1503
    %v1505 = vmul.f32 %v1498, %v1504
    %v1506 = vadd.f32 %v1492, %v1505
    %s1507 = sld [smem:[#allocation9 + $0x50]]
    %v1508 = vstv %s1507
    %v1509 = vmul.f32 %v1498, %v1508
    %v1510 = vadd.f32 %v1496, %v1509
    %v1511 = vld [vmem:[%s0] sm:$0xff]
    %v1512 = vmax.f32 %v1502, 0.0
    %v1513 = vmul.f32 %v1512, %v1511
    %1514 = vst [vmem:[#allocation3 + $0x8] sm:$0xff] %v1513
    %v1515 = vmax.f32 %v1506, 0.0
    %v1516 = vmul.f32 %v1515, %v1511
    %1517 = vst [vmem:[%s111 + $0x8] sm:$0xff] %v1516
    %v1518 = vmax.f32 %v1510, 0.0
    %v1519 = vmul.f32 %v1518, %v1511
    %1520 = vst [vmem:[%s114 + $0x8] sm:$0xff] %v1519
    %s1521 = sld [smem:[#allocation10]]
    %v1522 = vstv %s1521
    %s1523 = sld [smem:[#allocation10 + $0x1]]
    %v1524 = vstv %s1523
    %s1525 = sld [smem:[#allocation10 + $0x2]]
    %v1526 = vstv %s1525
    %v1527 = vld [vmem:[#allocation2 + $0xf] sm:$0xff]
    %1528 = vrot.lane.b32.xlu0 %v1527, 1
    %v1529 = vpop.permute.xlu0 %1528
    %s1530 = sld [smem:[#allocation9]]
    %v1531 = vstv %s1530
    %v1532 = vmul.f32 %v1529, %v1531
    %v1533 = vadd.f32 %v1522, %v1532
    %s1534 = sld [smem:[#allocation9 + $0x1b]]
    %v1535 = vstv %s1534
    %v1536 = vmul.f32 %v1529, %v1535
    %v1537 = vadd.f32 %v1524, %v1536
    %s1538 = sld [smem:[#allocation9 + $0x36]]
    %v1539 = vstv %s1538
    %v1540 = vmul.f32 %v1529, %v1539
    %v1541 = vadd.f32 %v1526, %v1540
    %s1542 = sld [smem:[#allocation9 + $0x1]]
    %v1543 = vstv %s1542
    %v1544 = vmul.f32 %v1527, %v1543
    %v1545 = vadd.f32 %v1533, %v1544
    %s1546 = sld [smem:[#allocation9 + $0x1c]]
    %v1547 = vstv %s1546
    %v1548 = vmul.f32 %v1527, %v1547
    %v1549 = vadd.f32 %v1537, %v1548
    %s1550 = sld [smem:[#allocation9 + $0x37]]
    %v1551 = vstv %s1550
    %v1552 = vmul.f32 %v1527, %v1551
    %v1553 = vadd.f32 %v1541, %v1552
    %1554 = vrot.lane.b32.xlu0 %v1527, 127
    %v1555 = vpop.permute.xlu0 %1554
    %s1556 = sld [smem:[#allocation9 + $0x2]]
    %v1557 = vstv %s1556
    %v1558 = vmul.f32 %v1555, %v1557
    %v1559 = vadd.f32 %v1545, %v1558
    %s1560 = sld [smem:[#allocation9 + $0x1d]]
    %v1561 = vstv %s1560
    %v1562 = vmul.f32 %v1555, %v1561
    %v1563 = vadd.f32 %v1549, %v1562
    %s1564 = sld [smem:[#allocation9 + $0x38]]
    %v1565 = vstv %s1564
    %v1566 = vmul.f32 %v1555, %v1565
    %v1567 = vadd.f32 %v1553, %v1566
    %v1568 = vld [vmem:[#allocation2 + $0x10] sm:$0xff]
    %1569 = vrot.lane.b32.xlu0 %v1568, 1
    %v1570 = vpop.permute.xlu0 %1569
    %s1571 = sld [smem:[#allocation9 + $0x3]]
    %v1572 = vstv %s1571
    %v1573 = vmul.f32 %v1570, %v1572
    %v1574 = vadd.f32 %v1559, %v1573
    %s1575 = sld [smem:[#allocation9 + $0x1e]]
    %v1576 = vstv %s1575
    %v1577 = vmul.f32 %v1570, %v1576
    %v1578 = vadd.f32 %v1563, %v1577
    %s1579 = sld [smem:[#allocation9 + $0x39]]
    %v1580 = vstv %s1579
    %v1581 = vmul.f32 %v1570, %v1580
    %v1582 = vadd.f32 %v1567, %v1581
    %s1583 = sld [smem:[#allocation9 + $0x4]]
    %v1584 = vstv %s1583
    %v1585 = vmul.f32 %v1568, %v1584
    %v1586 = vadd.f32 %v1574, %v1585
    %s1587 = sld [smem:[#allocation9 + $0x1f]]
    %v1588 = vstv %s1587
    %v1589 = vmul.f32 %v1568, %v1588
    %v1590 = vadd.f32 %v1578, %v1589
    %s1591 = sld [smem:[#allocation9 + $0x3a]]
    %v1592 = vstv %s1591
    %v1593 = vmul.f32 %v1568, %v1592
    %v1594 = vadd.f32 %v1582, %v1593
    %1595 = vrot.lane.b32.xlu0 %v1568, 127
    %v1596 = vpop.permute.xlu0 %1595
    %s1597 = sld [smem:[#allocation9 + $0x5]]
    %v1598 = vstv %s1597
    %v1599 = vmul.f32 %v1596, %v1598
    %v1600 = vadd.f32 %v1586, %v1599
    %s1601 = sld [smem:[#allocation9 + $0x20]]
    %v1602 = vstv %s1601
    %v1603 = vmul.f32 %v1596, %v1602
    %v1604 = vadd.f32 %v1590, %v1603
    %s1605 = sld [smem:[#allocation9 + $0x3b]]
    %v1606 = vstv %s1605
    %v1607 = vmul.f32 %v1596, %v1606
    %v1608 = vadd.f32 %v1594, %v1607
    %v1609 = vld [vmem:[#allocation2 + $0x11] sm:$0xff]
    %1610 = vrot.lane.b32.xlu0 %v1609, 1
    %v1611 = vpop.permute.xlu0 %1610
    %s1612 = sld [smem:[#allocation9 + $0x6]]
    %v1613 = vstv %s1612
    %v1614 = vmul.f32 %v1611, %v1613
    %v1615 = vadd.f32 %v1600, %v1614
    %s1616 = sld [smem:[#allocation9 + $0x21]]
    %v1617 = vstv %s1616
    %v1618 = vmul.f32 %v1611, %v1617
    %v1619 = vadd.f32 %v1604, %v1618
    %s1620 = sld [smem:[#allocation9 + $0x3c]]
    %v1621 = vstv %s1620
    %v1622 = vmul.f32 %v1611, %v1621
    %v1623 = vadd.f32 %v1608, %v1622
    %s1624 = sld [smem:[#allocation9 + $0x7]]
    %v1625 = vstv %s1624
    %v1626 = vmul.f32 %v1609, %v1625
    %v1627 = vadd.f32 %v1615, %v1626
    %s1628 = sld [smem:[#allocation9 + $0x22]]
    %v1629 = vstv %s1628
    %v1630 = vmul.f32 %v1609, %v1629
    %v1631 = vadd.f32 %v1619, %v1630
    %s1632 = sld [smem:[#allocation9 + $0x3d]]
    %v1633 = vstv %s1632
    %v1634 = vmul.f32 %v1609, %v1633
    %v1635 = vadd.f32 %v1623, %v1634
    %1636 = vrot.lane.b32.xlu0 %v1609, 127
    %v1637 = vpop.permute.xlu0 %1636
    %s1638 = sld [smem:[#allocation9 + $0x8]]
    %v1639 = vstv %s1638
    %v1640 = vmul.f32 %v1637, %v1639
    %v1641 = vadd.f32 %v1627, %v1640
    %s1642 = sld [smem:[#allocation9 + $0x23]]
    %v1643 = vstv %s1642
    %v1644 = vmul.f32 %v1637, %v1643
    %v1645 = vadd.f32 %v1631, %v1644
    %s1646 = sld [smem:[#allocation9 + $0x3e]]
    %v1647 = vstv %s1646
    %v1648 = vmul.f32 %v1637, %v1647
    %v1649 = vadd.f32 %v1635, %v1648
    %v1650 = vld [vmem:[%s103 + $0xf] sm:$0xff]
    %1651 = vrot.lane.b32.xlu0 %v1650, 1
    %v1652 = vpop.permute.xlu0 %1651
    %s1653 = sld [smem:[#allocation9 + $0x9]]
    %v1654 = vstv %s1653
    %v1655 = vmul.f32 %v1652, %v1654
    %v1656 = vadd.f32 %v1641, %v1655
    %s1657 = sld [smem:[#allocation9 + $0x24]]
    %v1658 = vstv %s1657
    %v1659 = vmul.f32 %v1652, %v1658
    %v1660 = vadd.f32 %v1645, %v1659
    %s1661 = sld [smem:[#allocation9 + $0x3f]]
    %v1662 = vstv %s1661
    %v1663 = vmul.f32 %v1652, %v1662
    %v1664 = vadd.f32 %v1649, %v1663
    %s1665 = sld [smem:[#allocation9 + $0xa]]
    %v1666 = vstv %s1665
    %v1667 = vmul.f32 %v1650, %v1666
    %v1668 = vadd.f32 %v1656, %v1667
    %s1669 = sld [smem:[#allocation9 + $0x25]]
    %v1670 = vstv %s1669
    %v1671 = vmul.f32 %v1650, %v1670
    %v1672 = vadd.f32 %v1660, %v1671
    %s1673 = sld [smem:[#allocation9 + $0x40]]
    %v1674 = vstv %s1673
    %v1675 = vmul.f32 %v1650, %v1674
    %v1676 = vadd.f32 %v1664, %v1675
    %1677 = vrot.lane.b32.xlu0 %v1650, 127
    %v1678 = vpop.permute.xlu0 %1677
    %s1679 = sld [smem:[#allocation9 + $0xb]]
    %v1680 = vstv %s1679
    %v1681 = vmul.f32 %v1678, %v1680
    %v1682 = vadd.f32 %v1668, %v1681
    %s1683 = sld [smem:[#allocation9 + $0x26]]
    %v1684 = vstv %s1683
    %v1685 = vmul.f32 %v1678, %v1684
    %v1686 = vadd.f32 %v1672, %v1685
    %s1687 = sld [smem:[#allocation9 + $0x41]]
    %v1688 = vstv %s1687
    %v1689 = vmul.f32 %v1678, %v1688
    %v1690 = vadd.f32 %v1676, %v1689
    %v1691 = vld [vmem:[%s103 + $0x10] sm:$0xff]
    %1692 = vrot.lane.b32.xlu0 %v1691, 1
    %v1693 = vpop.permute.xlu0 %1692
    %s1694 = sld [smem:[#allocation9 + $0xc]]
    %v1695 = vstv %s1694
    %v1696 = vmul.f32 %v1693, %v1695
    %v1697 = vadd.f32 %v1682, %v1696
    %s1698 = sld [smem:[#allocation9 + $0x27]]
    %v1699 = vstv %s1698
    %v1700 = vmul.f32 %v1693, %v1699
    %v1701 = vadd.f32 %v1686, %v1700
    %s1702 = sld [smem:[#allocation9 + $0x42]]
    %v1703 = vstv %s1702
    %v1704 = vmul.f32 %v1693, %v1703
    %v1705 = vadd.f32 %v1690, %v1704
    %s1706 = sld [smem:[#allocation9 + $0xd]]
    %v1707 = vstv %s1706
    %v1708 = vmul.f32 %v1691, %v1707
    %v1709 = vadd.f32 %v1697, %v1708
    %s1710 = sld [smem:[#allocation9 + $0x28]]
    %v1711 = vstv %s1710
    %v1712 = vmul.f32 %v1691, %v1711
    %v1713 = vadd.f32 %v1701, %v1712
    %s1714 = sld [smem:[#allocation9 + $0x43]]
    %v1715 = vstv %s1714
    %v1716 = vmul.f32 %v1691, %v1715
    %v1717 = vadd.f32 %v1705, %v1716
    %1718 = vrot.lane.b32.xlu0 %v1691, 127
    %v1719 = vpop.permute.xlu0 %1718
    %s1720 = sld [smem:[#allocation9 + $0xe]]
    %v1721 = vstv %s1720
    %v1722 = vmul.f32 %v1719, %v1721
    %v1723 = vadd.f32 %v1709, %v1722
    %s1724 = sld [smem:[#allocation9 + $0x29]]
    %v1725 = vstv %s1724
    %v1726 = vmul.f32 %v1719, %v1725
    %v1727 = vadd.f32 %v1713, %v1726
    %s1728 = sld [smem:[#allocation9 + $0x44]]
    %v1729 = vstv %s1728
    %v1730 = vmul.f32 %v1719, %v1729
    %v1731 = vadd.f32 %v1717, %v1730
    %v1732 = vld [vmem:[%s103 + $0x11] sm:$0xff]
    %1733 = vrot.lane.b32.xlu0 %v1732, 1
    %v1734 = vpop.permute.xlu0 %1733
    %s1735 = sld [smem:[#allocation9 + $0xf]]
    %v1736 = vstv %s1735
    %v1737 = vmul.f32 %v1734, %v1736
    %v1738 = vadd.f32 %v1723, %v1737
    %s1739 = sld [smem:[#allocation9 + $0x2a]]
    %v1740 = vstv %s1739
    %v1741 = vmul.f32 %v1734, %v1740
    %v1742 = vadd.f32 %v1727, %v1741
    %s1743 = sld [smem:[#allocation9 + $0x45]]
    %v1744 = vstv %s1743
    %v1745 = vmul.f32 %v1734, %v1744
    %v1746 = vadd.f32 %v1731, %v1745
    %s1747 = sld [smem:[#allocation9 + $0x10]]
    %v1748 = vstv %s1747
    %v1749 = vmul.f32 %v1732, %v1748
    %v1750 = vadd.f32 %v1738, %v1749
    %s1751 = sld [smem:[#allocation9 + $0x2b]]
    %v1752 = vstv %s1751
    %v1753 = vmul.f32 %v1732, %v1752
    %v1754 = vadd.f32 %v1742, %v1753
    %s1755 = sld [smem:[#allocation9 + $0x46]]
    %v1756 = vstv %s1755
    %v1757 = vmul.f32 %v1732, %v1756
    %v1758 = vadd.f32 %v1746, %v1757
    %1759 = vrot.lane.b32.xlu0 %v1732, 127
    %v1760 = vpop.permute.xlu0 %1759
    %s1761 = sld [smem:[#allocation9 + $0x11]]
    %v1762 = vstv %s1761
    %v1763 = vmul.f32 %v1760, %v1762
    %v1764 = vadd.f32 %v1750, %v1763
    %s1765 = sld [smem:[#allocation9 + $0x2c]]
    %v1766 = vstv %s1765
    %v1767 = vmul.f32 %v1760, %v1766
    %v1768 = vadd.f32 %v1754, %v1767
    %s1769 = sld [smem:[#allocation9 + $0x47]]
    %v1770 = vstv %s1769
    %v1771 = vmul.f32 %v1760, %v1770
    %v1772 = vadd.f32 %v1758, %v1771
    %v1773 = vld [vmem:[%s106 + $0xf] sm:$0xff]
    %1774 = vrot.lane.b32.xlu0 %v1773, 1
    %v1775 = vpop.permute.xlu0 %1774
    %s1776 = sld [smem:[#allocation9 + $0x12]]
    %v1777 = vstv %s1776
    %v1778 = vmul.f32 %v1775, %v1777
    %v1779 = vadd.f32 %v1764, %v1778
    %s1780 = sld [smem:[#allocation9 + $0x2d]]
    %v1781 = vstv %s1780
    %v1782 = vmul.f32 %v1775, %v1781
    %v1783 = vadd.f32 %v1768, %v1782
    %s1784 = sld [smem:[#allocation9 + $0x48]]
    %v1785 = vstv %s1784
    %v1786 = vmul.f32 %v1775, %v1785
    %v1787 = vadd.f32 %v1772, %v1786
    %s1788 = sld [smem:[#allocation9 + $0x13]]
    %v1789 = vstv %s1788
    %v1790 = vmul.f32 %v1773, %v1789
    %v1791 = vadd.f32 %v1779, %v1790
    %s1792 = sld [smem:[#allocation9 + $0x2e]]
    %v1793 = vstv %s1792
    %v1794 = vmul.f32 %v1773, %v1793
    %v1795 = vadd.f32 %v1783, %v1794
    %s1796 = sld [smem:[#allocation9 + $0x49]]
    %v1797 = vstv %s1796
    %v1798 = vmul.f32 %v1773, %v1797
    %v1799 = vadd.f32 %v1787, %v1798
    %1800 = vrot.lane.b32.xlu0 %v1773, 127
    %v1801 = vpop.permute.xlu0 %1800
    %s1802 = sld [smem:[#allocation9 + $0x14]]
    %v1803 = vstv %s1802
    %v1804 = vmul.f32 %v1801, %v1803
    %v1805 = vadd.f32 %v1791, %v1804
    %s1806 = sld [smem:[#allocation9 + $0x2f]]
    %v1807 = vstv %s1806
    %v1808 = vmul.f32 %v1801, %v1807
    %v1809 = vadd.f32 %v1795, %v1808
    %s1810 = sld [smem:[#allocation9 + $0x4a]]
    %v1811 = vstv %s1810
    %v1812 = vmul.f32 %v1801, %v1811
    %v1813 = vadd.f32 %v1799, %v1812
    %v1814 = vld [vmem:[%s106 + $0x10] sm:$0xff]
    %1815 = vrot.lane.b32.xlu0 %v1814, 1
    %v1816 = vpop.permute.xlu0 %1815
    %s1817 = sld [smem:[#allocation9 + $0x15]]
    %v1818 = vstv %s1817
    %v1819 = vmul.f32 %v1816, %v1818
    %v1820 = vadd.f32 %v1805, %v1819
    %s1821 = sld [smem:[#allocation9 + $0x30]]
    %v1822 = vstv %s1821
    %v1823 = vmul.f32 %v1816, %v1822
    %v1824 = vadd.f32 %v1809, %v1823
    %s1825 = sld [smem:[#allocation9 + $0x4b]]
    %v1826 = vstv %s1825
    %v1827 = vmul.f32 %v1816, %v1826
    %v1828 = vadd.f32 %v1813, %v1827
    %s1829 = sld [smem:[#allocation9 + $0x16]]
    %v1830 = vstv %s1829
    %v1831 = vmul.f32 %v1814, %v1830
    %v1832 = vadd.f32 %v1820, %v1831
    %s1833 = sld [smem:[#allocation9 + $0x31]]
    %v1834 = vstv %s1833
    %v1835 = vmul.f32 %v1814, %v1834
    %v1836 = vadd.f32 %v1824, %v1835
    %s1837 = sld [smem:[#allocation9 + $0x4c]]
    %v1838 = vstv %s1837
    %v1839 = vmul.f32 %v1814, %v1838
    %v1840 = vadd.f32 %v1828, %v1839
    %1841 = vrot.lane.b32.xlu0 %v1814, 127
    %v1842 = vpop.permute.xlu0 %1841
    %s1843 = sld [smem:[#allocation9 + $0x17]]
    %v1844 = vstv %s1843
    %v1845 = vmul.f32 %v1842, %v1844
    %v1846 = vadd.f32 %v1832, %v1845
    %s1847 = sld [smem:[#allocation9 + $0x32]]
    %v1848 = vstv %s1847
    %v1849 = vmul.f32 %v1842, %v1848
    %v1850 = vadd.f32 %v1836, %v1849
    %s1851 = sld [smem:[#allocation9 + $0x4d]]
    %v1852 = vstv %s1851
    %v1853 = vmul.f32 %v1842, %v1852
    %v1854 = vadd.f32 %v1840, %v1853
    %v1855 = vld [vmem:[%s106 + $0x11] sm:$0xff]
    %1856 = vrot.lane.b32.xlu0 %v1855, 1
    %v1857 = vpop.permute.xlu0 %1856
    %s1858 = sld [smem:[#allocation9 + $0x18]]
    %v1859 = vstv %s1858
    %v1860 = vmul.f32 %v1857, %v1859
    %v1861 = vadd.f32 %v1846, %v1860
    %s1862 = sld [smem:[#allocation9 + $0x33]]
    %v1863 = vstv %s1862
    %v1864 = vmul.f32 %v1857, %v1863
    %v1865 = vadd.f32 %v1850, %v1864
    %s1866 = sld [smem:[#allocation9 + $0x4e]]
    %v1867 = vstv %s1866
    %v1868 = vmul.f32 %v1857, %v1867
    %v1869 = vadd.f32 %v1854, %v1868
    %s1870 = sld [smem:[#allocation9 + $0x19]]
    %v1871 = vstv %s1870
    %v1872 = vmul.f32 %v1855, %v1871
    %v1873 = vadd.f32 %v1861, %v1872
    %s1874 = sld [smem:[#allocation9 + $0x34]]
    %v1875 = vstv %s1874
    %v1876 = vmul.f32 %v1855, %v1875
    %v1877 = vadd.f32 %v1865, %v1876
    %s1878 = sld [smem:[#allocation9 + $0x4f]]
    %v1879 = vstv %s1878
    %v1880 = vmul.f32 %v1855, %v1879
    %v1881 = vadd.f32 %v1869, %v1880
    %1882 = vrot.lane.b32.xlu0 %v1855, 127
    %v1883 = vpop.permute.xlu0 %1882
    %s1884 = sld [smem:[#allocation9 + $0x1a]]
    %v1885 = vstv %s1884
    %v1886 = vmul.f32 %v1883, %v1885
    %v1887 = vadd.f32 %v1873, %v1886
    %s1888 = sld [smem:[#allocation9 + $0x35]]
    %v1889 = vstv %s1888
    %v1890 = vmul.f32 %v1883, %v1889
    %v1891 = vadd.f32 %v1877, %v1890
    %s1892 = sld [smem:[#allocation9 + $0x50]]
    %v1893 = vstv %s1892
    %v1894 = vmul.f32 %v1883, %v1893
    %v1895 = vadd.f32 %v1881, %v1894
    %v1896 = vld [vmem:[%s0] sm:$0xff]
    %v1897 = vmax.f32 %v1887, 0.0
    %v1898 = vmul.f32 %v1897, %v1896
    %1899 = vst [vmem:[#allocation3 + $0x10] sm:$0xff] %v1898
    %v1900 = vmax.f32 %v1891, 0.0
    %v1901 = vmul.f32 %v1900, %v1896
    %1902 = vst [vmem:[%s111 + $0x10] sm:$0xff] %v1901
    %v1903 = vmax.f32 %v1895, 0.0
    %v1904 = vmul.f32 %v1903, %v1896
    %1905 = vst [vmem:[%s114 + $0x10] sm:$0xff] %v1904
    %s1906 = sld [smem:[#allocation13]]
    %v1907 = vstv %s1906
    %s1908 = sld [smem:[#allocation13 + $0x1]]
    %v1909 = vstv %s1908
    %s1910 = sld [smem:[#allocation13 + $0x2]]
    %v1911 = vstv %s1910
    %v1912 = vld [vmem:[#allocation3 + $0x7] sm:$0xff]
    %1913 = vrot.lane.b32.xlu0 %v1912, 1
    %v1914 = vpop.permute.xlu0 %1913
    %s1915 = sld [smem:[#allocation12]]
    %v1916 = vstv %s1915
    %v1917 = vmul.f32 %v1914, %v1916
    %v1918 = vadd.f32 %v1907, %v1917
    %s1919 = sld [smem:[#allocation12 + $0x1b]]
    %v1920 = vstv %s1919
    %v1921 = vmul.f32 %v1914, %v1920
    %v1922 = vadd.f32 %v1909, %v1921
    %s1923 = sld [smem:[#allocation12 + $0x36]]
    %v1924 = vstv %s1923
    %v1925 = vmul.f32 %v1914, %v1924
    %v1926 = vadd.f32 %v1911, %v1925
    %s1927 = sld [smem:[#allocation12 + $0x1]]
    %v1928 = vstv %s1927
    %v1929 = vmul.f32 %v1912, %v1928
    %v1930 = vadd.f32 %v1918, %v1929
    %s1931 = sld [smem:[#allocation12 + $0x1c]]
    %v1932 = vstv %s1931
    %v1933 = vmul.f32 %v1912, %v1932
    %v1934 = vadd.f32 %v1922, %v1933
    %s1935 = sld [smem:[#allocation12 + $0x37]]
    %v1936 = vstv %s1935
    %v1937 = vmul.f32 %v1912, %v1936
    %v1938 = vadd.f32 %v1926, %v1937
    %1939 = vrot.lane.b32.xlu0 %v1912, 127
    %v1940 = vpop.permute.xlu0 %1939
    %s1941 = sld [smem:[#allocation12 + $0x2]]
    %v1942 = vstv %s1941
    %v1943 = vmul.f32 %v1940, %v1942
    %v1944 = vadd.f32 %v1930, %v1943
    %s1945 = sld [smem:[#allocation12 + $0x1d]]
    %v1946 = vstv %s1945
    %v1947 = vmul.f32 %v1940, %v1946
    %v1948 = vadd.f32 %v1934, %v1947
    %s1949 = sld [smem:[#allocation12 + $0x38]]
    %v1950 = vstv %s1949
    %v1951 = vmul.f32 %v1940, %v1950
    %v1952 = vadd.f32 %v1938, %v1951
    %v1953 = vld [vmem:[#allocation3 + $0x8] sm:$0xff]
    %1954 = vrot.lane.b32.xlu0 %v1953, 1
    %v1955 = vpop.permute.xlu0 %1954
    %s1956 = sld [smem:[#allocation12 + $0x3]]
    %v1957 = vstv %s1956
    %v1958 = vmul.f32 %v1955, %v1957
    %v1959 = vadd.f32 %v1944, %v1958
    %s1960 = sld [smem:[#allocation12 + $0x1e]]
    %v1961 = vstv %s1960
    %v1962 = vmul.f32 %v1955, %v1961
    %v1963 = vadd.f32 %v1948, %v1962
    %s1964 = sld [smem:[#allocation12 + $0x39]]
    %v1965 = vstv %s1964
    %v1966 = vmul.f32 %v1955, %v1965
    %v1967 = vadd.f32 %v1952, %v1966
    %s1968 = sld [smem:[#allocation12 + $0x4]]
    %v1969 = vstv %s1968
    %v1970 = vmul.f32 %v1953, %v1969
    %v1971 = vadd.f32 %v1959, %v1970
    %s1972 = sld [smem:[#allocation12 + $0x1f]]
    %v1973 = vstv %s1972
    %v1974 = vmul.f32 %v1953, %v1973
    %v1975 = vadd.f32 %v1963, %v1974
    %s1976 = sld [smem:[#allocation12 + $0x3a]]
    %v1977 = vstv %s1976
    %v1978 = vmul.f32 %v1953, %v1977
    %v1979 = vadd.f32 %v1967, %v1978
    %1980 = vrot.lane.b32.xlu0 %v1953, 127
    %v1981 = vpop.permute.xlu0 %1980
    %s1982 = sld [smem:[#allocation12 + $0x5]]
    %v1983 = vstv %s1982
    %v1984 = vmul.f32 %v1981, %v1983
    %v1985 = vadd.f32 %v1971, %v1984
    %s1986 = sld [smem:[#allocation12 + $0x20]]
    %v1987 = vstv %s1986
    %v1988 = vmul.f32 %v1981, %v1987
    %v1989 = vadd.f32 %v1975, %v1988
    %s1990 = sld [smem:[#allocation12 + $0x3b]]
    %v1991 = vstv %s1990
    %v1992 = vmul.f32 %v1981, %v1991
    %v1993 = vadd.f32 %v1979, %v1992
    %v1994 = vld [vmem:[#allocation3 + $0x9] sm:$0xff]
    %1995 = vrot.lane.b32.xlu0 %v1994, 1
    %v1996 = vpop.permute.xlu0 %1995
    %s1997 = sld [smem:[#allocation12 + $0x6]]
    %v1998 = vstv %s1997
    %v1999 = vmul.f32 %v1996, %v1998
    %v2000 = vadd.f32 %v1985, %v1999
    %s2001 = sld [smem:[#allocation12 + $0x21]]
    %v2002 = vstv %s2001
    %v2003 = vmul.f32 %v1996, %v2002
    %v2004 = vadd.f32 %v1989, %v2003
    %s2005 = sld [smem:[#allocation12 + $0x3c]]
    %v2006 = vstv %s2005
    %v2007 = vmul.f32 %v1996, %v2006
    %v2008 = vadd.f32 %v1993, %v2007
    %s2009 = sld [smem:[#allocation12 + $0x7]]
    %v2010 = vstv %s2009
    %v2011 = vmul.f32 %v1994, %v2010
    %v2012 = vadd.f32 %v2000, %v2011
    %s2013 = sld [smem:[#allocation12 + $0x22]]
    %v2014 = vstv %s2013
    %v2015 = vmul.f32 %v1994, %v2014
    %v2016 = vadd.f32 %v2004, %v2015
    %s2017 = sld [smem:[#allocation12 + $0x3d]]
    %v2018 = vstv %s2017
    %v2019 = vmul.f32 %v1994, %v2018
    %v2020 = vadd.f32 %v2008, %v2019
    %2021 = vrot.lane.b32.xlu0 %v1994, 127
    %v2022 = vpop.permute.xlu0 %2021
    %s2023 = sld [smem:[#allocation12 + $0x8]]
    %v2024 = vstv %s2023
    %v2025 = vmul.f32 %v2022, %v2024
    %v2026 = vadd.f32 %v2012, %v2025
    %s2027 = sld [smem:[#allocation12 + $0x23]]
    %v2028 = vstv %s2027
    %v2029 = vmul.f32 %v2022, %v2028
    %v2030 = vadd.f32 %v2016, %v2029
    %s2031 = sld [smem:[#allocation12 + $0x3e]]
    %v2032 = vstv %s2031
    %v2033 = vmul.f32 %v2022, %v2032
    %v2034 = vadd.f32 %v2020, %v2033
    %v2035 = vld [vmem:[%s111 + $0x7] sm:$0xff]
    %2036 = vrot.lane.b32.xlu0 %v2035, 1
    %v2037 = vpop.permute.xlu0 %2036
    %s2038 = sld [smem:[#allocation12 + $0x9]]
    %v2039 = vstv %s2038
    %v2040 = vmul.f32 %v2037, %v2039
    %v2041 = vadd.f32 %v2026, %v2040
    %s2042 = sld [smem:[#allocation12 + $0x24]]
    %v2043 = vstv %s2042
    %v2044 = vmul.f32 %v2037, %v2043
    %v2045 = vadd.f32 %v2030, %v2044
    %s2046 = sld [smem:[#allocation12 + $0x3f]]
    %v2047 = vstv %s2046
    %v2048 = vmul.f32 %v2037, %v2047
    %v2049 = vadd.f32 %v2034, %v2048
    %s2050 = sld [smem:[#allocation12 + $0xa]]
    %v2051 = vstv %s2050
    %v2052 = vmul.f32 %v2035, %v2051
    %v2053 = vadd.f32 %v2041, %v2052
    %s2054 = sld [smem:[#allocation12 + $0x25]]
    %v2055 = vstv %s2054
    %v2056 = vmul.f32 %v2035, %v2055
    %v2057 = vadd.f32 %v2045, %v2056
    %s2058 = sld [smem:[#allocation12 + $0x40]]
    %v2059 = vstv %s2058
    %v2060 = vmul.f32 %v2035, %v2059
    %v2061 = vadd.f32 %v2049, %v2060
    %2062 = vrot.lane.b32.xlu0 %v2035, 127
    %v2063 = vpop.permute.xlu0 %2062
    %s2064 = sld [smem:[#allocation12 + $0xb]]
    %v2065 = vstv %s2064
    %v2066 = vmul.f32 %v2063, %v2065
    %v2067 = vadd.f32 %v2053, %v2066
    %s2068 = sld [smem:[#allocation12 + $0x26]]
    %v2069 = vstv %s2068
    %v2070 = vmul.f32 %v2063, %v2069
    %v2071 = vadd.f32 %v2057, %v2070
    %s2072 = sld [smem:[#allocation12 + $0x41]]
    %v2073 = vstv %s2072
    %v2074 = vmul.f32 %v2063, %v2073
    %v2075 = vadd.f32 %v2061, %v2074
    %v2076 = vld [vmem:[%s111 + $0x8] sm:$0xff]
    %2077 = vrot.lane.b32.xlu0 %v2076, 1
    %v2078 = vpop.permute.xlu0 %2077
    %s2079 = sld [smem:[#allocation12 + $0xc]]
    %v2080 = vstv %s2079
    %v2081 = vmul.f32 %v2078, %v2080
    %v2082 = vadd.f32 %v2067, %v2081
    %s2083 = sld [smem:[#allocation12 + $0x27]]
    %v2084 = vstv %s2083
    %v2085 = vmul.f32 %v2078, %v2084
    %v2086 = vadd.f32 %v2071, %v2085
    %s2087 = sld [smem:[#allocation12 + $0x42]]
    %v2088 = vstv %s2087
    %v2089 = vmul.f32 %v2078, %v2088
    %v2090 = vadd.f32 %v2075, %v2089
    %s2091 = sld [smem:[#allocation12 + $0xd]]
    %v2092 = vstv %s2091
    %v2093 = vmul.f32 %v2076, %v2092
    %v2094 = vadd.f32 %v2082, %v2093
    %s2095 = sld [smem:[#allocation12 + $0x28]]
    %v2096 = vstv %s2095
    %v2097 = vmul.f32 %v2076, %v2096
    %v2098 = vadd.f32 %v2086, %v2097
    %s2099 = sld [smem:[#allocation12 + $0x43]]
    %v2100 = vstv %s2099
    %v2101 = vmul.f32 %v2076, %v2100
    %v2102 = vadd.f32 %v2090, %v2101
    %2103 = vrot.lane.b32.xlu0 %v2076, 127
    %v2104 = vpop.permute.xlu0 %2103
    %s2105 = sld [smem:[#allocation12 + $0xe]]
    %v2106 = vstv %s2105
    %v2107 = vmul.f32 %v2104, %v2106
    %v2108 = vadd.f32 %v2094, %v2107
    %s2109 = sld [smem:[#allocation12 + $0x29]]
    %v2110 = vstv %s2109
    %v2111 = vmul.f32 %v2104, %v2110
    %v2112 = vadd.f32 %v2098, %v2111
    %s2113 = sld [smem:[#allocation12 + $0x44]]
    %v2114 = vstv %s2113
    %v2115 = vmul.f32 %v2104, %v2114
    %v2116 = vadd.f32 %v2102, %v2115
    %v2117 = vld [vmem:[%s111 + $0x9] sm:$0xff]
    %2118 = vrot.lane.b32.xlu0 %v2117, 1
    %v2119 = vpop.permute.xlu0 %2118
    %s2120 = sld [smem:[#allocation12 + $0xf]]
    %v2121 = vstv %s2120
    %v2122 = vmul.f32 %v2119, %v2121
    %v2123 = vadd.f32 %v2108, %v2122
    %s2124 = sld [smem:[#allocation12 + $0x2a]]
    %v2125 = vstv %s2124
    %v2126 = vmul.f32 %v2119, %v2125
    %v2127 = vadd.f32 %v2112, %v2126
    %s2128 = sld [smem:[#allocation12 + $0x45]]
    %v2129 = vstv %s2128
    %v2130 = vmul.f32 %v2119, %v2129
    %v2131 = vadd.f32 %v2116, %v2130
    %s2132 = sld [smem:[#allocation12 + $0x10]]
    %v2133 = vstv %s2132
    %v2134 = vmul.f32 %v2117, %v2133
    %v2135 = vadd.f32 %v2123, %v2134
    %s2136 = sld [smem:[#allocation12 + $0x2b]]
    %v2137 = vstv %s2136
    %v2138 = vmul.f32 %v2117, %v2137
    %v2139 = vadd.f32 %v2127, %v2138
    %s2140 = sld [smem:[#allocation12 + $0x46]]
    %v2141 = vstv %s2140
    %v2142 = vmul.f32 %v2117, %v2141
    %v2143 = vadd.f32 %v2131, %v2142
    %2144 = vrot.lane.b32.xlu0 %v2117, 127
    %v2145 = vpop.permute.xlu0 %2144
    %s2146 = sld [smem:[#allocation12 + $0x11]]
    %v2147 = vstv %s2146
    %v2148 = vmul.f32 %v2145, %v2147
    %v2149 = vadd.f32 %v2135, %v2148
    %s2150 = sld [smem:[#allocation12 + $0x2c]]
    %v2151 = vstv %s2150
    %v2152 = vmul.f32 %v2145, %v2151
    %v2153 = vadd.f32 %v2139, %v2152
    %s2154 = sld [smem:[#allocation12 + $0x47]]
    %v2155 = vstv %s2154
    %v2156 = vmul.f32 %v2145, %v2155
    %v2157 = vadd.f32 %v2143, %v2156
    %v2158 = vld [vmem:[%s114 + $0x7] sm:$0xff]
    %2159 = vrot.lane.b32.xlu0 %v2158, 1
    %v2160 = vpop.permute.xlu0 %2159
    %s2161 = sld [smem:[#allocation12 + $0x12]]
    %v2162 = vstv %s2161
    %v2163 = vmul.f32 %v2160, %v2162
    %v2164 = vadd.f32 %v2149, %v2163
    %s2165 = sld [smem:[#allocation12 + $0x2d]]
    %v2166 = vstv %s2165
    %v2167 = vmul.f32 %v2160, %v2166
    %v2168 = vadd.f32 %v2153, %v2167
    %s2169 = sld [smem:[#allocation12 + $0x48]]
    %v2170 = vstv %s2169
    %v2171 = vmul.f32 %v2160, %v2170
    %v2172 = vadd.f32 %v2157, %v2171
    %s2173 = sld [smem:[#allocation12 + $0x13]]
    %v2174 = vstv %s2173
    %v2175 = vmul.f32 %v2158, %v2174
    %v2176 = vadd.f32 %v2164, %v2175
    %s2177 = sld [smem:[#allocation12 + $0x2e]]
    %v2178 = vstv %s2177
    %v2179 = vmul.f32 %v2158, %v2178
    %v2180 = vadd.f32 %v2168, %v2179
    %s2181 = sld [smem:[#allocation12 + $0x49]]
    %v2182 = vstv %s2181
    %v2183 = vmul.f32 %v2158, %v2182
    %v2184 = vadd.f32 %v2172, %v2183
    %2185 = vrot.lane.b32.xlu0 %v2158, 127
    %v2186 = vpop.permute.xlu0 %2185
    %s2187 = sld [smem:[#allocation12 + $0x14]]
    %v2188 = vstv %s2187
    %v2189 = vmul.f32 %v2186, %v2188
    %v2190 = vadd.f32 %v2176, %v2189
    %s2191 = sld [smem:[#allocation12 + $0x2f]]
    %v2192 = vstv %s2191
    %v2193 = vmul.f32 %v2186, %v2192
    %v2194 = vadd.f32 %v2180, %v2193
    %s2195 = sld [smem:[#allocation12 + $0x4a]]
    %v2196 = vstv %s2195
    %v2197 = vmul.f32 %v2186, %v2196
    %v2198 = vadd.f32 %v2184, %v2197
    %v2199 = vld [vmem:[%s114 + $0x8] sm:$0xff]
    %2200 = vrot.lane.b32.xlu0 %v2199, 1
    %v2201 = vpop.permute.xlu0 %2200
    %s2202 = sld [smem:[#allocation12 + $0x15]]
    %v2203 = vstv %s2202
    %v2204 = vmul.f32 %v2201, %v2203
    %v2205 = vadd.f32 %v2190, %v2204
    %s2206 = sld [smem:[#allocation12 + $0x30]]
    %v2207 = vstv %s2206
    %v2208 = vmul.f32 %v2201, %v2207
    %v2209 = vadd.f32 %v2194, %v2208
    %s2210 = sld [smem:[#allocation12 + $0x4b]]
    %v2211 = vstv %s2210
    %v2212 = vmul.f32 %v2201, %v2211
    %v2213 = vadd.f32 %v2198, %v2212
    %s2214 = sld [smem:[#allocation12 + $0x16]]
    %v2215 = vstv %s2214
    %v2216 = vmul.f32 %v2199, %v2215
    %v2217 = vadd.f32 %v2205, %v2216
    %s2218 = sld [smem:[#allocation12 + $0x31]]
    %v2219 = vstv %s2218
    %v2220 = vmul.f32 %v2199, %v2219
    %v2221 = vadd.f32 %v2209, %v2220
    %s2222 = sld [smem:[#allocation12 + $0x4c]]
    %v2223 = vstv %s2222
    %v2224 = vmul.f32 %v2199, %v2223
    %v2225 = vadd.f32 %v2213, %v2224
    %2226 = vrot.lane.b32.xlu0 %v2199, 127
    %v2227 = vpop.permute.xlu0 %2226
    %s2228 = sld [smem:[#allocation12 + $0x17]]
    %v2229 = vstv %s2228
    %v2230 = vmul.f32 %v2227, %v2229
    %v2231 = vadd.f32 %v2217, %v2230
    %s2232 = sld [smem:[#allocation12 + $0x32]]
    %v2233 = vstv %s2232
    %v2234 = vmul.f32 %v2227, %v2233
    %v2235 = vadd.f32 %v2221, %v2234
    %s2236 = sld [smem:[#allocation12 + $0x4d]]
    %v2237 = vstv %s2236
    %v2238 = vmul.f32 %v2227, %v2237
    %v2239 = vadd.f32 %v2225, %v2238
    %v2240 = vld [vmem:[%s114 + $0x9] sm:$0xff]
    %2241 = vrot.lane.b32.xlu0 %v2240, 1
    %v2242 = vpop.permute.xlu0 %2241
    %s2243 = sld [smem:[#allocation12 + $0x18]]
    %v2244 = vstv %s2243
    %v2245 = vmul.f32 %v2242, %v2244
    %v2246 = vadd.f32 %v2231, %v2245
    %s2247 = sld [smem:[#allocation12 + $0x33]]
    %v2248 = vstv %s2247
    %v2249 = vmul.f32 %v2242, %v2248
    %v2250 = vadd.f32 %v2235, %v2249
    %s2251 = sld [smem:[#allocation12 + $0x4e]]
    %v2252 = vstv %s2251
    %v2253 = vmul.f32 %v2242, %v2252
    %v2254 = vadd.f32 %v2239, %v2253
    %s2255 = sld [smem:[#allocation12 + $0x19]]
    %v2256 = vstv %s2255
    %v2257 = vmul.f32 %v2240, %v2256
    %v2258 = vadd.f32 %v2246, %v2257
    %s2259 = sld [smem:[#allocation12 + $0x34]]
    %v2260 = vstv %s2259
    %v2261 = vmul.f32 %v2240, %v2260
    %v2262 = vadd.f32 %v2250, %v2261
    %s2263 = sld [smem:[#allocation12 + $0x4f]]
    %v2264 = vstv %s2263
    %v2265 = vmul.f32 %v2240, %v2264
    %v2266 = vadd.f32 %v2254, %v2265
    %2267 = vrot.lane.b32.xlu0 %v2240, 127
    %v2268 = vpop.permute.xlu0 %2267
    %s2269 = sld [smem:[#allocation12 + $0x1a]]
    %v2270 = vstv %s2269
    %v2271 = vmul.f32 %v2268, %v2270
    %v2272 = vadd.f32 %v2258, %v2271
    %s2273 = sld [smem:[#allocation12 + $0x35]]
    %v2274 = vstv %s2273
    %v2275 = vmul.f32 %v2268, %v2274
    %v2276 = vadd.f32 %v2262, %v2275
    %s2277 = sld [smem:[#allocation12 + $0x50]]
    %v2278 = vstv %s2277
    %v2279 = vmul.f32 %v2268, %v2278
    %v2280 = vadd.f32 %v2266, %v2279
    %v2281 = vmax.f32 %v2272, 0.0
    %2282 = vst [vmem:[#allocation15] sm:$0xff] %v2281
    %v2283 = vmax.f32 %v2276, 0.0
    %s2284 = scalar_lea.vmem [#allocation15], 16
    %2285 = vst [vmem:[%s2284] sm:$0xff] %v2283
    %v2286 = vmax.f32 %v2280, 0.0
    %s2287 = scalar_lea.vmem [#allocation15], 32
    %2288 = vst [vmem:[%s2287] sm:$0xff] %v2286
    %s2289 = sld [smem:[#allocation13]]
    %v2290 = vstv %s2289
    %s2291 = sld [smem:[#allocation13 + $0x1]]
    %v2292 = vstv %s2291
    %s2293 = sld [smem:[#allocation13 + $0x2]]
    %v2294 = vstv %s2293
    %v2295 = vld [vmem:[#allocation3 + $0xf] sm:$0xff]
    %2296 = vrot.lane.b32.xlu0 %v2295, 1
    %v2297 = vpop.permute.xlu0 %2296
    %s2298 = sld [smem:[#allocation12]]
    %v2299 = vstv %s2298
    %v2300 = vmul.f32 %v2297, %v2299
    %v2301 = vadd.f32 %v2290, %v2300
    %s2302 = sld [smem:[#allocation12 + $0x1b]]
    %v2303 = vstv %s2302
    %v2304 = vmul.f32 %v2297, %v2303
    %v2305 = vadd.f32 %v2292, %v2304
    %s2306 = sld [smem:[#allocation12 + $0x36]]
    %v2307 = vstv %s2306
    %v2308 = vmul.f32 %v2297, %v2307
    %v2309 = vadd.f32 %v2294, %v2308
    %s2310 = sld [smem:[#allocation12 + $0x1]]
    %v2311 = vstv %s2310
    %v2312 = vmul.f32 %v2295, %v2311
    %v2313 = vadd.f32 %v2301, %v2312
    %s2314 = sld [smem:[#allocation12 + $0x1c]]
    %v2315 = vstv %s2314
    %v2316 = vmul.f32 %v2295, %v2315
    %v2317 = vadd.f32 %v2305, %v2316
    %s2318 = sld [smem:[#allocation12 + $0x37]]
    %v2319 = vstv %s2318
    %v2320 = vmul.f32 %v2295, %v2319
    %v2321 = vadd.f32 %v2309, %v2320
    %2322 = vrot.lane.b32.xlu0 %v2295, 127
    %v2323 = vpop.permute.xlu0 %2322
    %s2324 = sld [smem:[#allocation12 + $0x2]]
    %v2325 = vstv %s2324
    %v2326 = vmul.f32 %v2323, %v2325
    %v2327 = vadd.f32 %v2313, %v2326
    %s2328 = sld [smem:[#allocation12 + $0x1d]]
    %v2329 = vstv %s2328
    %v2330 = vmul.f32 %v2323, %v2329
    %v2331 = vadd.f32 %v2317, %v2330
    %s2332 = sld [smem:[#allocation12 + $0x38]]
    %v2333 = vstv %s2332
    %v2334 = vmul.f32 %v2323, %v2333
    %v2335 = vadd.f32 %v2321, %v2334
    %v2336 = vld [vmem:[#allocation3 + $0x10] sm:$0xff]
    %2337 = vrot.lane.b32.xlu0 %v2336, 1
    %v2338 = vpop.permute.xlu0 %2337
    %s2339 = sld [smem:[#allocation12 + $0x3]]
    %v2340 = vstv %s2339
    %v2341 = vmul.f32 %v2338, %v2340
    %v2342 = vadd.f32 %v2327, %v2341
    %s2343 = sld [smem:[#allocation12 + $0x1e]]
    %v2344 = vstv %s2343
    %v2345 = vmul.f32 %v2338, %v2344
    %v2346 = vadd.f32 %v2331, %v2345
    %s2347 = sld [smem:[#allocation12 + $0x39]]
    %v2348 = vstv %s2347
    %v2349 = vmul.f32 %v2338, %v2348
    %v2350 = vadd.f32 %v2335, %v2349
    %s2351 = sld [smem:[#allocation12 + $0x4]]
    %v2352 = vstv %s2351
    %v2353 = vmul.f32 %v2336, %v2352
    %v2354 = vadd.f32 %v2342, %v2353
    %s2355 = sld [smem:[#allocation12 + $0x1f]]
    %v2356 = vstv %s2355
    %v2357 = vmul.f32 %v2336, %v2356
    %v2358 = vadd.f32 %v2346, %v2357
    %s2359 = sld [smem:[#allocation12 + $0x3a]]
    %v2360 = vstv %s2359
    %v2361 = vmul.f32 %v2336, %v2360
    %v2362 = vadd.f32 %v2350, %v2361
    %2363 = vrot.lane.b32.xlu0 %v2336, 127
    %v2364 = vpop.permute.xlu0 %2363
    %s2365 = sld [smem:[#allocation12 + $0x5]]
    %v2366 = vstv %s2365
    %v2367 = vmul.f32 %v2364, %v2366
    %v2368 = vadd.f32 %v2354, %v2367
    %s2369 = sld [smem:[#allocation12 + $0x20]]
    %v2370 = vstv %s2369
    %v2371 = vmul.f32 %v2364, %v2370
    %v2372 = vadd.f32 %v2358, %v2371
    %s2373 = sld [smem:[#allocation12 + $0x3b]]
    %v2374 = vstv %s2373
    %v2375 = vmul.f32 %v2364, %v2374
    %v2376 = vadd.f32 %v2362, %v2375
    %v2377 = vld [vmem:[#allocation3 + $0x11] sm:$0xff]
    %2378 = vrot.lane.b32.xlu0 %v2377, 1
    %v2379 = vpop.permute.xlu0 %2378
    %s2380 = sld [smem:[#allocation12 + $0x6]]
    %v2381 = vstv %s2380
    %v2382 = vmul.f32 %v2379, %v2381
    %v2383 = vadd.f32 %v2368, %v2382
    %s2384 = sld [smem:[#allocation12 + $0x21]]
    %v2385 = vstv %s2384
    %v2386 = vmul.f32 %v2379, %v2385
    %v2387 = vadd.f32 %v2372, %v2386
    %s2388 = sld [smem:[#allocation12 + $0x3c]]
    %v2389 = vstv %s2388
    %v2390 = vmul.f32 %v2379, %v2389
    %v2391 = vadd.f32 %v2376, %v2390
    %s2392 = sld [smem:[#allocation12 + $0x7]]
    %v2393 = vstv %s2392
    %v2394 = vmul.f32 %v2377, %v2393
    %v2395 = vadd.f32 %v2383, %v2394
    %s2396 = sld [smem:[#allocation12 + $0x22]]
    %v2397 = vstv %s2396
    %v2398 = vmul.f32 %v2377, %v2397
    %v2399 = vadd.f32 %v2387, %v2398
    %s2400 = sld [smem:[#allocation12 + $0x3d]]
    %v2401 = vstv %s2400
    %v2402 = vmul.f32 %v2377, %v2401
    %v2403 = vadd.f32 %v2391, %v2402
    %2404 = vrot.lane.b32.xlu0 %v2377, 127
    %v2405 = vpop.permute.xlu0 %2404
    %s2406 = sld [smem:[#allocation12 + $0x8]]
    %v2407 = vstv %s2406
    %v2408 = vmul.f32 %v2405, %v2407
    %v2409 = vadd.f32 %v2395, %v2408
    %s2410 = sld [smem:[#allocation12 + $0x23]]
    %v2411 = vstv %s2410
    %v2412 = vmul.f32 %v2405, %v2411
    %v2413 = vadd.f32 %v2399, %v2412
    %s2414 = sld [smem:[#allocation12 + $0x3e]]
    %v2415 = vstv %s2414
    %v2416 = vmul.f32 %v2405, %v2415
    %v2417 = vadd.f32 %v2403, %v2416
    %v2418 = vld [vmem:[%s111 + $0xf] sm:$0xff]
    %2419 = vrot.lane.b32.xlu0 %v2418, 1
    %v2420 = vpop.permute.xlu0 %2419
    %s2421 = sld [smem:[#allocation12 + $0x9]]
    %v2422 = vstv %s2421
    %v2423 = vmul.f32 %v2420, %v2422
    %v2424 = vadd.f32 %v2409, %v2423
    %s2425 = sld [smem:[#allocation12 + $0x24]]
    %v2426 = vstv %s2425
    %v2427 = vmul.f32 %v2420, %v2426
    %v2428 = vadd.f32 %v2413, %v2427
    %s2429 = sld [smem:[#allocation12 + $0x3f]]
    %v2430 = vstv %s2429
    %v2431 = vmul.f32 %v2420, %v2430
    %v2432 = vadd.f32 %v2417, %v2431
    %s2433 = sld [smem:[#allocation12 + $0xa]]
    %v2434 = vstv %s2433
    %v2435 = vmul.f32 %v2418, %v2434
    %v2436 = vadd.f32 %v2424, %v2435
    %s2437 = sld [smem:[#allocation12 + $0x25]]
    %v2438 = vstv %s2437
    %v2439 = vmul.f32 %v2418, %v2438
    %v2440 = vadd.f32 %v2428, %v2439
    %s2441 = sld [smem:[#allocation12 + $0x40]]
    %v2442 = vstv %s2441
    %v2443 = vmul.f32 %v2418, %v2442
    %v2444 = vadd.f32 %v2432, %v2443
    %2445 = vrot.lane.b32.xlu0 %v2418, 127
    %v2446 = vpop.permute.xlu0 %2445
    %s2447 = sld [smem:[#allocation12 + $0xb]]
    %v2448 = vstv %s2447
    %v2449 = vmul.f32 %v2446, %v2448
    %v2450 = vadd.f32 %v2436, %v2449
    %s2451 = sld [smem:[#allocation12 + $0x26]]
    %v2452 = vstv %s2451
    %v2453 = vmul.f32 %v2446, %v2452
    %v2454 = vadd.f32 %v2440, %v2453
    %s2455 = sld [smem:[#allocation12 + $0x41]]
    %v2456 = vstv %s2455
    %v2457 = vmul.f32 %v2446, %v2456
    %v2458 = vadd.f32 %v2444, %v2457
    %v2459 = vld [vmem:[%s111 + $0x10] sm:$0xff]
    %2460 = vrot.lane.b32.xlu0 %v2459, 1
    %v2461 = vpop.permute.xlu0 %2460
    %s2462 = sld [smem:[#allocation12 + $0xc]]
    %v2463 = vstv %s2462
    %v2464 = vmul.f32 %v2461, %v2463
    %v2465 = vadd.f32 %v2450, %v2464
    %s2466 = sld [smem:[#allocation12 + $0x27]]
    %v2467 = vstv %s2466
    %v2468 = vmul.f32 %v2461, %v2467
    %v2469 = vadd.f32 %v2454, %v2468
    %s2470 = sld [smem:[#allocation12 + $0x42]]
    %v2471 = vstv %s2470
    %v2472 = vmul.f32 %v2461, %v2471
    %v2473 = vadd.f32 %v2458, %v2472
    %s2474 = sld [smem:[#allocation12 + $0xd]]
    %v2475 = vstv %s2474
    %v2476 = vmul.f32 %v2459, %v2475
    %v2477 = vadd.f32 %v2465, %v2476
    %s2478 = sld [smem:[#allocation12 + $0x28]]
    %v2479 = vstv %s2478
    %v2480 = vmul.f32 %v2459, %v2479
    %v2481 = vadd.f32 %v2469, %v2480
    %s2482 = sld [smem:[#allocation12 + $0x43]]
    %v2483 = vstv %s2482
    %v2484 = vmul.f32 %v2459, %v2483
    %v2485 = vadd.f32 %v2473, %v2484
    %2486 = vrot.lane.b32.xlu0 %v2459, 127
    %v2487 = vpop.permute.xlu0 %2486
    %s2488 = sld [smem:[#allocation12 + $0xe]]
    %v2489 = vstv %s2488
    %v2490 = vmul.f32 %v2487, %v2489
    %v2491 = vadd.f32 %v2477, %v2490
    %s2492 = sld [smem:[#allocation12 + $0x29]]
    %v2493 = vstv %s2492
    %v2494 = vmul.f32 %v2487, %v2493
    %v2495 = vadd.f32 %v2481, %v2494
    %s2496 = sld [smem:[#allocation12 + $0x44]]
    %v2497 = vstv %s2496
    %v2498 = vmul.f32 %v2487, %v2497
    %v2499 = vadd.f32 %v2485, %v2498
    %v2500 = vld [vmem:[%s111 + $0x11] sm:$0xff]
    %2501 = vrot.lane.b32.xlu0 %v2500, 1
    %v2502 = vpop.permute.xlu0 %2501
    %s2503 = sld [smem:[#allocation12 + $0xf]]
    %v2504 = vstv %s2503
    %v2505 = vmul.f32 %v2502, %v2504
    %v2506 = vadd.f32 %v2491, %v2505
    %s2507 = sld [smem:[#allocation12 + $0x2a]]
    %v2508 = vstv %s2507
    %v2509 = vmul.f32 %v2502, %v2508
    %v2510 = vadd.f32 %v2495, %v2509
    %s2511 = sld [smem:[#allocation12 + $0x45]]
    %v2512 = vstv %s2511
    %v2513 = vmul.f32 %v2502, %v2512
    %v2514 = vadd.f32 %v2499, %v2513
    %s2515 = sld [smem:[#allocation12 + $0x10]]
    %v2516 = vstv %s2515
    %v2517 = vmul.f32 %v2500, %v2516
    %v2518 = vadd.f32 %v2506, %v2517
    %s2519 = sld [smem:[#allocation12 + $0x2b]]
    %v2520 = vstv %s2519
    %v2521 = vmul.f32 %v2500, %v2520
    %v2522 = vadd.f32 %v2510, %v2521
    %s2523 = sld [smem:[#allocation12 + $0x46]]
    %v2524 = vstv %s2523
    %v2525 = vmul.f32 %v2500, %v2524
    %v2526 = vadd.f32 %v2514, %v2525
    %2527 = vrot.lane.b32.xlu0 %v2500, 127
    %v2528 = vpop.permute.xlu0 %2527
    %s2529 = sld [smem:[#allocation12 + $0x11]]
    %v2530 = vstv %s2529
    %v2531 = vmul.f32 %v2528, %v2530
    %v2532 = vadd.f32 %v2518, %v2531
    %s2533 = sld [smem:[#allocation12 + $0x2c]]
    %v2534 = vstv %s2533
    %v2535 = vmul.f32 %v2528, %v2534
    %v2536 = vadd.f32 %v2522, %v2535
    %s2537 = sld [smem:[#allocation12 + $0x47]]
    %v2538 = vstv %s2537
    %v2539 = vmul.f32 %v2528, %v2538
    %v2540 = vadd.f32 %v2526, %v2539
    %v2541 = vld [vmem:[%s114 + $0xf] sm:$0xff]
    %2542 = vrot.lane.b32.xlu0 %v2541, 1
    %v2543 = vpop.permute.xlu0 %2542
    %s2544 = sld [smem:[#allocation12 + $0x12]]
    %v2545 = vstv %s2544
    %v2546 = vmul.f32 %v2543, %v2545
    %v2547 = vadd.f32 %v2532, %v2546
    %s2548 = sld [smem:[#allocation12 + $0x2d]]
    %v2549 = vstv %s2548
    %v2550 = vmul.f32 %v2543, %v2549
    %v2551 = vadd.f32 %v2536, %v2550
    %s2552 = sld [smem:[#allocation12 + $0x48]]
    %v2553 = vstv %s2552
    %v2554 = vmul.f32 %v2543, %v2553
    %v2555 = vadd.f32 %v2540, %v2554
    %s2556 = sld [smem:[#allocation12 + $0x13]]
    %v2557 = vstv %s2556
    %v2558 = vmul.f32 %v2541, %v2557
    %v2559 = vadd.f32 %v2547, %v2558
    %s2560 = sld [smem:[#allocation12 + $0x2e]]
    %v2561 = vstv %s2560
    %v2562 = vmul.f32 %v2541, %v2561
    %v2563 = vadd.f32 %v2551, %v2562
    %s2564 = sld [smem:[#allocation12 + $0x49]]
    %v2565 = vstv %s2564
    %v2566 = vmul.f32 %v2541, %v2565
    %v2567 = vadd.f32 %v2555, %v2566
    %2568 = vrot.lane.b32.xlu0 %v2541, 127
    %v2569 = vpop.permute.xlu0 %2568
    %s2570 = sld [smem:[#allocation12 + $0x14]]
    %v2571 = vstv %s2570
    %v2572 = vmul.f32 %v2569, %v2571
    %v2573 = vadd.f32 %v2559, %v2572
    %s2574 = sld [smem:[#allocation12 + $0x2f]]
    %v2575 = vstv %s2574
    %v2576 = vmul.f32 %v2569, %v2575
    %v2577 = vadd.f32 %v2563, %v2576
    %s2578 = sld [smem:[#allocation12 + $0x4a]]
    %v2579 = vstv %s2578
    %v2580 = vmul.f32 %v2569, %v2579
    %v2581 = vadd.f32 %v2567, %v2580
    %v2582 = vld [vmem:[%s114 + $0x10] sm:$0xff]
    %2583 = vrot.lane.b32.xlu0 %v2582, 1
    %v2584 = vpop.permute.xlu0 %2583
    %s2585 = sld [smem:[#allocation12 + $0x15]]
    %v2586 = vstv %s2585
    %v2587 = vmul.f32 %v2584, %v2586
    %v2588 = vadd.f32 %v2573, %v2587
    %s2589 = sld [smem:[#allocation12 + $0x30]]
    %v2590 = vstv %s2589
    %v2591 = vmul.f32 %v2584, %v2590
    %v2592 = vadd.f32 %v2577, %v2591
    %s2593 = sld [smem:[#allocation12 + $0x4b]]
    %v2594 = vstv %s2593
    %v2595 = vmul.f32 %v2584, %v2594
    %v2596 = vadd.f32 %v2581, %v2595
    %s2597 = sld [smem:[#allocation12 + $0x16]]
    %v2598 = vstv %s2597
    %v2599 = vmul.f32 %v2582, %v2598
    %v2600 = vadd.f32 %v2588, %v2599
    %s2601 = sld [smem:[#allocation12 + $0x31]]
    %v2602 = vstv %s2601
    %v2603 = vmul.f32 %v2582, %v2602
    %v2604 = vadd.f32 %v2592, %v2603
    %s2605 = sld [smem:[#allocation12 + $0x4c]]
    %v2606 = vstv %s2605
    %v2607 = vmul.f32 %v2582, %v2606
    %v2608 = vadd.f32 %v2596, %v2607
    %2609 = vrot.lane.b32.xlu0 %v2582, 127
    %v2610 = vpop.permute.xlu0 %2609
    %s2611 = sld [smem:[#allocation12 + $0x17]]
    %v2612 = vstv %s2611
    %v2613 = vmul.f32 %v2610, %v2612
    %v2614 = vadd.f32 %v2600, %v2613
    %s2615 = sld [smem:[#allocation12 + $0x32]]
    %v2616 = vstv %s2615
    %v2617 = vmul.f32 %v2610, %v2616
    %v2618 = vadd.f32 %v2604, %v2617
    %s2619 = sld [smem:[#allocation12 + $0x4d]]
    %v2620 = vstv %s2619
    %v2621 = vmul.f32 %v2610, %v2620
    %v2622 = vadd.f32 %v2608, %v2621
    %v2623 = vld [vmem:[%s114 + $0x11] sm:$0xff]
    %2624 = vrot.lane.b32.xlu0 %v2623, 1
    %v2625 = vpop.permute.xlu0 %2624
    %s2626 = sld [smem:[#allocation12 + $0x18]]
    %v2627 = vstv %s2626
    %v2628 = vmul.f32 %v2625, %v2627
    %v2629 = vadd.f32 %v2614, %v2628
    %s2630 = sld [smem:[#allocation12 + $0x33]]
    %v2631 = vstv %s2630
    %v2632 = vmul.f32 %v2625, %v2631
    %v2633 = vadd.f32 %v2618, %v2632
    %s2634 = sld [smem:[#allocation12 + $0x4e]]
    %v2635 = vstv %s2634
    %v2636 = vmul.f32 %v2625, %v2635
    %v2637 = vadd.f32 %v2622, %v2636
    %s2638 = sld [smem:[#allocation12 + $0x19]]
    %v2639 = vstv %s2638
    %v2640 = vmul.f32 %v2623, %v2639
    %v2641 = vadd.f32 %v2629, %v2640
    %s2642 = sld [smem:[#allocation12 + $0x34]]
    %v2643 = vstv %s2642
    %v2644 = vmul.f32 %v2623, %v2643
    %v2645 = vadd.f32 %v2633, %v2644
    %s2646 = sld [smem:[#allocation12 + $0x4f]]
    %v2647 = vstv %s2646
    %v2648 = vmul.f32 %v2623, %v2647
    %v2649 = vadd.f32 %v2637, %v2648
    %2650 = vrot.lane.b32.xlu0 %v2623, 127
    %v2651 = vpop.permute.xlu0 %2650
    %s2652 = sld [smem:[#allocation12 + $0x1a]]
    %v2653 = vstv %s2652
    %v2654 = vmul.f32 %v2651, %v2653
    %v2655 = vadd.f32 %v2641, %v2654
    %s2656 = sld [smem:[#allocation12 + $0x35]]
    %v2657 = vstv %s2656
    %v2658 = vmul.f32 %v2651, %v2657
    %v2659 = vadd.f32 %v2645, %v2658
    %s2660 = sld [smem:[#allocation12 + $0x50]]
    %v2661 = vstv %s2660
    %v2662 = vmul.f32 %v2651, %v2661
    %v2663 = vadd.f32 %v2649, %v2662
    %v2664 = vmax.f32 %v2655, 0.0
    %2665 = vst [vmem:[#allocation15 + $0x8] sm:$0xff] %v2664
    %v2666 = vmax.f32 %v2659, 0.0
    %2667 = vst [vmem:[%s2284 + $0x8] sm:$0xff] %v2666
    %v2668 = vmax.f32 %v2663, 0.0
    %2669 = vst [vmem:[%s2287 + $0x8] sm:$0xff] %v2668
    // Predicated region
    $region58: #{tpu_custom_call.1} parent=1 // pred_check
      _
    $region59: #{tpu_custom_call.1} parent=1 // pred_check_branch
      %2671 = sbr.rel (0) target = $region61
    $region60: #{tpu_custom_call.1} parent=1 // pred_region
      %2673 = vsyncadd [#allocation5], 0
      %s2674 = sshll.u32 [#allocation15], 4
      %s2675 = int_to_ptr.vmem [resolvable:$true] %s2674
      %s2676 = sshll.u32 %s8, 4
      %s2677 = int_to_ptr.hbm [resolvable:$true] %s2676
      %2682 = dma.vmem_to_hbm [thread:$0]  %s2675, 768, %s2677, [#allocation5], 128, 128, 8
    $region61: #{tpu_custom_call.1} parent=1 // pred_fallthru
      _
    // Predicated region
    $region62: #{tpu_custom_call.1} parent=1 // pred_check
      _
    $region63: #{tpu_custom_call.1} parent=1 // pred_check_branch
      %2684 = sbr.rel (0) target = $region65
    $region64: #{tpu_custom_call.1} parent=1 // pred_region
      %2686 = dma.done [#allocation5], 768
    $region65: #{tpu_custom_call.1} parent=1 // pred_fallthru
      _
    %2687 = vsyncpa [#allocation5], 1
    %2688 = vsyncpa [#allocation6], 1
    %2689 = vsyncpa [#allocation8], 1
    %2690 = vsyncpa [#allocation11], 1
    %2691 = vsyncpa [#allocation14], 1

</llo_original>
